<compile_context>
chip_gen: v7x
topology: tpu7x:2x2x1
jax: 0.10.0
libtpu: 0.0.40
codegen_flags: <defaults>
</compile_context>

<pallas_src>
import functools

import jax
import jax.numpy as jnp
from jax.experimental import pallas as pl
from jax.experimental.pallas import tpu as pltpu


# ----------------------------------------------------------------------------
# small-vector table row layout (see init_params)
# ----------------------------------------------------------------------------
_ROW_ENC_G, _ROW_ENC_B = 0, 1          # encoder layernorm gamma / beta   (D)
_ROW_DEC_G, _ROW_DEC_B = 2, 3          # decoder layernorm gamma / beta   (D)
_ROW_TC_B1, _ROW_TC_B2 = 4, 5          # temporal-conv biases             (F),(D)
_ROW_ENC_BQKV, _ROW_DEC_BQKV = 6, 7    # fused q/k/v conv biases          (3D)
_ROW_ENC_BO, _ROW_DEC_BO = 8, 9        # attention out-proj biases        (D)
_ROW_OUT_W, _ROW_OUT_B = 10, 11        # output head weight (D), bias at [.,0]
_ROW_GAT_A = 12                        # 2 rows (a_src, a_dst) per GAT layer,
                                       # encoder layers first, then decoder


# ----------------------------------------------------------------------------
# in-kernel helpers (plain f32/bf16 values, batch dim leading)
# ----------------------------------------------------------------------------
def _softmax_rows(e):
    e = e - jnp.max(e, axis=-1, keepdims=True)
    p = jnp.exp(e)
    return p / jnp.sum(p, axis=-1, keepdims=True)


def _layernorm(x, g, b):
    mean = jnp.mean(x, axis=-1, keepdims=True)
    var = jnp.mean((x - mean) ** 2, axis=-1, keepdims=True)
    return (x - mean) * jax.lax.rsqrt(var + 1e-5) * g + b


def _mm(x3, w2):
    # (Bt, N, Din) activation (f32) x (Din, Dout) weight (bf16) -> (Bt, N, Dout)
    # f32.  Weight is broadcast over the batch so the contraction is the
    # rank-3 batched-matmul form Mosaic lowers directly; activations are cast
    # to the weight dtype only at the MXU operand, accumulation stays f32.
    bt = x3.shape[0]
    w3 = jnp.broadcast_to(w2, (bt,) + w2.shape)
    return jnp.einsum('bnd,bdk->bnk', x3.astype(w2.dtype), w3,
                      preferred_element_type=jnp.float32)


def _gat(x, w, a_src, a_dst, adj):
    # GraphAttentionLayer: h = xW ; e_ij = LeakyReLU(a_src.h_i + a_dst.h_j),
    # adjacency-masked row softmax, out = ELU(attn @ h).
    bt, n, d = x.shape
    h = _mm(x, w)                                                   # (Bt,N,D)
    e_src = jnp.sum(h * a_src, axis=-1, keepdims=True)              # (Bt,N,1)
    a_dst_b = jnp.broadcast_to(a_dst, (bt, 1, d))
    e_dst = jnp.einsum('bmd,bnd->bmn', a_dst_b, h,
                       preferred_element_type=jnp.float32)          # (Bt,1,N)
    e = e_src + e_dst                                               # (Bt,N,N)
    e = jnp.where(e > 0, e, 0.2 * e)                                # LeakyReLU(0.2)
    e = jnp.where(adj > 0, e, jnp.float32(-1e9))                    # adjacency mask
    attn = _softmax_rows(e)
    out = jnp.einsum('bij,bjd->bid', attn, h,
                     preferred_element_type=jnp.float32)
    return jnp.where(out > 0, out, jnp.exp(jnp.minimum(out, 0.0)) - 1.0)  # ELU


def _conv_same(x, w, b):
    # 'same' 1-D conv along the sequence axis, entirely in registers:
    # value-level zero padding + K sublane-shifted windows, one batched MXU
    # matmul per tap.  No VMEM scratch round-trip.
    bt, n, din = x.shape
    k, _, dout = w.shape
    pad = k // 2
    zpad = jnp.zeros((bt, pad, din), jnp.float32)
    xp = jnp.concatenate([zpad, x, zpad], axis=1)       # (Bt, N + 2*pad, Din)
    acc = jnp.zeros((bt, n, dout), jnp.float32) + b
    for t in range(k):                                  # static unroll
        acc = acc + _mm(xp[:, t:t + n, :], w[t])
    return acc


def _st_attention(x, wqkv, bqkv, wo, bo):
    # SpatioTemporalAttention: fused q/k/v conv projection (single conv with a
    # (ks, D, 3D) weight), scaled dot-product attention over the sequence,
    # linear out-proj, residual.
    bt, n, d = x.shape
    qkv = _conv_same(x, wqkv, bqkv)                     # (Bt, N, 3D)
    q = qkv[..., :d]
    k = qkv[..., d:2 * d]
    v = qkv[..., 2 * d:]
    scores = jnp.einsum('bqd,bkd->bqk', q, k,
                        preferred_element_type=jnp.float32) * (1.0 / d ** 0.5)
    attn = _softmax_rows(scores)
    ctx = jnp.einsum('bqk,bkd->bqd', attn, v, preferred_element_type=jnp.float32)
    return x + _mm(ctx, wo) + bo


# ----------------------------------------------------------------------------
# fused forward kernel: one grid step = `batch_tile` batch elements, full net
# ----------------------------------------------------------------------------
def _fused_forward_kernel(x_ref, adj_ref, gmats_ref, vecs_ref, convw_ref, o_ref,
                          *, num_enc, num_dec, dim_ff, ks):
    f32 = jnp.float32
    x = x_ref[...].astype(f32)                     # (Bt, S, D)
    bt, s, d = x.shape
    n_enc = s - 1
    f = dim_ff

    adj = adj_ref[...].astype(f32)                 # (S, S)
    vecs = vecs_ref[...].astype(f32)               # (R, max(F,3D)) vector table

    # conv-weight slab column offsets: [tc_w1 | tc_w2 | enc_wqkv | dec_wqkv]
    off_tc2 = f
    off_eqkv = f + d
    off_dqkv = f + 4 * d

    x_enc = x[:, :n_enc, :]                        # (Bt, S-1, D)
    x_static = x[:, n_enc:, :]                     # (Bt, 1, D)

    # ------------------------------ encoder ------------------------------
    adj_e = adj[:n_enc, :n_enc]
    for l in range(num_enc):
        r = _ROW_GAT_A + 2 * l
        x_enc = _gat(x_enc, gmats_ref[l],
                     vecs[r:r + 1, :d], vecs[r + 1:r + 2, :d], adj_e)

    x_enc = _layernorm(x_enc, vecs[_ROW_ENC_G:_ROW_ENC_G + 1, :d],
                       vecs[_ROW_ENC_B:_ROW_ENC_B + 1, :d])

    # temporal convolution block: conv(D->F,3) + ReLU + conv(F->D,3) + residual
    w1 = convw_ref[0:3, 0:d, 0:f]                              # bf16 (3,D,F)
    w2 = convw_ref[0:3, 0:f, off_tc2:off_tc2 + d]              # bf16 (3,F,D)
    h = _conv_same(x_enc, w1, vecs[_ROW_TC_B1:_ROW_TC_B1 + 1, :f])
    h = jnp.maximum(h, 0.0)
    x_enc = x_enc + _conv_same(h, w2, vecs[_ROW_TC_B2:_ROW_TC_B2 + 1, :d])

    # encoder spatio-temporal attention (residual inside); dropout = identity
    x_enc = _st_attention(
        x_enc,
        convw_ref[0:ks, 0:d, off_eqkv:off_eqkv + 3 * d],
        vecs[_ROW_ENC_BQKV:_ROW_ENC_BQKV + 1, :3 * d],
        gmats_ref[num_enc + num_dec],
        vecs[_ROW_ENC_BO:_ROW_ENC_BO + 1, :d])

    # ------------------------------ decoder ------------------------------
    x_dec = jnp.concatenate([x_static, x_enc], axis=1)         # (Bt, S, D)

    for l in range(num_dec):
        r = _ROW_GAT_A + 2 * (num_enc + l)
        x_dec = _gat(x_dec, gmats_ref[num_enc + l],
                     vecs[r:r + 1, :d], vecs[r + 1:r + 2, :d], adj)

    x_dec = _layernorm(x_dec, vecs[_ROW_DEC_G:_ROW_DEC_G + 1, :d],
                       vecs[_ROW_DEC_B:_ROW_DEC_B + 1, :d])
    x_dec = _st_attention(
        x_dec,
        convw_ref[0:ks, 0:d, off_dqkv:off_dqkv + 3 * d],
        vecs[_ROW_DEC_BQKV:_ROW_DEC_BQKV + 1, :3 * d],
        gmats_ref[num_enc + num_dec + 1],
        vecs[_ROW_DEC_BO:_ROW_DEC_BO + 1, :d])

    # ---------------------- output head (lane-dense store) ----------------------
    bt_ = x_dec.shape[0]
    w_out = jnp.broadcast_to(vecs[_ROW_OUT_W:_ROW_OUT_W + 1, :d], (bt_, 1, d))
    y = jnp.einsum('bmd,bnd->bmn', w_out, x_dec,
                   preferred_element_type=f32)                 # (Bt, 1, S)
    y = y + vecs[_ROW_OUT_B:_ROW_OUT_B + 1, 0:1]
    o_ref[...] = y.astype(o_ref.dtype)


# ----------------------------------------------------------------------------
# wrapper
# ----------------------------------------------------------------------------
def stf_informer_stack_forward(params, x, *, num_encoder_layers,
                               num_decoder_layers, dim_feedforward,
                               kernel_size=3, batch_tile=None):
    b, s, d = x.shape
    if batch_tile is None:
        # Batch several elements per grid step to amortize per-step overhead,
        # while keeping >=2 "parallel" grid steps when possible so v7x's two
        # TensorCores both get work (v5e/v6e have a single TC: the grid is a
        # serial loop there, so batching matters most).
        batch_tile = b if b <= 2 else max(1, b // 2)
        while b % batch_tile:
            batch_tile -= 1
    assert b % batch_tile == 0, (b, batch_tile)
    grid_b = b // batch_tile

    kernel = functools.partial(_fused_forward_kernel,
                               num_enc=num_encoder_layers,
                               num_dec=num_decoder_layers,
                               dim_ff=dim_feedforward,
                               ks=kernel_size)

    adj = params["adj"]
    gmats = params["gmats"]
    vecs = params["vecs"]
    convw = params["convw"]

    out = pl.pallas_call(
        kernel,
        out_shape=jax.ShapeDtypeStruct((b, 1, s), x.dtype),
        grid=(grid_b,),
        in_specs=[
            pl.BlockSpec((batch_tile, s, d), lambda i: (i, 0, 0)),
            pl.BlockSpec(adj.shape, lambda i: (0, 0)),
            pl.BlockSpec(gmats.shape, lambda i: (0, 0, 0)),
            pl.BlockSpec(vecs.shape, lambda i: (0, 0)),
            pl.BlockSpec(convw.shape, lambda i: (0, 0, 0)),
        ],
        out_specs=pl.BlockSpec((batch_tile, 1, s), lambda i: (i, 0, 0)),
        compiler_params=pltpu.CompilerParams(
            dimension_semantics=("parallel",)),
    )(x, adj, gmats, vecs, convw)
    return out.reshape(b, s)


# ----------------------------------------------------------------------------
# parameter construction (deterministic, synthetic) + packing
# ----------------------------------------------------------------------------
def init_params(key, d_model, dim_ff, ks, num_enc, num_dec, seq_len):
    def nrm(k, shape, scale=0.1):
        return (scale * jax.random.normal(k, shape)).astype(jnp.float32)

    keys = iter(jax.random.split(key, 128))
    D, F = d_model, dim_ff
    n_layers = num_enc + num_dec

    # --- matrix slab: GAT weights (enc then dec) + enc/dec attn out-proj, bf16
    gat_w = [nrm(next(keys), (D, D)) for _ in range(n_layers)]
    enc_wo = nrm(next(keys), (D, D))
    dec_wo = nrm(next(keys), (D, D))
    gmats = jnp.stack(gat_w + [enc_wo, dec_wo]).astype(jnp.bfloat16)

    # --- conv-weight slab: (K_max, max(D,F), F + D + 3D + 3D), bf16
    k_max = max(3, ks)
    din_max = max(D, F)
    dout_sum = F + D + 6 * D
    slab = jnp.zeros((k_max, din_max, dout_sum), jnp.float32)

    def put(s_, w_, col):
        k_, din_, dout_ = w_.shape
        return s_.at[:k_, :din_, col:col + dout_].set(w_)

    tc_w1 = nrm(next(keys), (3, D, F))
    tc_w2 = nrm(next(keys), (3, F, D))

    def qkv_w():
        return jnp.concatenate(
            [nrm(next(keys), (ks, D, D)) for _ in range(3)], axis=-1)

    enc_wqkv = qkv_w()
    dec_wqkv = qkv_w()
    slab = put(slab, tc_w1, 0)
    slab = put(slab, tc_w2, F)
    slab = put(slab, enc_wqkv, F + D)
    slab = put(slab, dec_wqkv, F + 4 * D)
    convw = slab.astype(jnp.bfloat16)

    # --- small-vector table, f32, width max(F, 3D)
    vw = max(F, 3 * D)
    rows = _ROW_GAT_A + 2 * n_layers
    rows_pad = ((rows + 7) // 8) * 8
    vecs = jnp.zeros((rows_pad, vw), jnp.float32)

    def set_row(v, r, val):
        val = val.reshape(-1)
        return v.at[r, :val.shape[0]].set(val)

    vecs = set_row(vecs, _ROW_ENC_G, jnp.ones((D,), jnp.float32))
    vecs = set_row(vecs, _ROW_DEC_G, jnp.ones((D,), jnp.float32))
    # betas / conv biases / attn biases / out bias stay zero
    vecs = set_row(vecs, _ROW_OUT_W, nrm(next(keys), (D,)))
    for l in range(n_layers):
        r = _ROW_GAT_A + 2 * l
        vecs = set_row(vecs, r, nrm(next(keys), (D,)))        # a_src
        vecs = set_row(vecs, r + 1, nrm(next(keys), (D,)))    # a_dst

    # band adjacency over the full (decoder) sequence; sliced for the encoder
    idx = jnp.arange(seq_len)
    adj = (jnp.abs(idx[:, None] - idx[None, :]) <= 2).astype(jnp.float32)

    return {
        "adj": adj, "gmats": gmats, "convw": convw, "vecs": vecs,
        # declared by the torch module but unused in its forward
        "static_node_emb": nrm(next(keys), (seq_len, D)),
    }


# ----------------------------------------------------------------------------
if __name__ == "__main__":
    B, S, D = 8, 8, 32
    dim_ff = 64
    nhead = 4                       # stored by the torch module, unused in forward
    num_enc, num_dec = 2, 2
    ks = 3                          # spatio_temporal_kernel_size

    key = jax.random.PRNGKey(0)
    kx, kp = jax.random.split(key)
    x = jax.random.normal(kx, (B, S, D), dtype=jnp.float32)
    params = init_params(kp, D, dim_ff, ks, num_enc, num_dec, S)

    fwd = jax.jit(functools.partial(
        stf_informer_stack_forward,
        num_encoder_layers=num_enc,
        num_decoder_layers=num_dec,
        dim_feedforward=dim_ff,
        kernel_size=ks))

    out = jax.block_until_ready(fwd(params, x))
    assert out.shape == (B, S), out.shape
    print("KERNEL_OK")
</pallas_src>

<mosaic_0001>
module attributes {stable_mosaic.version = 11 : i64} {
  func.func @_fused_forward_kernel(%arg0: i32, %arg1: memref<4x8x32xf32, #tpu.memory_space<vmem>>, %arg2: memref<8x8xf32, #tpu.memory_space<vmem>>, %arg3: memref<6x32x32xbf16, #tpu.memory_space<vmem>>, %arg4: memref<24x96xf32, #tpu.memory_space<vmem>>, %arg5: memref<3x64x288xbf16, #tpu.memory_space<vmem>>, %arg6: memref<4x1x8xf32, #tpu.memory_space<vmem>>) attributes {dimension_semantics = [#tpu.dimension_semantics<parallel>], iteration_bounds = array<i64: 2>, scalar_prefetch = 0 : i64, scratch_operands = 0 : i64, tpu.core_type = #tpu.core_type<tc>, window_params = [{transform_indices = @transform_0, window_bounds = array<i64: 4, 8, 32>}, {pipeline_mode = #tpu.pipeline_mode<synchronous>, transform_indices = @transform_1, window_bounds = array<i64: 8, 8>}, {pipeline_mode = #tpu.pipeline_mode<synchronous>, transform_indices = @transform_2, window_bounds = array<i64: 6, 32, 32>}, {pipeline_mode = #tpu.pipeline_mode<synchronous>, transform_indices = @transform_3, window_bounds = array<i64: 24, 96>}, {pipeline_mode = #tpu.pipeline_mode<synchronous>, transform_indices = @transform_4, window_bounds = array<i64: 3, 64, 288>}, {transform_indices = @transform_5, window_bounds = array<i64: 4, 1, 8>}]} {
    %c0 = arith.constant 0 : index
    %c0_0 = arith.constant 0 : index
    %c0_1 = arith.constant 0 : index
    %0 = vector.load %arg1[%c0, %c0_0, %c0_1] : memref<4x8x32xf32, #tpu.memory_space<vmem>>, vector<4x8x32xf32>
    %c0_2 = arith.constant 0 : index
    %c0_3 = arith.constant 0 : index
    %1 = vector.load %arg2[%c0_2, %c0_3] : memref<8x8xf32, #tpu.memory_space<vmem>>, vector<8x8xf32>
    %c0_4 = arith.constant 0 : index
    %c0_5 = arith.constant 0 : index
    %2 = vector.load %arg4[%c0_4, %c0_5] : memref<24x96xf32, #tpu.memory_space<vmem>>, vector<24x96xf32>
    %3 = vector.extract_strided_slice %0 {offsets = [0, 0, 0], sizes = [4, 7, 32], strides = [1, 1, 1]} : vector<4x8x32xf32> to vector<4x7x32xf32>
    %4 = vector.extract_strided_slice %0 {offsets = [0, 7, 0], sizes = [4, 1, 32], strides = [1, 1, 1]} : vector<4x8x32xf32> to vector<4x1x32xf32>
    %5 = vector.extract_strided_slice %1 {offsets = [0, 0], sizes = [7, 7], strides = [1, 1]} : vector<8x8xf32> to vector<7x7xf32>
    %c0_6 = arith.constant 0 : index
    %c0_7 = arith.constant 0 : index
    %c0_8 = arith.constant 0 : index
    %6 = vector.load %arg3[%c0_6, %c0_7, %c0_8] : memref<6x32x32xbf16, #tpu.memory_space<vmem>>, vector<1x32x32xbf16>
    %7 = vector.shape_cast %6 : vector<1x32x32xbf16> to vector<32x32xbf16>
    %8 = vector.extract_strided_slice %2 {offsets = [12, 0], sizes = [1, 32], strides = [1, 1]} : vector<24x96xf32> to vector<1x32xf32>
    %9 = vector.extract_strided_slice %2 {offsets = [13, 0], sizes = [1, 32], strides = [1, 1]} : vector<24x96xf32> to vector<1x32xf32>
    %10 = vector.shape_cast %7 : vector<32x32xbf16> to vector<1x32x32xbf16>
    %11 = vector.broadcast %10 : vector<1x32x32xbf16> to vector<4x32x32xbf16>
    %12 = arith.truncf %3 : vector<4x7x32xf32> to vector<4x7x32xbf16>
    "tpu.trace_start"() <{level = 10 : i32, message = "bnd,bdk->bnk"}> : () -> ()
    %cst = arith.constant dense<0.000000e+00> : vector<4x7x32xf32>
    %13 = tpu.matmul %12, %11, %cst {dimension_numbers = #tpu.dot_dimension_numbers<[2], [1], [1], [2], [0, 0, 0, 1, 1, 2], [0], [0]>} : vector<4x7x32xbf16>, vector<4x32x32xbf16>, vector<4x7x32xf32> -> vector<4x7x32xf32>
    "tpu.trace_stop"() : () -> ()
    %14 = vector.shape_cast %8 : vector<1x32xf32> to vector<1x1x32xf32>
    %15 = vector.broadcast %14 : vector<1x1x32xf32> to vector<4x7x32xf32>
    %16 = arith.mulf %13, %15 : vector<4x7x32xf32>
    %cst_9 = arith.constant dense<0.000000e+00> : vector<4x7xf32>
    %17 = vector.multi_reduction <add>, %16, %cst_9 [2] : vector<4x7x32xf32> to vector<4x7xf32>
    %18 = vector.shape_cast %17 : vector<4x7xf32> to vector<4x7x1xf32>
    %19 = vector.shape_cast %9 : vector<1x32xf32> to vector<1x1x32xf32>
    %20 = vector.broadcast %19 : vector<1x1x32xf32> to vector<4x1x32xf32>
    "tpu.trace_start"() <{level = 10 : i32, message = "bmd,bnd->bmn"}> : () -> ()
    %cst_10 = arith.constant dense<0.000000e+00> : vector<4x1x7xf32>
    %21 = tpu.matmul %20, %13, %cst_10 {dimension_numbers = #tpu.dot_dimension_numbers<[2], [2], [1], [1], [0, 0, 0, 1, 1, 1], [0], [0]>} : vector<4x1x32xf32>, vector<4x7x32xf32>, vector<4x1x7xf32> -> vector<4x1x7xf32>
    "tpu.trace_stop"() : () -> ()
    %22 = vector.broadcast %18 : vector<4x7x1xf32> to vector<4x7x7xf32>
    %23 = vector.broadcast %21 : vector<4x1x7xf32> to vector<4x7x7xf32>
    %24 = arith.addf %22, %23 : vector<4x7x7xf32>
    %cst_11 = arith.constant 0.000000e+00 : f32
    %25 = vector.broadcast %cst_11 : f32 to vector<4x7x7xf32>
    %26 = arith.cmpf ogt, %24, %25 : vector<4x7x7xf32>
    %cst_12 = arith.constant 2.000000e-01 : f32
    %27 = vector.broadcast %cst_12 : f32 to vector<4x7x7xf32>
    %28 = arith.mulf %27, %24 : vector<4x7x7xf32>
    %29 = arith.select %26, %24, %28 : vector<4x7x7xi1>, vector<4x7x7xf32>
    %cst_13 = arith.constant 0.000000e+00 : f32
    %30 = vector.broadcast %cst_13 : f32 to vector<7x7xf32>
    %31 = arith.cmpf ogt, %5, %30 : vector<7x7xf32>
    %cst_14 = arith.constant -1.000000e+09 : f32
    %32 = vector.shape_cast %31 : vector<7x7xi1> to vector<1x7x7xi1>
    %33 = vector.broadcast %32 : vector<1x7x7xi1> to vector<4x7x7xi1>
    %34 = vector.broadcast %cst_14 : f32 to vector<4x7x7xf32>
    %35 = arith.select %33, %29, %34 : vector<4x7x7xi1>, vector<4x7x7xf32>
    %cst_15 = arith.constant dense<0xFF800000> : vector<4x7xf32>
    %36 = vector.multi_reduction <maximumf>, %35, %cst_15 [2] : vector<4x7x7xf32> to vector<4x7xf32>
    %37 = vector.shape_cast %36 : vector<4x7xf32> to vector<4x7x1xf32>
    %38 = vector.broadcast %37 : vector<4x7x1xf32> to vector<4x7x7xf32>
    %39 = arith.subf %35, %38 : vector<4x7x7xf32>
    %40 = math.exp %39 : vector<4x7x7xf32>
    %cst_16 = arith.constant dense<0.000000e+00> : vector<4x7xf32>
    %41 = vector.multi_reduction <add>, %40, %cst_16 [2] : vector<4x7x7xf32> to vector<4x7xf32>
    %42 = vector.shape_cast %41 : vector<4x7xf32> to vector<4x7x1xf32>
    %43 = vector.broadcast %42 : vector<4x7x1xf32> to vector<4x7x7xf32>
    %44 = arith.divf %40, %43 : vector<4x7x7xf32>
    "tpu.trace_start"() <{level = 10 : i32, message = "bij,bjd->bid"}> : () -> ()
    %cst_17 = arith.constant dense<0.000000e+00> : vector<4x7x32xf32>
    %45 = tpu.matmul %44, %13, %cst_17 {dimension_numbers = #tpu.dot_dimension_numbers<[2], [1], [1], [2], [0, 0, 0, 1, 1, 2], [0], [0]>} : vector<4x7x7xf32>, vector<4x7x32xf32>, vector<4x7x32xf32> -> vector<4x7x32xf32>
    %cst_18 = arith.constant 0.000000e+00 : f32
    "tpu.trace_stop"() : () -> ()
    %46 = vector.broadcast %cst_18 : f32 to vector<4x7x32xf32>
    %47 = arith.cmpf ogt, %45, %46 : vector<4x7x32xf32>
    %cst_19 = arith.constant 0.000000e+00 : f32
    %48 = vector.broadcast %cst_19 : f32 to vector<4x7x32xf32>
    %49 = arith.minimumf %45, %48 : vector<4x7x32xf32>
    %50 = math.exp %49 : vector<4x7x32xf32>
    %cst_20 = arith.constant 1.000000e+00 : f32
    %51 = vector.broadcast %cst_20 : f32 to vector<4x7x32xf32>
    %52 = arith.subf %50, %51 : vector<4x7x32xf32>
    %53 = arith.select %47, %45, %52 : vector<4x7x32xi1>, vector<4x7x32xf32>
    %c1 = arith.constant 1 : index
    %c0_21 = arith.constant 0 : index
    %c0_22 = arith.constant 0 : index
    %54 = vector.load %arg3[%c1, %c0_21, %c0_22] : memref<6x32x32xbf16, #tpu.memory_space<vmem>>, vector<1x32x32xbf16>
    %55 = vector.shape_cast %54 : vector<1x32x32xbf16> to vector<32x32xbf16>
    %56 = vector.extract_strided_slice %2 {offsets = [14, 0], sizes = [1, 32], strides = [1, 1]} : vector<24x96xf32> to vector<1x32xf32>
    %57 = vector.extract_strided_slice %2 {offsets = [15, 0], sizes = [1, 32], strides = [1, 1]} : vector<24x96xf32> to vector<1x32xf32>
    %58 = vector.shape_cast %55 : vector<32x32xbf16> to vector<1x32x32xbf16>
    %59 = vector.broadcast %58 : vector<1x32x32xbf16> to vector<4x32x32xbf16>
    %60 = arith.truncf %53 : vector<4x7x32xf32> to vector<4x7x32xbf16>
    "tpu.trace_start"() <{level = 10 : i32, message = "bnd,bdk->bnk"}> : () -> ()
    %cst_23 = arith.constant dense<0.000000e+00> : vector<4x7x32xf32>
    %61 = tpu.matmul %60, %59, %cst_23 {dimension_numbers = #tpu.dot_dimension_numbers<[2], [1], [1], [2], [0, 0, 0, 1, 1, 2], [0], [0]>} : vector<4x7x32xbf16>, vector<4x32x32xbf16>, vector<4x7x32xf32> -> vector<4x7x32xf32>
    "tpu.trace_stop"() : () -> ()
    %62 = vector.shape_cast %56 : vector<1x32xf32> to vector<1x1x32xf32>
    %63 = vector.broadcast %62 : vector<1x1x32xf32> to vector<4x7x32xf32>
    %64 = arith.mulf %61, %63 : vector<4x7x32xf32>
    %cst_24 = arith.constant dense<0.000000e+00> : vector<4x7xf32>
    %65 = vector.multi_reduction <add>, %64, %cst_24 [2] : vector<4x7x32xf32> to vector<4x7xf32>
    %66 = vector.shape_cast %65 : vector<4x7xf32> to vector<4x7x1xf32>
    %67 = vector.shape_cast %57 : vector<1x32xf32> to vector<1x1x32xf32>
    %68 = vector.broadcast %67 : vector<1x1x32xf32> to vector<4x1x32xf32>
    "tpu.trace_start"() <{level = 10 : i32, message = "bmd,bnd->bmn"}> : () -> ()
    %cst_25 = arith.constant dense<0.000000e+00> : vector<4x1x7xf32>
    %69 = tpu.matmul %68, %61, %cst_25 {dimension_numbers = #tpu.dot_dimension_numbers<[2], [2], [1], [1], [0, 0, 0, 1, 1, 1], [0], [0]>} : vector<4x1x32xf32>, vector<4x7x32xf32>, vector<4x1x7xf32> -> vector<4x1x7xf32>
    "tpu.trace_stop"() : () -> ()
    %70 = vector.broadcast %66 : vector<4x7x1xf32> to vector<4x7x7xf32>
    %71 = vector.broadcast %69 : vector<4x1x7xf32> to vector<4x7x7xf32>
    %72 = arith.addf %70, %71 : vector<4x7x7xf32>
    %cst_26 = arith.constant 0.000000e+00 : f32
    %73 = vector.broadcast %cst_26 : f32 to vector<4x7x7xf32>
    %74 = arith.cmpf ogt, %72, %73 : vector<4x7x7xf32>
    %cst_27 = arith.constant 2.000000e-01 : f32
    %75 = vector.broadcast %cst_27 : f32 to vector<4x7x7xf32>
    %76 = arith.mulf %75, %72 : vector<4x7x7xf32>
    %77 = arith.select %74, %72, %76 : vector<4x7x7xi1>, vector<4x7x7xf32>
    %cst_28 = arith.constant 0.000000e+00 : f32
    %78 = vector.broadcast %cst_28 : f32 to vector<7x7xf32>
    %79 = arith.cmpf ogt, %5, %78 : vector<7x7xf32>
    %cst_29 = arith.constant -1.000000e+09 : f32
    %80 = vector.shape_cast %79 : vector<7x7xi1> to vector<1x7x7xi1>
    %81 = vector.broadcast %80 : vector<1x7x7xi1> to vector<4x7x7xi1>
    %82 = vector.broadcast %cst_29 : f32 to vector<4x7x7xf32>
    %83 = arith.select %81, %77, %82 : vector<4x7x7xi1>, vector<4x7x7xf32>
    %cst_30 = arith.constant dense<0xFF800000> : vector<4x7xf32>
    %84 = vector.multi_reduction <maximumf>, %83, %cst_30 [2] : vector<4x7x7xf32> to vector<4x7xf32>
    %85 = vector.shape_cast %84 : vector<4x7xf32> to vector<4x7x1xf32>
    %86 = vector.broadcast %85 : vector<4x7x1xf32> to vector<4x7x7xf32>
    %87 = arith.subf %83, %86 : vector<4x7x7xf32>
    %88 = math.exp %87 : vector<4x7x7xf32>
    %cst_31 = arith.constant dense<0.000000e+00> : vector<4x7xf32>
    %89 = vector.multi_reduction <add>, %88, %cst_31 [2] : vector<4x7x7xf32> to vector<4x7xf32>
    %90 = vector.shape_cast %89 : vector<4x7xf32> to vector<4x7x1xf32>
    %91 = vector.broadcast %90 : vector<4x7x1xf32> to vector<4x7x7xf32>
    %92 = arith.divf %88, %91 : vector<4x7x7xf32>
    "tpu.trace_start"() <{level = 10 : i32, message = "bij,bjd->bid"}> : () -> ()
    %cst_32 = arith.constant dense<0.000000e+00> : vector<4x7x32xf32>
    %93 = tpu.matmul %92, %61, %cst_32 {dimension_numbers = #tpu.dot_dimension_numbers<[2], [1], [1], [2], [0, 0, 0, 1, 1, 2], [0], [0]>} : vector<4x7x7xf32>, vector<4x7x32xf32>, vector<4x7x32xf32> -> vector<4x7x32xf32>
    %cst_33 = arith.constant 0.000000e+00 : f32
    "tpu.trace_stop"() : () -> ()
    %94 = vector.broadcast %cst_33 : f32 to vector<4x7x32xf32>
    %95 = arith.cmpf ogt, %93, %94 : vector<4x7x32xf32>
    %cst_34 = arith.constant 0.000000e+00 : f32
    %96 = vector.broadcast %cst_34 : f32 to vector<4x7x32xf32>
    %97 = arith.minimumf %93, %96 : vector<4x7x32xf32>
    %98 = math.exp %97 : vector<4x7x32xf32>
    %cst_35 = arith.constant 1.000000e+00 : f32
    %99 = vector.broadcast %cst_35 : f32 to vector<4x7x32xf32>
    %100 = arith.subf %98, %99 : vector<4x7x32xf32>
    %101 = arith.select %95, %93, %100 : vector<4x7x32xi1>, vector<4x7x32xf32>
    %102 = vector.extract_strided_slice %2 {offsets = [0, 0], sizes = [1, 32], strides = [1, 1]} : vector<24x96xf32> to vector<1x32xf32>
    %103 = vector.extract_strided_slice %2 {offsets = [1, 0], sizes = [1, 32], strides = [1, 1]} : vector<24x96xf32> to vector<1x32xf32>
    %cst_36 = arith.constant dense<0.000000e+00> : vector<4x7xf32>
    %104 = vector.multi_reduction <add>, %101, %cst_36 [2] : vector<4x7x32xf32> to vector<4x7xf32>
    %105 = vector.shape_cast %104 : vector<4x7xf32> to vector<4x7x1xf32>
    %cst_37 = arith.constant 3.200000e+01 : f32
    %106 = vector.broadcast %cst_37 : f32 to vector<4x7x1xf32>
    %107 = arith.divf %105, %106 : vector<4x7x1xf32>
    %108 = vector.broadcast %107 : vector<4x7x1xf32> to vector<4x7x32xf32>
    %109 = arith.subf %101, %108 : vector<4x7x32xf32>
    %110 = arith.mulf %109, %109 : vector<4x7x32xf32>
    %cst_38 = arith.constant dense<0.000000e+00> : vector<4x7xf32>
    %111 = vector.multi_reduction <add>, %110, %cst_38 [2] : vector<4x7x32xf32> to vector<4x7xf32>
    %112 = vector.shape_cast %111 : vector<4x7xf32> to vector<4x7x1xf32>
    %cst_39 = arith.constant 3.200000e+01 : f32
    %113 = vector.broadcast %cst_39 : f32 to vector<4x7x1xf32>
    %114 = arith.divf %112, %113 : vector<4x7x1xf32>
    %115 = vector.broadcast %107 : vector<4x7x1xf32> to vector<4x7x32xf32>
    %116 = arith.subf %101, %115 : vector<4x7x32xf32>
    %cst_40 = arith.constant 9.99999974E-6 : f32
    %117 = vector.broadcast %cst_40 : f32 to vector<4x7x1xf32>
    %118 = arith.addf %114, %117 : vector<4x7x1xf32>
    %119 = math.rsqrt %118 : vector<4x7x1xf32>
    %120 = vector.broadcast %119 : vector<4x7x1xf32> to vector<4x7x32xf32>
    %121 = arith.mulf %116, %120 : vector<4x7x32xf32>
    %122 = vector.shape_cast %102 : vector<1x32xf32> to vector<1x1x32xf32>
    %123 = vector.broadcast %122 : vector<1x1x32xf32> to vector<4x7x32xf32>
    %124 = arith.mulf %121, %123 : vector<4x7x32xf32>
    %125 = vector.shape_cast %103 : vector<1x32xf32> to vector<1x1x32xf32>
    %126 = vector.broadcast %125 : vector<1x1x32xf32> to vector<4x7x32xf32>
    %127 = arith.addf %124, %126 : vector<4x7x32xf32>
    %c0_41 = arith.constant 0 : index
    %c0_42 = arith.constant 0 : index
    %c0_43 = arith.constant 0 : index
    %128 = vector.load %arg5[%c0_41, %c0_42, %c0_43] : memref<3x64x288xbf16, #tpu.memory_space<vmem>>, vector<3x32x64xbf16>
    %c0_44 = arith.constant 0 : index
    %c0_45 = arith.constant 0 : index
    %c64 = arith.constant 64 : index
    %129 = vector.load %arg5[%c0_44, %c0_45, %c64] : memref<3x64x288xbf16, #tpu.memory_space<vmem>>, vector<3x64x32xbf16>
    %130 = vector.extract_strided_slice %2 {offsets = [4, 0], sizes = [1, 64], strides = [1, 1]} : vector<24x96xf32> to vector<1x64xf32>
    %cst_46 = arith.constant 0.000000e+00 : f32
    %131 = vector.broadcast %cst_46 : f32 to vector<4x1x32xf32>
    %132 = tpu.concatenate %131, %127, %131 in 1 : vector<4x1x32xf32>, vector<4x7x32xf32>, vector<4x1x32xf32> -> vector<4x9x32xf32>
    %cst_47 = arith.constant 0.000000e+00 : f32
    %133 = vector.broadcast %cst_47 : f32 to vector<4x7x64xf32>
    %134 = vector.shape_cast %130 : vector<1x64xf32> to vector<1x1x64xf32>
    %135 = vector.broadcast %134 : vector<1x1x64xf32> to vector<4x7x64xf32>
    %136 = arith.addf %133, %135 : vector<4x7x64xf32>
    %137 = vector.extract_strided_slice %132 {offsets = [0, 0, 0], sizes = [4, 7, 32], strides = [1, 1, 1]} : vector<4x9x32xf32> to vector<4x7x32xf32>
    %138 = vector.extract_strided_slice %128 {offsets = [0, 0, 0], sizes = [1, 32, 64], strides = [1, 1, 1]} : vector<3x32x64xbf16> to vector<1x32x64xbf16>
    %139 = vector.shape_cast %138 : vector<1x32x64xbf16> to vector<32x64xbf16>
    %140 = vector.shape_cast %139 : vector<32x64xbf16> to vector<1x32x64xbf16>
    %141 = vector.broadcast %140 : vector<1x32x64xbf16> to vector<4x32x64xbf16>
    %142 = arith.truncf %137 : vector<4x7x32xf32> to vector<4x7x32xbf16>
    "tpu.trace_start"() <{level = 10 : i32, message = "bnd,bdk->bnk"}> : () -> ()
    %cst_48 = arith.constant dense<0.000000e+00> : vector<4x7x64xf32>
    %143 = tpu.matmul %142, %141, %cst_48 {dimension_numbers = #tpu.dot_dimension_numbers<[2], [1], [1], [2], [0, 0, 0, 1, 1, 2], [0], [0]>} : vector<4x7x32xbf16>, vector<4x32x64xbf16>, vector<4x7x64xf32> -> vector<4x7x64xf32>
    "tpu.trace_stop"() : () -> ()
    %144 = arith.addf %136, %143 : vector<4x7x64xf32>
    %145 = vector.extract_strided_slice %132 {offsets = [0, 1, 0], sizes = [4, 7, 32], strides = [1, 1, 1]} : vector<4x9x32xf32> to vector<4x7x32xf32>
    %146 = vector.extract_strided_slice %128 {offsets = [1, 0, 0], sizes = [1, 32, 64], strides = [1, 1, 1]} : vector<3x32x64xbf16> to vector<1x32x64xbf16>
    %147 = vector.shape_cast %146 : vector<1x32x64xbf16> to vector<32x64xbf16>
    %148 = vector.shape_cast %147 : vector<32x64xbf16> to vector<1x32x64xbf16>
    %149 = vector.broadcast %148 : vector<1x32x64xbf16> to vector<4x32x64xbf16>
    %150 = arith.truncf %145 : vector<4x7x32xf32> to vector<4x7x32xbf16>
    "tpu.trace_start"() <{level = 10 : i32, message = "bnd,bdk->bnk"}> : () -> ()
    %cst_49 = arith.constant dense<0.000000e+00> : vector<4x7x64xf32>
    %151 = tpu.matmul %150, %149, %cst_49 {dimension_numbers = #tpu.dot_dimension_numbers<[2], [1], [1], [2], [0, 0, 0, 1, 1, 2], [0], [0]>} : vector<4x7x32xbf16>, vector<4x32x64xbf16>, vector<4x7x64xf32> -> vector<4x7x64xf32>
    "tpu.trace_stop"() : () -> ()
    %152 = arith.addf %144, %151 : vector<4x7x64xf32>
    %153 = vector.extract_strided_slice %132 {offsets = [0, 2, 0], sizes = [4, 7, 32], strides = [1, 1, 1]} : vector<4x9x32xf32> to vector<4x7x32xf32>
    %154 = vector.extract_strided_slice %128 {offsets = [2, 0, 0], sizes = [1, 32, 64], strides = [1, 1, 1]} : vector<3x32x64xbf16> to vector<1x32x64xbf16>
    %155 = vector.shape_cast %154 : vector<1x32x64xbf16> to vector<32x64xbf16>
    %156 = vector.shape_cast %155 : vector<32x64xbf16> to vector<1x32x64xbf16>
    %157 = vector.broadcast %156 : vector<1x32x64xbf16> to vector<4x32x64xbf16>
    %158 = arith.truncf %153 : vector<4x7x32xf32> to vector<4x7x32xbf16>
    "tpu.trace_start"() <{level = 10 : i32, message = "bnd,bdk->bnk"}> : () -> ()
    %cst_50 = arith.constant dense<0.000000e+00> : vector<4x7x64xf32>
    %159 = tpu.matmul %158, %157, %cst_50 {dimension_numbers = #tpu.dot_dimension_numbers<[2], [1], [1], [2], [0, 0, 0, 1, 1, 2], [0], [0]>} : vector<4x7x32xbf16>, vector<4x32x64xbf16>, vector<4x7x64xf32> -> vector<4x7x64xf32>
    "tpu.trace_stop"() : () -> ()
    %160 = arith.addf %152, %159 : vector<4x7x64xf32>
    %cst_51 = arith.constant 0.000000e+00 : f32
    %161 = vector.broadcast %cst_51 : f32 to vector<4x7x64xf32>
    %162 = arith.maximumf %160, %161 : vector<4x7x64xf32>
    %163 = vector.extract_strided_slice %2 {offsets = [5, 0], sizes = [1, 32], strides = [1, 1]} : vector<24x96xf32> to vector<1x32xf32>
    %cst_52 = arith.constant 0.000000e+00 : f32
    %164 = vector.broadcast %cst_52 : f32 to vector<4x1x64xf32>
    %165 = tpu.concatenate %164, %162, %164 in 1 : vector<4x1x64xf32>, vector<4x7x64xf32>, vector<4x1x64xf32> -> vector<4x9x64xf32>
    %cst_53 = arith.constant 0.000000e+00 : f32
    %166 = vector.broadcast %cst_53 : f32 to vector<4x7x32xf32>
    %167 = vector.shape_cast %163 : vector<1x32xf32> to vector<1x1x32xf32>
    %168 = vector.broadcast %167 : vector<1x1x32xf32> to vector<4x7x32xf32>
    %169 = arith.addf %166, %168 : vector<4x7x32xf32>
    %170 = vector.extract_strided_slice %165 {offsets = [0, 0, 0], sizes = [4, 7, 64], strides = [1, 1, 1]} : vector<4x9x64xf32> to vector<4x7x64xf32>
    %171 = vector.extract_strided_slice %129 {offsets = [0, 0, 0], sizes = [1, 64, 32], strides = [1, 1, 1]} : vector<3x64x32xbf16> to vector<1x64x32xbf16>
    %172 = vector.shape_cast %171 : vector<1x64x32xbf16> to vector<64x32xbf16>
    %173 = vector.shape_cast %172 : vector<64x32xbf16> to vector<1x64x32xbf16>
    %174 = vector.broadcast %173 : vector<1x64x32xbf16> to vector<4x64x32xbf16>
    %175 = arith.truncf %170 : vector<4x7x64xf32> to vector<4x7x64xbf16>
    "tpu.trace_start"() <{level = 10 : i32, message = "bnd,bdk->bnk"}> : () -> ()
    %cst_54 = arith.constant dense<0.000000e+00> : vector<4x7x32xf32>
    %176 = tpu.matmul %175, %174, %cst_54 {dimension_numbers = #tpu.dot_dimension_numbers<[2], [1], [1], [2], [0, 0, 0, 1, 1, 2], [0], [0]>} : vector<4x7x64xbf16>, vector<4x64x32xbf16>, vector<4x7x32xf32> -> vector<4x7x32xf32>
    "tpu.trace_stop"() : () -> ()
    %177 = arith.addf %169, %176 : vector<4x7x32xf32>
    %178 = vector.extract_strided_slice %165 {offsets = [0, 1, 0], sizes = [4, 7, 64], strides = [1, 1, 1]} : vector<4x9x64xf32> to vector<4x7x64xf32>
    %179 = vector.extract_strided_slice %129 {offsets = [1, 0, 0], sizes = [1, 64, 32], strides = [1, 1, 1]} : vector<3x64x32xbf16> to vector<1x64x32xbf16>
    %180 = vector.shape_cast %179 : vector<1x64x32xbf16> to vector<64x32xbf16>
    %181 = vector.shape_cast %180 : vector<64x32xbf16> to vector<1x64x32xbf16>
    %182 = vector.broadcast %181 : vector<1x64x32xbf16> to vector<4x64x32xbf16>
    %183 = arith.truncf %178 : vector<4x7x64xf32> to vector<4x7x64xbf16>
    "tpu.trace_start"() <{level = 10 : i32, message = "bnd,bdk->bnk"}> : () -> ()
    %cst_55 = arith.constant dense<0.000000e+00> : vector<4x7x32xf32>
    %184 = tpu.matmul %183, %182, %cst_55 {dimension_numbers = #tpu.dot_dimension_numbers<[2], [1], [1], [2], [0, 0, 0, 1, 1, 2], [0], [0]>} : vector<4x7x64xbf16>, vector<4x64x32xbf16>, vector<4x7x32xf32> -> vector<4x7x32xf32>
    "tpu.trace_stop"() : () -> ()
    %185 = arith.addf %177, %184 : vector<4x7x32xf32>
    %186 = vector.extract_strided_slice %165 {offsets = [0, 2, 0], sizes = [4, 7, 64], strides = [1, 1, 1]} : vector<4x9x64xf32> to vector<4x7x64xf32>
    %187 = vector.extract_strided_slice %129 {offsets = [2, 0, 0], sizes = [1, 64, 32], strides = [1, 1, 1]} : vector<3x64x32xbf16> to vector<1x64x32xbf16>
    %188 = vector.shape_cast %187 : vector<1x64x32xbf16> to vector<64x32xbf16>
    %189 = vector.shape_cast %188 : vector<64x32xbf16> to vector<1x64x32xbf16>
    %190 = vector.broadcast %189 : vector<1x64x32xbf16> to vector<4x64x32xbf16>
    %191 = arith.truncf %186 : vector<4x7x64xf32> to vector<4x7x64xbf16>
    "tpu.trace_start"() <{level = 10 : i32, message = "bnd,bdk->bnk"}> : () -> ()
    %cst_56 = arith.constant dense<0.000000e+00> : vector<4x7x32xf32>
    %192 = tpu.matmul %191, %190, %cst_56 {dimension_numbers = #tpu.dot_dimension_numbers<[2], [1], [1], [2], [0, 0, 0, 1, 1, 2], [0], [0]>} : vector<4x7x64xbf16>, vector<4x64x32xbf16>, vector<4x7x32xf32> -> vector<4x7x32xf32>
    "tpu.trace_stop"() : () -> ()
    %193 = arith.addf %185, %192 : vector<4x7x32xf32>
    %194 = arith.addf %127, %193 : vector<4x7x32xf32>
    %c0_57 = arith.constant 0 : index
    %c0_58 = arith.constant 0 : index
    %c96 = arith.constant 96 : index
    %195 = vector.load %arg5[%c0_57, %c0_58, %c96] : memref<3x64x288xbf16, #tpu.memory_space<vmem>>, vector<3x32x96xbf16>
    %196 = vector.extract_strided_slice %2 {offsets = [6, 0], sizes = [1, 96], strides = [1, 1]} : vector<24x96xf32> to vector<1x96xf32>
    %c4 = arith.constant 4 : index
    %c0_59 = arith.constant 0 : index
    %c0_60 = arith.constant 0 : index
    %197 = vector.load %arg3[%c4, %c0_59, %c0_60] : memref<6x32x32xbf16, #tpu.memory_space<vmem>>, vector<1x32x32xbf16>
    %198 = vector.shape_cast %197 : vector<1x32x32xbf16> to vector<32x32xbf16>
    %199 = vector.extract_strided_slice %2 {offsets = [8, 0], sizes = [1, 32], strides = [1, 1]} : vector<24x96xf32> to vector<1x32xf32>
    %cst_61 = arith.constant 0.000000e+00 : f32
    %200 = vector.broadcast %cst_61 : f32 to vector<4x1x32xf32>
    %201 = tpu.concatenate %200, %194, %200 in 1 : vector<4x1x32xf32>, vector<4x7x32xf32>, vector<4x1x32xf32> -> vector<4x9x32xf32>
    %cst_62 = arith.constant 0.000000e+00 : f32
    %202 = vector.broadcast %cst_62 : f32 to vector<4x7x96xf32>
    %203 = vector.shape_cast %196 : vector<1x96xf32> to vector<1x1x96xf32>
    %204 = vector.broadcast %203 : vector<1x1x96xf32> to vector<4x7x96xf32>
    %205 = arith.addf %202, %204 : vector<4x7x96xf32>
    %206 = vector.extract_strided_slice %201 {offsets = [0, 0, 0], sizes = [4, 7, 32], strides = [1, 1, 1]} : vector<4x9x32xf32> to vector<4x7x32xf32>
    %207 = vector.extract_strided_slice %195 {offsets = [0, 0, 0], sizes = [1, 32, 96], strides = [1, 1, 1]} : vector<3x32x96xbf16> to vector<1x32x96xbf16>
    %208 = vector.shape_cast %207 : vector<1x32x96xbf16> to vector<32x96xbf16>
    %209 = vector.shape_cast %208 : vector<32x96xbf16> to vector<1x32x96xbf16>
    %210 = vector.broadcast %209 : vector<1x32x96xbf16> to vector<4x32x96xbf16>
    %211 = arith.truncf %206 : vector<4x7x32xf32> to vector<4x7x32xbf16>
    "tpu.trace_start"() <{level = 10 : i32, message = "bnd,bdk->bnk"}> : () -> ()
    %cst_63 = arith.constant dense<0.000000e+00> : vector<4x7x96xf32>
    %212 = tpu.matmul %211, %210, %cst_63 {dimension_numbers = #tpu.dot_dimension_numbers<[2], [1], [1], [2], [0, 0, 0, 1, 1, 2], [0], [0]>} : vector<4x7x32xbf16>, vector<4x32x96xbf16>, vector<4x7x96xf32> -> vector<4x7x96xf32>
    "tpu.trace_stop"() : () -> ()
    %213 = arith.addf %205, %212 : vector<4x7x96xf32>
    %214 = vector.extract_strided_slice %201 {offsets = [0, 1, 0], sizes = [4, 7, 32], strides = [1, 1, 1]} : vector<4x9x32xf32> to vector<4x7x32xf32>
    %215 = vector.extract_strided_slice %195 {offsets = [1, 0, 0], sizes = [1, 32, 96], strides = [1, 1, 1]} : vector<3x32x96xbf16> to vector<1x32x96xbf16>
    %216 = vector.shape_cast %215 : vector<1x32x96xbf16> to vector<32x96xbf16>
    %217 = vector.shape_cast %216 : vector<32x96xbf16> to vector<1x32x96xbf16>
    %218 = vector.broadcast %217 : vector<1x32x96xbf16> to vector<4x32x96xbf16>
    %219 = arith.truncf %214 : vector<4x7x32xf32> to vector<4x7x32xbf16>
    "tpu.trace_start"() <{level = 10 : i32, message = "bnd,bdk->bnk"}> : () -> ()
    %cst_64 = arith.constant dense<0.000000e+00> : vector<4x7x96xf32>
    %220 = tpu.matmul %219, %218, %cst_64 {dimension_numbers = #tpu.dot_dimension_numbers<[2], [1], [1], [2], [0, 0, 0, 1, 1, 2], [0], [0]>} : vector<4x7x32xbf16>, vector<4x32x96xbf16>, vector<4x7x96xf32> -> vector<4x7x96xf32>
    "tpu.trace_stop"() : () -> ()
    %221 = arith.addf %213, %220 : vector<4x7x96xf32>
    %222 = vector.extract_strided_slice %201 {offsets = [0, 2, 0], sizes = [4, 7, 32], strides = [1, 1, 1]} : vector<4x9x32xf32> to vector<4x7x32xf32>
    %223 = vector.extract_strided_slice %195 {offsets = [2, 0, 0], sizes = [1, 32, 96], strides = [1, 1, 1]} : vector<3x32x96xbf16> to vector<1x32x96xbf16>
    %224 = vector.shape_cast %223 : vector<1x32x96xbf16> to vector<32x96xbf16>
    %225 = vector.shape_cast %224 : vector<32x96xbf16> to vector<1x32x96xbf16>
    %226 = vector.broadcast %225 : vector<1x32x96xbf16> to vector<4x32x96xbf16>
    %227 = arith.truncf %222 : vector<4x7x32xf32> to vector<4x7x32xbf16>
    "tpu.trace_start"() <{level = 10 : i32, message = "bnd,bdk->bnk"}> : () -> ()
    %cst_65 = arith.constant dense<0.000000e+00> : vector<4x7x96xf32>
    %228 = tpu.matmul %227, %226, %cst_65 {dimension_numbers = #tpu.dot_dimension_numbers<[2], [1], [1], [2], [0, 0, 0, 1, 1, 2], [0], [0]>} : vector<4x7x32xbf16>, vector<4x32x96xbf16>, vector<4x7x96xf32> -> vector<4x7x96xf32>
    "tpu.trace_stop"() : () -> ()
    %229 = arith.addf %221, %228 : vector<4x7x96xf32>
    %230 = vector.extract_strided_slice %229 {offsets = [0, 0, 0], sizes = [4, 7, 32], strides = [1, 1, 1]} : vector<4x7x96xf32> to vector<4x7x32xf32>
    %231 = vector.extract_strided_slice %229 {offsets = [0, 0, 32], sizes = [4, 7, 32], strides = [1, 1, 1]} : vector<4x7x96xf32> to vector<4x7x32xf32>
    %232 = vector.extract_strided_slice %229 {offsets = [0, 0, 64], sizes = [4, 7, 32], strides = [1, 1, 1]} : vector<4x7x96xf32> to vector<4x7x32xf32>
    "tpu.trace_start"() <{level = 10 : i32, message = "bqd,bkd->bqk"}> : () -> ()
    %cst_66 = arith.constant dense<0.000000e+00> : vector<4x7x7xf32>
    %233 = tpu.matmul %230, %231, %cst_66 {dimension_numbers = #tpu.dot_dimension_numbers<[2], [2], [1], [1], [0, 0, 0, 1, 1, 1], [0], [0]>} : vector<4x7x32xf32>, vector<4x7x32xf32>, vector<4x7x7xf32> -> vector<4x7x7xf32>
    "tpu.trace_stop"() : () -> ()
    %cst_67 = arith.constant 0.176776692 : f32
    %234 = vector.broadcast %cst_67 : f32 to vector<4x7x7xf32>
    %235 = arith.mulf %233, %234 : vector<4x7x7xf32>
    %cst_68 = arith.constant dense<0xFF800000> : vector<4x7xf32>
    %236 = vector.multi_reduction <maximumf>, %235, %cst_68 [2] : vector<4x7x7xf32> to vector<4x7xf32>
    %237 = vector.shape_cast %236 : vector<4x7xf32> to vector<4x7x1xf32>
    %238 = vector.broadcast %237 : vector<4x7x1xf32> to vector<4x7x7xf32>
    %239 = arith.subf %235, %238 : vector<4x7x7xf32>
    %240 = math.exp %239 : vector<4x7x7xf32>
    %cst_69 = arith.constant dense<0.000000e+00> : vector<4x7xf32>
    %241 = vector.multi_reduction <add>, %240, %cst_69 [2] : vector<4x7x7xf32> to vector<4x7xf32>
    %242 = vector.shape_cast %241 : vector<4x7xf32> to vector<4x7x1xf32>
    %243 = vector.broadcast %242 : vector<4x7x1xf32> to vector<4x7x7xf32>
    %244 = arith.divf %240, %243 : vector<4x7x7xf32>
    "tpu.trace_start"() <{level = 10 : i32, message = "bqk,bkd->bqd"}> : () -> ()
    %cst_70 = arith.constant dense<0.000000e+00> : vector<4x7x32xf32>
    %245 = tpu.matmul %244, %232, %cst_70 {dimension_numbers = #tpu.dot_dimension_numbers<[2], [1], [1], [2], [0, 0, 0, 1, 1, 2], [0], [0]>} : vector<4x7x7xf32>, vector<4x7x32xf32>, vector<4x7x32xf32> -> vector<4x7x32xf32>
    "tpu.trace_stop"() : () -> ()
    %246 = vector.shape_cast %198 : vector<32x32xbf16> to vector<1x32x32xbf16>
    %247 = vector.broadcast %246 : vector<1x32x32xbf16> to vector<4x32x32xbf16>
    %248 = arith.truncf %245 : vector<4x7x32xf32> to vector<4x7x32xbf16>
    "tpu.trace_start"() <{level = 10 : i32, message = "bnd,bdk->bnk"}> : () -> ()
    %cst_71 = arith.constant dense<0.000000e+00> : vector<4x7x32xf32>
    %249 = tpu.matmul %248, %247, %cst_71 {dimension_numbers = #tpu.dot_dimension_numbers<[2], [1], [1], [2], [0, 0, 0, 1, 1, 2], [0], [0]>} : vector<4x7x32xbf16>, vector<4x32x32xbf16>, vector<4x7x32xf32> -> vector<4x7x32xf32>
    "tpu.trace_stop"() : () -> ()
    %250 = arith.addf %194, %249 : vector<4x7x32xf32>
    %251 = vector.shape_cast %199 : vector<1x32xf32> to vector<1x1x32xf32>
    %252 = vector.broadcast %251 : vector<1x1x32xf32> to vector<4x7x32xf32>
    %253 = arith.addf %250, %252 : vector<4x7x32xf32>
    %254 = tpu.concatenate %4, %253 in 1 : vector<4x1x32xf32>, vector<4x7x32xf32> -> vector<4x8x32xf32>
    %c2 = arith.constant 2 : index
    %c0_72 = arith.constant 0 : index
    %c0_73 = arith.constant 0 : index
    %255 = vector.load %arg3[%c2, %c0_72, %c0_73] : memref<6x32x32xbf16, #tpu.memory_space<vmem>>, vector<1x32x32xbf16>
    %256 = vector.shape_cast %255 : vector<1x32x32xbf16> to vector<32x32xbf16>
    %257 = vector.extract_strided_slice %2 {offsets = [16, 0], sizes = [1, 32], strides = [1, 1]} : vector<24x96xf32> to vector<1x32xf32>
    %258 = vector.extract_strided_slice %2 {offsets = [17, 0], sizes = [1, 32], strides = [1, 1]} : vector<24x96xf32> to vector<1x32xf32>
    %259 = vector.shape_cast %256 : vector<32x32xbf16> to vector<1x32x32xbf16>
    %260 = vector.broadcast %259 : vector<1x32x32xbf16> to vector<4x32x32xbf16>
    %261 = arith.truncf %254 : vector<4x8x32xf32> to vector<4x8x32xbf16>
    "tpu.trace_start"() <{level = 10 : i32, message = "bnd,bdk->bnk"}> : () -> ()
    %cst_74 = arith.constant dense<0.000000e+00> : vector<4x8x32xf32>
    %262 = tpu.matmul %261, %260, %cst_74 {dimension_numbers = #tpu.dot_dimension_numbers<[2], [1], [1], [2], [0, 0, 0, 1, 1, 2], [0], [0]>} : vector<4x8x32xbf16>, vector<4x32x32xbf16>, vector<4x8x32xf32> -> vector<4x8x32xf32>
    "tpu.trace_stop"() : () -> ()
    %263 = vector.shape_cast %257 : vector<1x32xf32> to vector<1x1x32xf32>
    %264 = vector.broadcast %263 : vector<1x1x32xf32> to vector<4x8x32xf32>
    %265 = arith.mulf %262, %264 : vector<4x8x32xf32>
    %cst_75 = arith.constant dense<0.000000e+00> : vector<4x8xf32>
    %266 = vector.multi_reduction <add>, %265, %cst_75 [2] : vector<4x8x32xf32> to vector<4x8xf32>
    %267 = vector.shape_cast %266 : vector<4x8xf32> to vector<4x8x1xf32>
    %268 = vector.shape_cast %258 : vector<1x32xf32> to vector<1x1x32xf32>
    %269 = vector.broadcast %268 : vector<1x1x32xf32> to vector<4x1x32xf32>
    "tpu.trace_start"() <{level = 10 : i32, message = "bmd,bnd->bmn"}> : () -> ()
    %cst_76 = arith.constant dense<0.000000e+00> : vector<4x1x8xf32>
    %270 = tpu.matmul %269, %262, %cst_76 {dimension_numbers = #tpu.dot_dimension_numbers<[2], [2], [1], [1], [0, 0, 0, 1, 1, 1], [0], [0]>} : vector<4x1x32xf32>, vector<4x8x32xf32>, vector<4x1x8xf32> -> vector<4x1x8xf32>
    "tpu.trace_stop"() : () -> ()
    %271 = vector.broadcast %267 : vector<4x8x1xf32> to vector<4x8x8xf32>
    %272 = vector.broadcast %270 : vector<4x1x8xf32> to vector<4x8x8xf32>
    %273 = arith.addf %271, %272 : vector<4x8x8xf32>
    %cst_77 = arith.constant 0.000000e+00 : f32
    %274 = vector.broadcast %cst_77 : f32 to vector<4x8x8xf32>
    %275 = arith.cmpf ogt, %273, %274 : vector<4x8x8xf32>
    %cst_78 = arith.constant 2.000000e-01 : f32
    %276 = vector.broadcast %cst_78 : f32 to vector<4x8x8xf32>
    %277 = arith.mulf %276, %273 : vector<4x8x8xf32>
    %278 = arith.select %275, %273, %277 : vector<4x8x8xi1>, vector<4x8x8xf32>
    %cst_79 = arith.constant 0.000000e+00 : f32
    %279 = vector.broadcast %cst_79 : f32 to vector<8x8xf32>
    %280 = arith.cmpf ogt, %1, %279 : vector<8x8xf32>
    %cst_80 = arith.constant -1.000000e+09 : f32
    %281 = vector.shape_cast %280 : vector<8x8xi1> to vector<1x8x8xi1>
    %282 = vector.broadcast %281 : vector<1x8x8xi1> to vector<4x8x8xi1>
    %283 = vector.broadcast %cst_80 : f32 to vector<4x8x8xf32>
    %284 = arith.select %282, %278, %283 : vector<4x8x8xi1>, vector<4x8x8xf32>
    %cst_81 = arith.constant dense<0xFF800000> : vector<4x8xf32>
    %285 = vector.multi_reduction <maximumf>, %284, %cst_81 [2] : vector<4x8x8xf32> to vector<4x8xf32>
    %286 = vector.shape_cast %285 : vector<4x8xf32> to vector<4x8x1xf32>
    %287 = vector.broadcast %286 : vector<4x8x1xf32> to vector<4x8x8xf32>
    %288 = arith.subf %284, %287 : vector<4x8x8xf32>
    %289 = math.exp %288 : vector<4x8x8xf32>
    %cst_82 = arith.constant dense<0.000000e+00> : vector<4x8xf32>
    %290 = vector.multi_reduction <add>, %289, %cst_82 [2] : vector<4x8x8xf32> to vector<4x8xf32>
    %291 = vector.shape_cast %290 : vector<4x8xf32> to vector<4x8x1xf32>
    %292 = vector.broadcast %291 : vector<4x8x1xf32> to vector<4x8x8xf32>
    %293 = arith.divf %289, %292 : vector<4x8x8xf32>
    "tpu.trace_start"() <{level = 10 : i32, message = "bij,bjd->bid"}> : () -> ()
    %cst_83 = arith.constant dense<0.000000e+00> : vector<4x8x32xf32>
    %294 = tpu.matmul %293, %262, %cst_83 {dimension_numbers = #tpu.dot_dimension_numbers<[2], [1], [1], [2], [0, 0, 0, 1, 1, 2], [0], [0]>} : vector<4x8x8xf32>, vector<4x8x32xf32>, vector<4x8x32xf32> -> vector<4x8x32xf32>
    %cst_84 = arith.constant 0.000000e+00 : f32
    "tpu.trace_stop"() : () -> ()
    %295 = vector.broadcast %cst_84 : f32 to vector<4x8x32xf32>
    %296 = arith.cmpf ogt, %294, %295 : vector<4x8x32xf32>
    %cst_85 = arith.constant 0.000000e+00 : f32
    %297 = vector.broadcast %cst_85 : f32 to vector<4x8x32xf32>
    %298 = arith.minimumf %294, %297 : vector<4x8x32xf32>
    %299 = math.exp %298 : vector<4x8x32xf32>
    %cst_86 = arith.constant 1.000000e+00 : f32
    %300 = vector.broadcast %cst_86 : f32 to vector<4x8x32xf32>
    %301 = arith.subf %299, %300 : vector<4x8x32xf32>
    %302 = arith.select %296, %294, %301 : vector<4x8x32xi1>, vector<4x8x32xf32>
    %c3 = arith.constant 3 : index
    %c0_87 = arith.constant 0 : index
    %c0_88 = arith.constant 0 : index
    %303 = vector.load %arg3[%c3, %c0_87, %c0_88] : memref<6x32x32xbf16, #tpu.memory_space<vmem>>, vector<1x32x32xbf16>
    %304 = vector.shape_cast %303 : vector<1x32x32xbf16> to vector<32x32xbf16>
    %305 = vector.extract_strided_slice %2 {offsets = [18, 0], sizes = [1, 32], strides = [1, 1]} : vector<24x96xf32> to vector<1x32xf32>
    %306 = vector.extract_strided_slice %2 {offsets = [19, 0], sizes = [1, 32], strides = [1, 1]} : vector<24x96xf32> to vector<1x32xf32>
    %307 = vector.shape_cast %304 : vector<32x32xbf16> to vector<1x32x32xbf16>
    %308 = vector.broadcast %307 : vector<1x32x32xbf16> to vector<4x32x32xbf16>
    %309 = arith.truncf %302 : vector<4x8x32xf32> to vector<4x8x32xbf16>
    "tpu.trace_start"() <{level = 10 : i32, message = "bnd,bdk->bnk"}> : () -> ()
    %cst_89 = arith.constant dense<0.000000e+00> : vector<4x8x32xf32>
    %310 = tpu.matmul %309, %308, %cst_89 {dimension_numbers = #tpu.dot_dimension_numbers<[2], [1], [1], [2], [0, 0, 0, 1, 1, 2], [0], [0]>} : vector<4x8x32xbf16>, vector<4x32x32xbf16>, vector<4x8x32xf32> -> vector<4x8x32xf32>
    "tpu.trace_stop"() : () -> ()
    %311 = vector.shape_cast %305 : vector<1x32xf32> to vector<1x1x32xf32>
    %312 = vector.broadcast %311 : vector<1x1x32xf32> to vector<4x8x32xf32>
    %313 = arith.mulf %310, %312 : vector<4x8x32xf32>
    %cst_90 = arith.constant dense<0.000000e+00> : vector<4x8xf32>
    %314 = vector.multi_reduction <add>, %313, %cst_90 [2] : vector<4x8x32xf32> to vector<4x8xf32>
    %315 = vector.shape_cast %314 : vector<4x8xf32> to vector<4x8x1xf32>
    %316 = vector.shape_cast %306 : vector<1x32xf32> to vector<1x1x32xf32>
    %317 = vector.broadcast %316 : vector<1x1x32xf32> to vector<4x1x32xf32>
    "tpu.trace_start"() <{level = 10 : i32, message = "bmd,bnd->bmn"}> : () -> ()
    %cst_91 = arith.constant dense<0.000000e+00> : vector<4x1x8xf32>
    %318 = tpu.matmul %317, %310, %cst_91 {dimension_numbers = #tpu.dot_dimension_numbers<[2], [2], [1], [1], [0, 0, 0, 1, 1, 1], [0], [0]>} : vector<4x1x32xf32>, vector<4x8x32xf32>, vector<4x1x8xf32> -> vector<4x1x8xf32>
    "tpu.trace_stop"() : () -> ()
    %319 = vector.broadcast %315 : vector<4x8x1xf32> to vector<4x8x8xf32>
    %320 = vector.broadcast %318 : vector<4x1x8xf32> to vector<4x8x8xf32>
    %321 = arith.addf %319, %320 : vector<4x8x8xf32>
    %cst_92 = arith.constant 0.000000e+00 : f32
    %322 = vector.broadcast %cst_92 : f32 to vector<4x8x8xf32>
    %323 = arith.cmpf ogt, %321, %322 : vector<4x8x8xf32>
    %cst_93 = arith.constant 2.000000e-01 : f32
    %324 = vector.broadcast %cst_93 : f32 to vector<4x8x8xf32>
    %325 = arith.mulf %324, %321 : vector<4x8x8xf32>
    %326 = arith.select %323, %321, %325 : vector<4x8x8xi1>, vector<4x8x8xf32>
    %cst_94 = arith.constant 0.000000e+00 : f32
    %327 = vector.broadcast %cst_94 : f32 to vector<8x8xf32>
    %328 = arith.cmpf ogt, %1, %327 : vector<8x8xf32>
    %cst_95 = arith.constant -1.000000e+09 : f32
    %329 = vector.shape_cast %328 : vector<8x8xi1> to vector<1x8x8xi1>
    %330 = vector.broadcast %329 : vector<1x8x8xi1> to vector<4x8x8xi1>
    %331 = vector.broadcast %cst_95 : f32 to vector<4x8x8xf32>
    %332 = arith.select %330, %326, %331 : vector<4x8x8xi1>, vector<4x8x8xf32>
    %cst_96 = arith.constant dense<0xFF800000> : vector<4x8xf32>
    %333 = vector.multi_reduction <maximumf>, %332, %cst_96 [2] : vector<4x8x8xf32> to vector<4x8xf32>
    %334 = vector.shape_cast %333 : vector<4x8xf32> to vector<4x8x1xf32>
    %335 = vector.broadcast %334 : vector<4x8x1xf32> to vector<4x8x8xf32>
    %336 = arith.subf %332, %335 : vector<4x8x8xf32>
    %337 = math.exp %336 : vector<4x8x8xf32>
    %cst_97 = arith.constant dense<0.000000e+00> : vector<4x8xf32>
    %338 = vector.multi_reduction <add>, %337, %cst_97 [2] : vector<4x8x8xf32> to vector<4x8xf32>
    %339 = vector.shape_cast %338 : vector<4x8xf32> to vector<4x8x1xf32>
    %340 = vector.broadcast %339 : vector<4x8x1xf32> to vector<4x8x8xf32>
    %341 = arith.divf %337, %340 : vector<4x8x8xf32>
    "tpu.trace_start"() <{level = 10 : i32, message = "bij,bjd->bid"}> : () -> ()
    %cst_98 = arith.constant dense<0.000000e+00> : vector<4x8x32xf32>
    %342 = tpu.matmul %341, %310, %cst_98 {dimension_numbers = #tpu.dot_dimension_numbers<[2], [1], [1], [2], [0, 0, 0, 1, 1, 2], [0], [0]>} : vector<4x8x8xf32>, vector<4x8x32xf32>, vector<4x8x32xf32> -> vector<4x8x32xf32>
    %cst_99 = arith.constant 0.000000e+00 : f32
    "tpu.trace_stop"() : () -> ()
    %343 = vector.broadcast %cst_99 : f32 to vector<4x8x32xf32>
    %344 = arith.cmpf ogt, %342, %343 : vector<4x8x32xf32>
    %cst_100 = arith.constant 0.000000e+00 : f32
    %345 = vector.broadcast %cst_100 : f32 to vector<4x8x32xf32>
    %346 = arith.minimumf %342, %345 : vector<4x8x32xf32>
    %347 = math.exp %346 : vector<4x8x32xf32>
    %cst_101 = arith.constant 1.000000e+00 : f32
    %348 = vector.broadcast %cst_101 : f32 to vector<4x8x32xf32>
    %349 = arith.subf %347, %348 : vector<4x8x32xf32>
    %350 = arith.select %344, %342, %349 : vector<4x8x32xi1>, vector<4x8x32xf32>
    %351 = vector.extract_strided_slice %2 {offsets = [2, 0], sizes = [1, 32], strides = [1, 1]} : vector<24x96xf32> to vector<1x32xf32>
    %352 = vector.extract_strided_slice %2 {offsets = [3, 0], sizes = [1, 32], strides = [1, 1]} : vector<24x96xf32> to vector<1x32xf32>
    %cst_102 = arith.constant dense<0.000000e+00> : vector<4x8xf32>
    %353 = vector.multi_reduction <add>, %350, %cst_102 [2] : vector<4x8x32xf32> to vector<4x8xf32>
    %354 = vector.shape_cast %353 : vector<4x8xf32> to vector<4x8x1xf32>
    %cst_103 = arith.constant 3.200000e+01 : f32
    %355 = vector.broadcast %cst_103 : f32 to vector<4x8x1xf32>
    %356 = arith.divf %354, %355 : vector<4x8x1xf32>
    %357 = vector.broadcast %356 : vector<4x8x1xf32> to vector<4x8x32xf32>
    %358 = arith.subf %350, %357 : vector<4x8x32xf32>
    %359 = arith.mulf %358, %358 : vector<4x8x32xf32>
    %cst_104 = arith.constant dense<0.000000e+00> : vector<4x8xf32>
    %360 = vector.multi_reduction <add>, %359, %cst_104 [2] : vector<4x8x32xf32> to vector<4x8xf32>
    %361 = vector.shape_cast %360 : vector<4x8xf32> to vector<4x8x1xf32>
    %cst_105 = arith.constant 3.200000e+01 : f32
    %362 = vector.broadcast %cst_105 : f32 to vector<4x8x1xf32>
    %363 = arith.divf %361, %362 : vector<4x8x1xf32>
    %364 = vector.broadcast %356 : vector<4x8x1xf32> to vector<4x8x32xf32>
    %365 = arith.subf %350, %364 : vector<4x8x32xf32>
    %cst_106 = arith.constant 9.99999974E-6 : f32
    %366 = vector.broadcast %cst_106 : f32 to vector<4x8x1xf32>
    %367 = arith.addf %363, %366 : vector<4x8x1xf32>
    %368 = math.rsqrt %367 : vector<4x8x1xf32>
    %369 = vector.broadcast %368 : vector<4x8x1xf32> to vector<4x8x32xf32>
    %370 = arith.mulf %365, %369 : vector<4x8x32xf32>
    %371 = vector.shape_cast %351 : vector<1x32xf32> to vector<1x1x32xf32>
    %372 = vector.broadcast %371 : vector<1x1x32xf32> to vector<4x8x32xf32>
    %373 = arith.mulf %370, %372 : vector<4x8x32xf32>
    %374 = vector.shape_cast %352 : vector<1x32xf32> to vector<1x1x32xf32>
    %375 = vector.broadcast %374 : vector<1x1x32xf32> to vector<4x8x32xf32>
    %376 = arith.addf %373, %375 : vector<4x8x32xf32>
    %c0_107 = arith.constant 0 : index
    %c0_108 = arith.constant 0 : index
    %c192 = arith.constant 192 : index
    %377 = vector.load %arg5[%c0_107, %c0_108, %c192] : memref<3x64x288xbf16, #tpu.memory_space<vmem>>, vector<3x32x96xbf16>
    %378 = vector.extract_strided_slice %2 {offsets = [7, 0], sizes = [1, 96], strides = [1, 1]} : vector<24x96xf32> to vector<1x96xf32>
    %c5 = arith.constant 5 : index
    %c0_109 = arith.constant 0 : index
    %c0_110 = arith.constant 0 : index
    %379 = vector.load %arg3[%c5, %c0_109, %c0_110] : memref<6x32x32xbf16, #tpu.memory_space<vmem>>, vector<1x32x32xbf16>
    %380 = vector.shape_cast %379 : vector<1x32x32xbf16> to vector<32x32xbf16>
    %381 = vector.extract_strided_slice %2 {offsets = [9, 0], sizes = [1, 32], strides = [1, 1]} : vector<24x96xf32> to vector<1x32xf32>
    %cst_111 = arith.constant 0.000000e+00 : f32
    %382 = vector.broadcast %cst_111 : f32 to vector<4x1x32xf32>
    %383 = tpu.concatenate %382, %376, %382 in 1 : vector<4x1x32xf32>, vector<4x8x32xf32>, vector<4x1x32xf32> -> vector<4x10x32xf32>
    %cst_112 = arith.constant 0.000000e+00 : f32
    %384 = vector.broadcast %cst_112 : f32 to vector<4x8x96xf32>
    %385 = vector.shape_cast %378 : vector<1x96xf32> to vector<1x1x96xf32>
    %386 = vector.broadcast %385 : vector<1x1x96xf32> to vector<4x8x96xf32>
    %387 = arith.addf %384, %386 : vector<4x8x96xf32>
    %388 = vector.extract_strided_slice %383 {offsets = [0, 0, 0], sizes = [4, 8, 32], strides = [1, 1, 1]} : vector<4x10x32xf32> to vector<4x8x32xf32>
    %389 = vector.extract_strided_slice %377 {offsets = [0, 0, 0], sizes = [1, 32, 96], strides = [1, 1, 1]} : vector<3x32x96xbf16> to vector<1x32x96xbf16>
    %390 = vector.shape_cast %389 : vector<1x32x96xbf16> to vector<32x96xbf16>
    %391 = vector.shape_cast %390 : vector<32x96xbf16> to vector<1x32x96xbf16>
    %392 = vector.broadcast %391 : vector<1x32x96xbf16> to vector<4x32x96xbf16>
    %393 = arith.truncf %388 : vector<4x8x32xf32> to vector<4x8x32xbf16>
    "tpu.trace_start"() <{level = 10 : i32, message = "bnd,bdk->bnk"}> : () -> ()
    %cst_113 = arith.constant dense<0.000000e+00> : vector<4x8x96xf32>
    %394 = tpu.matmul %393, %392, %cst_113 {dimension_numbers = #tpu.dot_dimension_numbers<[2], [1], [1], [2], [0, 0, 0, 1, 1, 2], [0], [0]>} : vector<4x8x32xbf16>, vector<4x32x96xbf16>, vector<4x8x96xf32> -> vector<4x8x96xf32>
    "tpu.trace_stop"() : () -> ()
    %395 = arith.addf %387, %394 : vector<4x8x96xf32>
    %396 = vector.extract_strided_slice %383 {offsets = [0, 1, 0], sizes = [4, 8, 32], strides = [1, 1, 1]} : vector<4x10x32xf32> to vector<4x8x32xf32>
    %397 = vector.extract_strided_slice %377 {offsets = [1, 0, 0], sizes = [1, 32, 96], strides = [1, 1, 1]} : vector<3x32x96xbf16> to vector<1x32x96xbf16>
    %398 = vector.shape_cast %397 : vector<1x32x96xbf16> to vector<32x96xbf16>
    %399 = vector.shape_cast %398 : vector<32x96xbf16> to vector<1x32x96xbf16>
    %400 = vector.broadcast %399 : vector<1x32x96xbf16> to vector<4x32x96xbf16>
    %401 = arith.truncf %396 : vector<4x8x32xf32> to vector<4x8x32xbf16>
    "tpu.trace_start"() <{level = 10 : i32, message = "bnd,bdk->bnk"}> : () -> ()
    %cst_114 = arith.constant dense<0.000000e+00> : vector<4x8x96xf32>
    %402 = tpu.matmul %401, %400, %cst_114 {dimension_numbers = #tpu.dot_dimension_numbers<[2], [1], [1], [2], [0, 0, 0, 1, 1, 2], [0], [0]>} : vector<4x8x32xbf16>, vector<4x32x96xbf16>, vector<4x8x96xf32> -> vector<4x8x96xf32>
    "tpu.trace_stop"() : () -> ()
    %403 = arith.addf %395, %402 : vector<4x8x96xf32>
    %404 = vector.extract_strided_slice %383 {offsets = [0, 2, 0], sizes = [4, 8, 32], strides = [1, 1, 1]} : vector<4x10x32xf32> to vector<4x8x32xf32>
    %405 = vector.extract_strided_slice %377 {offsets = [2, 0, 0], sizes = [1, 32, 96], strides = [1, 1, 1]} : vector<3x32x96xbf16> to vector<1x32x96xbf16>
    %406 = vector.shape_cast %405 : vector<1x32x96xbf16> to vector<32x96xbf16>
    %407 = vector.shape_cast %406 : vector<32x96xbf16> to vector<1x32x96xbf16>
    %408 = vector.broadcast %407 : vector<1x32x96xbf16> to vector<4x32x96xbf16>
    %409 = arith.truncf %404 : vector<4x8x32xf32> to vector<4x8x32xbf16>
    "tpu.trace_start"() <{level = 10 : i32, message = "bnd,bdk->bnk"}> : () -> ()
    %cst_115 = arith.constant dense<0.000000e+00> : vector<4x8x96xf32>
    %410 = tpu.matmul %409, %408, %cst_115 {dimension_numbers = #tpu.dot_dimension_numbers<[2], [1], [1], [2], [0, 0, 0, 1, 1, 2], [0], [0]>} : vector<4x8x32xbf16>, vector<4x32x96xbf16>, vector<4x8x96xf32> -> vector<4x8x96xf32>
    "tpu.trace_stop"() : () -> ()
    %411 = arith.addf %403, %410 : vector<4x8x96xf32>
    %412 = vector.extract_strided_slice %411 {offsets = [0, 0, 0], sizes = [4, 8, 32], strides = [1, 1, 1]} : vector<4x8x96xf32> to vector<4x8x32xf32>
    %413 = vector.extract_strided_slice %411 {offsets = [0, 0, 32], sizes = [4, 8, 32], strides = [1, 1, 1]} : vector<4x8x96xf32> to vector<4x8x32xf32>
    %414 = vector.extract_strided_slice %411 {offsets = [0, 0, 64], sizes = [4, 8, 32], strides = [1, 1, 1]} : vector<4x8x96xf32> to vector<4x8x32xf32>
    "tpu.trace_start"() <{level = 10 : i32, message = "bqd,bkd->bqk"}> : () -> ()
    %cst_116 = arith.constant dense<0.000000e+00> : vector<4x8x8xf32>
    %415 = tpu.matmul %412, %413, %cst_116 {dimension_numbers = #tpu.dot_dimension_numbers<[2], [2], [1], [1], [0, 0, 0, 1, 1, 1], [0], [0]>} : vector<4x8x32xf32>, vector<4x8x32xf32>, vector<4x8x8xf32> -> vector<4x8x8xf32>
    "tpu.trace_stop"() : () -> ()
    %cst_117 = arith.constant 0.176776692 : f32
    %416 = vector.broadcast %cst_117 : f32 to vector<4x8x8xf32>
    %417 = arith.mulf %415, %416 : vector<4x8x8xf32>
    %cst_118 = arith.constant dense<0xFF800000> : vector<4x8xf32>
    %418 = vector.multi_reduction <maximumf>, %417, %cst_118 [2] : vector<4x8x8xf32> to vector<4x8xf32>
    %419 = vector.shape_cast %418 : vector<4x8xf32> to vector<4x8x1xf32>
    %420 = vector.broadcast %419 : vector<4x8x1xf32> to vector<4x8x8xf32>
    %421 = arith.subf %417, %420 : vector<4x8x8xf32>
    %422 = math.exp %421 : vector<4x8x8xf32>
    %cst_119 = arith.constant dense<0.000000e+00> : vector<4x8xf32>
    %423 = vector.multi_reduction <add>, %422, %cst_119 [2] : vector<4x8x8xf32> to vector<4x8xf32>
    %424 = vector.shape_cast %423 : vector<4x8xf32> to vector<4x8x1xf32>
    %425 = vector.broadcast %424 : vector<4x8x1xf32> to vector<4x8x8xf32>
    %426 = arith.divf %422, %425 : vector<4x8x8xf32>
    "tpu.trace_start"() <{level = 10 : i32, message = "bqk,bkd->bqd"}> : () -> ()
    %cst_120 = arith.constant dense<0.000000e+00> : vector<4x8x32xf32>
    %427 = tpu.matmul %426, %414, %cst_120 {dimension_numbers = #tpu.dot_dimension_numbers<[2], [1], [1], [2], [0, 0, 0, 1, 1, 2], [0], [0]>} : vector<4x8x8xf32>, vector<4x8x32xf32>, vector<4x8x32xf32> -> vector<4x8x32xf32>
    "tpu.trace_stop"() : () -> ()
    %428 = vector.shape_cast %380 : vector<32x32xbf16> to vector<1x32x32xbf16>
    %429 = vector.broadcast %428 : vector<1x32x32xbf16> to vector<4x32x32xbf16>
    %430 = arith.truncf %427 : vector<4x8x32xf32> to vector<4x8x32xbf16>
    "tpu.trace_start"() <{level = 10 : i32, message = "bnd,bdk->bnk"}> : () -> ()
    %cst_121 = arith.constant dense<0.000000e+00> : vector<4x8x32xf32>
    %431 = tpu.matmul %430, %429, %cst_121 {dimension_numbers = #tpu.dot_dimension_numbers<[2], [1], [1], [2], [0, 0, 0, 1, 1, 2], [0], [0]>} : vector<4x8x32xbf16>, vector<4x32x32xbf16>, vector<4x8x32xf32> -> vector<4x8x32xf32>
    "tpu.trace_stop"() : () -> ()
    %432 = arith.addf %376, %431 : vector<4x8x32xf32>
    %433 = vector.shape_cast %381 : vector<1x32xf32> to vector<1x1x32xf32>
    %434 = vector.broadcast %433 : vector<1x1x32xf32> to vector<4x8x32xf32>
    %435 = arith.addf %432, %434 : vector<4x8x32xf32>
    %436 = vector.extract_strided_slice %2 {offsets = [10, 0], sizes = [1, 32], strides = [1, 1]} : vector<24x96xf32> to vector<1x32xf32>
    %437 = vector.shape_cast %436 : vector<1x32xf32> to vector<1x1x32xf32>
    %438 = vector.broadcast %437 : vector<1x1x32xf32> to vector<4x1x32xf32>
    "tpu.trace_start"() <{level = 10 : i32, message = "bmd,bnd->bmn"}> : () -> ()
    %cst_122 = arith.constant dense<0.000000e+00> : vector<4x1x8xf32>
    %439 = tpu.matmul %438, %435, %cst_122 {dimension_numbers = #tpu.dot_dimension_numbers<[2], [2], [1], [1], [0, 0, 0, 1, 1, 1], [0], [0]>} : vector<4x1x32xf32>, vector<4x8x32xf32>, vector<4x1x8xf32> -> vector<4x1x8xf32>
    "tpu.trace_stop"() : () -> ()
    %440 = vector.extract_strided_slice %2 {offsets = [11, 0], sizes = [1, 1], strides = [1, 1]} : vector<24x96xf32> to vector<1x1xf32>
    %441 = vector.shape_cast %440 : vector<1x1xf32> to vector<1x1x1xf32>
    %442 = vector.broadcast %441 : vector<1x1x1xf32> to vector<4x1x8xf32>
    %443 = arith.addf %439, %442 : vector<4x1x8xf32>
    %c0_123 = arith.constant 0 : index
    %c0_124 = arith.constant 0 : index
    %c0_125 = arith.constant 0 : index
    %444 = vector.load %arg6[%c0_123, %c0_124, %c0_125] : memref<4x1x8xf32, #tpu.memory_space<vmem>>, vector<4x1x8xf32>
    tpu.vector_store %arg6[%c0_123, %c0_124, %c0_125], %443 {strides = array<i32>} : memref<4x1x8xf32, #tpu.memory_space<vmem>>, vector<4x1x8xf32>,
    return
  }
  func.func @transform_0(%arg0: i32) -> (i32, i32, i32) {
    %c0_i32 = arith.constant 0 : i32
    %c0_i32_0 = arith.constant 0 : i32
    %c0_i32_1 = arith.constant 0 : i32
    return %arg0, %c0_i32, %c0_i32_0 : i32, i32, i32
  }
  func.func @transform_1(%arg0: i32) -> (i32, i32) {
    %c0_i32 = arith.constant 0 : i32
    %c0_i32_0 = arith.constant 0 : i32
    %c0_i32_1 = arith.constant 0 : i32
    return %c0_i32, %c0_i32_0 : i32, i32
  }
  func.func @transform_2(%arg0: i32) -> (i32, i32, i32) {
    %c0_i32 = arith.constant 0 : i32
    %c0_i32_0 = arith.constant 0 : i32
    %c0_i32_1 = arith.constant 0 : i32
    %c0_i32_2 = arith.constant 0 : i32
    return %c0_i32, %c0_i32_0, %c0_i32_1 : i32, i32, i32
  }
  func.func @transform_3(%arg0: i32) -> (i32, i32) {
    %c0_i32 = arith.constant 0 : i32
    %c0_i32_0 = arith.constant 0 : i32
    %c0_i32_1 = arith.constant 0 : i32
    return %c0_i32, %c0_i32_0 : i32, i32
  }
  func.func @transform_4(%arg0: i32) -> (i32, i32, i32) {
    %c0_i32 = arith.constant 0 : i32
    %c0_i32_0 = arith.constant 0 : i32
    %c0_i32_1 = arith.constant 0 : i32
    %c0_i32_2 = arith.constant 0 : i32
    return %c0_i32, %c0_i32_0, %c0_i32_1 : i32, i32, i32
  }
  func.func @transform_5(%arg0: i32) -> (i32, i32, i32) {
    %c0_i32 = arith.constant 0 : i32
    %c0_i32_0 = arith.constant 0 : i32
    %c0_i32_1 = arith.constant 0 : i32
    return %arg0, %c0_i32, %c0_i32_0 : i32, i32, i32
  }
}

</mosaic_0001>

<llo_original>
// kernel: stf_informer_stack_forward.1
$region0: #{stf_informer_stack_forward.1}
  #allocation0 [shape = 'u32[]', space=smem, size = 0x4, offset = 0x4, fixed_abs, tag = 'smem constant byte address 0x4 - core index']
  #allocation1 [shape = 'u32[144,128]{1,0:T(1,128)}', space=vmem, size = 0x12000, scoped, tag = 'internal scratch']
  %s0 = inlined_call_operand.hbm [shape: f32[8,8,32], index: 0, kind: input, shape index: {}]
  %s1 = inlined_call_operand.hbm [shape: f32[8,8], index: 1, kind: input, shape index: {}]
  %s2 = inlined_call_operand.hbm [shape: bf16[6,32,32], index: 2, kind: input, shape index: {}]
  %s3 = inlined_call_operand.hbm [shape: f32[24,96], index: 3, kind: input, shape index: {}]
  %s4 = inlined_call_operand.hbm [shape: bf16[3,64,288], index: 4, kind: input, shape index: {}]
  %s5 = inlined_call_operand.hbm [shape: f32[8,1,8], index: 5, kind: output, shape index: {}]
  %s6 = sld [smem:[#allocation0]]
  $region73: #{stf_informer_stack_forward.1} parent=0
    _
  %s8 = ssub.s32 1, %s6
  %s9 = scalar_select 0, %s8, %s6
  $region1: #{stf_informer_stack_forward.1} parent=0
    #allocation2 [shape = 'u8[32768]{0}', space=vmem, size = 0x8000, scoped, tag = 'input window, operand 0']
    #allocation3 [shape = 's32[2]{0}', space=sflag, size = 0x8, scoped, tag = 'scoped memory for stf_informer_stack_forward.1']
    #allocation4 [shape = 's32[2]{0}', space=sflag, size = 0x8, scoped, tag = 'scoped memory for stf_informer_stack_forward.1']
    #allocation5 [shape = 'u8[4096]{0}', space=vmem, size = 0x1000, scoped, tag = 'input window, operand 1, single buffered']
    #allocation6 [shape = 's32[1]{0}', space=sflag, size = 0x4, scoped, tag = 'scoped memory for stf_informer_stack_forward.1']
    #allocation7 [shape = 'u8[49152]{0}', space=vmem, size = 0xc000, scoped, tag = 'input window, operand 2, single buffered']
    #allocation8 [shape = 'u8[12288]{0}', space=vmem, size = 0x3000, scoped, tag = 'input window, operand 3, single buffered']
    #allocation9 [shape = 's32[1]{0}', space=sflag, size = 0x4, scoped, tag = 'scoped memory for stf_informer_stack_forward.1']
    #allocation10 [shape = 'u8[147456]{0}', space=vmem, size = 0x24000, scoped, tag = 'input window, operand 4, single buffered']
    #allocation11 [shape = 'u8[4096]{0}', space=vmem, size = 0x1000, scoped, tag = 'output window, operand 0']
    %10 = vsyncpa [#allocation3], 0
    %s11 = scalar_lea.sflag [#allocation3], 1
    %12 = vsyncpa %s11, 0
    %13 = vsyncpa [#allocation6], 0
    %14 = vsyncpa [#allocation9], 0
    %15 = vsyncpa [#allocation4], 0
    %s16 = scalar_lea.sflag [#allocation4], 1
    %17 = vsyncpa %s16, 0
    loop: start=0, step=1, limit=4
    $region2: #{stf_informer_stack_forward.1} parent=1 // loop_pre_header
      _
    $region3: #{stf_informer_stack_forward.1} parent=1 // loop_header
      %s19 = sphi 0, %s23
      %p20 = scmp.ge.s32.totalorder %s19, 4
      %s29 = sphi 0, %s31
      %s32 = sphi 0, %s29
      %s33 = sphi 0, %s32
      %s49 = sphi 0, %s33
      %s53 = sphi 0, %s53
      %s55 = sphi 0, %s53
      %s56 = sphi 0, %s55
      %s70 = sphi 0, %s56
      %s74 = sphi 0, %s74
      %s76 = sphi 0, %s74
      %s77 = sphi 0, %s76
      %s91 = sphi 0, %s77
      %s95 = sphi 0, %s95
      %s97 = sphi 0, %s95
      %s98 = sphi 0, %s97
      %s112 = sphi 0, %s98
      %s116 = sphi 0, %s116
      %s118 = sphi 0, %s116
      %s119 = sphi 0, %s118
      %s133 = sphi 0, %s119
      %s139 = sphi 0, %s141
      %s142 = sphi 0, %s139
      %s143 = sphi 0, %s142
      %s159 = sphi 0, %s143
    $region4: #{stf_informer_stack_forward.1} parent=1 // loop_header_branch
      %22 = sbr.rel (%p20) target = $region8
    $region5: #{stf_informer_stack_forward.1} parent=1 // loop_body
      %s24 = ssub.s32 %s19, 1
      %s25 = ssub.s32 %s19, 2
      %s26 = sadd.s32 %s19, 1
      %s27 = ssub.s32 %s19, %s26
      %p28 = scmp.eq.s32.totalorder %s27, 0
      %s30 = sadd.s32 %s29, 1
      %s31 = scalar_select %p28, %s29, %s30
      %p34 = pneg %p28
      %p35 = scmp.eq.s32.totalorder %s19, 1
      %p36 = por %p34, %p35
      %p37 = scmp.ne.s32.totalorder %s29, %s32
      %p38 = scmp.eq.s32.totalorder %s19, 0
      %p39 = por %p37, %p38
      %p40 = scmp.ne.s32.totalorder %s29, %s32
      %p41 = scmp.eq.s32.totalorder %s24, 1
      %p42 = por %p40, %p41
      %p43 = scmp.ne.s32.totalorder %s32, %s33
      %p44 = scmp.eq.s32.totalorder %s24, 0
      %p45 = por %p43, %p44
      %p46 = scmp.ne.s32.totalorder %s32, %s33
      %p47 = scmp.eq.s32.totalorder %s25, 1
      %p48 = por %p46, %p47
      %p50 = scmp.ne.s32.totalorder %s33, %s49
      %p51 = scmp.eq.s32.totalorder %s25, 0
      %p52 = por %p50, %p51
      %s54 = sadd.s32 %s53, 1
      %p57 = scmp.eq.s32.totalorder %s19, 1
      %p58 = scmp.ne.s32.totalorder %s53, %s55
      %p59 = scmp.eq.s32.totalorder %s19, 0
      %p60 = por %p58, %p59
      %p61 = scmp.ne.s32.totalorder %s53, %s55
      %p62 = scmp.eq.s32.totalorder %s24, 1
      %p63 = por %p61, %p62
      %p64 = scmp.ne.s32.totalorder %s55, %s56
      %p65 = scmp.eq.s32.totalorder %s24, 0
      %p66 = por %p64, %p65
      %p67 = scmp.ne.s32.totalorder %s55, %s56
      %p68 = scmp.eq.s32.totalorder %s25, 1
      %p69 = por %p67, %p68
      %p71 = scmp.ne.s32.totalorder %s56, %s70
      %p72 = scmp.eq.s32.totalorder %s25, 0
      %p73 = por %p71, %p72
      %s75 = sadd.s32 %s74, 1
      %p78 = scmp.eq.s32.totalorder %s19, 1
      %p79 = scmp.ne.s32.totalorder %s74, %s76
      %p80 = scmp.eq.s32.totalorder %s19, 0
      %p81 = por %p79, %p80
      %p82 = scmp.ne.s32.totalorder %s74, %s76
      %p83 = scmp.eq.s32.totalorder %s24, 1
      %p84 = por %p82, %p83
      %p85 = scmp.ne.s32.totalorder %s76, %s77
      %p86 = scmp.eq.s32.totalorder %s24, 0
      %p87 = por %p85, %p86
      %p88 = scmp.ne.s32.totalorder %s76, %s77
      %p89 = scmp.eq.s32.totalorder %s25, 1
      %p90 = por %p88, %p89
      %p92 = scmp.ne.s32.totalorder %s77, %s91
      %p93 = scmp.eq.s32.totalorder %s25, 0
      %p94 = por %p92, %p93
      %s96 = sadd.s32 %s95, 1
      %p99 = scmp.eq.s32.totalorder %s19, 1
      %p100 = scmp.ne.s32.totalorder %s95, %s97
      %p101 = scmp.eq.s32.totalorder %s19, 0
      %p102 = por %p100, %p101
      %p103 = scmp.ne.s32.totalorder %s95, %s97
      %p104 = scmp.eq.s32.totalorder %s24, 1
      %p105 = por %p103, %p104
      %p106 = scmp.ne.s32.totalorder %s97, %s98
      %p107 = scmp.eq.s32.totalorder %s24, 0
      %p108 = por %p106, %p107
      %p109 = scmp.ne.s32.totalorder %s97, %s98
      %p110 = scmp.eq.s32.totalorder %s25, 1
      %p111 = por %p109, %p110
      %p113 = scmp.ne.s32.totalorder %s98, %s112
      %p114 = scmp.eq.s32.totalorder %s25, 0
      %p115 = por %p113, %p114
      %s117 = sadd.s32 %s116, 1
      %p120 = scmp.eq.s32.totalorder %s19, 1
      %p121 = scmp.ne.s32.totalorder %s116, %s118
      %p122 = scmp.eq.s32.totalorder %s19, 0
      %p123 = por %p121, %p122
      %p124 = scmp.ne.s32.totalorder %s116, %s118
      %p125 = scmp.eq.s32.totalorder %s24, 1
      %p126 = por %p124, %p125
      %p127 = scmp.ne.s32.totalorder %s118, %s119
      %p128 = scmp.eq.s32.totalorder %s24, 0
      %p129 = por %p127, %p128
      %p130 = scmp.ne.s32.totalorder %s118, %s119
      %p131 = scmp.eq.s32.totalorder %s25, 1
      %p132 = por %p130, %p131
      %p134 = scmp.ne.s32.totalorder %s119, %s133
      %p135 = scmp.eq.s32.totalorder %s25, 0
      %p136 = por %p134, %p135
      %s137 = ssub.s32 %s19, %s26
      %p138 = scmp.eq.s32.totalorder %s137, 0
      %s140 = sadd.s32 %s139, 1
      %s141 = scalar_select %p138, %s139, %s140
      %p144 = pneg %p138
      %p145 = scmp.eq.s32.totalorder %s19, 1
      %p146 = por %p144, %p145
      %p147 = scmp.ne.s32.totalorder %s139, %s142
      %p148 = scmp.eq.s32.totalorder %s19, 0
      %p149 = por %p147, %p148
      %p150 = scmp.ne.s32.totalorder %s139, %s142
      %p151 = scmp.eq.s32.totalorder %s24, 1
      %p152 = por %p150, %p151
      %p153 = scmp.ne.s32.totalorder %s142, %s143
      %p154 = scmp.eq.s32.totalorder %s24, 0
      %p155 = por %p153, %p154
      %p156 = scmp.ne.s32.totalorder %s142, %s143
      %p157 = scmp.eq.s32.totalorder %s25, 1
      %p158 = por %p156, %p157
      %p160 = scmp.ne.s32.totalorder %s143, %s159
      %p161 = scmp.eq.s32.totalorder %s25, 0
      %p162 = por %p160, %p161
      %p163 = scmp.le.s32.totalorder 1, %s19
      %p164 = scmp.lt.s32.totalorder %s19, 3
      %p165 = pnand %p163, %p164
      %p166 = pneg %p165
      // Predicated region
      $region9: #{stf_informer_stack_forward.1} parent=5 // pred_check
        _
      $region10: #{stf_informer_stack_forward.1} parent=5 // pred_check_branch
        %168 = sbr.rel (%p165) target = $region12
      $region11: #{stf_informer_stack_forward.1} parent=5 // pred_region
        %s169 = ssub.s32 %s19, 1
        // Predicated region
        $region13: #{stf_informer_stack_forward.1} parent=11 // pred_check
          %p170 = pneg %p66
        $region14: #{stf_informer_stack_forward.1} parent=11 // pred_check_branch
          %172 = sbr.rel (%p170) target = $region16
        $region15: #{stf_informer_stack_forward.1} parent=11 // pred_region
          %s174 = ssub.s32 128, 128
          %175 = vsyncadd [#allocation6], %s174
          %s177 = sshll.u32 [#allocation5], 4
          %s178 = int_to_ptr.vmem [resolvable:$true] %s177
          %180 = dma.hbm_to_vmem [thread:$0]  %s1, 128, %s178, [#allocation6]
        $region16: #{stf_informer_stack_forward.1} parent=11 // pred_fallthru
          _
        // Predicated region
        $region17: #{stf_informer_stack_forward.1} parent=11 // pred_check
          %p181 = pneg %p87
        $region18: #{stf_informer_stack_forward.1} parent=11 // pred_check_branch
          %183 = sbr.rel (%p181) target = $region20
        $region19: #{stf_informer_stack_forward.1} parent=11 // pred_region
          %s185 = ssub.s32 1536, 1536
          %186 = vsyncadd [#allocation6], %s185
          %s187 = sshll.u32 [#allocation7], 4
          %s188 = int_to_ptr.vmem [resolvable:$true] %s187
          %193 = dma.hbm_to_vmem [thread:$0]  %s2, 1536, %s188, [#allocation6], 64, 64, 4
        $region20: #{stf_informer_stack_forward.1} parent=11 // pred_fallthru
          _
        // Predicated region
        $region21: #{stf_informer_stack_forward.1} parent=11 // pred_check
          %p194 = pneg %p108
        $region22: #{stf_informer_stack_forward.1} parent=11 // pred_check_branch
          %196 = sbr.rel (%p194) target = $region24
        $region23: #{stf_informer_stack_forward.1} parent=11 // pred_region
          %s198 = ssub.s32 384, 384
          %199 = vsyncadd [#allocation9], %s198
          %s200 = sshll.u32 [#allocation8], 4
          %s201 = int_to_ptr.vmem [resolvable:$true] %s200
          %206 = dma.hbm_to_vmem [thread:$0]  %s3, 384, %s201, [#allocation9], 128, 128, 8
        $region24: #{stf_informer_stack_forward.1} parent=11 // pred_fallthru
          _
        // Predicated region
        $region25: #{stf_informer_stack_forward.1} parent=11 // pred_check
          %p207 = pneg %p129
        $region26: #{stf_informer_stack_forward.1} parent=11 // pred_check_branch
          %209 = sbr.rel (%p207) target = $region28
        $region27: #{stf_informer_stack_forward.1} parent=11 // pred_region
          %s211 = ssub.s32 4608, 4608
          %212 = vsyncadd [#allocation9], %s211
          %s213 = sshll.u32 [#allocation10], 4
          %s214 = int_to_ptr.vmem [resolvable:$true] %s213
          %219 = dma.hbm_to_vmem [thread:$0]  %s4, 4608, %s214, [#allocation9], 192, 192, 12
        $region28: #{stf_informer_stack_forward.1} parent=11 // pred_fallthru
          _
      $region12: #{stf_informer_stack_forward.1} parent=5 // pred_fallthru
        _
      %p220 = scmp.lt.s32.totalorder %s19, 2
      // Predicated region
      $region29: #{stf_informer_stack_forward.1} parent=5 // pred_check
        %p221 = pneg %p220
      $region30: #{stf_informer_stack_forward.1} parent=5 // pred_check_branch
        %223 = sbr.rel (%p221) target = $region32
      $region31: #{stf_informer_stack_forward.1} parent=5 // pred_region
        // Predicated region
        $region33: #{stf_informer_stack_forward.1} parent=31 // pred_check
          %p224 = pneg %p39
        $region34: #{stf_informer_stack_forward.1} parent=31 // pred_check_branch
          %226 = sbr.rel (%p224) target = $region36
        $region35: #{stf_informer_stack_forward.1} parent=31 // pred_region
          %s227 = sand.u32 %s29, 1
          %s228 = scalar_lea.sflag [#allocation3], %s227
          %s229 = sand.u32 %s29, 1
          %s230 = smul.addr %s229, 32
          %s231 = scalar_lea.vmem [#allocation2], %s230
          %s232 = smul.u32 4, %s19
          %s234 = ssub.s32 512, 512
          %235 = vsyncadd %s228, %s234
          %s236 = smul.addr %s232, 128
          %s237 = scalar_lea.hbm %s0, %s236
          %s238 = sshll.u32 %s231, 4
          %s239 = int_to_ptr.vmem [resolvable:$true] %s238
          %244 = dma.hbm_to_vmem [thread:$0]  %s237, 512, %s239, %s228, 128, 128, 8
        $region36: #{stf_informer_stack_forward.1} parent=31 // pred_fallthru
          _
      $region32: #{stf_informer_stack_forward.1} parent=5 // pred_fallthru
        _
      %p245 = scmp.le.s32.totalorder 1, %s19
      %p246 = scmp.lt.s32.totalorder %s19, 3
      %p247 = pnand %p245, %p246
      %p248 = pneg %p247
      // Predicated region
      $region37: #{stf_informer_stack_forward.1} parent=5 // pred_check
        _
      $region38: #{stf_informer_stack_forward.1} parent=5 // pred_check_branch
        %250 = sbr.rel (%p247) target = $region40
      $region39: #{stf_informer_stack_forward.1} parent=5 // pred_region
        %s251 = ssub.s32 %s19, 1
        %s252 = sand.u32 %s32, 1
        %s253 = scalar_lea.sflag [#allocation3], %s252
        %s254 = sand.u32 %s32, 1
        %s255 = smul.addr %s254, 32
        %s256 = scalar_lea.vmem [#allocation2], %s255
        // Predicated region
        $region41: #{stf_informer_stack_forward.1} parent=39 // pred_check
          %p257 = pneg %p45
        $region42: #{stf_informer_stack_forward.1} parent=39 // pred_check_branch
          %259 = sbr.rel (%p257) target = $region44
        $region43: #{stf_informer_stack_forward.1} parent=39 // pred_region
          %260 = dma.done %s253, 512
        $region44: #{stf_informer_stack_forward.1} parent=39 // pred_fallthru
          _
        // Predicated region
        $region45: #{stf_informer_stack_forward.1} parent=39 // pred_check
          %p261 = pneg %p66
        $region46: #{stf_informer_stack_forward.1} parent=39 // pred_check_branch
          %263 = sbr.rel (%p261) target = $region48
        $region47: #{stf_informer_stack_forward.1} parent=39 // pred_region
          %264 = dma.done [#allocation6], 128
        $region48: #{stf_informer_stack_forward.1} parent=39 // pred_fallthru
          _
        // Predicated region
        $region49: #{stf_informer_stack_forward.1} parent=39 // pred_check
          %p265 = pneg %p87
        $region50: #{stf_informer_stack_forward.1} parent=39 // pred_check_branch
          %267 = sbr.rel (%p265) target = $region52
        $region51: #{stf_informer_stack_forward.1} parent=39 // pred_region
          %268 = dma.done [#allocation6], 1536
        $region52: #{stf_informer_stack_forward.1} parent=39 // pred_fallthru
          _
        // Predicated region
        $region53: #{stf_informer_stack_forward.1} parent=39 // pred_check
          %p269 = pneg %p108
        $region54: #{stf_informer_stack_forward.1} parent=39 // pred_check_branch
          %271 = sbr.rel (%p269) target = $region56
        $region55: #{stf_informer_stack_forward.1} parent=39 // pred_region
          %272 = dma.done [#allocation9], 384
        $region56: #{stf_informer_stack_forward.1} parent=39 // pred_fallthru
          _
        // Predicated region
        $region57: #{stf_informer_stack_forward.1} parent=39 // pred_check
          %p273 = pneg %p129
        $region58: #{stf_informer_stack_forward.1} parent=39 // pred_check_branch
          %275 = sbr.rel (%p273) target = $region60
        $region59: #{stf_informer_stack_forward.1} parent=39 // pred_region
          %276 = dma.done [#allocation9], 4608
        $region60: #{stf_informer_stack_forward.1} parent=39 // pred_fallthru
          _
        %s277 = sand.u32 %s32, 1
        %s278 = scalar_lea.sflag [#allocation3], %s277
        %s279 = sand.u32 %s32, 1
        %s280 = smul.addr %s279, 32
        %s281 = scalar_lea.vmem [#allocation2], %s280
        %p282 = pneg %p45
        %p283 = pneg %p42
        %p284 = pneg %p66
        %p285 = pneg %p63
        %p286 = pneg %p87
        %p287 = pneg %p84
        %p288 = pneg %p108
        %p289 = pneg %p105
        %p290 = pneg %p129
        %p291 = pneg %p126
        %p292 = pneg %p155
        %p293 = pneg %p152
        %s294 = sand.u32 %s142, 1
        %s295 = scalar_lea.sflag [#allocation4], %s294
        %s296 = sand.u32 %s142, 1
        %s297 = smul.addr %s296, 4
        %s298 = scalar_lea.vmem [#allocation11], %s297
        %s299 = smul.u32 4, %s24
        %s300 = smul.u32 4, %s24
        %v302 = vld [vmem:[%s256] sm:$0xff]
        %v303 = vld [vmem:[%s256 + $0x8] sm:$0xff]
        %v304 = vld [vmem:[%s256 + $0x10] sm:$0xff]
        %v305 = vld [vmem:[%s256 + $0x18] sm:$0xff]
        %v306 = vld [vmem:[#allocation5] sm:$0xff]
        %v307 = vld [vmem:[#allocation8] sm:$0xff]
        %v308 = vld [vmem:[#allocation8 + $0x8] sm:$0xff]
        %v309 = vld [vmem:[#allocation8 + $0x10] sm:$0xff]
        %v310 = vld [vmem:[#allocation7] sm:$0xf]
        %v311 = vld [vmem:[#allocation7 + $0x4] sm:$0xf]
        %v312 = vld [vmem:[#allocation7 + $0x8] sm:$0xf]
        %v313 = vld [vmem:[#allocation7 + $0xc] sm:$0xf]
        %v314 = vpack.c.bf16 %v302, %v302
        %v315 = vpack.c.bf16 %v303, %v303
        %v316 = vpack.c.bf16 %v304, %v304
        %v317 = vpack.c.bf16 %v305, %v305
        %v322 = vunpack.c.l.b16 %v310
        %v323 = vunpack.c.l.b16 %v311
        %v324 = vunpack.c.l.b16 %v312
        %v325 = vunpack.c.l.b16 %v313
        %v326 = vpack.c.b16 %v323, %v322
        %v327 = vpack.c.b16 %v325, %v324
        %vm330 = vcmask 261120
        %v332 = vsel %vm330, %v314, 0
        %334 = vmatprep.subr.bf16.mxu0 0
        %335 = vmatpush1.bf16.msra.mxu0 %v326
        %336 = vmatprep.subr.bf16.mxu0 0
        %337 = vmatpush1.bf16.msra.mxu0 %v327
        %338 = vmatprep.subr.bf16.mxu0 0
        %339 = vmatpush1.bf16.msra.mxu0 0
        %340 = vmatprep.subr.bf16.mxu0 0
        %341 = vmatpush1.bf16.msra.mxu0 0
        %342 = vmatprep.subr.bf16.mxu0 0
        %343 = vmatpush1.bf16.msra.mxu0 0
        %344 = vmatprep.subr.bf16.mxu0 0
        %345 = vmatpush1.bf16.msra.mxu0 0
        %346 = vmatprep.subr.bf16.mxu0 0
        %347 = vmatpush1.bf16.msra.mxu0 0
        %348 = vmatprep.subr.bf16.mxu0 0
        %349 = vmatpush1.bf16.msra.mxu0 0
        %350 = vmatprep.subr.bf16.mxu0 0
        %351 = vmatpush1.bf16.msra.mxu0 0
        %352 = vmatprep.subr.bf16.mxu0 0
        %353 = vmatpush1.bf16.msra.mxu0 0
        %354 = vmatprep.subr.bf16.mxu0 0
        %355 = vmatpush1.bf16.msra.mxu0 0
        %356 = vmatprep.subr.bf16.mxu0 0
        %357 = vmatpush1.bf16.msra.mxu0 0
        %358 = vmatprep.subr.bf16.mxu0 0
        %359 = vmatpush1.bf16.msra.mxu0 0
        %360 = vmatprep.subr.bf16.mxu0 0
        %361 = vmatpush1.bf16.msra.mxu0 0
        %362 = vmatprep.subr.bf16.mxu0 0
        %363 = vmatpush1.bf16.msra.mxu0 0
        %364 = vmatprep.subr.bf16.mxu0 0
        %365 = vmatpush1.bf16.msra.mxu0 0
        %366 = vmatprep.mubr.bf16.mxu0 0
        %367 = vmatmul.mubr.bf16.gmra.mrb[0].mxu0 %v332
        %v368 = vpop.f32.mrb[0].mxu0
        %v369 = vadd.f32 0.0, %v368
        %v370 = vpop.f32.mrb[0].mxu0
        %v371 = vpop.f32.mrb[0].mxu0
        %v372 = vpop.f32.mrb[0].mxu0
        %373 = vdwg.mxu0
        %v375 = vsel %vm330, %v315, 0
        %377 = vmatprep.subr.bf16.mxu0 0
        %378 = vmatpush1.bf16.msra.mxu0 %v326
        %379 = vmatprep.subr.bf16.mxu0 0
        %380 = vmatpush1.bf16.msra.mxu0 %v327
        %381 = vmatprep.subr.bf16.mxu0 0
        %382 = vmatpush1.bf16.msra.mxu0 0
        %383 = vmatprep.subr.bf16.mxu0 0
        %384 = vmatpush1.bf16.msra.mxu0 0
        %385 = vmatprep.subr.bf16.mxu0 0
        %386 = vmatpush1.bf16.msra.mxu0 0
        %387 = vmatprep.subr.bf16.mxu0 0
        %388 = vmatpush1.bf16.msra.mxu0 0
        %389 = vmatprep.subr.bf16.mxu0 0
        %390 = vmatpush1.bf16.msra.mxu0 0
        %391 = vmatprep.subr.bf16.mxu0 0
        %392 = vmatpush1.bf16.msra.mxu0 0
        %393 = vmatprep.subr.bf16.mxu0 0
        %394 = vmatpush1.bf16.msra.mxu0 0
        %395 = vmatprep.subr.bf16.mxu0 0
        %396 = vmatpush1.bf16.msra.mxu0 0
        %397 = vmatprep.subr.bf16.mxu0 0
        %398 = vmatpush1.bf16.msra.mxu0 0
        %399 = vmatprep.subr.bf16.mxu0 0
        %400 = vmatpush1.bf16.msra.mxu0 0
        %401 = vmatprep.subr.bf16.mxu0 0
        %402 = vmatpush1.bf16.msra.mxu0 0
        %403 = vmatprep.subr.bf16.mxu0 0
        %404 = vmatpush1.bf16.msra.mxu0 0
        %405 = vmatprep.subr.bf16.mxu0 0
        %406 = vmatpush1.bf16.msra.mxu0 0
        %407 = vmatprep.subr.bf16.mxu0 0
        %408 = vmatpush1.bf16.msra.mxu0 0
        %409 = vmatprep.mubr.bf16.mxu0 0
        %410 = vmatmul.mubr.bf16.gmra.mrb[0].mxu0 %v375
        %v411 = vpop.f32.mrb[0].mxu0
        %v412 = vadd.f32 0.0, %v411
        %v413 = vpop.f32.mrb[0].mxu0
        %v414 = vpop.f32.mrb[0].mxu0
        %v415 = vpop.f32.mrb[0].mxu0
        %416 = vdwg.mxu0
        %v418 = vsel %vm330, %v316, 0
        %420 = vmatprep.subr.bf16.mxu0 0
        %421 = vmatpush1.bf16.msra.mxu0 %v326
        %422 = vmatprep.subr.bf16.mxu0 0
        %423 = vmatpush1.bf16.msra.mxu0 %v327
        %424 = vmatprep.subr.bf16.mxu0 0
        %425 = vmatpush1.bf16.msra.mxu0 0
        %426 = vmatprep.subr.bf16.mxu0 0
        %427 = vmatpush1.bf16.msra.mxu0 0
        %428 = vmatprep.subr.bf16.mxu0 0
        %429 = vmatpush1.bf16.msra.mxu0 0
        %430 = vmatprep.subr.bf16.mxu0 0
        %431 = vmatpush1.bf16.msra.mxu0 0
        %432 = vmatprep.subr.bf16.mxu0 0
        %433 = vmatpush1.bf16.msra.mxu0 0
        %434 = vmatprep.subr.bf16.mxu0 0
        %435 = vmatpush1.bf16.msra.mxu0 0
        %436 = vmatprep.subr.bf16.mxu0 0
        %437 = vmatpush1.bf16.msra.mxu0 0
        %438 = vmatprep.subr.bf16.mxu0 0
        %439 = vmatpush1.bf16.msra.mxu0 0
        %440 = vmatprep.subr.bf16.mxu0 0
        %441 = vmatpush1.bf16.msra.mxu0 0
        %442 = vmatprep.subr.bf16.mxu0 0
        %443 = vmatpush1.bf16.msra.mxu0 0
        %444 = vmatprep.subr.bf16.mxu0 0
        %445 = vmatpush1.bf16.msra.mxu0 0
        %446 = vmatprep.subr.bf16.mxu0 0
        %447 = vmatpush1.bf16.msra.mxu0 0
        %448 = vmatprep.subr.bf16.mxu0 0
        %449 = vmatpush1.bf16.msra.mxu0 0
        %450 = vmatprep.subr.bf16.mxu0 0
        %451 = vmatpush1.bf16.msra.mxu0 0
        %452 = vmatprep.mubr.bf16.mxu0 0
        %453 = vmatmul.mubr.bf16.gmra.mrb[0].mxu0 %v418
        %v454 = vpop.f32.mrb[0].mxu0
        %v455 = vadd.f32 0.0, %v454
        %v456 = vpop.f32.mrb[0].mxu0
        %v457 = vpop.f32.mrb[0].mxu0
        %v458 = vpop.f32.mrb[0].mxu0
        %459 = vdwg.mxu0
        %v461 = vsel %vm330, %v317, 0
        %463 = vmatprep.subr.bf16.mxu0 0
        %464 = vmatpush1.bf16.msra.mxu0 %v326
        %465 = vmatprep.subr.bf16.mxu0 0
        %466 = vmatpush1.bf16.msra.mxu0 %v327
        %467 = vmatprep.subr.bf16.mxu0 0
        %468 = vmatpush1.bf16.msra.mxu0 0
        %469 = vmatprep.subr.bf16.mxu0 0
        %470 = vmatpush1.bf16.msra.mxu0 0
        %471 = vmatprep.subr.bf16.mxu0 0
        %472 = vmatpush1.bf16.msra.mxu0 0
        %473 = vmatprep.subr.bf16.mxu0 0
        %474 = vmatpush1.bf16.msra.mxu0 0
        %475 = vmatprep.subr.bf16.mxu0 0
        %476 = vmatpush1.bf16.msra.mxu0 0
        %477 = vmatprep.subr.bf16.mxu0 0
        %478 = vmatpush1.bf16.msra.mxu0 0
        %479 = vmatprep.subr.bf16.mxu0 0
        %480 = vmatpush1.bf16.msra.mxu0 0
        %481 = vmatprep.subr.bf16.mxu0 0
        %482 = vmatpush1.bf16.msra.mxu0 0
        %483 = vmatprep.subr.bf16.mxu0 0
        %484 = vmatpush1.bf16.msra.mxu0 0
        %485 = vmatprep.subr.bf16.mxu0 0
        %486 = vmatpush1.bf16.msra.mxu0 0
        %487 = vmatprep.subr.bf16.mxu0 0
        %488 = vmatpush1.bf16.msra.mxu0 0
        %489 = vmatprep.subr.bf16.mxu0 0
        %490 = vmatpush1.bf16.msra.mxu0 0
        %491 = vmatprep.subr.bf16.mxu0 0
        %492 = vmatpush1.bf16.msra.mxu0 0
        %493 = vmatprep.subr.bf16.mxu0 0
        %494 = vmatpush1.bf16.msra.mxu0 0
        %495 = vmatprep.mubr.bf16.mxu0 0
        %496 = vmatmul.mubr.bf16.gmra.mrb[0].mxu0 %v461
        %v497 = vpop.f32.mrb[0].mxu0
        %v498 = vadd.f32 0.0, %v497
        %v499 = vpop.f32.mrb[0].mxu0
        %v500 = vpop.f32.mrb[0].mxu0
        %v501 = vpop.f32.mrb[0].mxu0
        %502 = vdwg.mxu0
        %v503 = vlaneseq
        %v504 = vshrl.u32 %v503, 7
        %v505 = vsub.s32 4, %v504
        %v506 = vrot.slane %v308, %v505
        %v507 = vmul.f32 %v369, %v506
        %v508 = vmul.f32 %v412, %v506
        %v509 = vmul.f32 %v455, %v506
        %v510 = vmul.f32 %v498, %v506
        %vm511 = vcmask 260096
        %v512 = vsel %vm511, %v507, 0.0
        %513 = vadd.xlane.f32.xlu0 %v512
        %v514 = vpop.xlane.xlu0 %513
        %v515 = vsel %vm511, %v508, 0.0
        %516 = vadd.xlane.f32.xlu0 %v515
        %v517 = vpop.xlane.xlu0 %516
        %v518 = vsel %vm511, %v509, 0.0
        %519 = vadd.xlane.f32.xlu0 %v518
        %v520 = vpop.xlane.xlu0 %519
        %v521 = vsel %vm511, %v510, 0.0
        %522 = vadd.xlane.f32.xlu0 %v521
        %v523 = vpop.xlane.xlu0 %522
        %v525 = vrot.slane %v308, 5
        %v526 = vsel %vm330, %v525, 0
        %v529 = vsel %vm330, %v369, 0
        %531 = vmatprep.subr.mxu0 0.0
        %532 = vmatpush1.xpose.msra.mxu0 %v529
        %533 = vmatprep.subr.mxu0 0.0
        %534 = vmatpush1.xpose.msra.mxu0 0.0
        %535 = vmatprep.subr.mxu0 0.0
        %536 = vmatpush1.xpose.msra.mxu0 0.0
        %537 = vmatprep.subr.mxu0 0.0
        %538 = vmatpush1.xpose.msra.mxu0 0.0
        %539 = vmatprep.subr.mxu0 0.0
        %540 = vmatpush1.xpose.msra.mxu0 0.0
        %541 = vmatprep.subr.mxu0 0.0
        %542 = vmatpush1.xpose.msra.mxu0 0.0
        %543 = vmatprep.subr.mxu0 0.0
        %544 = vmatpush1.xpose.msra.mxu0 0.0
        %545 = vmatprep.subr.mxu0 0.0
        %546 = vmatpush1.xpose.msra.mxu0 0.0
        %547 = vmatprep.subr.mxu0 0.0
        %548 = vmatpush1.xpose.msra.mxu0 0.0
        %549 = vmatprep.subr.mxu0 0.0
        %550 = vmatpush1.xpose.msra.mxu0 0.0
        %551 = vmatprep.subr.mxu0 0.0
        %552 = vmatpush1.xpose.msra.mxu0 0.0
        %553 = vmatprep.subr.mxu0 0.0
        %554 = vmatpush1.xpose.msra.mxu0 0.0
        %555 = vmatprep.subr.mxu0 0.0
        %556 = vmatpush1.xpose.msra.mxu0 0.0
        %557 = vmatprep.subr.mxu0 0.0
        %558 = vmatpush1.xpose.msra.mxu0 0.0
        %559 = vmatprep.subr.mxu0 0.0
        %560 = vmatpush1.xpose.msra.mxu0 0.0
        %561 = vmatprep.subr.mxu0 0.0
        %562 = vmatpush1.xpose.msra.mxu0 0.0
        %563 = vmatprep.subr.mxu0 0.0
        %564 = vmatpush1.xpose.msra.mxu0 0.0
        %565 = vmatprep.subr.mxu0 0.0
        %566 = vmatpush1.xpose.msra.mxu0 0.0
        %567 = vmatprep.subr.mxu0 0.0
        %568 = vmatpush1.xpose.msra.mxu0 0.0
        %569 = vmatprep.subr.mxu0 0.0
        %570 = vmatpush1.xpose.msra.mxu0 0.0
        %571 = vmatprep.subr.mxu0 0.0
        %572 = vmatpush1.xpose.msra.mxu0 0.0
        %573 = vmatprep.subr.mxu0 0.0
        %574 = vmatpush1.xpose.msra.mxu0 0.0
        %575 = vmatprep.subr.mxu0 0.0
        %576 = vmatpush1.xpose.msra.mxu0 0.0
        %577 = vmatprep.subr.mxu0 0.0
        %578 = vmatpush1.xpose.msra.mxu0 0.0
        %579 = vmatprep.subr.mxu0 0.0
        %580 = vmatpush1.xpose.msra.mxu0 0.0
        %581 = vmatprep.subr.mxu0 0.0
        %582 = vmatpush1.xpose.msra.mxu0 0.0
        %583 = vmatprep.subr.mxu0 0.0
        %584 = vmatpush1.xpose.msra.mxu0 0.0
        %585 = vmatprep.subr.mxu0 0.0
        %586 = vmatpush1.xpose.msra.mxu0 0.0
        %587 = vmatprep.subr.mxu0 0.0
        %588 = vmatpush1.xpose.msra.mxu0 0.0
        %589 = vmatprep.subr.mxu0 0.0
        %590 = vmatpush1.xpose.msra.mxu0 0.0
        %591 = vmatprep.subr.mxu0 0.0
        %592 = vmatpush1.xpose.msra.mxu0 0.0
        %593 = vmatprep.subr.mxu0 0.0
        %594 = vmatpush1.xpose.msra.mxu0 0.0
        %595 = vmatprep.mubr.f32.mxu0 0.0
        %596 = vmatmul.mubr.f32.gmra.mrb[0].mxu0 %v526
        %v597 = vpop.f32.mrb[0].mxu0
        %v598 = vadd.f32 0.0, %v597
        %v599 = vpop.f32.mrb[0].mxu0
        %600 = vdwg.mxu0
        %v602 = vsel %vm330, %v412, 0
        %604 = vmatprep.subr.mxu0 0.0
        %605 = vmatpush1.xpose.msra.mxu0 %v602
        %606 = vmatprep.subr.mxu0 0.0
        %607 = vmatpush1.xpose.msra.mxu0 0.0
        %608 = vmatprep.subr.mxu0 0.0
        %609 = vmatpush1.xpose.msra.mxu0 0.0
        %610 = vmatprep.subr.mxu0 0.0
        %611 = vmatpush1.xpose.msra.mxu0 0.0
        %612 = vmatprep.subr.mxu0 0.0
        %613 = vmatpush1.xpose.msra.mxu0 0.0
        %614 = vmatprep.subr.mxu0 0.0
        %615 = vmatpush1.xpose.msra.mxu0 0.0
        %616 = vmatprep.subr.mxu0 0.0
        %617 = vmatpush1.xpose.msra.mxu0 0.0
        %618 = vmatprep.subr.mxu0 0.0
        %619 = vmatpush1.xpose.msra.mxu0 0.0
        %620 = vmatprep.subr.mxu0 0.0
        %621 = vmatpush1.xpose.msra.mxu0 0.0
        %622 = vmatprep.subr.mxu0 0.0
        %623 = vmatpush1.xpose.msra.mxu0 0.0
        %624 = vmatprep.subr.mxu0 0.0
        %625 = vmatpush1.xpose.msra.mxu0 0.0
        %626 = vmatprep.subr.mxu0 0.0
        %627 = vmatpush1.xpose.msra.mxu0 0.0
        %628 = vmatprep.subr.mxu0 0.0
        %629 = vmatpush1.xpose.msra.mxu0 0.0
        %630 = vmatprep.subr.mxu0 0.0
        %631 = vmatpush1.xpose.msra.mxu0 0.0
        %632 = vmatprep.subr.mxu0 0.0
        %633 = vmatpush1.xpose.msra.mxu0 0.0
        %634 = vmatprep.subr.mxu0 0.0
        %635 = vmatpush1.xpose.msra.mxu0 0.0
        %636 = vmatprep.subr.mxu0 0.0
        %637 = vmatpush1.xpose.msra.mxu0 0.0
        %638 = vmatprep.subr.mxu0 0.0
        %639 = vmatpush1.xpose.msra.mxu0 0.0
        %640 = vmatprep.subr.mxu0 0.0
        %641 = vmatpush1.xpose.msra.mxu0 0.0
        %642 = vmatprep.subr.mxu0 0.0
        %643 = vmatpush1.xpose.msra.mxu0 0.0
        %644 = vmatprep.subr.mxu0 0.0
        %645 = vmatpush1.xpose.msra.mxu0 0.0
        %646 = vmatprep.subr.mxu0 0.0
        %647 = vmatpush1.xpose.msra.mxu0 0.0
        %648 = vmatprep.subr.mxu0 0.0
        %649 = vmatpush1.xpose.msra.mxu0 0.0
        %650 = vmatprep.subr.mxu0 0.0
        %651 = vmatpush1.xpose.msra.mxu0 0.0
        %652 = vmatprep.subr.mxu0 0.0
        %653 = vmatpush1.xpose.msra.mxu0 0.0
        %654 = vmatprep.subr.mxu0 0.0
        %655 = vmatpush1.xpose.msra.mxu0 0.0
        %656 = vmatprep.subr.mxu0 0.0
        %657 = vmatpush1.xpose.msra.mxu0 0.0
        %658 = vmatprep.subr.mxu0 0.0
        %659 = vmatpush1.xpose.msra.mxu0 0.0
        %660 = vmatprep.subr.mxu0 0.0
        %661 = vmatpush1.xpose.msra.mxu0 0.0
        %662 = vmatprep.subr.mxu0 0.0
        %663 = vmatpush1.xpose.msra.mxu0 0.0
        %664 = vmatprep.subr.mxu0 0.0
        %665 = vmatpush1.xpose.msra.mxu0 0.0
        %666 = vmatprep.subr.mxu0 0.0
        %667 = vmatpush1.xpose.msra.mxu0 0.0
        %668 = vmatprep.mubr.f32.mxu0 0.0
        %669 = vmatmul.mubr.f32.gmra.mrb[0].mxu0 %v526
        %v670 = vpop.f32.mrb[0].mxu0
        %v671 = vadd.f32 0.0, %v670
        %v672 = vpop.f32.mrb[0].mxu0
        %673 = vdwg.mxu0
        %v675 = vsel %vm330, %v455, 0
        %677 = vmatprep.subr.mxu0 0.0
        %678 = vmatpush1.xpose.msra.mxu0 %v675
        %679 = vmatprep.subr.mxu0 0.0
        %680 = vmatpush1.xpose.msra.mxu0 0.0
        %681 = vmatprep.subr.mxu0 0.0
        %682 = vmatpush1.xpose.msra.mxu0 0.0
        %683 = vmatprep.subr.mxu0 0.0
        %684 = vmatpush1.xpose.msra.mxu0 0.0
        %685 = vmatprep.subr.mxu0 0.0
        %686 = vmatpush1.xpose.msra.mxu0 0.0
        %687 = vmatprep.subr.mxu0 0.0
        %688 = vmatpush1.xpose.msra.mxu0 0.0
        %689 = vmatprep.subr.mxu0 0.0
        %690 = vmatpush1.xpose.msra.mxu0 0.0
        %691 = vmatprep.subr.mxu0 0.0
        %692 = vmatpush1.xpose.msra.mxu0 0.0
        %693 = vmatprep.subr.mxu0 0.0
        %694 = vmatpush1.xpose.msra.mxu0 0.0
        %695 = vmatprep.subr.mxu0 0.0
        %696 = vmatpush1.xpose.msra.mxu0 0.0
        %697 = vmatprep.subr.mxu0 0.0
        %698 = vmatpush1.xpose.msra.mxu0 0.0
        %699 = vmatprep.subr.mxu0 0.0
        %700 = vmatpush1.xpose.msra.mxu0 0.0
        %701 = vmatprep.subr.mxu0 0.0
        %702 = vmatpush1.xpose.msra.mxu0 0.0
        %703 = vmatprep.subr.mxu0 0.0
        %704 = vmatpush1.xpose.msra.mxu0 0.0
        %705 = vmatprep.subr.mxu0 0.0
        %706 = vmatpush1.xpose.msra.mxu0 0.0
        %707 = vmatprep.subr.mxu0 0.0
        %708 = vmatpush1.xpose.msra.mxu0 0.0
        %709 = vmatprep.subr.mxu0 0.0
        %710 = vmatpush1.xpose.msra.mxu0 0.0
        %711 = vmatprep.subr.mxu0 0.0
        %712 = vmatpush1.xpose.msra.mxu0 0.0
        %713 = vmatprep.subr.mxu0 0.0
        %714 = vmatpush1.xpose.msra.mxu0 0.0
        %715 = vmatprep.subr.mxu0 0.0
        %716 = vmatpush1.xpose.msra.mxu0 0.0
        %717 = vmatprep.subr.mxu0 0.0
        %718 = vmatpush1.xpose.msra.mxu0 0.0
        %719 = vmatprep.subr.mxu0 0.0
        %720 = vmatpush1.xpose.msra.mxu0 0.0
        %721 = vmatprep.subr.mxu0 0.0
        %722 = vmatpush1.xpose.msra.mxu0 0.0
        %723 = vmatprep.subr.mxu0 0.0
        %724 = vmatpush1.xpose.msra.mxu0 0.0
        %725 = vmatprep.subr.mxu0 0.0
        %726 = vmatpush1.xpose.msra.mxu0 0.0
        %727 = vmatprep.subr.mxu0 0.0
        %728 = vmatpush1.xpose.msra.mxu0 0.0
        %729 = vmatprep.subr.mxu0 0.0
        %730 = vmatpush1.xpose.msra.mxu0 0.0
        %731 = vmatprep.subr.mxu0 0.0
        %732 = vmatpush1.xpose.msra.mxu0 0.0
        %733 = vmatprep.subr.mxu0 0.0
        %734 = vmatpush1.xpose.msra.mxu0 0.0
        %735 = vmatprep.subr.mxu0 0.0
        %736 = vmatpush1.xpose.msra.mxu0 0.0
        %737 = vmatprep.subr.mxu0 0.0
        %738 = vmatpush1.xpose.msra.mxu0 0.0
        %739 = vmatprep.subr.mxu0 0.0
        %740 = vmatpush1.xpose.msra.mxu0 0.0
        %741 = vmatprep.mubr.f32.mxu0 0.0
        %742 = vmatmul.mubr.f32.gmra.mrb[0].mxu0 %v526
        %v743 = vpop.f32.mrb[0].mxu0
        %v744 = vadd.f32 0.0, %v743
        %v745 = vpop.f32.mrb[0].mxu0
        %746 = vdwg.mxu0
        %v748 = vsel %vm330, %v498, 0
        %750 = vmatprep.subr.mxu0 0.0
        %751 = vmatpush1.xpose.msra.mxu0 %v748
        %752 = vmatprep.subr.mxu0 0.0
        %753 = vmatpush1.xpose.msra.mxu0 0.0
        %754 = vmatprep.subr.mxu0 0.0
        %755 = vmatpush1.xpose.msra.mxu0 0.0
        %756 = vmatprep.subr.mxu0 0.0
        %757 = vmatpush1.xpose.msra.mxu0 0.0
        %758 = vmatprep.subr.mxu0 0.0
        %759 = vmatpush1.xpose.msra.mxu0 0.0
        %760 = vmatprep.subr.mxu0 0.0
        %761 = vmatpush1.xpose.msra.mxu0 0.0
        %762 = vmatprep.subr.mxu0 0.0
        %763 = vmatpush1.xpose.msra.mxu0 0.0
        %764 = vmatprep.subr.mxu0 0.0
        %765 = vmatpush1.xpose.msra.mxu0 0.0
        %766 = vmatprep.subr.mxu0 0.0
        %767 = vmatpush1.xpose.msra.mxu0 0.0
        %768 = vmatprep.subr.mxu0 0.0
        %769 = vmatpush1.xpose.msra.mxu0 0.0
        %770 = vmatprep.subr.mxu0 0.0
        %771 = vmatpush1.xpose.msra.mxu0 0.0
        %772 = vmatprep.subr.mxu0 0.0
        %773 = vmatpush1.xpose.msra.mxu0 0.0
        %774 = vmatprep.subr.mxu0 0.0
        %775 = vmatpush1.xpose.msra.mxu0 0.0
        %776 = vmatprep.subr.mxu0 0.0
        %777 = vmatpush1.xpose.msra.mxu0 0.0
        %778 = vmatprep.subr.mxu0 0.0
        %779 = vmatpush1.xpose.msra.mxu0 0.0
        %780 = vmatprep.subr.mxu0 0.0
        %781 = vmatpush1.xpose.msra.mxu0 0.0
        %782 = vmatprep.subr.mxu0 0.0
        %783 = vmatpush1.xpose.msra.mxu0 0.0
        %784 = vmatprep.subr.mxu0 0.0
        %785 = vmatpush1.xpose.msra.mxu0 0.0
        %786 = vmatprep.subr.mxu0 0.0
        %787 = vmatpush1.xpose.msra.mxu0 0.0
        %788 = vmatprep.subr.mxu0 0.0
        %789 = vmatpush1.xpose.msra.mxu0 0.0
        %790 = vmatprep.subr.mxu0 0.0
        %791 = vmatpush1.xpose.msra.mxu0 0.0
        %792 = vmatprep.subr.mxu0 0.0
        %793 = vmatpush1.xpose.msra.mxu0 0.0
        %794 = vmatprep.subr.mxu0 0.0
        %795 = vmatpush1.xpose.msra.mxu0 0.0
        %796 = vmatprep.subr.mxu0 0.0
        %797 = vmatpush1.xpose.msra.mxu0 0.0
        %798 = vmatprep.subr.mxu0 0.0
        %799 = vmatpush1.xpose.msra.mxu0 0.0
        %800 = vmatprep.subr.mxu0 0.0
        %801 = vmatpush1.xpose.msra.mxu0 0.0
        %802 = vmatprep.subr.mxu0 0.0
        %803 = vmatpush1.xpose.msra.mxu0 0.0
        %804 = vmatprep.subr.mxu0 0.0
        %805 = vmatpush1.xpose.msra.mxu0 0.0
        %806 = vmatprep.subr.mxu0 0.0
        %807 = vmatpush1.xpose.msra.mxu0 0.0
        %808 = vmatprep.subr.mxu0 0.0
        %809 = vmatpush1.xpose.msra.mxu0 0.0
        %810 = vmatprep.subr.mxu0 0.0
        %811 = vmatpush1.xpose.msra.mxu0 0.0
        %812 = vmatprep.subr.mxu0 0.0
        %813 = vmatpush1.xpose.msra.mxu0 0.0
        %814 = vmatprep.mubr.f32.mxu0 0.0
        %815 = vmatmul.mubr.f32.gmra.mrb[0].mxu0 %v526
        %v816 = vpop.f32.mrb[0].mxu0
        %v817 = vadd.f32 0.0, %v816
        %v818 = vpop.f32.mrb[0].mxu0
        %819 = vdwg.mxu0
        %v820 = vlaneseq
        %v821 = vshrl.u32 %v820, 7
        %v822 = vsub.s32 0, %v821
        %v823 = vrot.slane %v598, %v822
        %v824 = vlaneseq
        %v825 = vshrl.u32 %v824, 7
        %v826 = vsub.s32 0, %v825
        %v827 = vrot.slane %v671, %v826
        %v828 = vlaneseq
        %v829 = vshrl.u32 %v828, 7
        %v830 = vsub.s32 0, %v829
        %v831 = vrot.slane %v744, %v830
        %v832 = vlaneseq
        %v833 = vshrl.u32 %v832, 7
        %v834 = vsub.s32 0, %v833
        %v835 = vrot.slane %v817, %v834
        %v836 = vadd.f32 %v514, %v823
        %v837 = vadd.f32 %v517, %v827
        %v838 = vadd.f32 %v520, %v831
        %v839 = vadd.f32 %v523, %v835
        %vm840 = vcmp.gt.f32.partialorder %v836, 0.0
        %vm841 = vcmp.gt.f32.partialorder %v837, 0.0
        %vm842 = vcmp.gt.f32.partialorder %v838, 0.0
        %vm843 = vcmp.gt.f32.partialorder %v839, 0.0
        %v844 = vmul.f32 %v836, 0.2
        %v845 = vmul.f32 %v837, 0.2
        %v846 = vmul.f32 %v838, 0.2
        %v847 = vmul.f32 %v839, 0.2
        %v848 = vsel %vm840, %v836, %v844
        %v849 = vsel %vm841, %v837, %v845
        %v850 = vsel %vm842, %v838, %v846
        %v851 = vsel %vm843, %v839, %v847
        %vm852 = vcmp.gt.f32.partialorder %v306, 0.0
        %v853 = vsel %vm852, 1, 0
        %vm854 = vcmp.eq.s32.totalorder %v853, 1
        %v855 = vsel %vm854, %v848, -1e+09
        %v856 = vsel %vm854, %v849, -1e+09
        %v857 = vsel %vm854, %v850, -1e+09
        %v858 = vsel %vm854, %v851, -1e+09
        %vm859 = vcmask 55296
        %v860 = vsel %vm859, %v855, -inf
        %861 = vmax.xlane.f32.xlu0 %v860
        %v862 = vpop.xlane.xlu0 %861
        %v863 = vsel %vm859, %v856, -inf
        %864 = vmax.xlane.f32.xlu0 %v863
        %v865 = vpop.xlane.xlu0 %864
        %v866 = vsel %vm859, %v857, -inf
        %867 = vmax.xlane.f32.xlu0 %v866
        %v868 = vpop.xlane.xlu0 %867
        %v869 = vsel %vm859, %v858, -inf
        %870 = vmax.xlane.f32.xlu0 %v869
        %v871 = vpop.xlane.xlu0 %870
        %v872 = vsub.f32 %v855, %v862
        %v873 = vsub.f32 %v856, %v865
        %v874 = vsub.f32 %v857, %v868
        %v875 = vsub.f32 %v858, %v871
        %v876 = vmul.f32 %v872, 1.442695
        %v877 = vpow.pop %v876
        %v878 = vmul.f32 %v873, 1.442695
        %v879 = vpow.pop %v878
        %v880 = vmul.f32 %v874, 1.442695
        %v881 = vpow.pop %v880
        %v882 = vmul.f32 %v875, 1.442695
        %v883 = vpow.pop %v882
        %v884 = vsel %vm859, %v877, 0.0
        %885 = vadd.xlane.f32.xlu0 %v884
        %v886 = vpop.xlane.xlu0 %885
        %v887 = vsel %vm859, %v879, 0.0
        %888 = vadd.xlane.f32.xlu0 %v887
        %v889 = vpop.xlane.xlu0 %888
        %v890 = vsel %vm859, %v881, 0.0
        %891 = vadd.xlane.f32.xlu0 %v890
        %v892 = vpop.xlane.xlu0 %891
        %v893 = vsel %vm859, %v883, 0.0
        %894 = vadd.xlane.f32.xlu0 %v893
        %v895 = vpop.xlane.xlu0 %894
        %v896 = vrcp.pop %v886
        %v897 = vmul.f32 %v877, %v896
        %v898 = vrcp.pop %v889
        %v899 = vmul.f32 %v879, %v898
        %v900 = vrcp.pop %v892
        %v901 = vmul.f32 %v881, %v900
        %v902 = vrcp.pop %v895
        %v903 = vmul.f32 %v883, %v902
        %vm904 = vcmask 56320
        %v906 = vsel %vm904, %v897, 0
        %vm908 = vcmask 1046528
        %v909 = vsel %vm908, %v369, 0
        %911 = vmatprep.subr.mxu0 0.0
        %912 = vmatpush1.msra.mxu0 %v909
        %913 = vmatprep.subr.mxu0 0.0
        %914 = vmatpush1.msra.mxu0 0.0
        %915 = vmatprep.subr.mxu0 0.0
        %916 = vmatpush1.msra.mxu0 0.0
        %917 = vmatprep.subr.mxu0 0.0
        %918 = vmatpush1.msra.mxu0 0.0
        %919 = vmatprep.subr.mxu0 0.0
        %920 = vmatpush1.msra.mxu0 0.0
        %921 = vmatprep.subr.mxu0 0.0
        %922 = vmatpush1.msra.mxu0 0.0
        %923 = vmatprep.subr.mxu0 0.0
        %924 = vmatpush1.msra.mxu0 0.0
        %925 = vmatprep.subr.mxu0 0.0
        %926 = vmatpush1.msra.mxu0 0.0
        %927 = vmatprep.subr.mxu0 0.0
        %928 = vmatpush1.msra.mxu0 0.0
        %929 = vmatprep.subr.mxu0 0.0
        %930 = vmatpush1.msra.mxu0 0.0
        %931 = vmatprep.subr.mxu0 0.0
        %932 = vmatpush1.msra.mxu0 0.0
        %933 = vmatprep.subr.mxu0 0.0
        %934 = vmatpush1.msra.mxu0 0.0
        %935 = vmatprep.subr.mxu0 0.0
        %936 = vmatpush1.msra.mxu0 0.0
        %937 = vmatprep.subr.mxu0 0.0
        %938 = vmatpush1.msra.mxu0 0.0
        %939 = vmatprep.subr.mxu0 0.0
        %940 = vmatpush1.msra.mxu0 0.0
        %941 = vmatprep.subr.mxu0 0.0
        %942 = vmatpush1.msra.mxu0 0.0
        %943 = vmatprep.subr.mxu0 0.0
        %944 = vmatpush1.msra.mxu0 0.0
        %945 = vmatprep.subr.mxu0 0.0
        %946 = vmatpush1.msra.mxu0 0.0
        %947 = vmatprep.subr.mxu0 0.0
        %948 = vmatpush1.msra.mxu0 0.0
        %949 = vmatprep.subr.mxu0 0.0
        %950 = vmatpush1.msra.mxu0 0.0
        %951 = vmatprep.subr.mxu0 0.0
        %952 = vmatpush1.msra.mxu0 0.0
        %953 = vmatprep.subr.mxu0 0.0
        %954 = vmatpush1.msra.mxu0 0.0
        %955 = vmatprep.subr.mxu0 0.0
        %956 = vmatpush1.msra.mxu0 0.0
        %957 = vmatprep.subr.mxu0 0.0
        %958 = vmatpush1.msra.mxu0 0.0
        %959 = vmatprep.subr.mxu0 0.0
        %960 = vmatpush1.msra.mxu0 0.0
        %961 = vmatprep.subr.mxu0 0.0
        %962 = vmatpush1.msra.mxu0 0.0
        %963 = vmatprep.subr.mxu0 0.0
        %964 = vmatpush1.msra.mxu0 0.0
        %965 = vmatprep.subr.mxu0 0.0
        %966 = vmatpush1.msra.mxu0 0.0
        %967 = vmatprep.subr.mxu0 0.0
        %968 = vmatpush1.msra.mxu0 0.0
        %969 = vmatprep.subr.mxu0 0.0
        %970 = vmatpush1.msra.mxu0 0.0
        %971 = vmatprep.subr.mxu0 0.0
        %972 = vmatpush1.msra.mxu0 0.0
        %973 = vmatprep.subr.mxu0 0.0
        %974 = vmatpush1.msra.mxu0 0.0
        %975 = vmatprep.mubr.f32.mxu0 0.0
        %976 = vmatmul.mubr.f32.gmra.mrb[0].mxu0 %v906
        %v977 = vpop.f32.mrb[0].mxu0
        %v978 = vadd.f32 0.0, %v977
        %v979 = vpop.f32.mrb[0].mxu0
        %980 = vdwg.mxu0
        %v982 = vsel %vm904, %v899, 0
        %v984 = vsel %vm908, %v412, 0
        %986 = vmatprep.subr.mxu0 0.0
        %987 = vmatpush1.msra.mxu0 %v984
        %988 = vmatprep.subr.mxu0 0.0
        %989 = vmatpush1.msra.mxu0 0.0
        %990 = vmatprep.subr.mxu0 0.0
        %991 = vmatpush1.msra.mxu0 0.0
        %992 = vmatprep.subr.mxu0 0.0
        %993 = vmatpush1.msra.mxu0 0.0
        %994 = vmatprep.subr.mxu0 0.0
        %995 = vmatpush1.msra.mxu0 0.0
        %996 = vmatprep.subr.mxu0 0.0
        %997 = vmatpush1.msra.mxu0 0.0
        %998 = vmatprep.subr.mxu0 0.0
        %999 = vmatpush1.msra.mxu0 0.0
        %1000 = vmatprep.subr.mxu0 0.0
        %1001 = vmatpush1.msra.mxu0 0.0
        %1002 = vmatprep.subr.mxu0 0.0
        %1003 = vmatpush1.msra.mxu0 0.0
        %1004 = vmatprep.subr.mxu0 0.0
        %1005 = vmatpush1.msra.mxu0 0.0
        %1006 = vmatprep.subr.mxu0 0.0
        %1007 = vmatpush1.msra.mxu0 0.0
        %1008 = vmatprep.subr.mxu0 0.0
        %1009 = vmatpush1.msra.mxu0 0.0
        %1010 = vmatprep.subr.mxu0 0.0
        %1011 = vmatpush1.msra.mxu0 0.0
        %1012 = vmatprep.subr.mxu0 0.0
        %1013 = vmatpush1.msra.mxu0 0.0
        %1014 = vmatprep.subr.mxu0 0.0
        %1015 = vmatpush1.msra.mxu0 0.0
        %1016 = vmatprep.subr.mxu0 0.0
        %1017 = vmatpush1.msra.mxu0 0.0
        %1018 = vmatprep.subr.mxu0 0.0
        %1019 = vmatpush1.msra.mxu0 0.0
        %1020 = vmatprep.subr.mxu0 0.0
        %1021 = vmatpush1.msra.mxu0 0.0
        %1022 = vmatprep.subr.mxu0 0.0
        %1023 = vmatpush1.msra.mxu0 0.0
        %1024 = vmatprep.subr.mxu0 0.0
        %1025 = vmatpush1.msra.mxu0 0.0
        %1026 = vmatprep.subr.mxu0 0.0
        %1027 = vmatpush1.msra.mxu0 0.0
        %1028 = vmatprep.subr.mxu0 0.0
        %1029 = vmatpush1.msra.mxu0 0.0
        %1030 = vmatprep.subr.mxu0 0.0
        %1031 = vmatpush1.msra.mxu0 0.0
        %1032 = vmatprep.subr.mxu0 0.0
        %1033 = vmatpush1.msra.mxu0 0.0
        %1034 = vmatprep.subr.mxu0 0.0
        %1035 = vmatpush1.msra.mxu0 0.0
        %1036 = vmatprep.subr.mxu0 0.0
        %1037 = vmatpush1.msra.mxu0 0.0
        %1038 = vmatprep.subr.mxu0 0.0
        %1039 = vmatpush1.msra.mxu0 0.0
        %1040 = vmatprep.subr.mxu0 0.0
        %1041 = vmatpush1.msra.mxu0 0.0
        %1042 = vmatprep.subr.mxu0 0.0
        %1043 = vmatpush1.msra.mxu0 0.0
        %1044 = vmatprep.subr.mxu0 0.0
        %1045 = vmatpush1.msra.mxu0 0.0
        %1046 = vmatprep.subr.mxu0 0.0
        %1047 = vmatpush1.msra.mxu0 0.0
        %1048 = vmatprep.subr.mxu0 0.0
        %1049 = vmatpush1.msra.mxu0 0.0
        %1050 = vmatprep.mubr.f32.mxu0 0.0
        %1051 = vmatmul.mubr.f32.gmra.mrb[0].mxu0 %v982
        %v1052 = vpop.f32.mrb[0].mxu0
        %v1053 = vadd.f32 0.0, %v1052
        %v1054 = vpop.f32.mrb[0].mxu0
        %1055 = vdwg.mxu0
        %v1057 = vsel %vm904, %v901, 0
        %v1059 = vsel %vm908, %v455, 0
        %1061 = vmatprep.subr.mxu0 0.0
        %1062 = vmatpush1.msra.mxu0 %v1059
        %1063 = vmatprep.subr.mxu0 0.0
        %1064 = vmatpush1.msra.mxu0 0.0
        %1065 = vmatprep.subr.mxu0 0.0
        %1066 = vmatpush1.msra.mxu0 0.0
        %1067 = vmatprep.subr.mxu0 0.0
        %1068 = vmatpush1.msra.mxu0 0.0
        %1069 = vmatprep.subr.mxu0 0.0
        %1070 = vmatpush1.msra.mxu0 0.0
        %1071 = vmatprep.subr.mxu0 0.0
        %1072 = vmatpush1.msra.mxu0 0.0
        %1073 = vmatprep.subr.mxu0 0.0
        %1074 = vmatpush1.msra.mxu0 0.0
        %1075 = vmatprep.subr.mxu0 0.0
        %1076 = vmatpush1.msra.mxu0 0.0
        %1077 = vmatprep.subr.mxu0 0.0
        %1078 = vmatpush1.msra.mxu0 0.0
        %1079 = vmatprep.subr.mxu0 0.0
        %1080 = vmatpush1.msra.mxu0 0.0
        %1081 = vmatprep.subr.mxu0 0.0
        %1082 = vmatpush1.msra.mxu0 0.0
        %1083 = vmatprep.subr.mxu0 0.0
        %1084 = vmatpush1.msra.mxu0 0.0
        %1085 = vmatprep.subr.mxu0 0.0
        %1086 = vmatpush1.msra.mxu0 0.0
        %1087 = vmatprep.subr.mxu0 0.0
        %1088 = vmatpush1.msra.mxu0 0.0
        %1089 = vmatprep.subr.mxu0 0.0
        %1090 = vmatpush1.msra.mxu0 0.0
        %1091 = vmatprep.subr.mxu0 0.0
        %1092 = vmatpush1.msra.mxu0 0.0
        %1093 = vmatprep.subr.mxu0 0.0
        %1094 = vmatpush1.msra.mxu0 0.0
        %1095 = vmatprep.subr.mxu0 0.0
        %1096 = vmatpush1.msra.mxu0 0.0
        %1097 = vmatprep.subr.mxu0 0.0
        %1098 = vmatpush1.msra.mxu0 0.0
        %1099 = vmatprep.subr.mxu0 0.0
        %1100 = vmatpush1.msra.mxu0 0.0
        %1101 = vmatprep.subr.mxu0 0.0
        %1102 = vmatpush1.msra.mxu0 0.0
        %1103 = vmatprep.subr.mxu0 0.0
        %1104 = vmatpush1.msra.mxu0 0.0
        %1105 = vmatprep.subr.mxu0 0.0
        %1106 = vmatpush1.msra.mxu0 0.0
        %1107 = vmatprep.subr.mxu0 0.0
        %1108 = vmatpush1.msra.mxu0 0.0
        %1109 = vmatprep.subr.mxu0 0.0
        %1110 = vmatpush1.msra.mxu0 0.0
        %1111 = vmatprep.subr.mxu0 0.0
        %1112 = vmatpush1.msra.mxu0 0.0
        %1113 = vmatprep.subr.mxu0 0.0
        %1114 = vmatpush1.msra.mxu0 0.0
        %1115 = vmatprep.subr.mxu0 0.0
        %1116 = vmatpush1.msra.mxu0 0.0
        %1117 = vmatprep.subr.mxu0 0.0
        %1118 = vmatpush1.msra.mxu0 0.0
        %1119 = vmatprep.subr.mxu0 0.0
        %1120 = vmatpush1.msra.mxu0 0.0
        %1121 = vmatprep.subr.mxu0 0.0
        %1122 = vmatpush1.msra.mxu0 0.0
        %1123 = vmatprep.subr.mxu0 0.0
        %1124 = vmatpush1.msra.mxu0 0.0
        %1125 = vmatprep.mubr.f32.mxu0 0.0
        %1126 = vmatmul.mubr.f32.gmra.mrb[0].mxu0 %v1057
        %v1127 = vpop.f32.mrb[0].mxu0
        %v1128 = vadd.f32 0.0, %v1127
        %v1129 = vpop.f32.mrb[0].mxu0
        %1130 = vdwg.mxu0
        %v1132 = vsel %vm904, %v903, 0
        %v1134 = vsel %vm908, %v498, 0
        %1136 = vmatprep.subr.mxu0 0.0
        %1137 = vmatpush1.msra.mxu0 %v1134
        %1138 = vmatprep.subr.mxu0 0.0
        %1139 = vmatpush1.msra.mxu0 0.0
        %1140 = vmatprep.subr.mxu0 0.0
        %1141 = vmatpush1.msra.mxu0 0.0
        %1142 = vmatprep.subr.mxu0 0.0
        %1143 = vmatpush1.msra.mxu0 0.0
        %1144 = vmatprep.subr.mxu0 0.0
        %1145 = vmatpush1.msra.mxu0 0.0
        %1146 = vmatprep.subr.mxu0 0.0
        %1147 = vmatpush1.msra.mxu0 0.0
        %1148 = vmatprep.subr.mxu0 0.0
        %1149 = vmatpush1.msra.mxu0 0.0
        %1150 = vmatprep.subr.mxu0 0.0
        %1151 = vmatpush1.msra.mxu0 0.0
        %1152 = vmatprep.subr.mxu0 0.0
        %1153 = vmatpush1.msra.mxu0 0.0
        %1154 = vmatprep.subr.mxu0 0.0
        %1155 = vmatpush1.msra.mxu0 0.0
        %1156 = vmatprep.subr.mxu0 0.0
        %1157 = vmatpush1.msra.mxu0 0.0
        %1158 = vmatprep.subr.mxu0 0.0
        %1159 = vmatpush1.msra.mxu0 0.0
        %1160 = vmatprep.subr.mxu0 0.0
        %1161 = vmatpush1.msra.mxu0 0.0
        %1162 = vmatprep.subr.mxu0 0.0
        %1163 = vmatpush1.msra.mxu0 0.0
        %1164 = vmatprep.subr.mxu0 0.0
        %1165 = vmatpush1.msra.mxu0 0.0
        %1166 = vmatprep.subr.mxu0 0.0
        %1167 = vmatpush1.msra.mxu0 0.0
        %1168 = vmatprep.subr.mxu0 0.0
        %1169 = vmatpush1.msra.mxu0 0.0
        %1170 = vmatprep.subr.mxu0 0.0
        %1171 = vmatpush1.msra.mxu0 0.0
        %1172 = vmatprep.subr.mxu0 0.0
        %1173 = vmatpush1.msra.mxu0 0.0
        %1174 = vmatprep.subr.mxu0 0.0
        %1175 = vmatpush1.msra.mxu0 0.0
        %1176 = vmatprep.subr.mxu0 0.0
        %1177 = vmatpush1.msra.mxu0 0.0
        %1178 = vmatprep.subr.mxu0 0.0
        %1179 = vmatpush1.msra.mxu0 0.0
        %1180 = vmatprep.subr.mxu0 0.0
        %1181 = vmatpush1.msra.mxu0 0.0
        %1182 = vmatprep.subr.mxu0 0.0
        %1183 = vmatpush1.msra.mxu0 0.0
        %1184 = vmatprep.subr.mxu0 0.0
        %1185 = vmatpush1.msra.mxu0 0.0
        %1186 = vmatprep.subr.mxu0 0.0
        %1187 = vmatpush1.msra.mxu0 0.0
        %1188 = vmatprep.subr.mxu0 0.0
        %1189 = vmatpush1.msra.mxu0 0.0
        %1190 = vmatprep.subr.mxu0 0.0
        %1191 = vmatpush1.msra.mxu0 0.0
        %1192 = vmatprep.subr.mxu0 0.0
        %1193 = vmatpush1.msra.mxu0 0.0
        %1194 = vmatprep.subr.mxu0 0.0
        %1195 = vmatpush1.msra.mxu0 0.0
        %1196 = vmatprep.subr.mxu0 0.0
        %1197 = vmatpush1.msra.mxu0 0.0
        %1198 = vmatprep.subr.mxu0 0.0
        %1199 = vmatpush1.msra.mxu0 0.0
        %1200 = vmatprep.mubr.f32.mxu0 0.0
        %1201 = vmatmul.mubr.f32.gmra.mrb[0].mxu0 %v1132
        %v1202 = vpop.f32.mrb[0].mxu0
        %v1203 = vadd.f32 0.0, %v1202
        %v1204 = vpop.f32.mrb[0].mxu0
        %1205 = vdwg.mxu0
        %vm1206 = vcmp.gt.f32.partialorder %v978, 0.0
        %vm1207 = vcmp.gt.f32.partialorder %v1053, 0.0
        %vm1208 = vcmp.gt.f32.partialorder %v1128, 0.0
        %vm1209 = vcmp.gt.f32.partialorder %v1203, 0.0
        %v1210 = vmin.f32 %v978, 0.0
        %v1211 = vmin.f32 %v1053, 0.0
        %v1212 = vmin.f32 %v1128, 0.0
        %v1213 = vmin.f32 %v1203, 0.0
        %v1214 = vmul.f32 %v1210, 1.442695
        %v1215 = vpow.pop %v1214
        %v1216 = vmul.f32 %v1211, 1.442695
        %v1217 = vpow.pop %v1216
        %v1218 = vmul.f32 %v1212, 1.442695
        %v1219 = vpow.pop %v1218
        %v1220 = vmul.f32 %v1213, 1.442695
        %v1221 = vpow.pop %v1220
        %v1222 = vsub.f32 %v1215, 1.0
        %v1223 = vsub.f32 %v1217, 1.0
        %v1224 = vsub.f32 %v1219, 1.0
        %v1225 = vsub.f32 %v1221, 1.0
        %v1226 = vsel %vm1206, %v978, %v1222
        %v1227 = vsel %vm1207, %v1053, %v1223
        %v1228 = vsel %vm1208, %v1128, %v1224
        %v1229 = vsel %vm1209, %v1203, %v1225
        %s1230 = scalar_lea.vmem [#allocation7], 16
        %v1231 = vld [vmem:[%s1230] sm:$0xf]
        %v1232 = vld [vmem:[%s1230 + $0x4] sm:$0xf]
        %v1233 = vld [vmem:[%s1230 + $0x8] sm:$0xf]
        %v1234 = vld [vmem:[%s1230 + $0xc] sm:$0xf]
        %v1235 = vpack.c.bf16 %v1226, %v1226
        %v1236 = vpack.c.bf16 %v1227, %v1227
        %v1237 = vpack.c.bf16 %v1228, %v1228
        %v1238 = vpack.c.bf16 %v1229, %v1229
        %v1243 = vunpack.c.l.b16 %v1231
        %v1244 = vunpack.c.l.b16 %v1232
        %v1245 = vunpack.c.l.b16 %v1233
        %v1246 = vunpack.c.l.b16 %v1234
        %v1247 = vpack.c.b16 %v1244, %v1243
        %v1248 = vpack.c.b16 %v1246, %v1245
        %v1252 = vsel %vm330, %v1235, 0
        %1254 = vmatprep.subr.bf16.mxu0 0
        %1255 = vmatpush1.bf16.msra.mxu0 %v1247
        %1256 = vmatprep.subr.bf16.mxu0 0
        %1257 = vmatpush1.bf16.msra.mxu0 %v1248
        %1258 = vmatprep.subr.bf16.mxu0 0
        %1259 = vmatpush1.bf16.msra.mxu0 0
        %1260 = vmatprep.subr.bf16.mxu0 0
        %1261 = vmatpush1.bf16.msra.mxu0 0
        %1262 = vmatprep.subr.bf16.mxu0 0
        %1263 = vmatpush1.bf16.msra.mxu0 0
        %1264 = vmatprep.subr.bf16.mxu0 0
        %1265 = vmatpush1.bf16.msra.mxu0 0
        %1266 = vmatprep.subr.bf16.mxu0 0
        %1267 = vmatpush1.bf16.msra.mxu0 0
        %1268 = vmatprep.subr.bf16.mxu0 0
        %1269 = vmatpush1.bf16.msra.mxu0 0
        %1270 = vmatprep.subr.bf16.mxu0 0
        %1271 = vmatpush1.bf16.msra.mxu0 0
        %1272 = vmatprep.subr.bf16.mxu0 0
        %1273 = vmatpush1.bf16.msra.mxu0 0
        %1274 = vmatprep.subr.bf16.mxu0 0
        %1275 = vmatpush1.bf16.msra.mxu0 0
        %1276 = vmatprep.subr.bf16.mxu0 0
        %1277 = vmatpush1.bf16.msra.mxu0 0
        %1278 = vmatprep.subr.bf16.mxu0 0
        %1279 = vmatpush1.bf16.msra.mxu0 0
        %1280 = vmatprep.subr.bf16.mxu0 0
        %1281 = vmatpush1.bf16.msra.mxu0 0
        %1282 = vmatprep.subr.bf16.mxu0 0
        %1283 = vmatpush1.bf16.msra.mxu0 0
        %1284 = vmatprep.subr.bf16.mxu0 0
        %1285 = vmatpush1.bf16.msra.mxu0 0
        %1286 = vmatprep.mubr.bf16.mxu0 0
        %1287 = vmatmul.mubr.bf16.gmra.mrb[0].mxu0 %v1252
        %v1288 = vpop.f32.mrb[0].mxu0
        %v1289 = vadd.f32 0.0, %v1288
        %v1290 = vpop.f32.mrb[0].mxu0
        %v1291 = vpop.f32.mrb[0].mxu0
        %v1292 = vpop.f32.mrb[0].mxu0
        %1293 = vdwg.mxu0
        %v1295 = vsel %vm330, %v1236, 0
        %1297 = vmatprep.subr.bf16.mxu0 0
        %1298 = vmatpush1.bf16.msra.mxu0 %v1247
        %1299 = vmatprep.subr.bf16.mxu0 0
        %1300 = vmatpush1.bf16.msra.mxu0 %v1248
        %1301 = vmatprep.subr.bf16.mxu0 0
        %1302 = vmatpush1.bf16.msra.mxu0 0
        %1303 = vmatprep.subr.bf16.mxu0 0
        %1304 = vmatpush1.bf16.msra.mxu0 0
        %1305 = vmatprep.subr.bf16.mxu0 0
        %1306 = vmatpush1.bf16.msra.mxu0 0
        %1307 = vmatprep.subr.bf16.mxu0 0
        %1308 = vmatpush1.bf16.msra.mxu0 0
        %1309 = vmatprep.subr.bf16.mxu0 0
        %1310 = vmatpush1.bf16.msra.mxu0 0
        %1311 = vmatprep.subr.bf16.mxu0 0
        %1312 = vmatpush1.bf16.msra.mxu0 0
        %1313 = vmatprep.subr.bf16.mxu0 0
        %1314 = vmatpush1.bf16.msra.mxu0 0
        %1315 = vmatprep.subr.bf16.mxu0 0
        %1316 = vmatpush1.bf16.msra.mxu0 0
        %1317 = vmatprep.subr.bf16.mxu0 0
        %1318 = vmatpush1.bf16.msra.mxu0 0
        %1319 = vmatprep.subr.bf16.mxu0 0
        %1320 = vmatpush1.bf16.msra.mxu0 0
        %1321 = vmatprep.subr.bf16.mxu0 0
        %1322 = vmatpush1.bf16.msra.mxu0 0
        %1323 = vmatprep.subr.bf16.mxu0 0
        %1324 = vmatpush1.bf16.msra.mxu0 0
        %1325 = vmatprep.subr.bf16.mxu0 0
        %1326 = vmatpush1.bf16.msra.mxu0 0
        %1327 = vmatprep.subr.bf16.mxu0 0
        %1328 = vmatpush1.bf16.msra.mxu0 0
        %1329 = vmatprep.mubr.bf16.mxu0 0
        %1330 = vmatmul.mubr.bf16.gmra.mrb[0].mxu0 %v1295
        %v1331 = vpop.f32.mrb[0].mxu0
        %v1332 = vadd.f32 0.0, %v1331
        %v1333 = vpop.f32.mrb[0].mxu0
        %v1334 = vpop.f32.mrb[0].mxu0
        %v1335 = vpop.f32.mrb[0].mxu0
        %1336 = vdwg.mxu0
        %v1338 = vsel %vm330, %v1237, 0
        %1340 = vmatprep.subr.bf16.mxu0 0
        %1341 = vmatpush1.bf16.msra.mxu0 %v1247
        %1342 = vmatprep.subr.bf16.mxu0 0
        %1343 = vmatpush1.bf16.msra.mxu0 %v1248
        %1344 = vmatprep.subr.bf16.mxu0 0
        %1345 = vmatpush1.bf16.msra.mxu0 0
        %1346 = vmatprep.subr.bf16.mxu0 0
        %1347 = vmatpush1.bf16.msra.mxu0 0
        %1348 = vmatprep.subr.bf16.mxu0 0
        %1349 = vmatpush1.bf16.msra.mxu0 0
        %1350 = vmatprep.subr.bf16.mxu0 0
        %1351 = vmatpush1.bf16.msra.mxu0 0
        %1352 = vmatprep.subr.bf16.mxu0 0
        %1353 = vmatpush1.bf16.msra.mxu0 0
        %1354 = vmatprep.subr.bf16.mxu0 0
        %1355 = vmatpush1.bf16.msra.mxu0 0
        %1356 = vmatprep.subr.bf16.mxu0 0
        %1357 = vmatpush1.bf16.msra.mxu0 0
        %1358 = vmatprep.subr.bf16.mxu0 0
        %1359 = vmatpush1.bf16.msra.mxu0 0
        %1360 = vmatprep.subr.bf16.mxu0 0
        %1361 = vmatpush1.bf16.msra.mxu0 0
        %1362 = vmatprep.subr.bf16.mxu0 0
        %1363 = vmatpush1.bf16.msra.mxu0 0
        %1364 = vmatprep.subr.bf16.mxu0 0
        %1365 = vmatpush1.bf16.msra.mxu0 0
        %1366 = vmatprep.subr.bf16.mxu0 0
        %1367 = vmatpush1.bf16.msra.mxu0 0
        %1368 = vmatprep.subr.bf16.mxu0 0
        %1369 = vmatpush1.bf16.msra.mxu0 0
        %1370 = vmatprep.subr.bf16.mxu0 0
        %1371 = vmatpush1.bf16.msra.mxu0 0
        %1372 = vmatprep.mubr.bf16.mxu0 0
        %1373 = vmatmul.mubr.bf16.gmra.mrb[0].mxu0 %v1338
        %v1374 = vpop.f32.mrb[0].mxu0
        %v1375 = vadd.f32 0.0, %v1374
        %v1376 = vpop.f32.mrb[0].mxu0
        %v1377 = vpop.f32.mrb[0].mxu0
        %v1378 = vpop.f32.mrb[0].mxu0
        %1379 = vdwg.mxu0
        %v1381 = vsel %vm330, %v1238, 0
        %1383 = vmatprep.subr.bf16.mxu0 0
        %1384 = vmatpush1.bf16.msra.mxu0 %v1247
        %1385 = vmatprep.subr.bf16.mxu0 0
        %1386 = vmatpush1.bf16.msra.mxu0 %v1248
        %1387 = vmatprep.subr.bf16.mxu0 0
        %1388 = vmatpush1.bf16.msra.mxu0 0
        %1389 = vmatprep.subr.bf16.mxu0 0
        %1390 = vmatpush1.bf16.msra.mxu0 0
        %1391 = vmatprep.subr.bf16.mxu0 0
        %1392 = vmatpush1.bf16.msra.mxu0 0
        %1393 = vmatprep.subr.bf16.mxu0 0
        %1394 = vmatpush1.bf16.msra.mxu0 0
        %1395 = vmatprep.subr.bf16.mxu0 0
        %1396 = vmatpush1.bf16.msra.mxu0 0
        %1397 = vmatprep.subr.bf16.mxu0 0
        %1398 = vmatpush1.bf16.msra.mxu0 0
        %1399 = vmatprep.subr.bf16.mxu0 0
        %1400 = vmatpush1.bf16.msra.mxu0 0
        %1401 = vmatprep.subr.bf16.mxu0 0
        %1402 = vmatpush1.bf16.msra.mxu0 0
        %1403 = vmatprep.subr.bf16.mxu0 0
        %1404 = vmatpush1.bf16.msra.mxu0 0
        %1405 = vmatprep.subr.bf16.mxu0 0
        %1406 = vmatpush1.bf16.msra.mxu0 0
        %1407 = vmatprep.subr.bf16.mxu0 0
        %1408 = vmatpush1.bf16.msra.mxu0 0
        %1409 = vmatprep.subr.bf16.mxu0 0
        %1410 = vmatpush1.bf16.msra.mxu0 0
        %1411 = vmatprep.subr.bf16.mxu0 0
        %1412 = vmatpush1.bf16.msra.mxu0 0
        %1413 = vmatprep.subr.bf16.mxu0 0
        %1414 = vmatpush1.bf16.msra.mxu0 0
        %1415 = vmatprep.mubr.bf16.mxu0 0
        %1416 = vmatmul.mubr.bf16.gmra.mrb[0].mxu0 %v1381
        %v1417 = vpop.f32.mrb[0].mxu0
        %v1418 = vadd.f32 0.0, %v1417
        %v1419 = vpop.f32.mrb[0].mxu0
        %v1420 = vpop.f32.mrb[0].mxu0
        %v1421 = vpop.f32.mrb[0].mxu0
        %1422 = vdwg.mxu0
        %v1423 = vlaneseq
        %v1424 = vshrl.u32 %v1423, 7
        %v1425 = vsub.s32 6, %v1424
        %v1426 = vrot.slane %v308, %v1425
        %v1427 = vmul.f32 %v1289, %v1426
        %v1428 = vmul.f32 %v1332, %v1426
        %v1429 = vmul.f32 %v1375, %v1426
        %v1430 = vmul.f32 %v1418, %v1426
        %v1431 = vsel %vm511, %v1427, 0.0
        %1432 = vadd.xlane.f32.xlu0 %v1431
        %v1433 = vpop.xlane.xlu0 %1432
        %v1434 = vsel %vm511, %v1428, 0.0
        %1435 = vadd.xlane.f32.xlu0 %v1434
        %v1436 = vpop.xlane.xlu0 %1435
        %v1437 = vsel %vm511, %v1429, 0.0
        %1438 = vadd.xlane.f32.xlu0 %v1437
        %v1439 = vpop.xlane.xlu0 %1438
        %v1440 = vsel %vm511, %v1430, 0.0
        %1441 = vadd.xlane.f32.xlu0 %v1440
        %v1442 = vpop.xlane.xlu0 %1441
        %v1443 = vrot.slane %v308, 7
        %v1444 = vsel %vm330, %v1443, 0
        %v1447 = vsel %vm330, %v1289, 0
        %1449 = vmatprep.subr.mxu0 0.0
        %1450 = vmatpush1.xpose.msra.mxu0 %v1447
        %1451 = vmatprep.subr.mxu0 0.0
        %1452 = vmatpush1.xpose.msra.mxu0 0.0
        %1453 = vmatprep.subr.mxu0 0.0
        %1454 = vmatpush1.xpose.msra.mxu0 0.0
        %1455 = vmatprep.subr.mxu0 0.0
        %1456 = vmatpush1.xpose.msra.mxu0 0.0
        %1457 = vmatprep.subr.mxu0 0.0
        %1458 = vmatpush1.xpose.msra.mxu0 0.0
        %1459 = vmatprep.subr.mxu0 0.0
        %1460 = vmatpush1.xpose.msra.mxu0 0.0
        %1461 = vmatprep.subr.mxu0 0.0
        %1462 = vmatpush1.xpose.msra.mxu0 0.0
        %1463 = vmatprep.subr.mxu0 0.0
        %1464 = vmatpush1.xpose.msra.mxu0 0.0
        %1465 = vmatprep.subr.mxu0 0.0
        %1466 = vmatpush1.xpose.msra.mxu0 0.0
        %1467 = vmatprep.subr.mxu0 0.0
        %1468 = vmatpush1.xpose.msra.mxu0 0.0
        %1469 = vmatprep.subr.mxu0 0.0
        %1470 = vmatpush1.xpose.msra.mxu0 0.0
        %1471 = vmatprep.subr.mxu0 0.0
        %1472 = vmatpush1.xpose.msra.mxu0 0.0
        %1473 = vmatprep.subr.mxu0 0.0
        %1474 = vmatpush1.xpose.msra.mxu0 0.0
        %1475 = vmatprep.subr.mxu0 0.0
        %1476 = vmatpush1.xpose.msra.mxu0 0.0
        %1477 = vmatprep.subr.mxu0 0.0
        %1478 = vmatpush1.xpose.msra.mxu0 0.0
        %1479 = vmatprep.subr.mxu0 0.0
        %1480 = vmatpush1.xpose.msra.mxu0 0.0
        %1481 = vmatprep.subr.mxu0 0.0
        %1482 = vmatpush1.xpose.msra.mxu0 0.0
        %1483 = vmatprep.subr.mxu0 0.0
        %1484 = vmatpush1.xpose.msra.mxu0 0.0
        %1485 = vmatprep.subr.mxu0 0.0
        %1486 = vmatpush1.xpose.msra.mxu0 0.0
        %1487 = vmatprep.subr.mxu0 0.0
        %1488 = vmatpush1.xpose.msra.mxu0 0.0
        %1489 = vmatprep.subr.mxu0 0.0
        %1490 = vmatpush1.xpose.msra.mxu0 0.0
        %1491 = vmatprep.subr.mxu0 0.0
        %1492 = vmatpush1.xpose.msra.mxu0 0.0
        %1493 = vmatprep.subr.mxu0 0.0
        %1494 = vmatpush1.xpose.msra.mxu0 0.0
        %1495 = vmatprep.subr.mxu0 0.0
        %1496 = vmatpush1.xpose.msra.mxu0 0.0
        %1497 = vmatprep.subr.mxu0 0.0
        %1498 = vmatpush1.xpose.msra.mxu0 0.0
        %1499 = vmatprep.subr.mxu0 0.0
        %1500 = vmatpush1.xpose.msra.mxu0 0.0
        %1501 = vmatprep.subr.mxu0 0.0
        %1502 = vmatpush1.xpose.msra.mxu0 0.0
        %1503 = vmatprep.subr.mxu0 0.0
        %1504 = vmatpush1.xpose.msra.mxu0 0.0
        %1505 = vmatprep.subr.mxu0 0.0
        %1506 = vmatpush1.xpose.msra.mxu0 0.0
        %1507 = vmatprep.subr.mxu0 0.0
        %1508 = vmatpush1.xpose.msra.mxu0 0.0
        %1509 = vmatprep.subr.mxu0 0.0
        %1510 = vmatpush1.xpose.msra.mxu0 0.0
        %1511 = vmatprep.subr.mxu0 0.0
        %1512 = vmatpush1.xpose.msra.mxu0 0.0
        %1513 = vmatprep.mubr.f32.mxu0 0.0
        %1514 = vmatmul.mubr.f32.gmra.mrb[0].mxu0 %v1444
        %v1515 = vpop.f32.mrb[0].mxu0
        %v1516 = vadd.f32 0.0, %v1515
        %v1517 = vpop.f32.mrb[0].mxu0
        %1518 = vdwg.mxu0
        %v1520 = vsel %vm330, %v1332, 0
        %1522 = vmatprep.subr.mxu0 0.0
        %1523 = vmatpush1.xpose.msra.mxu0 %v1520
        %1524 = vmatprep.subr.mxu0 0.0
        %1525 = vmatpush1.xpose.msra.mxu0 0.0
        %1526 = vmatprep.subr.mxu0 0.0
        %1527 = vmatpush1.xpose.msra.mxu0 0.0
        %1528 = vmatprep.subr.mxu0 0.0
        %1529 = vmatpush1.xpose.msra.mxu0 0.0
        %1530 = vmatprep.subr.mxu0 0.0
        %1531 = vmatpush1.xpose.msra.mxu0 0.0
        %1532 = vmatprep.subr.mxu0 0.0
        %1533 = vmatpush1.xpose.msra.mxu0 0.0
        %1534 = vmatprep.subr.mxu0 0.0
        %1535 = vmatpush1.xpose.msra.mxu0 0.0
        %1536 = vmatprep.subr.mxu0 0.0
        %1537 = vmatpush1.xpose.msra.mxu0 0.0
        %1538 = vmatprep.subr.mxu0 0.0
        %1539 = vmatpush1.xpose.msra.mxu0 0.0
        %1540 = vmatprep.subr.mxu0 0.0
        %1541 = vmatpush1.xpose.msra.mxu0 0.0
        %1542 = vmatprep.subr.mxu0 0.0
        %1543 = vmatpush1.xpose.msra.mxu0 0.0
        %1544 = vmatprep.subr.mxu0 0.0
        %1545 = vmatpush1.xpose.msra.mxu0 0.0
        %1546 = vmatprep.subr.mxu0 0.0
        %1547 = vmatpush1.xpose.msra.mxu0 0.0
        %1548 = vmatprep.subr.mxu0 0.0
        %1549 = vmatpush1.xpose.msra.mxu0 0.0
        %1550 = vmatprep.subr.mxu0 0.0
        %1551 = vmatpush1.xpose.msra.mxu0 0.0
        %1552 = vmatprep.subr.mxu0 0.0
        %1553 = vmatpush1.xpose.msra.mxu0 0.0
        %1554 = vmatprep.subr.mxu0 0.0
        %1555 = vmatpush1.xpose.msra.mxu0 0.0
        %1556 = vmatprep.subr.mxu0 0.0
        %1557 = vmatpush1.xpose.msra.mxu0 0.0
        %1558 = vmatprep.subr.mxu0 0.0
        %1559 = vmatpush1.xpose.msra.mxu0 0.0
        %1560 = vmatprep.subr.mxu0 0.0
        %1561 = vmatpush1.xpose.msra.mxu0 0.0
        %1562 = vmatprep.subr.mxu0 0.0
        %1563 = vmatpush1.xpose.msra.mxu0 0.0
        %1564 = vmatprep.subr.mxu0 0.0
        %1565 = vmatpush1.xpose.msra.mxu0 0.0
        %1566 = vmatprep.subr.mxu0 0.0
        %1567 = vmatpush1.xpose.msra.mxu0 0.0
        %1568 = vmatprep.subr.mxu0 0.0
        %1569 = vmatpush1.xpose.msra.mxu0 0.0
        %1570 = vmatprep.subr.mxu0 0.0
        %1571 = vmatpush1.xpose.msra.mxu0 0.0
        %1572 = vmatprep.subr.mxu0 0.0
        %1573 = vmatpush1.xpose.msra.mxu0 0.0
        %1574 = vmatprep.subr.mxu0 0.0
        %1575 = vmatpush1.xpose.msra.mxu0 0.0
        %1576 = vmatprep.subr.mxu0 0.0
        %1577 = vmatpush1.xpose.msra.mxu0 0.0
        %1578 = vmatprep.subr.mxu0 0.0
        %1579 = vmatpush1.xpose.msra.mxu0 0.0
        %1580 = vmatprep.subr.mxu0 0.0
        %1581 = vmatpush1.xpose.msra.mxu0 0.0
        %1582 = vmatprep.subr.mxu0 0.0
        %1583 = vmatpush1.xpose.msra.mxu0 0.0
        %1584 = vmatprep.subr.mxu0 0.0
        %1585 = vmatpush1.xpose.msra.mxu0 0.0
        %1586 = vmatprep.mubr.f32.mxu0 0.0
        %1587 = vmatmul.mubr.f32.gmra.mrb[0].mxu0 %v1444
        %v1588 = vpop.f32.mrb[0].mxu0
        %v1589 = vadd.f32 0.0, %v1588
        %v1590 = vpop.f32.mrb[0].mxu0
        %1591 = vdwg.mxu0
        %v1593 = vsel %vm330, %v1375, 0
        %1595 = vmatprep.subr.mxu0 0.0
        %1596 = vmatpush1.xpose.msra.mxu0 %v1593
        %1597 = vmatprep.subr.mxu0 0.0
        %1598 = vmatpush1.xpose.msra.mxu0 0.0
        %1599 = vmatprep.subr.mxu0 0.0
        %1600 = vmatpush1.xpose.msra.mxu0 0.0
        %1601 = vmatprep.subr.mxu0 0.0
        %1602 = vmatpush1.xpose.msra.mxu0 0.0
        %1603 = vmatprep.subr.mxu0 0.0
        %1604 = vmatpush1.xpose.msra.mxu0 0.0
        %1605 = vmatprep.subr.mxu0 0.0
        %1606 = vmatpush1.xpose.msra.mxu0 0.0
        %1607 = vmatprep.subr.mxu0 0.0
        %1608 = vmatpush1.xpose.msra.mxu0 0.0
        %1609 = vmatprep.subr.mxu0 0.0
        %1610 = vmatpush1.xpose.msra.mxu0 0.0
        %1611 = vmatprep.subr.mxu0 0.0
        %1612 = vmatpush1.xpose.msra.mxu0 0.0
        %1613 = vmatprep.subr.mxu0 0.0
        %1614 = vmatpush1.xpose.msra.mxu0 0.0
        %1615 = vmatprep.subr.mxu0 0.0
        %1616 = vmatpush1.xpose.msra.mxu0 0.0
        %1617 = vmatprep.subr.mxu0 0.0
        %1618 = vmatpush1.xpose.msra.mxu0 0.0
        %1619 = vmatprep.subr.mxu0 0.0
        %1620 = vmatpush1.xpose.msra.mxu0 0.0
        %1621 = vmatprep.subr.mxu0 0.0
        %1622 = vmatpush1.xpose.msra.mxu0 0.0
        %1623 = vmatprep.subr.mxu0 0.0
        %1624 = vmatpush1.xpose.msra.mxu0 0.0
        %1625 = vmatprep.subr.mxu0 0.0
        %1626 = vmatpush1.xpose.msra.mxu0 0.0
        %1627 = vmatprep.subr.mxu0 0.0
        %1628 = vmatpush1.xpose.msra.mxu0 0.0
        %1629 = vmatprep.subr.mxu0 0.0
        %1630 = vmatpush1.xpose.msra.mxu0 0.0
        %1631 = vmatprep.subr.mxu0 0.0
        %1632 = vmatpush1.xpose.msra.mxu0 0.0
        %1633 = vmatprep.subr.mxu0 0.0
        %1634 = vmatpush1.xpose.msra.mxu0 0.0
        %1635 = vmatprep.subr.mxu0 0.0
        %1636 = vmatpush1.xpose.msra.mxu0 0.0
        %1637 = vmatprep.subr.mxu0 0.0
        %1638 = vmatpush1.xpose.msra.mxu0 0.0
        %1639 = vmatprep.subr.mxu0 0.0
        %1640 = vmatpush1.xpose.msra.mxu0 0.0
        %1641 = vmatprep.subr.mxu0 0.0
        %1642 = vmatpush1.xpose.msra.mxu0 0.0
        %1643 = vmatprep.subr.mxu0 0.0
        %1644 = vmatpush1.xpose.msra.mxu0 0.0
        %1645 = vmatprep.subr.mxu0 0.0
        %1646 = vmatpush1.xpose.msra.mxu0 0.0
        %1647 = vmatprep.subr.mxu0 0.0
        %1648 = vmatpush1.xpose.msra.mxu0 0.0
        %1649 = vmatprep.subr.mxu0 0.0
        %1650 = vmatpush1.xpose.msra.mxu0 0.0
        %1651 = vmatprep.subr.mxu0 0.0
        %1652 = vmatpush1.xpose.msra.mxu0 0.0
        %1653 = vmatprep.subr.mxu0 0.0
        %1654 = vmatpush1.xpose.msra.mxu0 0.0
        %1655 = vmatprep.subr.mxu0 0.0
        %1656 = vmatpush1.xpose.msra.mxu0 0.0
        %1657 = vmatprep.subr.mxu0 0.0
        %1658 = vmatpush1.xpose.msra.mxu0 0.0
        %1659 = vmatprep.mubr.f32.mxu0 0.0
        %1660 = vmatmul.mubr.f32.gmra.mrb[0].mxu0 %v1444
        %v1661 = vpop.f32.mrb[0].mxu0
        %v1662 = vadd.f32 0.0, %v1661
        %v1663 = vpop.f32.mrb[0].mxu0
        %1664 = vdwg.mxu0
        %v1666 = vsel %vm330, %v1418, 0
        %1668 = vmatprep.subr.mxu0 0.0
        %1669 = vmatpush1.xpose.msra.mxu0 %v1666
        %1670 = vmatprep.subr.mxu0 0.0
        %1671 = vmatpush1.xpose.msra.mxu0 0.0
        %1672 = vmatprep.subr.mxu0 0.0
        %1673 = vmatpush1.xpose.msra.mxu0 0.0
        %1674 = vmatprep.subr.mxu0 0.0
        %1675 = vmatpush1.xpose.msra.mxu0 0.0
        %1676 = vmatprep.subr.mxu0 0.0
        %1677 = vmatpush1.xpose.msra.mxu0 0.0
        %1678 = vmatprep.subr.mxu0 0.0
        %1679 = vmatpush1.xpose.msra.mxu0 0.0
        %1680 = vmatprep.subr.mxu0 0.0
        %1681 = vmatpush1.xpose.msra.mxu0 0.0
        %1682 = vmatprep.subr.mxu0 0.0
        %1683 = vmatpush1.xpose.msra.mxu0 0.0
        %1684 = vmatprep.subr.mxu0 0.0
        %1685 = vmatpush1.xpose.msra.mxu0 0.0
        %1686 = vmatprep.subr.mxu0 0.0
        %1687 = vmatpush1.xpose.msra.mxu0 0.0
        %1688 = vmatprep.subr.mxu0 0.0
        %1689 = vmatpush1.xpose.msra.mxu0 0.0
        %1690 = vmatprep.subr.mxu0 0.0
        %1691 = vmatpush1.xpose.msra.mxu0 0.0
        %1692 = vmatprep.subr.mxu0 0.0
        %1693 = vmatpush1.xpose.msra.mxu0 0.0
        %1694 = vmatprep.subr.mxu0 0.0
        %1695 = vmatpush1.xpose.msra.mxu0 0.0
        %1696 = vmatprep.subr.mxu0 0.0
        %1697 = vmatpush1.xpose.msra.mxu0 0.0
        %1698 = vmatprep.subr.mxu0 0.0
        %1699 = vmatpush1.xpose.msra.mxu0 0.0
        %1700 = vmatprep.subr.mxu0 0.0
        %1701 = vmatpush1.xpose.msra.mxu0 0.0
        %1702 = vmatprep.subr.mxu0 0.0
        %1703 = vmatpush1.xpose.msra.mxu0 0.0
        %1704 = vmatprep.subr.mxu0 0.0
        %1705 = vmatpush1.xpose.msra.mxu0 0.0
        %1706 = vmatprep.subr.mxu0 0.0
        %1707 = vmatpush1.xpose.msra.mxu0 0.0
        %1708 = vmatprep.subr.mxu0 0.0
        %1709 = vmatpush1.xpose.msra.mxu0 0.0
        %1710 = vmatprep.subr.mxu0 0.0
        %1711 = vmatpush1.xpose.msra.mxu0 0.0
        %1712 = vmatprep.subr.mxu0 0.0
        %1713 = vmatpush1.xpose.msra.mxu0 0.0
        %1714 = vmatprep.subr.mxu0 0.0
        %1715 = vmatpush1.xpose.msra.mxu0 0.0
        %1716 = vmatprep.subr.mxu0 0.0
        %1717 = vmatpush1.xpose.msra.mxu0 0.0
        %1718 = vmatprep.subr.mxu0 0.0
        %1719 = vmatpush1.xpose.msra.mxu0 0.0
        %1720 = vmatprep.subr.mxu0 0.0
        %1721 = vmatpush1.xpose.msra.mxu0 0.0
        %1722 = vmatprep.subr.mxu0 0.0
        %1723 = vmatpush1.xpose.msra.mxu0 0.0
        %1724 = vmatprep.subr.mxu0 0.0
        %1725 = vmatpush1.xpose.msra.mxu0 0.0
        %1726 = vmatprep.subr.mxu0 0.0
        %1727 = vmatpush1.xpose.msra.mxu0 0.0
        %1728 = vmatprep.subr.mxu0 0.0
        %1729 = vmatpush1.xpose.msra.mxu0 0.0
        %1730 = vmatprep.subr.mxu0 0.0
        %1731 = vmatpush1.xpose.msra.mxu0 0.0
        %1732 = vmatprep.mubr.f32.mxu0 0.0
        %1733 = vmatmul.mubr.f32.gmra.mrb[0].mxu0 %v1444
        %v1734 = vpop.f32.mrb[0].mxu0
        %v1735 = vadd.f32 0.0, %v1734
        %v1736 = vpop.f32.mrb[0].mxu0
        %1737 = vdwg.mxu0
        %v1738 = vlaneseq
        %v1739 = vshrl.u32 %v1738, 7
        %v1740 = vsub.s32 0, %v1739
        %v1741 = vrot.slane %v1516, %v1740
        %v1742 = vlaneseq
        %v1743 = vshrl.u32 %v1742, 7
        %v1744 = vsub.s32 0, %v1743
        %v1745 = vrot.slane %v1589, %v1744
        %v1746 = vlaneseq
        %v1747 = vshrl.u32 %v1746, 7
        %v1748 = vsub.s32 0, %v1747
        %v1749 = vrot.slane %v1662, %v1748
        %v1750 = vlaneseq
        %v1751 = vshrl.u32 %v1750, 7
        %v1752 = vsub.s32 0, %v1751
        %v1753 = vrot.slane %v1735, %v1752
        %v1754 = vadd.f32 %v1433, %v1741
        %v1755 = vadd.f32 %v1436, %v1745
        %v1756 = vadd.f32 %v1439, %v1749
        %v1757 = vadd.f32 %v1442, %v1753
        %vm1758 = vcmp.gt.f32.partialorder %v1754, 0.0
        %vm1759 = vcmp.gt.f32.partialorder %v1755, 0.0
        %vm1760 = vcmp.gt.f32.partialorder %v1756, 0.0
        %vm1761 = vcmp.gt.f32.partialorder %v1757, 0.0
        %v1762 = vmul.f32 %v1754, 0.2
        %v1763 = vmul.f32 %v1755, 0.2
        %v1764 = vmul.f32 %v1756, 0.2
        %v1765 = vmul.f32 %v1757, 0.2
        %v1766 = vsel %vm1758, %v1754, %v1762
        %v1767 = vsel %vm1759, %v1755, %v1763
        %v1768 = vsel %vm1760, %v1756, %v1764
        %v1769 = vsel %vm1761, %v1757, %v1765
        %v1770 = vsel %vm854, %v1766, -1e+09
        %v1771 = vsel %vm854, %v1767, -1e+09
        %v1772 = vsel %vm854, %v1768, -1e+09
        %v1773 = vsel %vm854, %v1769, -1e+09
        %v1774 = vsel %vm859, %v1770, -inf
        %1775 = vmax.xlane.f32.xlu0 %v1774
        %v1776 = vpop.xlane.xlu0 %1775
        %v1777 = vsel %vm859, %v1771, -inf
        %1778 = vmax.xlane.f32.xlu0 %v1777
        %v1779 = vpop.xlane.xlu0 %1778
        %v1780 = vsel %vm859, %v1772, -inf
        %1781 = vmax.xlane.f32.xlu0 %v1780
        %v1782 = vpop.xlane.xlu0 %1781
        %v1783 = vsel %vm859, %v1773, -inf
        %1784 = vmax.xlane.f32.xlu0 %v1783
        %v1785 = vpop.xlane.xlu0 %1784
        %v1786 = vsub.f32 %v1770, %v1776
        %v1787 = vsub.f32 %v1771, %v1779
        %v1788 = vsub.f32 %v1772, %v1782
        %v1789 = vsub.f32 %v1773, %v1785
        %v1790 = vmul.f32 %v1786, 1.442695
        %v1791 = vpow.pop %v1790
        %v1792 = vmul.f32 %v1787, 1.442695
        %v1793 = vpow.pop %v1792
        %v1794 = vmul.f32 %v1788, 1.442695
        %v1795 = vpow.pop %v1794
        %v1796 = vmul.f32 %v1789, 1.442695
        %v1797 = vpow.pop %v1796
        %v1798 = vsel %vm859, %v1791, 0.0
        %1799 = vadd.xlane.f32.xlu0 %v1798
        %v1800 = vpop.xlane.xlu0 %1799
        %v1801 = vsel %vm859, %v1793, 0.0
        %1802 = vadd.xlane.f32.xlu0 %v1801
        %v1803 = vpop.xlane.xlu0 %1802
        %v1804 = vsel %vm859, %v1795, 0.0
        %1805 = vadd.xlane.f32.xlu0 %v1804
        %v1806 = vpop.xlane.xlu0 %1805
        %v1807 = vsel %vm859, %v1797, 0.0
        %1808 = vadd.xlane.f32.xlu0 %v1807
        %v1809 = vpop.xlane.xlu0 %1808
        %v1810 = vrcp.pop %v1800
        %v1811 = vmul.f32 %v1791, %v1810
        %v1812 = vrcp.pop %v1803
        %v1813 = vmul.f32 %v1793, %v1812
        %v1814 = vrcp.pop %v1806
        %v1815 = vmul.f32 %v1795, %v1814
        %v1816 = vrcp.pop %v1809
        %v1817 = vmul.f32 %v1797, %v1816
        %v1819 = vsel %vm904, %v1811, 0
        %v1821 = vsel %vm908, %v1289, 0
        %1823 = vmatprep.subr.mxu0 0.0
        %1824 = vmatpush1.msra.mxu0 %v1821
        %1825 = vmatprep.subr.mxu0 0.0
        %1826 = vmatpush1.msra.mxu0 0.0
        %1827 = vmatprep.subr.mxu0 0.0
        %1828 = vmatpush1.msra.mxu0 0.0
        %1829 = vmatprep.subr.mxu0 0.0
        %1830 = vmatpush1.msra.mxu0 0.0
        %1831 = vmatprep.subr.mxu0 0.0
        %1832 = vmatpush1.msra.mxu0 0.0
        %1833 = vmatprep.subr.mxu0 0.0
        %1834 = vmatpush1.msra.mxu0 0.0
        %1835 = vmatprep.subr.mxu0 0.0
        %1836 = vmatpush1.msra.mxu0 0.0
        %1837 = vmatprep.subr.mxu0 0.0
        %1838 = vmatpush1.msra.mxu0 0.0
        %1839 = vmatprep.subr.mxu0 0.0
        %1840 = vmatpush1.msra.mxu0 0.0
        %1841 = vmatprep.subr.mxu0 0.0
        %1842 = vmatpush1.msra.mxu0 0.0
        %1843 = vmatprep.subr.mxu0 0.0
        %1844 = vmatpush1.msra.mxu0 0.0
        %1845 = vmatprep.subr.mxu0 0.0
        %1846 = vmatpush1.msra.mxu0 0.0
        %1847 = vmatprep.subr.mxu0 0.0
        %1848 = vmatpush1.msra.mxu0 0.0
        %1849 = vmatprep.subr.mxu0 0.0
        %1850 = vmatpush1.msra.mxu0 0.0
        %1851 = vmatprep.subr.mxu0 0.0
        %1852 = vmatpush1.msra.mxu0 0.0
        %1853 = vmatprep.subr.mxu0 0.0
        %1854 = vmatpush1.msra.mxu0 0.0
        %1855 = vmatprep.subr.mxu0 0.0
        %1856 = vmatpush1.msra.mxu0 0.0
        %1857 = vmatprep.subr.mxu0 0.0
        %1858 = vmatpush1.msra.mxu0 0.0
        %1859 = vmatprep.subr.mxu0 0.0
        %1860 = vmatpush1.msra.mxu0 0.0
        %1861 = vmatprep.subr.mxu0 0.0
        %1862 = vmatpush1.msra.mxu0 0.0
        %1863 = vmatprep.subr.mxu0 0.0
        %1864 = vmatpush1.msra.mxu0 0.0
        %1865 = vmatprep.subr.mxu0 0.0
        %1866 = vmatpush1.msra.mxu0 0.0
        %1867 = vmatprep.subr.mxu0 0.0
        %1868 = vmatpush1.msra.mxu0 0.0
        %1869 = vmatprep.subr.mxu0 0.0
        %1870 = vmatpush1.msra.mxu0 0.0
        %1871 = vmatprep.subr.mxu0 0.0
        %1872 = vmatpush1.msra.mxu0 0.0
        %1873 = vmatprep.subr.mxu0 0.0
        %1874 = vmatpush1.msra.mxu0 0.0
        %1875 = vmatprep.subr.mxu0 0.0
        %1876 = vmatpush1.msra.mxu0 0.0
        %1877 = vmatprep.subr.mxu0 0.0
        %1878 = vmatpush1.msra.mxu0 0.0
        %1879 = vmatprep.subr.mxu0 0.0
        %1880 = vmatpush1.msra.mxu0 0.0
        %1881 = vmatprep.subr.mxu0 0.0
        %1882 = vmatpush1.msra.mxu0 0.0
        %1883 = vmatprep.subr.mxu0 0.0
        %1884 = vmatpush1.msra.mxu0 0.0
        %1885 = vmatprep.subr.mxu0 0.0
        %1886 = vmatpush1.msra.mxu0 0.0
        %1887 = vmatprep.mubr.f32.mxu0 0.0
        %1888 = vmatmul.mubr.f32.gmra.mrb[0].mxu0 %v1819
        %v1889 = vpop.f32.mrb[0].mxu0
        %v1890 = vadd.f32 0.0, %v1889
        %v1891 = vpop.f32.mrb[0].mxu0
        %1892 = vdwg.mxu0
        %v1894 = vsel %vm904, %v1813, 0
        %v1896 = vsel %vm908, %v1332, 0
        %1898 = vmatprep.subr.mxu0 0.0
        %1899 = vmatpush1.msra.mxu0 %v1896
        %1900 = vmatprep.subr.mxu0 0.0
        %1901 = vmatpush1.msra.mxu0 0.0
        %1902 = vmatprep.subr.mxu0 0.0
        %1903 = vmatpush1.msra.mxu0 0.0
        %1904 = vmatprep.subr.mxu0 0.0
        %1905 = vmatpush1.msra.mxu0 0.0
        %1906 = vmatprep.subr.mxu0 0.0
        %1907 = vmatpush1.msra.mxu0 0.0
        %1908 = vmatprep.subr.mxu0 0.0
        %1909 = vmatpush1.msra.mxu0 0.0
        %1910 = vmatprep.subr.mxu0 0.0
        %1911 = vmatpush1.msra.mxu0 0.0
        %1912 = vmatprep.subr.mxu0 0.0
        %1913 = vmatpush1.msra.mxu0 0.0
        %1914 = vmatprep.subr.mxu0 0.0
        %1915 = vmatpush1.msra.mxu0 0.0
        %1916 = vmatprep.subr.mxu0 0.0
        %1917 = vmatpush1.msra.mxu0 0.0
        %1918 = vmatprep.subr.mxu0 0.0
        %1919 = vmatpush1.msra.mxu0 0.0
        %1920 = vmatprep.subr.mxu0 0.0
        %1921 = vmatpush1.msra.mxu0 0.0
        %1922 = vmatprep.subr.mxu0 0.0
        %1923 = vmatpush1.msra.mxu0 0.0
        %1924 = vmatprep.subr.mxu0 0.0
        %1925 = vmatpush1.msra.mxu0 0.0
        %1926 = vmatprep.subr.mxu0 0.0
        %1927 = vmatpush1.msra.mxu0 0.0
        %1928 = vmatprep.subr.mxu0 0.0
        %1929 = vmatpush1.msra.mxu0 0.0
        %1930 = vmatprep.subr.mxu0 0.0
        %1931 = vmatpush1.msra.mxu0 0.0
        %1932 = vmatprep.subr.mxu0 0.0
        %1933 = vmatpush1.msra.mxu0 0.0
        %1934 = vmatprep.subr.mxu0 0.0
        %1935 = vmatpush1.msra.mxu0 0.0
        %1936 = vmatprep.subr.mxu0 0.0
        %1937 = vmatpush1.msra.mxu0 0.0
        %1938 = vmatprep.subr.mxu0 0.0
        %1939 = vmatpush1.msra.mxu0 0.0
        %1940 = vmatprep.subr.mxu0 0.0
        %1941 = vmatpush1.msra.mxu0 0.0
        %1942 = vmatprep.subr.mxu0 0.0
        %1943 = vmatpush1.msra.mxu0 0.0
        %1944 = vmatprep.subr.mxu0 0.0
        %1945 = vmatpush1.msra.mxu0 0.0
        %1946 = vmatprep.subr.mxu0 0.0
        %1947 = vmatpush1.msra.mxu0 0.0
        %1948 = vmatprep.subr.mxu0 0.0
        %1949 = vmatpush1.msra.mxu0 0.0
        %1950 = vmatprep.subr.mxu0 0.0
        %1951 = vmatpush1.msra.mxu0 0.0
        %1952 = vmatprep.subr.mxu0 0.0
        %1953 = vmatpush1.msra.mxu0 0.0
        %1954 = vmatprep.subr.mxu0 0.0
        %1955 = vmatpush1.msra.mxu0 0.0
        %1956 = vmatprep.subr.mxu0 0.0
        %1957 = vmatpush1.msra.mxu0 0.0
        %1958 = vmatprep.subr.mxu0 0.0
        %1959 = vmatpush1.msra.mxu0 0.0
        %1960 = vmatprep.subr.mxu0 0.0
        %1961 = vmatpush1.msra.mxu0 0.0
        %1962 = vmatprep.mubr.f32.mxu0 0.0
        %1963 = vmatmul.mubr.f32.gmra.mrb[0].mxu0 %v1894
        %v1964 = vpop.f32.mrb[0].mxu0
        %v1965 = vadd.f32 0.0, %v1964
        %v1966 = vpop.f32.mrb[0].mxu0
        %1967 = vdwg.mxu0
        %v1969 = vsel %vm904, %v1815, 0
        %v1971 = vsel %vm908, %v1375, 0
        %1973 = vmatprep.subr.mxu0 0.0
        %1974 = vmatpush1.msra.mxu0 %v1971
        %1975 = vmatprep.subr.mxu0 0.0
        %1976 = vmatpush1.msra.mxu0 0.0
        %1977 = vmatprep.subr.mxu0 0.0
        %1978 = vmatpush1.msra.mxu0 0.0
        %1979 = vmatprep.subr.mxu0 0.0
        %1980 = vmatpush1.msra.mxu0 0.0
        %1981 = vmatprep.subr.mxu0 0.0
        %1982 = vmatpush1.msra.mxu0 0.0
        %1983 = vmatprep.subr.mxu0 0.0
        %1984 = vmatpush1.msra.mxu0 0.0
        %1985 = vmatprep.subr.mxu0 0.0
        %1986 = vmatpush1.msra.mxu0 0.0
        %1987 = vmatprep.subr.mxu0 0.0
        %1988 = vmatpush1.msra.mxu0 0.0
        %1989 = vmatprep.subr.mxu0 0.0
        %1990 = vmatpush1.msra.mxu0 0.0
        %1991 = vmatprep.subr.mxu0 0.0
        %1992 = vmatpush1.msra.mxu0 0.0
        %1993 = vmatprep.subr.mxu0 0.0
        %1994 = vmatpush1.msra.mxu0 0.0
        %1995 = vmatprep.subr.mxu0 0.0
        %1996 = vmatpush1.msra.mxu0 0.0
        %1997 = vmatprep.subr.mxu0 0.0
        %1998 = vmatpush1.msra.mxu0 0.0
        %1999 = vmatprep.subr.mxu0 0.0
        %2000 = vmatpush1.msra.mxu0 0.0
        %2001 = vmatprep.subr.mxu0 0.0
        %2002 = vmatpush1.msra.mxu0 0.0
        %2003 = vmatprep.subr.mxu0 0.0
        %2004 = vmatpush1.msra.mxu0 0.0
        %2005 = vmatprep.subr.mxu0 0.0
        %2006 = vmatpush1.msra.mxu0 0.0
        %2007 = vmatprep.subr.mxu0 0.0
        %2008 = vmatpush1.msra.mxu0 0.0
        %2009 = vmatprep.subr.mxu0 0.0
        %2010 = vmatpush1.msra.mxu0 0.0
        %2011 = vmatprep.subr.mxu0 0.0
        %2012 = vmatpush1.msra.mxu0 0.0
        %2013 = vmatprep.subr.mxu0 0.0
        %2014 = vmatpush1.msra.mxu0 0.0
        %2015 = vmatprep.subr.mxu0 0.0
        %2016 = vmatpush1.msra.mxu0 0.0
        %2017 = vmatprep.subr.mxu0 0.0
        %2018 = vmatpush1.msra.mxu0 0.0
        %2019 = vmatprep.subr.mxu0 0.0
        %2020 = vmatpush1.msra.mxu0 0.0
        %2021 = vmatprep.subr.mxu0 0.0
        %2022 = vmatpush1.msra.mxu0 0.0
        %2023 = vmatprep.subr.mxu0 0.0
        %2024 = vmatpush1.msra.mxu0 0.0
        %2025 = vmatprep.subr.mxu0 0.0
        %2026 = vmatpush1.msra.mxu0 0.0
        %2027 = vmatprep.subr.mxu0 0.0
        %2028 = vmatpush1.msra.mxu0 0.0
        %2029 = vmatprep.subr.mxu0 0.0
        %2030 = vmatpush1.msra.mxu0 0.0
        %2031 = vmatprep.subr.mxu0 0.0
        %2032 = vmatpush1.msra.mxu0 0.0
        %2033 = vmatprep.subr.mxu0 0.0
        %2034 = vmatpush1.msra.mxu0 0.0
        %2035 = vmatprep.subr.mxu0 0.0
        %2036 = vmatpush1.msra.mxu0 0.0
        %2037 = vmatprep.mubr.f32.mxu0 0.0
        %2038 = vmatmul.mubr.f32.gmra.mrb[0].mxu0 %v1969
        %v2039 = vpop.f32.mrb[0].mxu0
        %v2040 = vadd.f32 0.0, %v2039
        %v2041 = vpop.f32.mrb[0].mxu0
        %2042 = vdwg.mxu0
        %v2044 = vsel %vm904, %v1817, 0
        %v2046 = vsel %vm908, %v1418, 0
        %2048 = vmatprep.subr.mxu0 0.0
        %2049 = vmatpush1.msra.mxu0 %v2046
        %2050 = vmatprep.subr.mxu0 0.0
        %2051 = vmatpush1.msra.mxu0 0.0
        %2052 = vmatprep.subr.mxu0 0.0
        %2053 = vmatpush1.msra.mxu0 0.0
        %2054 = vmatprep.subr.mxu0 0.0
        %2055 = vmatpush1.msra.mxu0 0.0
        %2056 = vmatprep.subr.mxu0 0.0
        %2057 = vmatpush1.msra.mxu0 0.0
        %2058 = vmatprep.subr.mxu0 0.0
        %2059 = vmatpush1.msra.mxu0 0.0
        %2060 = vmatprep.subr.mxu0 0.0
        %2061 = vmatpush1.msra.mxu0 0.0
        %2062 = vmatprep.subr.mxu0 0.0
        %2063 = vmatpush1.msra.mxu0 0.0
        %2064 = vmatprep.subr.mxu0 0.0
        %2065 = vmatpush1.msra.mxu0 0.0
        %2066 = vmatprep.subr.mxu0 0.0
        %2067 = vmatpush1.msra.mxu0 0.0
        %2068 = vmatprep.subr.mxu0 0.0
        %2069 = vmatpush1.msra.mxu0 0.0
        %2070 = vmatprep.subr.mxu0 0.0
        %2071 = vmatpush1.msra.mxu0 0.0
        %2072 = vmatprep.subr.mxu0 0.0
        %2073 = vmatpush1.msra.mxu0 0.0
        %2074 = vmatprep.subr.mxu0 0.0
        %2075 = vmatpush1.msra.mxu0 0.0
        %2076 = vmatprep.subr.mxu0 0.0
        %2077 = vmatpush1.msra.mxu0 0.0
        %2078 = vmatprep.subr.mxu0 0.0
        %2079 = vmatpush1.msra.mxu0 0.0
        %2080 = vmatprep.subr.mxu0 0.0
        %2081 = vmatpush1.msra.mxu0 0.0
        %2082 = vmatprep.subr.mxu0 0.0
        %2083 = vmatpush1.msra.mxu0 0.0
        %2084 = vmatprep.subr.mxu0 0.0
        %2085 = vmatpush1.msra.mxu0 0.0
        %2086 = vmatprep.subr.mxu0 0.0
        %2087 = vmatpush1.msra.mxu0 0.0
        %2088 = vmatprep.subr.mxu0 0.0
        %2089 = vmatpush1.msra.mxu0 0.0
        %2090 = vmatprep.subr.mxu0 0.0
        %2091 = vmatpush1.msra.mxu0 0.0
        %2092 = vmatprep.subr.mxu0 0.0
        %2093 = vmatpush1.msra.mxu0 0.0
        %2094 = vmatprep.subr.mxu0 0.0
        %2095 = vmatpush1.msra.mxu0 0.0
        %2096 = vmatprep.subr.mxu0 0.0
        %2097 = vmatpush1.msra.mxu0 0.0
        %2098 = vmatprep.subr.mxu0 0.0
        %2099 = vmatpush1.msra.mxu0 0.0
        %2100 = vmatprep.subr.mxu0 0.0
        %2101 = vmatpush1.msra.mxu0 0.0
        %2102 = vmatprep.subr.mxu0 0.0
        %2103 = vmatpush1.msra.mxu0 0.0
        %2104 = vmatprep.subr.mxu0 0.0
        %2105 = vmatpush1.msra.mxu0 0.0
        %2106 = vmatprep.subr.mxu0 0.0
        %2107 = vmatpush1.msra.mxu0 0.0
        %2108 = vmatprep.subr.mxu0 0.0
        %2109 = vmatpush1.msra.mxu0 0.0
        %2110 = vmatprep.subr.mxu0 0.0
        %2111 = vmatpush1.msra.mxu0 0.0
        %2112 = vmatprep.mubr.f32.mxu0 0.0
        %2113 = vmatmul.mubr.f32.gmra.mrb[0].mxu0 %v2044
        %v2114 = vpop.f32.mrb[0].mxu0
        %v2115 = vadd.f32 0.0, %v2114
        %v2116 = vpop.f32.mrb[0].mxu0
        %2117 = vdwg.mxu0
        %vm2118 = vcmp.gt.f32.partialorder %v1890, 0.0
        %vm2119 = vcmp.gt.f32.partialorder %v1965, 0.0
        %vm2120 = vcmp.gt.f32.partialorder %v2040, 0.0
        %vm2121 = vcmp.gt.f32.partialorder %v2115, 0.0
        %v2122 = vmin.f32 %v1890, 0.0
        %v2123 = vmin.f32 %v1965, 0.0
        %v2124 = vmin.f32 %v2040, 0.0
        %v2125 = vmin.f32 %v2115, 0.0
        %v2126 = vmul.f32 %v2122, 1.442695
        %v2127 = vpow.pop %v2126
        %v2128 = vmul.f32 %v2123, 1.442695
        %v2129 = vpow.pop %v2128
        %v2130 = vmul.f32 %v2124, 1.442695
        %v2131 = vpow.pop %v2130
        %v2132 = vmul.f32 %v2125, 1.442695
        %v2133 = vpow.pop %v2132
        %v2134 = vsub.f32 %v2127, 1.0
        %v2135 = vsub.f32 %v2129, 1.0
        %v2136 = vsub.f32 %v2131, 1.0
        %v2137 = vsub.f32 %v2133, 1.0
        %v2138 = vsel %vm2118, %v1890, %v2134
        %v2139 = vsel %vm2119, %v1965, %v2135
        %v2140 = vsel %vm2120, %v2040, %v2136
        %v2141 = vsel %vm2121, %v2115, %v2137
        %v2142 = vsel %vm511, %v2138, 0.0
        %2143 = vadd.xlane.f32.xlu0 %v2142
        %v2144 = vpop.xlane.xlu0 %2143
        %v2145 = vsel %vm511, %v2139, 0.0
        %2146 = vadd.xlane.f32.xlu0 %v2145
        %v2147 = vpop.xlane.xlu0 %2146
        %v2148 = vsel %vm511, %v2140, 0.0
        %2149 = vadd.xlane.f32.xlu0 %v2148
        %v2150 = vpop.xlane.xlu0 %2149
        %v2151 = vsel %vm511, %v2141, 0.0
        %2152 = vadd.xlane.f32.xlu0 %v2151
        %v2153 = vpop.xlane.xlu0 %2152
        %v2154 = vrcp.pop 32.0
        %v2155 = vmul.f32 %v2144, %v2154
        %v2156 = vmul.f32 %v2147, %v2154
        %v2157 = vmul.f32 %v2150, %v2154
        %v2158 = vmul.f32 %v2153, %v2154
        %v2159 = vsub.f32 %v2138, %v2155
        %v2160 = vsub.f32 %v2139, %v2156
        %v2161 = vsub.f32 %v2140, %v2157
        %v2162 = vsub.f32 %v2141, %v2158
        %v2163 = vmul.f32 %v2159, %v2159
        %v2164 = vmul.f32 %v2160, %v2160
        %v2165 = vmul.f32 %v2161, %v2161
        %v2166 = vmul.f32 %v2162, %v2162
        %v2167 = vsel %vm511, %v2163, 0.0
        %2168 = vadd.xlane.f32.xlu0 %v2167
        %v2169 = vpop.xlane.xlu0 %2168
        %v2170 = vsel %vm511, %v2164, 0.0
        %2171 = vadd.xlane.f32.xlu0 %v2170
        %v2172 = vpop.xlane.xlu0 %2171
        %v2173 = vsel %vm511, %v2165, 0.0
        %2174 = vadd.xlane.f32.xlu0 %v2173
        %v2175 = vpop.xlane.xlu0 %2174
        %v2176 = vsel %vm511, %v2166, 0.0
        %2177 = vadd.xlane.f32.xlu0 %v2176
        %v2178 = vpop.xlane.xlu0 %2177
        %v2179 = vmul.f32 %v2169, %v2154
        %v2180 = vmul.f32 %v2172, %v2154
        %v2181 = vmul.f32 %v2175, %v2154
        %v2182 = vmul.f32 %v2178, %v2154
        %v2183 = vadd.f32 %v2179, 1e-05
        %v2184 = vadd.f32 %v2180, 1e-05
        %v2185 = vadd.f32 %v2181, 1e-05
        %v2186 = vadd.f32 %v2182, 1e-05
        %v2187 = vrsqrt.pop %v2183
        %v2188 = vrsqrt.pop %v2184
        %v2189 = vrsqrt.pop %v2185
        %v2190 = vrsqrt.pop %v2186
        %v2191 = vmul.f32 %v2159, %v2187
        %v2192 = vmul.f32 %v2160, %v2188
        %v2193 = vmul.f32 %v2161, %v2189
        %v2194 = vmul.f32 %v2162, %v2190
        %v2195 = vlaneseq
        %v2196 = vshrl.u32 %v2195, 7
        %v2197 = vsub.s32 0, %v2196
        %v2198 = vrot.slane %v307, %v2197
        %v2199 = vmul.f32 %v2191, %v2198
        %v2200 = vmul.f32 %v2192, %v2198
        %v2201 = vmul.f32 %v2193, %v2198
        %v2202 = vmul.f32 %v2194, %v2198
        %v2203 = vlaneseq
        %v2204 = vshrl.u32 %v2203, 7
        %v2205 = vsub.s32 1, %v2204
        %v2206 = vrot.slane %v307, %v2205
        %v2207 = vadd.f32 %v2199, %v2206
        %v2208 = vadd.f32 %v2200, %v2206
        %v2209 = vadd.f32 %v2201, %v2206
        %v2210 = vadd.f32 %v2202, %v2206
        %v2211 = vld [vmem:[#allocation10] sm:$0xf]
        %v2212 = vld [vmem:[#allocation10 + $0xc] sm:$0xf]
        %v2213 = vld [vmem:[#allocation10 + $0x18] sm:$0xf]
        %v2214 = vld [vmem:[#allocation10 + $0x24] sm:$0xf]
        %v2215 = vld [vmem:[#allocation10 + $0x60] sm:$0xf]
        %v2216 = vld [vmem:[#allocation10 + $0x6c] sm:$0xf]
        %v2217 = vld [vmem:[#allocation10 + $0x78] sm:$0xf]
        %v2218 = vld [vmem:[#allocation10 + $0x84] sm:$0xf]
        %v2219 = vld [vmem:[#allocation10 + $0xc0] sm:$0xf]
        %v2220 = vld [vmem:[#allocation10 + $0xcc] sm:$0xf]
        %v2221 = vld [vmem:[#allocation10 + $0xd8] sm:$0xf]
        %v2222 = vld [vmem:[#allocation10 + $0xe4] sm:$0xf]
        %v2223 = vld [vmem:[#allocation10 + $0x30] sm:$0xf]
        %v2224 = vld [vmem:[#allocation10 + $0x3c] sm:$0xf]
        %v2225 = vld [vmem:[#allocation10 + $0x48] sm:$0xf]
        %v2226 = vld [vmem:[#allocation10 + $0x54] sm:$0xf]
        %v2227 = vld [vmem:[#allocation10 + $0x90] sm:$0xf]
        %v2228 = vld [vmem:[#allocation10 + $0x9c] sm:$0xf]
        %v2229 = vld [vmem:[#allocation10 + $0xa8] sm:$0xf]
        %v2230 = vld [vmem:[#allocation10 + $0xb4] sm:$0xf]
        %v2231 = vld [vmem:[#allocation10 + $0xf0] sm:$0xf]
        %v2232 = vld [vmem:[#allocation10 + $0xfc] sm:$0xf]
        %v2233 = vld [vmem:[#allocation10 + $0x108] sm:$0xf]
        %v2234 = vld [vmem:[#allocation10 + $0x114] sm:$0xf]
        %v2239 = vrot.slane %v2207, 7
        %v2240 = vrot.slane %v2208, 7
        %v2241 = vrot.slane %v2209, 7
        %v2242 = vrot.slane %v2210, 7
        %vm2247 = vcmask 1040384
        %v2248 = vsel %vm2247, 0.0, %v2239
        %v2249 = vsel %vm2247, 0.0, %v2240
        %v2250 = vsel %vm2247, 0.0, %v2241
        %v2251 = vsel %vm2247, 0.0, %v2242
        %v2252 = vlaneseq
        %v2253 = vshrl.u32 %v2252, 7
        %v2254 = vsub.s32 4, %v2253
        %v2255 = vrot.slane %v307, %v2254
        %v2256 = vadd.f32 %v2255, 0.0
        %v2257 = vpack.c.bf16 %v2248, %v2248
        %v2258 = vpack.c.bf16 %v2249, %v2249
        %v2259 = vpack.c.bf16 %v2250, %v2250
        %v2260 = vpack.c.bf16 %v2251, %v2251
        %v2265 = vunpack.c.l.b16 %v2211
        %v2266 = vunpack.c.l.b16 %v2212
        %v2267 = vunpack.c.l.b16 %v2213
        %v2268 = vunpack.c.l.b16 %v2214
        %v2269 = vpack.c.b16 %v2266, %v2265
        %v2270 = vpack.c.b16 %v2268, %v2267
        %v2274 = vsel %vm330, %v2257, 0
        %2276 = vmatprep.subr.bf16.mxu0 0
        %2277 = vmatpush1.bf16.msra.mxu0 %v2269
        %2278 = vmatprep.subr.bf16.mxu0 0
        %2279 = vmatpush1.bf16.msra.mxu0 %v2270
        %2280 = vmatprep.subr.bf16.mxu0 0
        %2281 = vmatpush1.bf16.msra.mxu0 0
        %2282 = vmatprep.subr.bf16.mxu0 0
        %2283 = vmatpush1.bf16.msra.mxu0 0
        %2284 = vmatprep.subr.bf16.mxu0 0
        %2285 = vmatpush1.bf16.msra.mxu0 0
        %2286 = vmatprep.subr.bf16.mxu0 0
        %2287 = vmatpush1.bf16.msra.mxu0 0
        %2288 = vmatprep.subr.bf16.mxu0 0
        %2289 = vmatpush1.bf16.msra.mxu0 0
        %2290 = vmatprep.subr.bf16.mxu0 0
        %2291 = vmatpush1.bf16.msra.mxu0 0
        %2292 = vmatprep.subr.bf16.mxu0 0
        %2293 = vmatpush1.bf16.msra.mxu0 0
        %2294 = vmatprep.subr.bf16.mxu0 0
        %2295 = vmatpush1.bf16.msra.mxu0 0
        %2296 = vmatprep.subr.bf16.mxu0 0
        %2297 = vmatpush1.bf16.msra.mxu0 0
        %2298 = vmatprep.subr.bf16.mxu0 0
        %2299 = vmatpush1.bf16.msra.mxu0 0
        %2300 = vmatprep.subr.bf16.mxu0 0
        %2301 = vmatpush1.bf16.msra.mxu0 0
        %2302 = vmatprep.subr.bf16.mxu0 0
        %2303 = vmatpush1.bf16.msra.mxu0 0
        %2304 = vmatprep.subr.bf16.mxu0 0
        %2305 = vmatpush1.bf16.msra.mxu0 0
        %2306 = vmatprep.subr.bf16.mxu0 0
        %2307 = vmatpush1.bf16.msra.mxu0 0
        %2308 = vmatprep.mubr.bf16.mxu0 0
        %2309 = vmatmul.mubr.bf16.gmra.mrb[0].mxu0 %v2274
        %v2310 = vpop.f32.mrb[0].mxu0
        %v2311 = vadd.f32 0.0, %v2310
        %v2312 = vpop.f32.mrb[0].mxu0
        %v2313 = vpop.f32.mrb[0].mxu0
        %v2314 = vpop.f32.mrb[0].mxu0
        %2315 = vdwg.mxu0
        %v2317 = vsel %vm330, %v2258, 0
        %2319 = vmatprep.subr.bf16.mxu0 0
        %2320 = vmatpush1.bf16.msra.mxu0 %v2269
        %2321 = vmatprep.subr.bf16.mxu0 0
        %2322 = vmatpush1.bf16.msra.mxu0 %v2270
        %2323 = vmatprep.subr.bf16.mxu0 0
        %2324 = vmatpush1.bf16.msra.mxu0 0
        %2325 = vmatprep.subr.bf16.mxu0 0
        %2326 = vmatpush1.bf16.msra.mxu0 0
        %2327 = vmatprep.subr.bf16.mxu0 0
        %2328 = vmatpush1.bf16.msra.mxu0 0
        %2329 = vmatprep.subr.bf16.mxu0 0
        %2330 = vmatpush1.bf16.msra.mxu0 0
        %2331 = vmatprep.subr.bf16.mxu0 0
        %2332 = vmatpush1.bf16.msra.mxu0 0
        %2333 = vmatprep.subr.bf16.mxu0 0
        %2334 = vmatpush1.bf16.msra.mxu0 0
        %2335 = vmatprep.subr.bf16.mxu0 0
        %2336 = vmatpush1.bf16.msra.mxu0 0
        %2337 = vmatprep.subr.bf16.mxu0 0
        %2338 = vmatpush1.bf16.msra.mxu0 0
        %2339 = vmatprep.subr.bf16.mxu0 0
        %2340 = vmatpush1.bf16.msra.mxu0 0
        %2341 = vmatprep.subr.bf16.mxu0 0
        %2342 = vmatpush1.bf16.msra.mxu0 0
        %2343 = vmatprep.subr.bf16.mxu0 0
        %2344 = vmatpush1.bf16.msra.mxu0 0
        %2345 = vmatprep.subr.bf16.mxu0 0
        %2346 = vmatpush1.bf16.msra.mxu0 0
        %2347 = vmatprep.subr.bf16.mxu0 0
        %2348 = vmatpush1.bf16.msra.mxu0 0
        %2349 = vmatprep.subr.bf16.mxu0 0
        %2350 = vmatpush1.bf16.msra.mxu0 0
        %2351 = vmatprep.mubr.bf16.mxu0 0
        %2352 = vmatmul.mubr.bf16.gmra.mrb[0].mxu0 %v2317
        %v2353 = vpop.f32.mrb[0].mxu0
        %v2354 = vadd.f32 0.0, %v2353
        %v2355 = vpop.f32.mrb[0].mxu0
        %v2356 = vpop.f32.mrb[0].mxu0
        %v2357 = vpop.f32.mrb[0].mxu0
        %2358 = vdwg.mxu0
        %v2360 = vsel %vm330, %v2259, 0
        %2362 = vmatprep.subr.bf16.mxu0 0
        %2363 = vmatpush1.bf16.msra.mxu0 %v2269
        %2364 = vmatprep.subr.bf16.mxu0 0
        %2365 = vmatpush1.bf16.msra.mxu0 %v2270
        %2366 = vmatprep.subr.bf16.mxu0 0
        %2367 = vmatpush1.bf16.msra.mxu0 0
        %2368 = vmatprep.subr.bf16.mxu0 0
        %2369 = vmatpush1.bf16.msra.mxu0 0
        %2370 = vmatprep.subr.bf16.mxu0 0
        %2371 = vmatpush1.bf16.msra.mxu0 0
        %2372 = vmatprep.subr.bf16.mxu0 0
        %2373 = vmatpush1.bf16.msra.mxu0 0
        %2374 = vmatprep.subr.bf16.mxu0 0
        %2375 = vmatpush1.bf16.msra.mxu0 0
        %2376 = vmatprep.subr.bf16.mxu0 0
        %2377 = vmatpush1.bf16.msra.mxu0 0
        %2378 = vmatprep.subr.bf16.mxu0 0
        %2379 = vmatpush1.bf16.msra.mxu0 0
        %2380 = vmatprep.subr.bf16.mxu0 0
        %2381 = vmatpush1.bf16.msra.mxu0 0
        %2382 = vmatprep.subr.bf16.mxu0 0
        %2383 = vmatpush1.bf16.msra.mxu0 0
        %2384 = vmatprep.subr.bf16.mxu0 0
        %2385 = vmatpush1.bf16.msra.mxu0 0
        %2386 = vmatprep.subr.bf16.mxu0 0
        %2387 = vmatpush1.bf16.msra.mxu0 0
        %2388 = vmatprep.subr.bf16.mxu0 0
        %2389 = vmatpush1.bf16.msra.mxu0 0
        %2390 = vmatprep.subr.bf16.mxu0 0
        %2391 = vmatpush1.bf16.msra.mxu0 0
        %2392 = vmatprep.subr.bf16.mxu0 0
        %2393 = vmatpush1.bf16.msra.mxu0 0
        %2394 = vmatprep.mubr.bf16.mxu0 0
        %2395 = vmatmul.mubr.bf16.gmra.mrb[0].mxu0 %v2360
        %v2396 = vpop.f32.mrb[0].mxu0
        %v2397 = vadd.f32 0.0, %v2396
        %v2398 = vpop.f32.mrb[0].mxu0
        %v2399 = vpop.f32.mrb[0].mxu0
        %v2400 = vpop.f32.mrb[0].mxu0
        %2401 = vdwg.mxu0
        %v2403 = vsel %vm330, %v2260, 0
        %2405 = vmatprep.subr.bf16.mxu0 0
        %2406 = vmatpush1.bf16.msra.mxu0 %v2269
        %2407 = vmatprep.subr.bf16.mxu0 0
        %2408 = vmatpush1.bf16.msra.mxu0 %v2270
        %2409 = vmatprep.subr.bf16.mxu0 0
        %2410 = vmatpush1.bf16.msra.mxu0 0
        %2411 = vmatprep.subr.bf16.mxu0 0
        %2412 = vmatpush1.bf16.msra.mxu0 0
        %2413 = vmatprep.subr.bf16.mxu0 0
        %2414 = vmatpush1.bf16.msra.mxu0 0
        %2415 = vmatprep.subr.bf16.mxu0 0
        %2416 = vmatpush1.bf16.msra.mxu0 0
        %2417 = vmatprep.subr.bf16.mxu0 0
        %2418 = vmatpush1.bf16.msra.mxu0 0
        %2419 = vmatprep.subr.bf16.mxu0 0
        %2420 = vmatpush1.bf16.msra.mxu0 0
        %2421 = vmatprep.subr.bf16.mxu0 0
        %2422 = vmatpush1.bf16.msra.mxu0 0
        %2423 = vmatprep.subr.bf16.mxu0 0
        %2424 = vmatpush1.bf16.msra.mxu0 0
        %2425 = vmatprep.subr.bf16.mxu0 0
        %2426 = vmatpush1.bf16.msra.mxu0 0
        %2427 = vmatprep.subr.bf16.mxu0 0
        %2428 = vmatpush1.bf16.msra.mxu0 0
        %2429 = vmatprep.subr.bf16.mxu0 0
        %2430 = vmatpush1.bf16.msra.mxu0 0
        %2431 = vmatprep.subr.bf16.mxu0 0
        %2432 = vmatpush1.bf16.msra.mxu0 0
        %2433 = vmatprep.subr.bf16.mxu0 0
        %2434 = vmatpush1.bf16.msra.mxu0 0
        %2435 = vmatprep.subr.bf16.mxu0 0
        %2436 = vmatpush1.bf16.msra.mxu0 0
        %2437 = vmatprep.mubr.bf16.mxu0 0
        %2438 = vmatmul.mubr.bf16.gmra.mrb[0].mxu0 %v2403
        %v2439 = vpop.f32.mrb[0].mxu0
        %v2440 = vadd.f32 0.0, %v2439
        %v2441 = vpop.f32.mrb[0].mxu0
        %v2442 = vpop.f32.mrb[0].mxu0
        %v2443 = vpop.f32.mrb[0].mxu0
        %2444 = vdwg.mxu0
        %v2445 = vadd.f32 %v2256, %v2311
        %v2446 = vadd.f32 %v2256, %v2354
        %v2447 = vadd.f32 %v2256, %v2397
        %v2448 = vadd.f32 %v2256, %v2440
        %v2449 = vshrl.u32 %v2257, 16
        %v2451 = vshll.u32 %v2257, 16
        %v2453 = vrot.slane %v2451, 1
        %v2454 = vor.u32 %v2449, %v2453
        %v2459 = vunpack.c.l.b16 %v2215
        %v2460 = vunpack.c.l.b16 %v2216
        %v2461 = vunpack.c.l.b16 %v2217
        %v2462 = vunpack.c.l.b16 %v2218
        %v2463 = vpack.c.b16 %v2460, %v2459
        %v2464 = vpack.c.b16 %v2462, %v2461
        %v2468 = vsel %vm330, %v2454, 0
        %2470 = vmatprep.subr.bf16.mxu0 0
        %2471 = vmatpush1.bf16.msra.mxu0 %v2463
        %2472 = vmatprep.subr.bf16.mxu0 0
        %2473 = vmatpush1.bf16.msra.mxu0 %v2464
        %2474 = vmatprep.subr.bf16.mxu0 0
        %2475 = vmatpush1.bf16.msra.mxu0 0
        %2476 = vmatprep.subr.bf16.mxu0 0
        %2477 = vmatpush1.bf16.msra.mxu0 0
        %2478 = vmatprep.subr.bf16.mxu0 0
        %2479 = vmatpush1.bf16.msra.mxu0 0
        %2480 = vmatprep.subr.bf16.mxu0 0
        %2481 = vmatpush1.bf16.msra.mxu0 0
        %2482 = vmatprep.subr.bf16.mxu0 0
        %2483 = vmatpush1.bf16.msra.mxu0 0
        %2484 = vmatprep.subr.bf16.mxu0 0
        %2485 = vmatpush1.bf16.msra.mxu0 0
        %2486 = vmatprep.subr.bf16.mxu0 0
        %2487 = vmatpush1.bf16.msra.mxu0 0
        %2488 = vmatprep.subr.bf16.mxu0 0
        %2489 = vmatpush1.bf16.msra.mxu0 0
        %2490 = vmatprep.subr.bf16.mxu0 0
        %2491 = vmatpush1.bf16.msra.mxu0 0
        %2492 = vmatprep.subr.bf16.mxu0 0
        %2493 = vmatpush1.bf16.msra.mxu0 0
        %2494 = vmatprep.subr.bf16.mxu0 0
        %2495 = vmatpush1.bf16.msra.mxu0 0
        %2496 = vmatprep.subr.bf16.mxu0 0
        %2497 = vmatpush1.bf16.msra.mxu0 0
        %2498 = vmatprep.subr.bf16.mxu0 0
        %2499 = vmatpush1.bf16.msra.mxu0 0
        %2500 = vmatprep.subr.bf16.mxu0 0
        %2501 = vmatpush1.bf16.msra.mxu0 0
        %2502 = vmatprep.mubr.bf16.mxu0 0
        %2503 = vmatmul.mubr.bf16.gmra.mrb[0].mxu0 %v2468
        %v2504 = vpop.f32.mrb[0].mxu0
        %v2505 = vadd.f32 0.0, %v2504
        %v2506 = vpop.f32.mrb[0].mxu0
        %v2507 = vpop.f32.mrb[0].mxu0
        %v2508 = vpop.f32.mrb[0].mxu0
        %2509 = vdwg.mxu0
        %v2510 = vshrl.u32 %v2258, 16
        %v2512 = vshll.u32 %v2258, 16
        %v2514 = vrot.slane %v2512, 1
        %v2515 = vor.u32 %v2510, %v2514
        %v2517 = vsel %vm330, %v2515, 0
        %2519 = vmatprep.subr.bf16.mxu0 0
        %2520 = vmatpush1.bf16.msra.mxu0 %v2463
        %2521 = vmatprep.subr.bf16.mxu0 0
        %2522 = vmatpush1.bf16.msra.mxu0 %v2464
        %2523 = vmatprep.subr.bf16.mxu0 0
        %2524 = vmatpush1.bf16.msra.mxu0 0
        %2525 = vmatprep.subr.bf16.mxu0 0
        %2526 = vmatpush1.bf16.msra.mxu0 0
        %2527 = vmatprep.subr.bf16.mxu0 0
        %2528 = vmatpush1.bf16.msra.mxu0 0
        %2529 = vmatprep.subr.bf16.mxu0 0
        %2530 = vmatpush1.bf16.msra.mxu0 0
        %2531 = vmatprep.subr.bf16.mxu0 0
        %2532 = vmatpush1.bf16.msra.mxu0 0
        %2533 = vmatprep.subr.bf16.mxu0 0
        %2534 = vmatpush1.bf16.msra.mxu0 0
        %2535 = vmatprep.subr.bf16.mxu0 0
        %2536 = vmatpush1.bf16.msra.mxu0 0
        %2537 = vmatprep.subr.bf16.mxu0 0
        %2538 = vmatpush1.bf16.msra.mxu0 0
        %2539 = vmatprep.subr.bf16.mxu0 0
        %2540 = vmatpush1.bf16.msra.mxu0 0
        %2541 = vmatprep.subr.bf16.mxu0 0
        %2542 = vmatpush1.bf16.msra.mxu0 0
        %2543 = vmatprep.subr.bf16.mxu0 0
        %2544 = vmatpush1.bf16.msra.mxu0 0
        %2545 = vmatprep.subr.bf16.mxu0 0
        %2546 = vmatpush1.bf16.msra.mxu0 0
        %2547 = vmatprep.subr.bf16.mxu0 0
        %2548 = vmatpush1.bf16.msra.mxu0 0
        %2549 = vmatprep.subr.bf16.mxu0 0
        %2550 = vmatpush1.bf16.msra.mxu0 0
        %2551 = vmatprep.mubr.bf16.mxu0 0
        %2552 = vmatmul.mubr.bf16.gmra.mrb[0].mxu0 %v2517
        %v2553 = vpop.f32.mrb[0].mxu0
        %v2554 = vadd.f32 0.0, %v2553
        %v2555 = vpop.f32.mrb[0].mxu0
        %v2556 = vpop.f32.mrb[0].mxu0
        %v2557 = vpop.f32.mrb[0].mxu0
        %2558 = vdwg.mxu0
        %v2559 = vshrl.u32 %v2259, 16
        %v2561 = vshll.u32 %v2259, 16
        %v2563 = vrot.slane %v2561, 1
        %v2564 = vor.u32 %v2559, %v2563
        %v2566 = vsel %vm330, %v2564, 0
        %2568 = vmatprep.subr.bf16.mxu0 0
        %2569 = vmatpush1.bf16.msra.mxu0 %v2463
        %2570 = vmatprep.subr.bf16.mxu0 0
        %2571 = vmatpush1.bf16.msra.mxu0 %v2464
        %2572 = vmatprep.subr.bf16.mxu0 0
        %2573 = vmatpush1.bf16.msra.mxu0 0
        %2574 = vmatprep.subr.bf16.mxu0 0
        %2575 = vmatpush1.bf16.msra.mxu0 0
        %2576 = vmatprep.subr.bf16.mxu0 0
        %2577 = vmatpush1.bf16.msra.mxu0 0
        %2578 = vmatprep.subr.bf16.mxu0 0
        %2579 = vmatpush1.bf16.msra.mxu0 0
        %2580 = vmatprep.subr.bf16.mxu0 0
        %2581 = vmatpush1.bf16.msra.mxu0 0
        %2582 = vmatprep.subr.bf16.mxu0 0
        %2583 = vmatpush1.bf16.msra.mxu0 0
        %2584 = vmatprep.subr.bf16.mxu0 0
        %2585 = vmatpush1.bf16.msra.mxu0 0
        %2586 = vmatprep.subr.bf16.mxu0 0
        %2587 = vmatpush1.bf16.msra.mxu0 0
        %2588 = vmatprep.subr.bf16.mxu0 0
        %2589 = vmatpush1.bf16.msra.mxu0 0
        %2590 = vmatprep.subr.bf16.mxu0 0
        %2591 = vmatpush1.bf16.msra.mxu0 0
        %2592 = vmatprep.subr.bf16.mxu0 0
        %2593 = vmatpush1.bf16.msra.mxu0 0
        %2594 = vmatprep.subr.bf16.mxu0 0
        %2595 = vmatpush1.bf16.msra.mxu0 0
        %2596 = vmatprep.subr.bf16.mxu0 0
        %2597 = vmatpush1.bf16.msra.mxu0 0
        %2598 = vmatprep.subr.bf16.mxu0 0
        %2599 = vmatpush1.bf16.msra.mxu0 0
        %2600 = vmatprep.mubr.bf16.mxu0 0
        %2601 = vmatmul.mubr.bf16.gmra.mrb[0].mxu0 %v2566
        %v2602 = vpop.f32.mrb[0].mxu0
        %v2603 = vadd.f32 0.0, %v2602
        %v2604 = vpop.f32.mrb[0].mxu0
        %v2605 = vpop.f32.mrb[0].mxu0
        %v2606 = vpop.f32.mrb[0].mxu0
        %2607 = vdwg.mxu0
        %v2608 = vshrl.u32 %v2260, 16
        %v2610 = vshll.u32 %v2260, 16
        %v2612 = vrot.slane %v2610, 1
        %v2613 = vor.u32 %v2608, %v2612
        %v2615 = vsel %vm330, %v2613, 0
        %2617 = vmatprep.subr.bf16.mxu0 0
        %2618 = vmatpush1.bf16.msra.mxu0 %v2463
        %2619 = vmatprep.subr.bf16.mxu0 0
        %2620 = vmatpush1.bf16.msra.mxu0 %v2464
        %2621 = vmatprep.subr.bf16.mxu0 0
        %2622 = vmatpush1.bf16.msra.mxu0 0
        %2623 = vmatprep.subr.bf16.mxu0 0
        %2624 = vmatpush1.bf16.msra.mxu0 0
        %2625 = vmatprep.subr.bf16.mxu0 0
        %2626 = vmatpush1.bf16.msra.mxu0 0
        %2627 = vmatprep.subr.bf16.mxu0 0
        %2628 = vmatpush1.bf16.msra.mxu0 0
        %2629 = vmatprep.subr.bf16.mxu0 0
        %2630 = vmatpush1.bf16.msra.mxu0 0
        %2631 = vmatprep.subr.bf16.mxu0 0
        %2632 = vmatpush1.bf16.msra.mxu0 0
        %2633 = vmatprep.subr.bf16.mxu0 0
        %2634 = vmatpush1.bf16.msra.mxu0 0
        %2635 = vmatprep.subr.bf16.mxu0 0
        %2636 = vmatpush1.bf16.msra.mxu0 0
        %2637 = vmatprep.subr.bf16.mxu0 0
        %2638 = vmatpush1.bf16.msra.mxu0 0
        %2639 = vmatprep.subr.bf16.mxu0 0
        %2640 = vmatpush1.bf16.msra.mxu0 0
        %2641 = vmatprep.subr.bf16.mxu0 0
        %2642 = vmatpush1.bf16.msra.mxu0 0
        %2643 = vmatprep.subr.bf16.mxu0 0
        %2644 = vmatpush1.bf16.msra.mxu0 0
        %2645 = vmatprep.subr.bf16.mxu0 0
        %2646 = vmatpush1.bf16.msra.mxu0 0
        %2647 = vmatprep.subr.bf16.mxu0 0
        %2648 = vmatpush1.bf16.msra.mxu0 0
        %2649 = vmatprep.mubr.bf16.mxu0 0
        %2650 = vmatmul.mubr.bf16.gmra.mrb[0].mxu0 %v2615
        %v2651 = vpop.f32.mrb[0].mxu0
        %v2652 = vadd.f32 0.0, %v2651
        %v2653 = vpop.f32.mrb[0].mxu0
        %v2654 = vpop.f32.mrb[0].mxu0
        %v2655 = vpop.f32.mrb[0].mxu0
        %2656 = vdwg.mxu0
        %v2657 = vadd.f32 %v2445, %v2505
        %v2658 = vadd.f32 %v2446, %v2554
        %v2659 = vadd.f32 %v2447, %v2603
        %v2660 = vadd.f32 %v2448, %v2652
        %v2661 = vpack.c.bf16 0.0, %v2248
        %v2662 = vpack.c.bf16 0.0, %v2249
        %v2663 = vpack.c.bf16 0.0, %v2250
        %v2664 = vpack.c.bf16 0.0, %v2251
        %v2666 = vrot.slane %v2661, 1
        %v2671 = vunpack.c.l.b16 %v2219
        %v2672 = vunpack.c.l.b16 %v2220
        %v2673 = vunpack.c.l.b16 %v2221
        %v2674 = vunpack.c.l.b16 %v2222
        %v2675 = vpack.c.b16 %v2672, %v2671
        %v2676 = vpack.c.b16 %v2674, %v2673
        %v2680 = vsel %vm330, %v2666, 0
        %2682 = vmatprep.subr.bf16.mxu0 0
        %2683 = vmatpush1.bf16.msra.mxu0 %v2675
        %2684 = vmatprep.subr.bf16.mxu0 0
        %2685 = vmatpush1.bf16.msra.mxu0 %v2676
        %2686 = vmatprep.subr.bf16.mxu0 0
        %2687 = vmatpush1.bf16.msra.mxu0 0
        %2688 = vmatprep.subr.bf16.mxu0 0
        %2689 = vmatpush1.bf16.msra.mxu0 0
        %2690 = vmatprep.subr.bf16.mxu0 0
        %2691 = vmatpush1.bf16.msra.mxu0 0
        %2692 = vmatprep.subr.bf16.mxu0 0
        %2693 = vmatpush1.bf16.msra.mxu0 0
        %2694 = vmatprep.subr.bf16.mxu0 0
        %2695 = vmatpush1.bf16.msra.mxu0 0
        %2696 = vmatprep.subr.bf16.mxu0 0
        %2697 = vmatpush1.bf16.msra.mxu0 0
        %2698 = vmatprep.subr.bf16.mxu0 0
        %2699 = vmatpush1.bf16.msra.mxu0 0
        %2700 = vmatprep.subr.bf16.mxu0 0
        %2701 = vmatpush1.bf16.msra.mxu0 0
        %2702 = vmatprep.subr.bf16.mxu0 0
        %2703 = vmatpush1.bf16.msra.mxu0 0
        %2704 = vmatprep.subr.bf16.mxu0 0
        %2705 = vmatpush1.bf16.msra.mxu0 0
        %2706 = vmatprep.subr.bf16.mxu0 0
        %2707 = vmatpush1.bf16.msra.mxu0 0
        %2708 = vmatprep.subr.bf16.mxu0 0
        %2709 = vmatpush1.bf16.msra.mxu0 0
        %2710 = vmatprep.subr.bf16.mxu0 0
        %2711 = vmatpush1.bf16.msra.mxu0 0
        %2712 = vmatprep.subr.bf16.mxu0 0
        %2713 = vmatpush1.bf16.msra.mxu0 0
        %2714 = vmatprep.mubr.bf16.mxu0 0
        %2715 = vmatmul.mubr.bf16.gmra.mrb[0].mxu0 %v2680
        %v2716 = vpop.f32.mrb[0].mxu0
        %v2717 = vadd.f32 0.0, %v2716
        %v2718 = vpop.f32.mrb[0].mxu0
        %v2719 = vpop.f32.mrb[0].mxu0
        %v2720 = vpop.f32.mrb[0].mxu0
        %2721 = vdwg.mxu0
        %v2723 = vrot.slane %v2662, 1
        %v2725 = vsel %vm330, %v2723, 0
        %2727 = vmatprep.subr.bf16.mxu0 0
        %2728 = vmatpush1.bf16.msra.mxu0 %v2675
        %2729 = vmatprep.subr.bf16.mxu0 0
        %2730 = vmatpush1.bf16.msra.mxu0 %v2676
        %2731 = vmatprep.subr.bf16.mxu0 0
        %2732 = vmatpush1.bf16.msra.mxu0 0
        %2733 = vmatprep.subr.bf16.mxu0 0
        %2734 = vmatpush1.bf16.msra.mxu0 0
        %2735 = vmatprep.subr.bf16.mxu0 0
        %2736 = vmatpush1.bf16.msra.mxu0 0
        %2737 = vmatprep.subr.bf16.mxu0 0
        %2738 = vmatpush1.bf16.msra.mxu0 0
        %2739 = vmatprep.subr.bf16.mxu0 0
        %2740 = vmatpush1.bf16.msra.mxu0 0
        %2741 = vmatprep.subr.bf16.mxu0 0
        %2742 = vmatpush1.bf16.msra.mxu0 0
        %2743 = vmatprep.subr.bf16.mxu0 0
        %2744 = vmatpush1.bf16.msra.mxu0 0
        %2745 = vmatprep.subr.bf16.mxu0 0
        %2746 = vmatpush1.bf16.msra.mxu0 0
        %2747 = vmatprep.subr.bf16.mxu0 0
        %2748 = vmatpush1.bf16.msra.mxu0 0
        %2749 = vmatprep.subr.bf16.mxu0 0
        %2750 = vmatpush1.bf16.msra.mxu0 0
        %2751 = vmatprep.subr.bf16.mxu0 0
        %2752 = vmatpush1.bf16.msra.mxu0 0
        %2753 = vmatprep.subr.bf16.mxu0 0
        %2754 = vmatpush1.bf16.msra.mxu0 0
        %2755 = vmatprep.subr.bf16.mxu0 0
        %2756 = vmatpush1.bf16.msra.mxu0 0
        %2757 = vmatprep.subr.bf16.mxu0 0
        %2758 = vmatpush1.bf16.msra.mxu0 0
        %2759 = vmatprep.mubr.bf16.mxu0 0
        %2760 = vmatmul.mubr.bf16.gmra.mrb[0].mxu0 %v2725
        %v2761 = vpop.f32.mrb[0].mxu0
        %v2762 = vadd.f32 0.0, %v2761
        %v2763 = vpop.f32.mrb[0].mxu0
        %v2764 = vpop.f32.mrb[0].mxu0
        %v2765 = vpop.f32.mrb[0].mxu0
        %2766 = vdwg.mxu0
        %v2768 = vrot.slane %v2663, 1
        %v2770 = vsel %vm330, %v2768, 0
        %2772 = vmatprep.subr.bf16.mxu0 0
        %2773 = vmatpush1.bf16.msra.mxu0 %v2675
        %2774 = vmatprep.subr.bf16.mxu0 0
        %2775 = vmatpush1.bf16.msra.mxu0 %v2676
        %2776 = vmatprep.subr.bf16.mxu0 0
        %2777 = vmatpush1.bf16.msra.mxu0 0
        %2778 = vmatprep.subr.bf16.mxu0 0
        %2779 = vmatpush1.bf16.msra.mxu0 0
        %2780 = vmatprep.subr.bf16.mxu0 0
        %2781 = vmatpush1.bf16.msra.mxu0 0
        %2782 = vmatprep.subr.bf16.mxu0 0
        %2783 = vmatpush1.bf16.msra.mxu0 0
        %2784 = vmatprep.subr.bf16.mxu0 0
        %2785 = vmatpush1.bf16.msra.mxu0 0
        %2786 = vmatprep.subr.bf16.mxu0 0
        %2787 = vmatpush1.bf16.msra.mxu0 0
        %2788 = vmatprep.subr.bf16.mxu0 0
        %2789 = vmatpush1.bf16.msra.mxu0 0
        %2790 = vmatprep.subr.bf16.mxu0 0
        %2791 = vmatpush1.bf16.msra.mxu0 0
        %2792 = vmatprep.subr.bf16.mxu0 0
        %2793 = vmatpush1.bf16.msra.mxu0 0
        %2794 = vmatprep.subr.bf16.mxu0 0
        %2795 = vmatpush1.bf16.msra.mxu0 0
        %2796 = vmatprep.subr.bf16.mxu0 0
        %2797 = vmatpush1.bf16.msra.mxu0 0
        %2798 = vmatprep.subr.bf16.mxu0 0
        %2799 = vmatpush1.bf16.msra.mxu0 0
        %2800 = vmatprep.subr.bf16.mxu0 0
        %2801 = vmatpush1.bf16.msra.mxu0 0
        %2802 = vmatprep.subr.bf16.mxu0 0
        %2803 = vmatpush1.bf16.msra.mxu0 0
        %2804 = vmatprep.mubr.bf16.mxu0 0
        %2805 = vmatmul.mubr.bf16.gmra.mrb[0].mxu0 %v2770
        %v2806 = vpop.f32.mrb[0].mxu0
        %v2807 = vadd.f32 0.0, %v2806
        %v2808 = vpop.f32.mrb[0].mxu0
        %v2809 = vpop.f32.mrb[0].mxu0
        %v2810 = vpop.f32.mrb[0].mxu0
        %2811 = vdwg.mxu0
        %v2813 = vrot.slane %v2664, 1
        %v2815 = vsel %vm330, %v2813, 0
        %2817 = vmatprep.subr.bf16.mxu0 0
        %2818 = vmatpush1.bf16.msra.mxu0 %v2675
        %2819 = vmatprep.subr.bf16.mxu0 0
        %2820 = vmatpush1.bf16.msra.mxu0 %v2676
        %2821 = vmatprep.subr.bf16.mxu0 0
        %2822 = vmatpush1.bf16.msra.mxu0 0
        %2823 = vmatprep.subr.bf16.mxu0 0
        %2824 = vmatpush1.bf16.msra.mxu0 0
        %2825 = vmatprep.subr.bf16.mxu0 0
        %2826 = vmatpush1.bf16.msra.mxu0 0
        %2827 = vmatprep.subr.bf16.mxu0 0
        %2828 = vmatpush1.bf16.msra.mxu0 0
        %2829 = vmatprep.subr.bf16.mxu0 0
        %2830 = vmatpush1.bf16.msra.mxu0 0
        %2831 = vmatprep.subr.bf16.mxu0 0
        %2832 = vmatpush1.bf16.msra.mxu0 0
        %2833 = vmatprep.subr.bf16.mxu0 0
        %2834 = vmatpush1.bf16.msra.mxu0 0
        %2835 = vmatprep.subr.bf16.mxu0 0
        %2836 = vmatpush1.bf16.msra.mxu0 0
        %2837 = vmatprep.subr.bf16.mxu0 0
        %2838 = vmatpush1.bf16.msra.mxu0 0
        %2839 = vmatprep.subr.bf16.mxu0 0
        %2840 = vmatpush1.bf16.msra.mxu0 0
        %2841 = vmatprep.subr.bf16.mxu0 0
        %2842 = vmatpush1.bf16.msra.mxu0 0
        %2843 = vmatprep.subr.bf16.mxu0 0
        %2844 = vmatpush1.bf16.msra.mxu0 0
        %2845 = vmatprep.subr.bf16.mxu0 0
        %2846 = vmatpush1.bf16.msra.mxu0 0
        %2847 = vmatprep.subr.bf16.mxu0 0
        %2848 = vmatpush1.bf16.msra.mxu0 0
        %2849 = vmatprep.mubr.bf16.mxu0 0
        %2850 = vmatmul.mubr.bf16.gmra.mrb[0].mxu0 %v2815
        %v2851 = vpop.f32.mrb[0].mxu0
        %v2852 = vadd.f32 0.0, %v2851
        %v2853 = vpop.f32.mrb[0].mxu0
        %v2854 = vpop.f32.mrb[0].mxu0
        %v2855 = vpop.f32.mrb[0].mxu0
        %2856 = vdwg.mxu0
        %v2857 = vadd.f32 %v2657, %v2717
        %v2858 = vadd.f32 %v2658, %v2762
        %v2859 = vadd.f32 %v2659, %v2807
        %v2860 = vadd.f32 %v2660, %v2852
        %v2861 = vmax.f32 %v2857, 0.0
        %v2862 = vmax.f32 %v2858, 0.0
        %v2863 = vmax.f32 %v2859, 0.0
        %v2864 = vmax.f32 %v2860, 0.0
        %v2869 = vrot.slane %v2861, 7
        %v2870 = vrot.slane %v2862, 7
        %v2871 = vrot.slane %v2863, 7
        %v2872 = vrot.slane %v2864, 7
        %v2877 = vsel %vm2247, 0.0, %v2869
        %v2878 = vsel %vm2247, 0.0, %v2870
        %v2879 = vsel %vm2247, 0.0, %v2871
        %v2880 = vsel %vm2247, 0.0, %v2872
        %v2881 = vlaneseq
        %v2882 = vshrl.u32 %v2881, 7
        %v2883 = vsub.s32 5, %v2882
        %v2884 = vrot.slane %v307, %v2883
        %v2885 = vadd.f32 %v2884, 0.0
        %v2886 = vpack.c.bf16 %v2877, %v2877
        %v2887 = vpack.c.bf16 %v2878, %v2878
        %v2888 = vpack.c.bf16 %v2879, %v2879
        %v2889 = vpack.c.bf16 %v2880, %v2880
        %v2894 = vunpack.c.l.b16 %v2223
        %v2895 = vunpack.c.l.b16 %v2224
        %v2896 = vunpack.c.l.b16 %v2225
        %v2897 = vunpack.c.l.b16 %v2226
        %v2898 = vpack.c.b16 %v2895, %v2894
        %v2899 = vpack.c.b16 %v2897, %v2896
        %2900 = vrot.lane.b32.xlu0 %v2269, 64
        %v2901 = vpop.permute.xlu0 %2900
        %2902 = vrot.lane.b32.xlu0 %v2270, 64
        %v2903 = vpop.permute.xlu0 %2902
        %2904 = vrot.lane.b32.xlu0 %v2898, 64
        %v2905 = vpop.permute.xlu0 %2904
        %2906 = vrot.lane.b32.xlu0 %v2899, 64
        %v2907 = vpop.permute.xlu0 %2906
        %vm2912 = vcmask 523264
        %v2914 = vsel %vm2912, %v2886, 0
        %2916 = vmatprep.subr.bf16.mxu0 0
        %2917 = vmatpush1.bf16.msra.mxu0 %v2901
        %2918 = vmatprep.subr.bf16.mxu0 0
        %2919 = vmatpush1.bf16.msra.mxu0 %v2903
        %2920 = vmatprep.subr.bf16.mxu0 0
        %2921 = vmatpush1.bf16.msra.mxu0 %v2905
        %2922 = vmatprep.subr.bf16.mxu0 0
        %2923 = vmatpush1.bf16.msra.mxu0 %v2907
        %2924 = vmatprep.subr.bf16.mxu0 0
        %2925 = vmatpush1.bf16.msra.mxu0 0
        %2926 = vmatprep.subr.bf16.mxu0 0
        %2927 = vmatpush1.bf16.msra.mxu0 0
        %2928 = vmatprep.subr.bf16.mxu0 0
        %2929 = vmatpush1.bf16.msra.mxu0 0
        %2930 = vmatprep.subr.bf16.mxu0 0
        %2931 = vmatpush1.bf16.msra.mxu0 0
        %2932 = vmatprep.subr.bf16.mxu0 0
        %2933 = vmatpush1.bf16.msra.mxu0 0
        %2934 = vmatprep.subr.bf16.mxu0 0
        %2935 = vmatpush1.bf16.msra.mxu0 0
        %2936 = vmatprep.subr.bf16.mxu0 0
        %2937 = vmatpush1.bf16.msra.mxu0 0
        %2938 = vmatprep.subr.bf16.mxu0 0
        %2939 = vmatpush1.bf16.msra.mxu0 0
        %2940 = vmatprep.subr.bf16.mxu0 0
        %2941 = vmatpush1.bf16.msra.mxu0 0
        %2942 = vmatprep.subr.bf16.mxu0 0
        %2943 = vmatpush1.bf16.msra.mxu0 0
        %2944 = vmatprep.subr.bf16.mxu0 0
        %2945 = vmatpush1.bf16.msra.mxu0 0
        %2946 = vmatprep.subr.bf16.mxu0 0
        %2947 = vmatpush1.bf16.msra.mxu0 0
        %2948 = vmatprep.mubr.bf16.mxu0 0
        %2949 = vmatmul.mubr.bf16.gmra.mrb[0].mxu0 %v2914
        %v2950 = vpop.f32.mrb[0].mxu0
        %v2951 = vadd.f32 0.0, %v2950
        %v2952 = vpop.f32.mrb[0].mxu0
        %v2953 = vpop.f32.mrb[0].mxu0
        %v2954 = vpop.f32.mrb[0].mxu0
        %2955 = vdwg.mxu0
        %v2957 = vsel %vm2912, %v2887, 0
        %2959 = vmatprep.subr.bf16.mxu0 0
        %2960 = vmatpush1.bf16.msra.mxu0 %v2901
        %2961 = vmatprep.subr.bf16.mxu0 0
        %2962 = vmatpush1.bf16.msra.mxu0 %v2903
        %2963 = vmatprep.subr.bf16.mxu0 0
        %2964 = vmatpush1.bf16.msra.mxu0 %v2905
        %2965 = vmatprep.subr.bf16.mxu0 0
        %2966 = vmatpush1.bf16.msra.mxu0 %v2907
        %2967 = vmatprep.subr.bf16.mxu0 0
        %2968 = vmatpush1.bf16.msra.mxu0 0
        %2969 = vmatprep.subr.bf16.mxu0 0
        %2970 = vmatpush1.bf16.msra.mxu0 0
        %2971 = vmatprep.subr.bf16.mxu0 0
        %2972 = vmatpush1.bf16.msra.mxu0 0
        %2973 = vmatprep.subr.bf16.mxu0 0
        %2974 = vmatpush1.bf16.msra.mxu0 0
        %2975 = vmatprep.subr.bf16.mxu0 0
        %2976 = vmatpush1.bf16.msra.mxu0 0
        %2977 = vmatprep.subr.bf16.mxu0 0
        %2978 = vmatpush1.bf16.msra.mxu0 0
        %2979 = vmatprep.subr.bf16.mxu0 0
        %2980 = vmatpush1.bf16.msra.mxu0 0
        %2981 = vmatprep.subr.bf16.mxu0 0
        %2982 = vmatpush1.bf16.msra.mxu0 0
        %2983 = vmatprep.subr.bf16.mxu0 0
        %2984 = vmatpush1.bf16.msra.mxu0 0
        %2985 = vmatprep.subr.bf16.mxu0 0
        %2986 = vmatpush1.bf16.msra.mxu0 0
        %2987 = vmatprep.subr.bf16.mxu0 0
        %2988 = vmatpush1.bf16.msra.mxu0 0
        %2989 = vmatprep.subr.bf16.mxu0 0
        %2990 = vmatpush1.bf16.msra.mxu0 0
        %2991 = vmatprep.mubr.bf16.mxu0 0
        %2992 = vmatmul.mubr.bf16.gmra.mrb[0].mxu0 %v2957
        %v2993 = vpop.f32.mrb[0].mxu0
        %v2994 = vadd.f32 0.0, %v2993
        %v2995 = vpop.f32.mrb[0].mxu0
        %v2996 = vpop.f32.mrb[0].mxu0
        %v2997 = vpop.f32.mrb[0].mxu0
        %2998 = vdwg.mxu0
        %v3000 = vsel %vm2912, %v2888, 0
        %3002 = vmatprep.subr.bf16.mxu0 0
        %3003 = vmatpush1.bf16.msra.mxu0 %v2901
        %3004 = vmatprep.subr.bf16.mxu0 0
        %3005 = vmatpush1.bf16.msra.mxu0 %v2903
        %3006 = vmatprep.subr.bf16.mxu0 0
        %3007 = vmatpush1.bf16.msra.mxu0 %v2905
        %3008 = vmatprep.subr.bf16.mxu0 0
        %3009 = vmatpush1.bf16.msra.mxu0 %v2907
        %3010 = vmatprep.subr.bf16.mxu0 0
        %3011 = vmatpush1.bf16.msra.mxu0 0
        %3012 = vmatprep.subr.bf16.mxu0 0
        %3013 = vmatpush1.bf16.msra.mxu0 0
        %3014 = vmatprep.subr.bf16.mxu0 0
        %3015 = vmatpush1.bf16.msra.mxu0 0
        %3016 = vmatprep.subr.bf16.mxu0 0
        %3017 = vmatpush1.bf16.msra.mxu0 0
        %3018 = vmatprep.subr.bf16.mxu0 0
        %3019 = vmatpush1.bf16.msra.mxu0 0
        %3020 = vmatprep.subr.bf16.mxu0 0
        %3021 = vmatpush1.bf16.msra.mxu0 0
        %3022 = vmatprep.subr.bf16.mxu0 0
        %3023 = vmatpush1.bf16.msra.mxu0 0
        %3024 = vmatprep.subr.bf16.mxu0 0
        %3025 = vmatpush1.bf16.msra.mxu0 0
        %3026 = vmatprep.subr.bf16.mxu0 0
        %3027 = vmatpush1.bf16.msra.mxu0 0
        %3028 = vmatprep.subr.bf16.mxu0 0
        %3029 = vmatpush1.bf16.msra.mxu0 0
        %3030 = vmatprep.subr.bf16.mxu0 0
        %3031 = vmatpush1.bf16.msra.mxu0 0
        %3032 = vmatprep.subr.bf16.mxu0 0
        %3033 = vmatpush1.bf16.msra.mxu0 0
        %3034 = vmatprep.mubr.bf16.mxu0 0
        %3035 = vmatmul.mubr.bf16.gmra.mrb[0].mxu0 %v3000
        %v3036 = vpop.f32.mrb[0].mxu0
        %v3037 = vadd.f32 0.0, %v3036
        %v3038 = vpop.f32.mrb[0].mxu0
        %v3039 = vpop.f32.mrb[0].mxu0
        %v3040 = vpop.f32.mrb[0].mxu0
        %3041 = vdwg.mxu0
        %v3043 = vsel %vm2912, %v2889, 0
        %3045 = vmatprep.subr.bf16.mxu0 0
        %3046 = vmatpush1.bf16.msra.mxu0 %v2901
        %3047 = vmatprep.subr.bf16.mxu0 0
        %3048 = vmatpush1.bf16.msra.mxu0 %v2903
        %3049 = vmatprep.subr.bf16.mxu0 0
        %3050 = vmatpush1.bf16.msra.mxu0 %v2905
        %3051 = vmatprep.subr.bf16.mxu0 0
        %3052 = vmatpush1.bf16.msra.mxu0 %v2907
        %3053 = vmatprep.subr.bf16.mxu0 0
        %3054 = vmatpush1.bf16.msra.mxu0 0
        %3055 = vmatprep.subr.bf16.mxu0 0
        %3056 = vmatpush1.bf16.msra.mxu0 0
        %3057 = vmatprep.subr.bf16.mxu0 0
        %3058 = vmatpush1.bf16.msra.mxu0 0
        %3059 = vmatprep.subr.bf16.mxu0 0
        %3060 = vmatpush1.bf16.msra.mxu0 0
        %3061 = vmatprep.subr.bf16.mxu0 0
        %3062 = vmatpush1.bf16.msra.mxu0 0
        %3063 = vmatprep.subr.bf16.mxu0 0
        %3064 = vmatpush1.bf16.msra.mxu0 0
        %3065 = vmatprep.subr.bf16.mxu0 0
        %3066 = vmatpush1.bf16.msra.mxu0 0
        %3067 = vmatprep.subr.bf16.mxu0 0
        %3068 = vmatpush1.bf16.msra.mxu0 0
        %3069 = vmatprep.subr.bf16.mxu0 0
        %3070 = vmatpush1.bf16.msra.mxu0 0
        %3071 = vmatprep.subr.bf16.mxu0 0
        %3072 = vmatpush1.bf16.msra.mxu0 0
        %3073 = vmatprep.subr.bf16.mxu0 0
        %3074 = vmatpush1.bf16.msra.mxu0 0
        %3075 = vmatprep.subr.bf16.mxu0 0
        %3076 = vmatpush1.bf16.msra.mxu0 0
        %3077 = vmatprep.mubr.bf16.mxu0 0
        %3078 = vmatmul.mubr.bf16.gmra.mrb[0].mxu0 %v3043
        %v3079 = vpop.f32.mrb[0].mxu0
        %v3080 = vadd.f32 0.0, %v3079
        %v3081 = vpop.f32.mrb[0].mxu0
        %v3082 = vpop.f32.mrb[0].mxu0
        %v3083 = vpop.f32.mrb[0].mxu0
        %3084 = vdwg.mxu0
        %v3085 = vadd.f32 %v2885, %v2951
        %v3086 = vadd.f32 %v2885, %v2994
        %v3087 = vadd.f32 %v2885, %v3037
        %v3088 = vadd.f32 %v2885, %v3080
        %v3089 = vshrl.u32 %v2886, 16
        %v3091 = vshll.u32 %v2886, 16
        %v3093 = vrot.slane %v3091, 1
        %v3094 = vor.u32 %v3089, %v3093
        %v3099 = vunpack.c.l.b16 %v2227
        %v3100 = vunpack.c.l.b16 %v2228
        %v3101 = vunpack.c.l.b16 %v2229
        %v3102 = vunpack.c.l.b16 %v2230
        %v3103 = vpack.c.b16 %v3100, %v3099
        %v3104 = vpack.c.b16 %v3102, %v3101
        %3105 = vrot.lane.b32.xlu0 %v2463, 64
        %v3106 = vpop.permute.xlu0 %3105
        %3107 = vrot.lane.b32.xlu0 %v2464, 64
        %v3108 = vpop.permute.xlu0 %3107
        %3109 = vrot.lane.b32.xlu0 %v3103, 64
        %v3110 = vpop.permute.xlu0 %3109
        %3111 = vrot.lane.b32.xlu0 %v3104, 64
        %v3112 = vpop.permute.xlu0 %3111
        %v3118 = vsel %vm2912, %v3094, 0
        %3120 = vmatprep.subr.bf16.mxu0 0
        %3121 = vmatpush1.bf16.msra.mxu0 %v3106
        %3122 = vmatprep.subr.bf16.mxu0 0
        %3123 = vmatpush1.bf16.msra.mxu0 %v3108
        %3124 = vmatprep.subr.bf16.mxu0 0
        %3125 = vmatpush1.bf16.msra.mxu0 %v3110
        %3126 = vmatprep.subr.bf16.mxu0 0
        %3127 = vmatpush1.bf16.msra.mxu0 %v3112
        %3128 = vmatprep.subr.bf16.mxu0 0
        %3129 = vmatpush1.bf16.msra.mxu0 0
        %3130 = vmatprep.subr.bf16.mxu0 0
        %3131 = vmatpush1.bf16.msra.mxu0 0
        %3132 = vmatprep.subr.bf16.mxu0 0
        %3133 = vmatpush1.bf16.msra.mxu0 0
        %3134 = vmatprep.subr.bf16.mxu0 0
        %3135 = vmatpush1.bf16.msra.mxu0 0
        %3136 = vmatprep.subr.bf16.mxu0 0
        %3137 = vmatpush1.bf16.msra.mxu0 0
        %3138 = vmatprep.subr.bf16.mxu0 0
        %3139 = vmatpush1.bf16.msra.mxu0 0
        %3140 = vmatprep.subr.bf16.mxu0 0
        %3141 = vmatpush1.bf16.msra.mxu0 0
        %3142 = vmatprep.subr.bf16.mxu0 0
        %3143 = vmatpush1.bf16.msra.mxu0 0
        %3144 = vmatprep.subr.bf16.mxu0 0
        %3145 = vmatpush1.bf16.msra.mxu0 0
        %3146 = vmatprep.subr.bf16.mxu0 0
        %3147 = vmatpush1.bf16.msra.mxu0 0
        %3148 = vmatprep.subr.bf16.mxu0 0
        %3149 = vmatpush1.bf16.msra.mxu0 0
        %3150 = vmatprep.subr.bf16.mxu0 0
        %3151 = vmatpush1.bf16.msra.mxu0 0
        %3152 = vmatprep.mubr.bf16.mxu0 0
        %3153 = vmatmul.mubr.bf16.gmra.mrb[0].mxu0 %v3118
        %v3154 = vpop.f32.mrb[0].mxu0
        %v3155 = vadd.f32 0.0, %v3154
        %v3156 = vpop.f32.mrb[0].mxu0
        %v3157 = vpop.f32.mrb[0].mxu0
        %v3158 = vpop.f32.mrb[0].mxu0
        %3159 = vdwg.mxu0
        %v3160 = vshrl.u32 %v2887, 16
        %v3162 = vshll.u32 %v2887, 16
        %v3164 = vrot.slane %v3162, 1
        %v3165 = vor.u32 %v3160, %v3164
        %v3167 = vsel %vm2912, %v3165, 0
        %3169 = vmatprep.subr.bf16.mxu0 0
        %3170 = vmatpush1.bf16.msra.mxu0 %v3106
        %3171 = vmatprep.subr.bf16.mxu0 0
        %3172 = vmatpush1.bf16.msra.mxu0 %v3108
        %3173 = vmatprep.subr.bf16.mxu0 0
        %3174 = vmatpush1.bf16.msra.mxu0 %v3110
        %3175 = vmatprep.subr.bf16.mxu0 0
        %3176 = vmatpush1.bf16.msra.mxu0 %v3112
        %3177 = vmatprep.subr.bf16.mxu0 0
        %3178 = vmatpush1.bf16.msra.mxu0 0
        %3179 = vmatprep.subr.bf16.mxu0 0
        %3180 = vmatpush1.bf16.msra.mxu0 0
        %3181 = vmatprep.subr.bf16.mxu0 0
        %3182 = vmatpush1.bf16.msra.mxu0 0
        %3183 = vmatprep.subr.bf16.mxu0 0
        %3184 = vmatpush1.bf16.msra.mxu0 0
        %3185 = vmatprep.subr.bf16.mxu0 0
        %3186 = vmatpush1.bf16.msra.mxu0 0
        %3187 = vmatprep.subr.bf16.mxu0 0
        %3188 = vmatpush1.bf16.msra.mxu0 0
        %3189 = vmatprep.subr.bf16.mxu0 0
        %3190 = vmatpush1.bf16.msra.mxu0 0
        %3191 = vmatprep.subr.bf16.mxu0 0
        %3192 = vmatpush1.bf16.msra.mxu0 0
        %3193 = vmatprep.subr.bf16.mxu0 0
        %3194 = vmatpush1.bf16.msra.mxu0 0
        %3195 = vmatprep.subr.bf16.mxu0 0
        %3196 = vmatpush1.bf16.msra.mxu0 0
        %3197 = vmatprep.subr.bf16.mxu0 0
        %3198 = vmatpush1.bf16.msra.mxu0 0
        %3199 = vmatprep.subr.bf16.mxu0 0
        %3200 = vmatpush1.bf16.msra.mxu0 0
        %3201 = vmatprep.mubr.bf16.mxu0 0
        %3202 = vmatmul.mubr.bf16.gmra.mrb[0].mxu0 %v3167
        %v3203 = vpop.f32.mrb[0].mxu0
        %v3204 = vadd.f32 0.0, %v3203
        %v3205 = vpop.f32.mrb[0].mxu0
        %v3206 = vpop.f32.mrb[0].mxu0
        %v3207 = vpop.f32.mrb[0].mxu0
        %3208 = vdwg.mxu0
        %v3209 = vshrl.u32 %v2888, 16
        %v3211 = vshll.u32 %v2888, 16
        %v3213 = vrot.slane %v3211, 1
        %v3214 = vor.u32 %v3209, %v3213
        %v3216 = vsel %vm2912, %v3214, 0
        %3218 = vmatprep.subr.bf16.mxu0 0
        %3219 = vmatpush1.bf16.msra.mxu0 %v3106
        %3220 = vmatprep.subr.bf16.mxu0 0
        %3221 = vmatpush1.bf16.msra.mxu0 %v3108
        %3222 = vmatprep.subr.bf16.mxu0 0
        %3223 = vmatpush1.bf16.msra.mxu0 %v3110
        %3224 = vmatprep.subr.bf16.mxu0 0
        %3225 = vmatpush1.bf16.msra.mxu0 %v3112
        %3226 = vmatprep.subr.bf16.mxu0 0
        %3227 = vmatpush1.bf16.msra.mxu0 0
        %3228 = vmatprep.subr.bf16.mxu0 0
        %3229 = vmatpush1.bf16.msra.mxu0 0
        %3230 = vmatprep.subr.bf16.mxu0 0
        %3231 = vmatpush1.bf16.msra.mxu0 0
        %3232 = vmatprep.subr.bf16.mxu0 0
        %3233 = vmatpush1.bf16.msra.mxu0 0
        %3234 = vmatprep.subr.bf16.mxu0 0
        %3235 = vmatpush1.bf16.msra.mxu0 0
        %3236 = vmatprep.subr.bf16.mxu0 0
        %3237 = vmatpush1.bf16.msra.mxu0 0
        %3238 = vmatprep.subr.bf16.mxu0 0
        %3239 = vmatpush1.bf16.msra.mxu0 0
        %3240 = vmatprep.subr.bf16.mxu0 0
        %3241 = vmatpush1.bf16.msra.mxu0 0
        %3242 = vmatprep.subr.bf16.mxu0 0
        %3243 = vmatpush1.bf16.msra.mxu0 0
        %3244 = vmatprep.subr.bf16.mxu0 0
        %3245 = vmatpush1.bf16.msra.mxu0 0
        %3246 = vmatprep.subr.bf16.mxu0 0
        %3247 = vmatpush1.bf16.msra.mxu0 0
        %3248 = vmatprep.subr.bf16.mxu0 0
        %3249 = vmatpush1.bf16.msra.mxu0 0
        %3250 = vmatprep.mubr.bf16.mxu0 0
        %3251 = vmatmul.mubr.bf16.gmra.mrb[0].mxu0 %v3216
        %v3252 = vpop.f32.mrb[0].mxu0
        %v3253 = vadd.f32 0.0, %v3252
        %v3254 = vpop.f32.mrb[0].mxu0
        %v3255 = vpop.f32.mrb[0].mxu0
        %v3256 = vpop.f32.mrb[0].mxu0
        %3257 = vdwg.mxu0
        %v3258 = vshrl.u32 %v2889, 16
        %v3260 = vshll.u32 %v2889, 16
        %v3262 = vrot.slane %v3260, 1
        %v3263 = vor.u32 %v3258, %v3262
        %v3265 = vsel %vm2912, %v3263, 0
        %3267 = vmatprep.subr.bf16.mxu0 0
        %3268 = vmatpush1.bf16.msra.mxu0 %v3106
        %3269 = vmatprep.subr.bf16.mxu0 0
        %3270 = vmatpush1.bf16.msra.mxu0 %v3108
        %3271 = vmatprep.subr.bf16.mxu0 0
        %3272 = vmatpush1.bf16.msra.mxu0 %v3110
        %3273 = vmatprep.subr.bf16.mxu0 0
        %3274 = vmatpush1.bf16.msra.mxu0 %v3112
        %3275 = vmatprep.subr.bf16.mxu0 0
        %3276 = vmatpush1.bf16.msra.mxu0 0
        %3277 = vmatprep.subr.bf16.mxu0 0
        %3278 = vmatpush1.bf16.msra.mxu0 0
        %3279 = vmatprep.subr.bf16.mxu0 0
        %3280 = vmatpush1.bf16.msra.mxu0 0
        %3281 = vmatprep.subr.bf16.mxu0 0
        %3282 = vmatpush1.bf16.msra.mxu0 0
        %3283 = vmatprep.subr.bf16.mxu0 0
        %3284 = vmatpush1.bf16.msra.mxu0 0
        %3285 = vmatprep.subr.bf16.mxu0 0
        %3286 = vmatpush1.bf16.msra.mxu0 0
        %3287 = vmatprep.subr.bf16.mxu0 0
        %3288 = vmatpush1.bf16.msra.mxu0 0
        %3289 = vmatprep.subr.bf16.mxu0 0
        %3290 = vmatpush1.bf16.msra.mxu0 0
        %3291 = vmatprep.subr.bf16.mxu0 0
        %3292 = vmatpush1.bf16.msra.mxu0 0
        %3293 = vmatprep.subr.bf16.mxu0 0
        %3294 = vmatpush1.bf16.msra.mxu0 0
        %3295 = vmatprep.subr.bf16.mxu0 0
        %3296 = vmatpush1.bf16.msra.mxu0 0
        %3297 = vmatprep.subr.bf16.mxu0 0
        %3298 = vmatpush1.bf16.msra.mxu0 0
        %3299 = vmatprep.mubr.bf16.mxu0 0
        %3300 = vmatmul.mubr.bf16.gmra.mrb[0].mxu0 %v3265
        %v3301 = vpop.f32.mrb[0].mxu0
        %v3302 = vadd.f32 0.0, %v3301
        %v3303 = vpop.f32.mrb[0].mxu0
        %v3304 = vpop.f32.mrb[0].mxu0
        %v3305 = vpop.f32.mrb[0].mxu0
        %3306 = vdwg.mxu0
        %v3307 = vadd.f32 %v3085, %v3155
        %v3308 = vadd.f32 %v3086, %v3204
        %v3309 = vadd.f32 %v3087, %v3253
        %v3310 = vadd.f32 %v3088, %v3302
        %v3311 = vpack.c.bf16 0.0, %v2877
        %v3312 = vpack.c.bf16 0.0, %v2878
        %v3313 = vpack.c.bf16 0.0, %v2879
        %v3314 = vpack.c.bf16 0.0, %v2880
        %v3316 = vrot.slane %v3311, 1
        %v3321 = vunpack.c.l.b16 %v2231
        %v3322 = vunpack.c.l.b16 %v2232
        %v3323 = vunpack.c.l.b16 %v2233
        %v3324 = vunpack.c.l.b16 %v2234
        %v3325 = vpack.c.b16 %v3322, %v3321
        %v3326 = vpack.c.b16 %v3324, %v3323
        %3327 = vrot.lane.b32.xlu0 %v2675, 64
        %v3328 = vpop.permute.xlu0 %3327
        %3329 = vrot.lane.b32.xlu0 %v2676, 64
        %v3330 = vpop.permute.xlu0 %3329
        %3331 = vrot.lane.b32.xlu0 %v3325, 64
        %v3332 = vpop.permute.xlu0 %3331
        %3333 = vrot.lane.b32.xlu0 %v3326, 64
        %v3334 = vpop.permute.xlu0 %3333
        %v3340 = vsel %vm2912, %v3316, 0
        %3342 = vmatprep.subr.bf16.mxu0 0
        %3343 = vmatpush1.bf16.msra.mxu0 %v3328
        %3344 = vmatprep.subr.bf16.mxu0 0
        %3345 = vmatpush1.bf16.msra.mxu0 %v3330
        %3346 = vmatprep.subr.bf16.mxu0 0
        %3347 = vmatpush1.bf16.msra.mxu0 %v3332
        %3348 = vmatprep.subr.bf16.mxu0 0
        %3349 = vmatpush1.bf16.msra.mxu0 %v3334
        %3350 = vmatprep.subr.bf16.mxu0 0
        %3351 = vmatpush1.bf16.msra.mxu0 0
        %3352 = vmatprep.subr.bf16.mxu0 0
        %3353 = vmatpush1.bf16.msra.mxu0 0
        %3354 = vmatprep.subr.bf16.mxu0 0
        %3355 = vmatpush1.bf16.msra.mxu0 0
        %3356 = vmatprep.subr.bf16.mxu0 0
        %3357 = vmatpush1.bf16.msra.mxu0 0
        %3358 = vmatprep.subr.bf16.mxu0 0
        %3359 = vmatpush1.bf16.msra.mxu0 0
        %3360 = vmatprep.subr.bf16.mxu0 0
        %3361 = vmatpush1.bf16.msra.mxu0 0
        %3362 = vmatprep.subr.bf16.mxu0 0
        %3363 = vmatpush1.bf16.msra.mxu0 0
        %3364 = vmatprep.subr.bf16.mxu0 0
        %3365 = vmatpush1.bf16.msra.mxu0 0
        %3366 = vmatprep.subr.bf16.mxu0 0
        %3367 = vmatpush1.bf16.msra.mxu0 0
        %3368 = vmatprep.subr.bf16.mxu0 0
        %3369 = vmatpush1.bf16.msra.mxu0 0
        %3370 = vmatprep.subr.bf16.mxu0 0
        %3371 = vmatpush1.bf16.msra.mxu0 0
        %3372 = vmatprep.subr.bf16.mxu0 0
        %3373 = vmatpush1.bf16.msra.mxu0 0
        %3374 = vmatprep.mubr.bf16.mxu0 0
        %3375 = vmatmul.mubr.bf16.gmra.mrb[0].mxu0 %v3340
        %v3376 = vpop.f32.mrb[0].mxu0
        %v3377 = vadd.f32 0.0, %v3376
        %v3378 = vpop.f32.mrb[0].mxu0
        %v3379 = vpop.f32.mrb[0].mxu0
        %v3380 = vpop.f32.mrb[0].mxu0
        %3381 = vdwg.mxu0
        %v3383 = vrot.slane %v3312, 1
        %v3385 = vsel %vm2912, %v3383, 0
        %3387 = vmatprep.subr.bf16.mxu0 0
        %3388 = vmatpush1.bf16.msra.mxu0 %v3328
        %3389 = vmatprep.subr.bf16.mxu0 0
        %3390 = vmatpush1.bf16.msra.mxu0 %v3330
        %3391 = vmatprep.subr.bf16.mxu0 0
        %3392 = vmatpush1.bf16.msra.mxu0 %v3332
        %3393 = vmatprep.subr.bf16.mxu0 0
        %3394 = vmatpush1.bf16.msra.mxu0 %v3334
        %3395 = vmatprep.subr.bf16.mxu0 0
        %3396 = vmatpush1.bf16.msra.mxu0 0
        %3397 = vmatprep.subr.bf16.mxu0 0
        %3398 = vmatpush1.bf16.msra.mxu0 0
        %3399 = vmatprep.subr.bf16.mxu0 0
        %3400 = vmatpush1.bf16.msra.mxu0 0
        %3401 = vmatprep.subr.bf16.mxu0 0
        %3402 = vmatpush1.bf16.msra.mxu0 0
        %3403 = vmatprep.subr.bf16.mxu0 0
        %3404 = vmatpush1.bf16.msra.mxu0 0
        %3405 = vmatprep.subr.bf16.mxu0 0
        %3406 = vmatpush1.bf16.msra.mxu0 0
        %3407 = vmatprep.subr.bf16.mxu0 0
        %3408 = vmatpush1.bf16.msra.mxu0 0
        %3409 = vmatprep.subr.bf16.mxu0 0
        %3410 = vmatpush1.bf16.msra.mxu0 0
        %3411 = vmatprep.subr.bf16.mxu0 0
        %3412 = vmatpush1.bf16.msra.mxu0 0
        %3413 = vmatprep.subr.bf16.mxu0 0
        %3414 = vmatpush1.bf16.msra.mxu0 0
        %3415 = vmatprep.subr.bf16.mxu0 0
        %3416 = vmatpush1.bf16.msra.mxu0 0
        %3417 = vmatprep.subr.bf16.mxu0 0
        %3418 = vmatpush1.bf16.msra.mxu0 0
        %3419 = vmatprep.mubr.bf16.mxu0 0
        %3420 = vmatmul.mubr.bf16.gmra.mrb[0].mxu0 %v3385
        %v3421 = vpop.f32.mrb[0].mxu0
        %v3422 = vadd.f32 0.0, %v3421
        %v3423 = vpop.f32.mrb[0].mxu0
        %v3424 = vpop.f32.mrb[0].mxu0
        %v3425 = vpop.f32.mrb[0].mxu0
        %3426 = vdwg.mxu0
        %v3428 = vrot.slane %v3313, 1
        %v3430 = vsel %vm2912, %v3428, 0
        %3432 = vmatprep.subr.bf16.mxu0 0
        %3433 = vmatpush1.bf16.msra.mxu0 %v3328
        %3434 = vmatprep.subr.bf16.mxu0 0
        %3435 = vmatpush1.bf16.msra.mxu0 %v3330
        %3436 = vmatprep.subr.bf16.mxu0 0
        %3437 = vmatpush1.bf16.msra.mxu0 %v3332
        %3438 = vmatprep.subr.bf16.mxu0 0
        %3439 = vmatpush1.bf16.msra.mxu0 %v3334
        %3440 = vmatprep.subr.bf16.mxu0 0
        %3441 = vmatpush1.bf16.msra.mxu0 0
        %3442 = vmatprep.subr.bf16.mxu0 0
        %3443 = vmatpush1.bf16.msra.mxu0 0
        %3444 = vmatprep.subr.bf16.mxu0 0
        %3445 = vmatpush1.bf16.msra.mxu0 0
        %3446 = vmatprep.subr.bf16.mxu0 0
        %3447 = vmatpush1.bf16.msra.mxu0 0
        %3448 = vmatprep.subr.bf16.mxu0 0
        %3449 = vmatpush1.bf16.msra.mxu0 0
        %3450 = vmatprep.subr.bf16.mxu0 0
        %3451 = vmatpush1.bf16.msra.mxu0 0
        %3452 = vmatprep.subr.bf16.mxu0 0
        %3453 = vmatpush1.bf16.msra.mxu0 0
        %3454 = vmatprep.subr.bf16.mxu0 0
        %3455 = vmatpush1.bf16.msra.mxu0 0
        %3456 = vmatprep.subr.bf16.mxu0 0
        %3457 = vmatpush1.bf16.msra.mxu0 0
        %3458 = vmatprep.subr.bf16.mxu0 0
        %3459 = vmatpush1.bf16.msra.mxu0 0
        %3460 = vmatprep.subr.bf16.mxu0 0
        %3461 = vmatpush1.bf16.msra.mxu0 0
        %3462 = vmatprep.subr.bf16.mxu0 0
        %3463 = vmatpush1.bf16.msra.mxu0 0
        %3464 = vmatprep.mubr.bf16.mxu0 0
        %3465 = vmatmul.mubr.bf16.gmra.mrb[0].mxu0 %v3430
        %v3466 = vpop.f32.mrb[0].mxu0
        %v3467 = vadd.f32 0.0, %v3466
        %v3468 = vpop.f32.mrb[0].mxu0
        %v3469 = vpop.f32.mrb[0].mxu0
        %v3470 = vpop.f32.mrb[0].mxu0
        %3471 = vdwg.mxu0
        %v3473 = vrot.slane %v3314, 1
        %v3475 = vsel %vm2912, %v3473, 0
        %3477 = vmatprep.subr.bf16.mxu0 0
        %3478 = vmatpush1.bf16.msra.mxu0 %v3328
        %3479 = vmatprep.subr.bf16.mxu0 0
        %3480 = vmatpush1.bf16.msra.mxu0 %v3330
        %3481 = vmatprep.subr.bf16.mxu0 0
        %3482 = vmatpush1.bf16.msra.mxu0 %v3332
        %3483 = vmatprep.subr.bf16.mxu0 0
        %3484 = vmatpush1.bf16.msra.mxu0 %v3334
        %3485 = vmatprep.subr.bf16.mxu0 0
        %3486 = vmatpush1.bf16.msra.mxu0 0
        %3487 = vmatprep.subr.bf16.mxu0 0
        %3488 = vmatpush1.bf16.msra.mxu0 0
        %3489 = vmatprep.subr.bf16.mxu0 0
        %3490 = vmatpush1.bf16.msra.mxu0 0
        %3491 = vmatprep.subr.bf16.mxu0 0
        %3492 = vmatpush1.bf16.msra.mxu0 0
        %3493 = vmatprep.subr.bf16.mxu0 0
        %3494 = vmatpush1.bf16.msra.mxu0 0
        %3495 = vmatprep.subr.bf16.mxu0 0
        %3496 = vmatpush1.bf16.msra.mxu0 0
        %3497 = vmatprep.subr.bf16.mxu0 0
        %3498 = vmatpush1.bf16.msra.mxu0 0
        %3499 = vmatprep.subr.bf16.mxu0 0
        %3500 = vmatpush1.bf16.msra.mxu0 0
        %3501 = vmatprep.subr.bf16.mxu0 0
        %3502 = vmatpush1.bf16.msra.mxu0 0
        %3503 = vmatprep.subr.bf16.mxu0 0
        %3504 = vmatpush1.bf16.msra.mxu0 0
        %3505 = vmatprep.subr.bf16.mxu0 0
        %3506 = vmatpush1.bf16.msra.mxu0 0
        %3507 = vmatprep.subr.bf16.mxu0 0
        %3508 = vmatpush1.bf16.msra.mxu0 0
        %3509 = vmatprep.mubr.bf16.mxu0 0
        %3510 = vmatmul.mubr.bf16.gmra.mrb[0].mxu0 %v3475
        %v3511 = vpop.f32.mrb[0].mxu0
        %v3512 = vadd.f32 0.0, %v3511
        %v3513 = vpop.f32.mrb[0].mxu0
        %v3514 = vpop.f32.mrb[0].mxu0
        %v3515 = vpop.f32.mrb[0].mxu0
        %3516 = vdwg.mxu0
        %v3517 = vadd.f32 %v3307, %v3377
        %v3518 = vadd.f32 %v3308, %v3422
        %v3519 = vadd.f32 %v3309, %v3467
        %v3520 = vadd.f32 %v3310, %v3512
        %v3521 = vadd.f32 %v2207, %v3517
        %v3522 = vadd.f32 %v2208, %v3518
        %v3523 = vadd.f32 %v2209, %v3519
        %v3524 = vadd.f32 %v2210, %v3520
        %v3525 = vld [vmem:[#allocation10] sm:$0xff]
        %v3526 = vld [vmem:[#allocation10 + $0xc] sm:$0xff]
        %v3527 = vld [vmem:[#allocation10 + $0x18] sm:$0xff]
        %v3528 = vld [vmem:[#allocation10 + $0x24] sm:$0xff]
        %v3529 = vld [vmem:[#allocation10 + $0x60] sm:$0xff]
        %v3530 = vld [vmem:[#allocation10 + $0x6c] sm:$0xff]
        %v3531 = vld [vmem:[#allocation10 + $0x78] sm:$0xff]
        %v3532 = vld [vmem:[#allocation10 + $0x84] sm:$0xff]
        %v3533 = vld [vmem:[#allocation10 + $0xc0] sm:$0xff]
        %v3534 = vld [vmem:[#allocation10 + $0xcc] sm:$0xff]
        %v3535 = vld [vmem:[#allocation10 + $0xd8] sm:$0xff]
        %v3536 = vld [vmem:[#allocation10 + $0xe4] sm:$0xff]
        %s3537 = scalar_lea.vmem [#allocation7], 64
        %v3538 = vld [vmem:[%s3537] sm:$0xf]
        %v3539 = vld [vmem:[%s3537 + $0x4] sm:$0xf]
        %v3540 = vld [vmem:[%s3537 + $0x8] sm:$0xf]
        %v3541 = vld [vmem:[%s3537 + $0xc] sm:$0xf]
        %v3546 = vrot.slane %v3521, 7
        %v3547 = vrot.slane %v3522, 7
        %v3548 = vrot.slane %v3523, 7
        %v3549 = vrot.slane %v3524, 7
        %v3554 = vsel %vm2247, 0.0, %v3546
        %v3555 = vsel %vm2247, 0.0, %v3547
        %v3556 = vsel %vm2247, 0.0, %v3548
        %v3557 = vsel %vm2247, 0.0, %v3549
        %v3558 = vlaneseq
        %v3559 = vshrl.u32 %v3558, 7
        %v3560 = vsub.s32 6, %v3559
        %v3561 = vrot.slane %v307, %v3560
        %v3562 = vadd.f32 %v3561, 0.0
        %v3563 = vpack.c.bf16 %v3554, %v3554
        %v3564 = vpack.c.bf16 %v3555, %v3555
        %v3565 = vpack.c.bf16 %v3556, %v3556
        %v3566 = vpack.c.bf16 %v3557, %v3557
        %v3571 = vunpack.c.l.b16 %v3525
        %v3572 = vunpack.c.h.b16 %v3525
        %v3573 = vunpack.c.l.b16 %v3526
        %v3574 = vunpack.c.h.b16 %v3526
        %v3575 = vunpack.c.l.b16 %v3527
        %v3576 = vunpack.c.h.b16 %v3527
        %v3577 = vunpack.c.l.b16 %v3528
        %v3578 = vunpack.c.h.b16 %v3528
        %v3579 = vpack.c.b16 %v3573, %v3571
        %v3580 = vpack.c.b16 %v3574, %v3572
        %v3581 = vpack.c.b16 %v3577, %v3575
        %v3582 = vpack.c.b16 %v3578, %v3576
        %3583 = vrot.lane.b32.xlu0 %v3579, 32
        %v3584 = vpop.permute.xlu0 %3583
        %3585 = vrot.lane.b32.xlu0 %v3580, 32
        %v3586 = vpop.permute.xlu0 %3585
        %3587 = vrot.lane.b32.xlu0 %v3581, 32
        %v3588 = vpop.permute.xlu0 %3587
        %3589 = vrot.lane.b32.xlu0 %v3582, 32
        %v3590 = vpop.permute.xlu0 %3589
        %vm3591 = vcmask 261120
        %v3592 = vsel %vm3591, %v3584, %v3586
        %v3593 = vsel %vm3591, %v3588, %v3590
        %v3597 = vsel %vm330, %v3563, 0
        %3599 = vmatprep.subr.bf16.mxu0 0
        %3600 = vmatpush1.bf16.msra.mxu0 %v3592
        %3601 = vmatprep.subr.bf16.mxu0 0
        %3602 = vmatpush1.bf16.msra.mxu0 %v3593
        %3603 = vmatprep.subr.bf16.mxu0 0
        %3604 = vmatpush1.bf16.msra.mxu0 0
        %3605 = vmatprep.subr.bf16.mxu0 0
        %3606 = vmatpush1.bf16.msra.mxu0 0
        %3607 = vmatprep.subr.bf16.mxu0 0
        %3608 = vmatpush1.bf16.msra.mxu0 0
        %3609 = vmatprep.subr.bf16.mxu0 0
        %3610 = vmatpush1.bf16.msra.mxu0 0
        %3611 = vmatprep.subr.bf16.mxu0 0
        %3612 = vmatpush1.bf16.msra.mxu0 0
        %3613 = vmatprep.subr.bf16.mxu0 0
        %3614 = vmatpush1.bf16.msra.mxu0 0
        %3615 = vmatprep.subr.bf16.mxu0 0
        %3616 = vmatpush1.bf16.msra.mxu0 0
        %3617 = vmatprep.subr.bf16.mxu0 0
        %3618 = vmatpush1.bf16.msra.mxu0 0
        %3619 = vmatprep.subr.bf16.mxu0 0
        %3620 = vmatpush1.bf16.msra.mxu0 0
        %3621 = vmatprep.subr.bf16.mxu0 0
        %3622 = vmatpush1.bf16.msra.mxu0 0
        %3623 = vmatprep.subr.bf16.mxu0 0
        %3624 = vmatpush1.bf16.msra.mxu0 0
        %3625 = vmatprep.subr.bf16.mxu0 0
        %3626 = vmatpush1.bf16.msra.mxu0 0
        %3627 = vmatprep.subr.bf16.mxu0 0
        %3628 = vmatpush1.bf16.msra.mxu0 0
        %3629 = vmatprep.subr.bf16.mxu0 0
        %3630 = vmatpush1.bf16.msra.mxu0 0
        %3631 = vmatprep.mubr.bf16.mxu0 0
        %3632 = vmatmul.mubr.bf16.gmra.mrb[0].mxu0 %v3597
        %v3633 = vpop.f32.mrb[0].mxu0
        %v3634 = vadd.f32 0.0, %v3633
        %v3635 = vpop.f32.mrb[0].mxu0
        %v3636 = vpop.f32.mrb[0].mxu0
        %v3637 = vpop.f32.mrb[0].mxu0
        %3638 = vdwg.mxu0
        %v3640 = vsel %vm330, %v3564, 0
        %3642 = vmatprep.subr.bf16.mxu0 0
        %3643 = vmatpush1.bf16.msra.mxu0 %v3592
        %3644 = vmatprep.subr.bf16.mxu0 0
        %3645 = vmatpush1.bf16.msra.mxu0 %v3593
        %3646 = vmatprep.subr.bf16.mxu0 0
        %3647 = vmatpush1.bf16.msra.mxu0 0
        %3648 = vmatprep.subr.bf16.mxu0 0
        %3649 = vmatpush1.bf16.msra.mxu0 0
        %3650 = vmatprep.subr.bf16.mxu0 0
        %3651 = vmatpush1.bf16.msra.mxu0 0
        %3652 = vmatprep.subr.bf16.mxu0 0
        %3653 = vmatpush1.bf16.msra.mxu0 0
        %3654 = vmatprep.subr.bf16.mxu0 0
        %3655 = vmatpush1.bf16.msra.mxu0 0
        %3656 = vmatprep.subr.bf16.mxu0 0
        %3657 = vmatpush1.bf16.msra.mxu0 0
        %3658 = vmatprep.subr.bf16.mxu0 0
        %3659 = vmatpush1.bf16.msra.mxu0 0
        %3660 = vmatprep.subr.bf16.mxu0 0
        %3661 = vmatpush1.bf16.msra.mxu0 0
        %3662 = vmatprep.subr.bf16.mxu0 0
        %3663 = vmatpush1.bf16.msra.mxu0 0
        %3664 = vmatprep.subr.bf16.mxu0 0
        %3665 = vmatpush1.bf16.msra.mxu0 0
        %3666 = vmatprep.subr.bf16.mxu0 0
        %3667 = vmatpush1.bf16.msra.mxu0 0
        %3668 = vmatprep.subr.bf16.mxu0 0
        %3669 = vmatpush1.bf16.msra.mxu0 0
        %3670 = vmatprep.subr.bf16.mxu0 0
        %3671 = vmatpush1.bf16.msra.mxu0 0
        %3672 = vmatprep.subr.bf16.mxu0 0
        %3673 = vmatpush1.bf16.msra.mxu0 0
        %3674 = vmatprep.mubr.bf16.mxu0 0
        %3675 = vmatmul.mubr.bf16.gmra.mrb[0].mxu0 %v3640
        %v3676 = vpop.f32.mrb[0].mxu0
        %v3677 = vadd.f32 0.0, %v3676
        %v3678 = vpop.f32.mrb[0].mxu0
        %v3679 = vpop.f32.mrb[0].mxu0
        %v3680 = vpop.f32.mrb[0].mxu0
        %3681 = vdwg.mxu0
        %v3683 = vsel %vm330, %v3565, 0
        %3685 = vmatprep.subr.bf16.mxu0 0
        %3686 = vmatpush1.bf16.msra.mxu0 %v3592
        %3687 = vmatprep.subr.bf16.mxu0 0
        %3688 = vmatpush1.bf16.msra.mxu0 %v3593
        %3689 = vmatprep.subr.bf16.mxu0 0
        %3690 = vmatpush1.bf16.msra.mxu0 0
        %3691 = vmatprep.subr.bf16.mxu0 0
        %3692 = vmatpush1.bf16.msra.mxu0 0
        %3693 = vmatprep.subr.bf16.mxu0 0
        %3694 = vmatpush1.bf16.msra.mxu0 0
        %3695 = vmatprep.subr.bf16.mxu0 0
        %3696 = vmatpush1.bf16.msra.mxu0 0
        %3697 = vmatprep.subr.bf16.mxu0 0
        %3698 = vmatpush1.bf16.msra.mxu0 0
        %3699 = vmatprep.subr.bf16.mxu0 0
        %3700 = vmatpush1.bf16.msra.mxu0 0
        %3701 = vmatprep.subr.bf16.mxu0 0
        %3702 = vmatpush1.bf16.msra.mxu0 0
        %3703 = vmatprep.subr.bf16.mxu0 0
        %3704 = vmatpush1.bf16.msra.mxu0 0
        %3705 = vmatprep.subr.bf16.mxu0 0
        %3706 = vmatpush1.bf16.msra.mxu0 0
        %3707 = vmatprep.subr.bf16.mxu0 0
        %3708 = vmatpush1.bf16.msra.mxu0 0
        %3709 = vmatprep.subr.bf16.mxu0 0
        %3710 = vmatpush1.bf16.msra.mxu0 0
        %3711 = vmatprep.subr.bf16.mxu0 0
        %3712 = vmatpush1.bf16.msra.mxu0 0
        %3713 = vmatprep.subr.bf16.mxu0 0
        %3714 = vmatpush1.bf16.msra.mxu0 0
        %3715 = vmatprep.subr.bf16.mxu0 0
        %3716 = vmatpush1.bf16.msra.mxu0 0
        %3717 = vmatprep.mubr.bf16.mxu0 0
        %3718 = vmatmul.mubr.bf16.gmra.mrb[0].mxu0 %v3683
        %v3719 = vpop.f32.mrb[0].mxu0
        %v3720 = vadd.f32 0.0, %v3719
        %v3721 = vpop.f32.mrb[0].mxu0
        %v3722 = vpop.f32.mrb[0].mxu0
        %v3723 = vpop.f32.mrb[0].mxu0
        %3724 = vdwg.mxu0
        %v3726 = vsel %vm330, %v3566, 0
        %3728 = vmatprep.subr.bf16.mxu0 0
        %3729 = vmatpush1.bf16.msra.mxu0 %v3592
        %3730 = vmatprep.subr.bf16.mxu0 0
        %3731 = vmatpush1.bf16.msra.mxu0 %v3593
        %3732 = vmatprep.subr.bf16.mxu0 0
        %3733 = vmatpush1.bf16.msra.mxu0 0
        %3734 = vmatprep.subr.bf16.mxu0 0
        %3735 = vmatpush1.bf16.msra.mxu0 0
        %3736 = vmatprep.subr.bf16.mxu0 0
        %3737 = vmatpush1.bf16.msra.mxu0 0
        %3738 = vmatprep.subr.bf16.mxu0 0
        %3739 = vmatpush1.bf16.msra.mxu0 0
        %3740 = vmatprep.subr.bf16.mxu0 0
        %3741 = vmatpush1.bf16.msra.mxu0 0
        %3742 = vmatprep.subr.bf16.mxu0 0
        %3743 = vmatpush1.bf16.msra.mxu0 0
        %3744 = vmatprep.subr.bf16.mxu0 0
        %3745 = vmatpush1.bf16.msra.mxu0 0
        %3746 = vmatprep.subr.bf16.mxu0 0
        %3747 = vmatpush1.bf16.msra.mxu0 0
        %3748 = vmatprep.subr.bf16.mxu0 0
        %3749 = vmatpush1.bf16.msra.mxu0 0
        %3750 = vmatprep.subr.bf16.mxu0 0
        %3751 = vmatpush1.bf16.msra.mxu0 0
        %3752 = vmatprep.subr.bf16.mxu0 0
        %3753 = vmatpush1.bf16.msra.mxu0 0
        %3754 = vmatprep.subr.bf16.mxu0 0
        %3755 = vmatpush1.bf16.msra.mxu0 0
        %3756 = vmatprep.subr.bf16.mxu0 0
        %3757 = vmatpush1.bf16.msra.mxu0 0
        %3758 = vmatprep.subr.bf16.mxu0 0
        %3759 = vmatpush1.bf16.msra.mxu0 0
        %3760 = vmatprep.mubr.bf16.mxu0 0
        %3761 = vmatmul.mubr.bf16.gmra.mrb[0].mxu0 %v3726
        %v3762 = vpop.f32.mrb[0].mxu0
        %v3763 = vadd.f32 0.0, %v3762
        %v3764 = vpop.f32.mrb[0].mxu0
        %v3765 = vpop.f32.mrb[0].mxu0
        %v3766 = vpop.f32.mrb[0].mxu0
        %3767 = vdwg.mxu0
        %v3768 = vadd.f32 %v3562, %v3634
        %v3769 = vadd.f32 %v3562, %v3677
        %v3770 = vadd.f32 %v3562, %v3720
        %v3771 = vadd.f32 %v3562, %v3763
        %v3772 = vshrl.u32 %v3563, 16
        %v3774 = vshll.u32 %v3563, 16
        %v3776 = vrot.slane %v3774, 1
        %v3777 = vor.u32 %v3772, %v3776
        %v3782 = vunpack.c.l.b16 %v3529
        %v3783 = vunpack.c.h.b16 %v3529
        %v3784 = vunpack.c.l.b16 %v3530
        %v3785 = vunpack.c.h.b16 %v3530
        %v3786 = vunpack.c.l.b16 %v3531
        %v3787 = vunpack.c.h.b16 %v3531
        %v3788 = vunpack.c.l.b16 %v3532
        %v3789 = vunpack.c.h.b16 %v3532
        %v3790 = vpack.c.b16 %v3784, %v3782
        %v3791 = vpack.c.b16 %v3785, %v3783
        %v3792 = vpack.c.b16 %v3788, %v3786
        %v3793 = vpack.c.b16 %v3789, %v3787
        %3794 = vrot.lane.b32.xlu0 %v3790, 32
        %v3795 = vpop.permute.xlu0 %3794
        %3796 = vrot.lane.b32.xlu0 %v3791, 32
        %v3797 = vpop.permute.xlu0 %3796
        %3798 = vrot.lane.b32.xlu0 %v3792, 32
        %v3799 = vpop.permute.xlu0 %3798
        %3800 = vrot.lane.b32.xlu0 %v3793, 32
        %v3801 = vpop.permute.xlu0 %3800
        %v3802 = vsel %vm3591, %v3795, %v3797
        %v3803 = vsel %vm3591, %v3799, %v3801
        %v3807 = vsel %vm330, %v3777, 0
        %3809 = vmatprep.subr.bf16.mxu0 0
        %3810 = vmatpush1.bf16.msra.mxu0 %v3802
        %3811 = vmatprep.subr.bf16.mxu0 0
        %3812 = vmatpush1.bf16.msra.mxu0 %v3803
        %3813 = vmatprep.subr.bf16.mxu0 0
        %3814 = vmatpush1.bf16.msra.mxu0 0
        %3815 = vmatprep.subr.bf16.mxu0 0
        %3816 = vmatpush1.bf16.msra.mxu0 0
        %3817 = vmatprep.subr.bf16.mxu0 0
        %3818 = vmatpush1.bf16.msra.mxu0 0
        %3819 = vmatprep.subr.bf16.mxu0 0
        %3820 = vmatpush1.bf16.msra.mxu0 0
        %3821 = vmatprep.subr.bf16.mxu0 0
        %3822 = vmatpush1.bf16.msra.mxu0 0
        %3823 = vmatprep.subr.bf16.mxu0 0
        %3824 = vmatpush1.bf16.msra.mxu0 0
        %3825 = vmatprep.subr.bf16.mxu0 0
        %3826 = vmatpush1.bf16.msra.mxu0 0
        %3827 = vmatprep.subr.bf16.mxu0 0
        %3828 = vmatpush1.bf16.msra.mxu0 0
        %3829 = vmatprep.subr.bf16.mxu0 0
        %3830 = vmatpush1.bf16.msra.mxu0 0
        %3831 = vmatprep.subr.bf16.mxu0 0
        %3832 = vmatpush1.bf16.msra.mxu0 0
        %3833 = vmatprep.subr.bf16.mxu0 0
        %3834 = vmatpush1.bf16.msra.mxu0 0
        %3835 = vmatprep.subr.bf16.mxu0 0
        %3836 = vmatpush1.bf16.msra.mxu0 0
        %3837 = vmatprep.subr.bf16.mxu0 0
        %3838 = vmatpush1.bf16.msra.mxu0 0
        %3839 = vmatprep.subr.bf16.mxu0 0
        %3840 = vmatpush1.bf16.msra.mxu0 0
        %3841 = vmatprep.mubr.bf16.mxu0 0
        %3842 = vmatmul.mubr.bf16.gmra.mrb[0].mxu0 %v3807
        %v3843 = vpop.f32.mrb[0].mxu0
        %v3844 = vadd.f32 0.0, %v3843
        %v3845 = vpop.f32.mrb[0].mxu0
        %v3846 = vpop.f32.mrb[0].mxu0
        %v3847 = vpop.f32.mrb[0].mxu0
        %3848 = vdwg.mxu0
        %v3849 = vshrl.u32 %v3564, 16
        %v3851 = vshll.u32 %v3564, 16
        %v3853 = vrot.slane %v3851, 1
        %v3854 = vor.u32 %v3849, %v3853
        %v3856 = vsel %vm330, %v3854, 0
        %3858 = vmatprep.subr.bf16.mxu0 0
        %3859 = vmatpush1.bf16.msra.mxu0 %v3802
        %3860 = vmatprep.subr.bf16.mxu0 0
        %3861 = vmatpush1.bf16.msra.mxu0 %v3803
        %3862 = vmatprep.subr.bf16.mxu0 0
        %3863 = vmatpush1.bf16.msra.mxu0 0
        %3864 = vmatprep.subr.bf16.mxu0 0
        %3865 = vmatpush1.bf16.msra.mxu0 0
        %3866 = vmatprep.subr.bf16.mxu0 0
        %3867 = vmatpush1.bf16.msra.mxu0 0
        %3868 = vmatprep.subr.bf16.mxu0 0
        %3869 = vmatpush1.bf16.msra.mxu0 0
        %3870 = vmatprep.subr.bf16.mxu0 0
        %3871 = vmatpush1.bf16.msra.mxu0 0
        %3872 = vmatprep.subr.bf16.mxu0 0
        %3873 = vmatpush1.bf16.msra.mxu0 0
        %3874 = vmatprep.subr.bf16.mxu0 0
        %3875 = vmatpush1.bf16.msra.mxu0 0
        %3876 = vmatprep.subr.bf16.mxu0 0
        %3877 = vmatpush1.bf16.msra.mxu0 0
        %3878 = vmatprep.subr.bf16.mxu0 0
        %3879 = vmatpush1.bf16.msra.mxu0 0
        %3880 = vmatprep.subr.bf16.mxu0 0
        %3881 = vmatpush1.bf16.msra.mxu0 0
        %3882 = vmatprep.subr.bf16.mxu0 0
        %3883 = vmatpush1.bf16.msra.mxu0 0
        %3884 = vmatprep.subr.bf16.mxu0 0
        %3885 = vmatpush1.bf16.msra.mxu0 0
        %3886 = vmatprep.subr.bf16.mxu0 0
        %3887 = vmatpush1.bf16.msra.mxu0 0
        %3888 = vmatprep.subr.bf16.mxu0 0
        %3889 = vmatpush1.bf16.msra.mxu0 0
        %3890 = vmatprep.mubr.bf16.mxu0 0
        %3891 = vmatmul.mubr.bf16.gmra.mrb[0].mxu0 %v3856
        %v3892 = vpop.f32.mrb[0].mxu0
        %v3893 = vadd.f32 0.0, %v3892
        %v3894 = vpop.f32.mrb[0].mxu0
        %v3895 = vpop.f32.mrb[0].mxu0
        %v3896 = vpop.f32.mrb[0].mxu0
        %3897 = vdwg.mxu0
        %v3898 = vshrl.u32 %v3565, 16
        %v3900 = vshll.u32 %v3565, 16
        %v3902 = vrot.slane %v3900, 1
        %v3903 = vor.u32 %v3898, %v3902
        %v3905 = vsel %vm330, %v3903, 0
        %3907 = vmatprep.subr.bf16.mxu0 0
        %3908 = vmatpush1.bf16.msra.mxu0 %v3802
        %3909 = vmatprep.subr.bf16.mxu0 0
        %3910 = vmatpush1.bf16.msra.mxu0 %v3803
        %3911 = vmatprep.subr.bf16.mxu0 0
        %3912 = vmatpush1.bf16.msra.mxu0 0
        %3913 = vmatprep.subr.bf16.mxu0 0
        %3914 = vmatpush1.bf16.msra.mxu0 0
        %3915 = vmatprep.subr.bf16.mxu0 0
        %3916 = vmatpush1.bf16.msra.mxu0 0
        %3917 = vmatprep.subr.bf16.mxu0 0
        %3918 = vmatpush1.bf16.msra.mxu0 0
        %3919 = vmatprep.subr.bf16.mxu0 0
        %3920 = vmatpush1.bf16.msra.mxu0 0
        %3921 = vmatprep.subr.bf16.mxu0 0
        %3922 = vmatpush1.bf16.msra.mxu0 0
        %3923 = vmatprep.subr.bf16.mxu0 0
        %3924 = vmatpush1.bf16.msra.mxu0 0
        %3925 = vmatprep.subr.bf16.mxu0 0
        %3926 = vmatpush1.bf16.msra.mxu0 0
        %3927 = vmatprep.subr.bf16.mxu0 0
        %3928 = vmatpush1.bf16.msra.mxu0 0
        %3929 = vmatprep.subr.bf16.mxu0 0
        %3930 = vmatpush1.bf16.msra.mxu0 0
        %3931 = vmatprep.subr.bf16.mxu0 0
        %3932 = vmatpush1.bf16.msra.mxu0 0
        %3933 = vmatprep.subr.bf16.mxu0 0
        %3934 = vmatpush1.bf16.msra.mxu0 0
        %3935 = vmatprep.subr.bf16.mxu0 0
        %3936 = vmatpush1.bf16.msra.mxu0 0
        %3937 = vmatprep.subr.bf16.mxu0 0
        %3938 = vmatpush1.bf16.msra.mxu0 0
        %3939 = vmatprep.mubr.bf16.mxu0 0
        %3940 = vmatmul.mubr.bf16.gmra.mrb[0].mxu0 %v3905
        %v3941 = vpop.f32.mrb[0].mxu0
        %v3942 = vadd.f32 0.0, %v3941
        %v3943 = vpop.f32.mrb[0].mxu0
        %v3944 = vpop.f32.mrb[0].mxu0
        %v3945 = vpop.f32.mrb[0].mxu0
        %3946 = vdwg.mxu0
        %v3947 = vshrl.u32 %v3566, 16
        %v3949 = vshll.u32 %v3566, 16
        %v3951 = vrot.slane %v3949, 1
        %v3952 = vor.u32 %v3947, %v3951
        %v3954 = vsel %vm330, %v3952, 0
        %3956 = vmatprep.subr.bf16.mxu0 0
        %3957 = vmatpush1.bf16.msra.mxu0 %v3802
        %3958 = vmatprep.subr.bf16.mxu0 0
        %3959 = vmatpush1.bf16.msra.mxu0 %v3803
        %3960 = vmatprep.subr.bf16.mxu0 0
        %3961 = vmatpush1.bf16.msra.mxu0 0
        %3962 = vmatprep.subr.bf16.mxu0 0
        %3963 = vmatpush1.bf16.msra.mxu0 0
        %3964 = vmatprep.subr.bf16.mxu0 0
        %3965 = vmatpush1.bf16.msra.mxu0 0
        %3966 = vmatprep.subr.bf16.mxu0 0
        %3967 = vmatpush1.bf16.msra.mxu0 0
        %3968 = vmatprep.subr.bf16.mxu0 0
        %3969 = vmatpush1.bf16.msra.mxu0 0
        %3970 = vmatprep.subr.bf16.mxu0 0
        %3971 = vmatpush1.bf16.msra.mxu0 0
        %3972 = vmatprep.subr.bf16.mxu0 0
        %3973 = vmatpush1.bf16.msra.mxu0 0
        %3974 = vmatprep.subr.bf16.mxu0 0
        %3975 = vmatpush1.bf16.msra.mxu0 0
        %3976 = vmatprep.subr.bf16.mxu0 0
        %3977 = vmatpush1.bf16.msra.mxu0 0
        %3978 = vmatprep.subr.bf16.mxu0 0
        %3979 = vmatpush1.bf16.msra.mxu0 0
        %3980 = vmatprep.subr.bf16.mxu0 0
        %3981 = vmatpush1.bf16.msra.mxu0 0
        %3982 = vmatprep.subr.bf16.mxu0 0
        %3983 = vmatpush1.bf16.msra.mxu0 0
        %3984 = vmatprep.subr.bf16.mxu0 0
        %3985 = vmatpush1.bf16.msra.mxu0 0
        %3986 = vmatprep.subr.bf16.mxu0 0
        %3987 = vmatpush1.bf16.msra.mxu0 0
        %3988 = vmatprep.mubr.bf16.mxu0 0
        %3989 = vmatmul.mubr.bf16.gmra.mrb[0].mxu0 %v3954
        %v3990 = vpop.f32.mrb[0].mxu0
        %v3991 = vadd.f32 0.0, %v3990
        %v3992 = vpop.f32.mrb[0].mxu0
        %v3993 = vpop.f32.mrb[0].mxu0
        %v3994 = vpop.f32.mrb[0].mxu0
        %3995 = vdwg.mxu0
        %v3996 = vadd.f32 %v3768, %v3844
        %v3997 = vadd.f32 %v3769, %v3893
        %v3998 = vadd.f32 %v3770, %v3942
        %v3999 = vadd.f32 %v3771, %v3991
        %v4000 = vpack.c.bf16 0.0, %v3554
        %v4001 = vpack.c.bf16 0.0, %v3555
        %v4002 = vpack.c.bf16 0.0, %v3556
        %v4003 = vpack.c.bf16 0.0, %v3557
        %v4005 = vrot.slane %v4000, 1
        %v4010 = vunpack.c.l.b16 %v3533
        %v4011 = vunpack.c.h.b16 %v3533
        %v4012 = vunpack.c.l.b16 %v3534
        %v4013 = vunpack.c.h.b16 %v3534
        %v4014 = vunpack.c.l.b16 %v3535
        %v4015 = vunpack.c.h.b16 %v3535
        %v4016 = vunpack.c.l.b16 %v3536
        %v4017 = vunpack.c.h.b16 %v3536
        %v4018 = vpack.c.b16 %v4012, %v4010
        %v4019 = vpack.c.b16 %v4013, %v4011
        %v4020 = vpack.c.b16 %v4016, %v4014
        %v4021 = vpack.c.b16 %v4017, %v4015
        %4022 = vrot.lane.b32.xlu0 %v4018, 32
        %v4023 = vpop.permute.xlu0 %4022
        %4024 = vrot.lane.b32.xlu0 %v4019, 32
        %v4025 = vpop.permute.xlu0 %4024
        %4026 = vrot.lane.b32.xlu0 %v4020, 32
        %v4027 = vpop.permute.xlu0 %4026
        %4028 = vrot.lane.b32.xlu0 %v4021, 32
        %v4029 = vpop.permute.xlu0 %4028
        %v4030 = vsel %vm3591, %v4023, %v4025
        %v4031 = vsel %vm3591, %v4027, %v4029
        %v4035 = vsel %vm330, %v4005, 0
        %4037 = vmatprep.subr.bf16.mxu0 0
        %4038 = vmatpush1.bf16.msra.mxu0 %v4030
        %4039 = vmatprep.subr.bf16.mxu0 0
        %4040 = vmatpush1.bf16.msra.mxu0 %v4031
        %4041 = vmatprep.subr.bf16.mxu0 0
        %4042 = vmatpush1.bf16.msra.mxu0 0
        %4043 = vmatprep.subr.bf16.mxu0 0
        %4044 = vmatpush1.bf16.msra.mxu0 0
        %4045 = vmatprep.subr.bf16.mxu0 0
        %4046 = vmatpush1.bf16.msra.mxu0 0
        %4047 = vmatprep.subr.bf16.mxu0 0
        %4048 = vmatpush1.bf16.msra.mxu0 0
        %4049 = vmatprep.subr.bf16.mxu0 0
        %4050 = vmatpush1.bf16.msra.mxu0 0
        %4051 = vmatprep.subr.bf16.mxu0 0
        %4052 = vmatpush1.bf16.msra.mxu0 0
        %4053 = vmatprep.subr.bf16.mxu0 0
        %4054 = vmatpush1.bf16.msra.mxu0 0
        %4055 = vmatprep.subr.bf16.mxu0 0
        %4056 = vmatpush1.bf16.msra.mxu0 0
        %4057 = vmatprep.subr.bf16.mxu0 0
        %4058 = vmatpush1.bf16.msra.mxu0 0
        %4059 = vmatprep.subr.bf16.mxu0 0
        %4060 = vmatpush1.bf16.msra.mxu0 0
        %4061 = vmatprep.subr.bf16.mxu0 0
        %4062 = vmatpush1.bf16.msra.mxu0 0
        %4063 = vmatprep.subr.bf16.mxu0 0
        %4064 = vmatpush1.bf16.msra.mxu0 0
        %4065 = vmatprep.subr.bf16.mxu0 0
        %4066 = vmatpush1.bf16.msra.mxu0 0
        %4067 = vmatprep.subr.bf16.mxu0 0
        %4068 = vmatpush1.bf16.msra.mxu0 0
        %4069 = vmatprep.mubr.bf16.mxu0 0
        %4070 = vmatmul.mubr.bf16.gmra.mrb[0].mxu0 %v4035
        %v4071 = vpop.f32.mrb[0].mxu0
        %v4072 = vadd.f32 0.0, %v4071
        %v4073 = vpop.f32.mrb[0].mxu0
        %v4074 = vpop.f32.mrb[0].mxu0
        %v4075 = vpop.f32.mrb[0].mxu0
        %4076 = vdwg.mxu0
        %v4078 = vrot.slane %v4001, 1
        %v4080 = vsel %vm330, %v4078, 0
        %4082 = vmatprep.subr.bf16.mxu0 0
        %4083 = vmatpush1.bf16.msra.mxu0 %v4030
        %4084 = vmatprep.subr.bf16.mxu0 0
        %4085 = vmatpush1.bf16.msra.mxu0 %v4031
        %4086 = vmatprep.subr.bf16.mxu0 0
        %4087 = vmatpush1.bf16.msra.mxu0 0
        %4088 = vmatprep.subr.bf16.mxu0 0
        %4089 = vmatpush1.bf16.msra.mxu0 0
        %4090 = vmatprep.subr.bf16.mxu0 0
        %4091 = vmatpush1.bf16.msra.mxu0 0
        %4092 = vmatprep.subr.bf16.mxu0 0
        %4093 = vmatpush1.bf16.msra.mxu0 0
        %4094 = vmatprep.subr.bf16.mxu0 0
        %4095 = vmatpush1.bf16.msra.mxu0 0
        %4096 = vmatprep.subr.bf16.mxu0 0
        %4097 = vmatpush1.bf16.msra.mxu0 0
        %4098 = vmatprep.subr.bf16.mxu0 0
        %4099 = vmatpush1.bf16.msra.mxu0 0
        %4100 = vmatprep.subr.bf16.mxu0 0
        %4101 = vmatpush1.bf16.msra.mxu0 0
        %4102 = vmatprep.subr.bf16.mxu0 0
        %4103 = vmatpush1.bf16.msra.mxu0 0
        %4104 = vmatprep.subr.bf16.mxu0 0
        %4105 = vmatpush1.bf16.msra.mxu0 0
        %4106 = vmatprep.subr.bf16.mxu0 0
        %4107 = vmatpush1.bf16.msra.mxu0 0
        %4108 = vmatprep.subr.bf16.mxu0 0
        %4109 = vmatpush1.bf16.msra.mxu0 0
        %4110 = vmatprep.subr.bf16.mxu0 0
        %4111 = vmatpush1.bf16.msra.mxu0 0
        %4112 = vmatprep.subr.bf16.mxu0 0
        %4113 = vmatpush1.bf16.msra.mxu0 0
        %4114 = vmatprep.mubr.bf16.mxu0 0
        %4115 = vmatmul.mubr.bf16.gmra.mrb[0].mxu0 %v4080
        %v4116 = vpop.f32.mrb[0].mxu0
        %v4117 = vadd.f32 0.0, %v4116
        %v4118 = vpop.f32.mrb[0].mxu0
        %v4119 = vpop.f32.mrb[0].mxu0
        %v4120 = vpop.f32.mrb[0].mxu0
        %4121 = vdwg.mxu0
        %v4123 = vrot.slane %v4002, 1
        %v4125 = vsel %vm330, %v4123, 0
        %4127 = vmatprep.subr.bf16.mxu0 0
        %4128 = vmatpush1.bf16.msra.mxu0 %v4030
        %4129 = vmatprep.subr.bf16.mxu0 0
        %4130 = vmatpush1.bf16.msra.mxu0 %v4031
        %4131 = vmatprep.subr.bf16.mxu0 0
        %4132 = vmatpush1.bf16.msra.mxu0 0
        %4133 = vmatprep.subr.bf16.mxu0 0
        %4134 = vmatpush1.bf16.msra.mxu0 0
        %4135 = vmatprep.subr.bf16.mxu0 0
        %4136 = vmatpush1.bf16.msra.mxu0 0
        %4137 = vmatprep.subr.bf16.mxu0 0
        %4138 = vmatpush1.bf16.msra.mxu0 0
        %4139 = vmatprep.subr.bf16.mxu0 0
        %4140 = vmatpush1.bf16.msra.mxu0 0
        %4141 = vmatprep.subr.bf16.mxu0 0
        %4142 = vmatpush1.bf16.msra.mxu0 0
        %4143 = vmatprep.subr.bf16.mxu0 0
        %4144 = vmatpush1.bf16.msra.mxu0 0
        %4145 = vmatprep.subr.bf16.mxu0 0
        %4146 = vmatpush1.bf16.msra.mxu0 0
        %4147 = vmatprep.subr.bf16.mxu0 0
        %4148 = vmatpush1.bf16.msra.mxu0 0
        %4149 = vmatprep.subr.bf16.mxu0 0
        %4150 = vmatpush1.bf16.msra.mxu0 0
        %4151 = vmatprep.subr.bf16.mxu0 0
        %4152 = vmatpush1.bf16.msra.mxu0 0
        %4153 = vmatprep.subr.bf16.mxu0 0
        %4154 = vmatpush1.bf16.msra.mxu0 0
        %4155 = vmatprep.subr.bf16.mxu0 0
        %4156 = vmatpush1.bf16.msra.mxu0 0
        %4157 = vmatprep.subr.bf16.mxu0 0
        %4158 = vmatpush1.bf16.msra.mxu0 0
        %4159 = vmatprep.mubr.bf16.mxu0 0
        %4160 = vmatmul.mubr.bf16.gmra.mrb[0].mxu0 %v4125
        %v4161 = vpop.f32.mrb[0].mxu0
        %v4162 = vadd.f32 0.0, %v4161
        %v4163 = vpop.f32.mrb[0].mxu0
        %v4164 = vpop.f32.mrb[0].mxu0
        %v4165 = vpop.f32.mrb[0].mxu0
        %4166 = vdwg.mxu0
        %v4168 = vrot.slane %v4003, 1
        %v4170 = vsel %vm330, %v4168, 0
        %4172 = vmatprep.subr.bf16.mxu0 0
        %4173 = vmatpush1.bf16.msra.mxu0 %v4030
        %4174 = vmatprep.subr.bf16.mxu0 0
        %4175 = vmatpush1.bf16.msra.mxu0 %v4031
        %4176 = vmatprep.subr.bf16.mxu0 0
        %4177 = vmatpush1.bf16.msra.mxu0 0
        %4178 = vmatprep.subr.bf16.mxu0 0
        %4179 = vmatpush1.bf16.msra.mxu0 0
        %4180 = vmatprep.subr.bf16.mxu0 0
        %4181 = vmatpush1.bf16.msra.mxu0 0
        %4182 = vmatprep.subr.bf16.mxu0 0
        %4183 = vmatpush1.bf16.msra.mxu0 0
        %4184 = vmatprep.subr.bf16.mxu0 0
        %4185 = vmatpush1.bf16.msra.mxu0 0
        %4186 = vmatprep.subr.bf16.mxu0 0
        %4187 = vmatpush1.bf16.msra.mxu0 0
        %4188 = vmatprep.subr.bf16.mxu0 0
        %4189 = vmatpush1.bf16.msra.mxu0 0
        %4190 = vmatprep.subr.bf16.mxu0 0
        %4191 = vmatpush1.bf16.msra.mxu0 0
        %4192 = vmatprep.subr.bf16.mxu0 0
        %4193 = vmatpush1.bf16.msra.mxu0 0
        %4194 = vmatprep.subr.bf16.mxu0 0
        %4195 = vmatpush1.bf16.msra.mxu0 0
        %4196 = vmatprep.subr.bf16.mxu0 0
        %4197 = vmatpush1.bf16.msra.mxu0 0
        %4198 = vmatprep.subr.bf16.mxu0 0
        %4199 = vmatpush1.bf16.msra.mxu0 0
        %4200 = vmatprep.subr.bf16.mxu0 0
        %4201 = vmatpush1.bf16.msra.mxu0 0
        %4202 = vmatprep.subr.bf16.mxu0 0
        %4203 = vmatpush1.bf16.msra.mxu0 0
        %4204 = vmatprep.mubr.bf16.mxu0 0
        %4205 = vmatmul.mubr.bf16.gmra.mrb[0].mxu0 %v4170
        %v4206 = vpop.f32.mrb[0].mxu0
        %v4207 = vadd.f32 0.0, %v4206
        %v4208 = vpop.f32.mrb[0].mxu0
        %v4209 = vpop.f32.mrb[0].mxu0
        %v4210 = vpop.f32.mrb[0].mxu0
        %4211 = vdwg.mxu0
        %v4212 = vadd.f32 %v3996, %v4072
        %v4213 = vadd.f32 %v3997, %v4117
        %v4214 = vadd.f32 %v3998, %v4162
        %v4215 = vadd.f32 %v3999, %v4207
        %4217 = vrot.lane.b32.xlu0 %v4212, 96
        %v4218 = vpop.permute.xlu0 %4217
        %v4219 = vsel %vm330, %v4212, 0
        %v4221 = vsel %vm330, %v4218, 0
        %4223 = vmatprep.subr.mxu0 0.0
        %4224 = vmatpush1.xpose.msra.mxu0 %v4221
        %4225 = vmatprep.subr.mxu0 0.0
        %4226 = vmatpush1.xpose.msra.mxu0 0.0
        %4227 = vmatprep.subr.mxu0 0.0
        %4228 = vmatpush1.xpose.msra.mxu0 0.0
        %4229 = vmatprep.subr.mxu0 0.0
        %4230 = vmatpush1.xpose.msra.mxu0 0.0
        %4231 = vmatprep.subr.mxu0 0.0
        %4232 = vmatpush1.xpose.msra.mxu0 0.0
        %4233 = vmatprep.subr.mxu0 0.0
        %4234 = vmatpush1.xpose.msra.mxu0 0.0
        %4235 = vmatprep.subr.mxu0 0.0
        %4236 = vmatpush1.xpose.msra.mxu0 0.0
        %4237 = vmatprep.subr.mxu0 0.0
        %4238 = vmatpush1.xpose.msra.mxu0 0.0
        %4239 = vmatprep.subr.mxu0 0.0
        %4240 = vmatpush1.xpose.msra.mxu0 0.0
        %4241 = vmatprep.subr.mxu0 0.0
        %4242 = vmatpush1.xpose.msra.mxu0 0.0
        %4243 = vmatprep.subr.mxu0 0.0
        %4244 = vmatpush1.xpose.msra.mxu0 0.0
        %4245 = vmatprep.subr.mxu0 0.0
        %4246 = vmatpush1.xpose.msra.mxu0 0.0
        %4247 = vmatprep.subr.mxu0 0.0
        %4248 = vmatpush1.xpose.msra.mxu0 0.0
        %4249 = vmatprep.subr.mxu0 0.0
        %4250 = vmatpush1.xpose.msra.mxu0 0.0
        %4251 = vmatprep.subr.mxu0 0.0
        %4252 = vmatpush1.xpose.msra.mxu0 0.0
        %4253 = vmatprep.subr.mxu0 0.0
        %4254 = vmatpush1.xpose.msra.mxu0 0.0
        %4255 = vmatprep.subr.mxu0 0.0
        %4256 = vmatpush1.xpose.msra.mxu0 0.0
        %4257 = vmatprep.subr.mxu0 0.0
        %4258 = vmatpush1.xpose.msra.mxu0 0.0
        %4259 = vmatprep.subr.mxu0 0.0
        %4260 = vmatpush1.xpose.msra.mxu0 0.0
        %4261 = vmatprep.subr.mxu0 0.0
        %4262 = vmatpush1.xpose.msra.mxu0 0.0
        %4263 = vmatprep.subr.mxu0 0.0
        %4264 = vmatpush1.xpose.msra.mxu0 0.0
        %4265 = vmatprep.subr.mxu0 0.0
        %4266 = vmatpush1.xpose.msra.mxu0 0.0
        %4267 = vmatprep.subr.mxu0 0.0
        %4268 = vmatpush1.xpose.msra.mxu0 0.0
        %4269 = vmatprep.subr.mxu0 0.0
        %4270 = vmatpush1.xpose.msra.mxu0 0.0
        %4271 = vmatprep.subr.mxu0 0.0
        %4272 = vmatpush1.xpose.msra.mxu0 0.0
        %4273 = vmatprep.subr.mxu0 0.0
        %4274 = vmatpush1.xpose.msra.mxu0 0.0
        %4275 = vmatprep.subr.mxu0 0.0
        %4276 = vmatpush1.xpose.msra.mxu0 0.0
        %4277 = vmatprep.subr.mxu0 0.0
        %4278 = vmatpush1.xpose.msra.mxu0 0.0
        %4279 = vmatprep.subr.mxu0 0.0
        %4280 = vmatpush1.xpose.msra.mxu0 0.0
        %4281 = vmatprep.subr.mxu0 0.0
        %4282 = vmatpush1.xpose.msra.mxu0 0.0
        %4283 = vmatprep.subr.mxu0 0.0
        %4284 = vmatpush1.xpose.msra.mxu0 0.0
        %4285 = vmatprep.subr.mxu0 0.0
        %4286 = vmatpush1.xpose.msra.mxu0 0.0
        %4287 = vmatprep.mubr.f32.mxu0 0.0
        %4288 = vmatmul.mubr.f32.gmra.mrb[0].mxu0 %v4219
        %v4289 = vpop.f32.mrb[0].mxu0
        %v4290 = vadd.f32 0.0, %v4289
        %v4291 = vpop.f32.mrb[0].mxu0
        %4292 = vdwg.mxu0
        %4294 = vrot.lane.b32.xlu0 %v4213, 96
        %v4295 = vpop.permute.xlu0 %4294
        %v4296 = vsel %vm330, %v4213, 0
        %v4298 = vsel %vm330, %v4295, 0
        %4300 = vmatprep.subr.mxu0 0.0
        %4301 = vmatpush1.xpose.msra.mxu0 %v4298
        %4302 = vmatprep.subr.mxu0 0.0
        %4303 = vmatpush1.xpose.msra.mxu0 0.0
        %4304 = vmatprep.subr.mxu0 0.0
        %4305 = vmatpush1.xpose.msra.mxu0 0.0
        %4306 = vmatprep.subr.mxu0 0.0
        %4307 = vmatpush1.xpose.msra.mxu0 0.0
        %4308 = vmatprep.subr.mxu0 0.0
        %4309 = vmatpush1.xpose.msra.mxu0 0.0
        %4310 = vmatprep.subr.mxu0 0.0
        %4311 = vmatpush1.xpose.msra.mxu0 0.0
        %4312 = vmatprep.subr.mxu0 0.0
        %4313 = vmatpush1.xpose.msra.mxu0 0.0
        %4314 = vmatprep.subr.mxu0 0.0
        %4315 = vmatpush1.xpose.msra.mxu0 0.0
        %4316 = vmatprep.subr.mxu0 0.0
        %4317 = vmatpush1.xpose.msra.mxu0 0.0
        %4318 = vmatprep.subr.mxu0 0.0
        %4319 = vmatpush1.xpose.msra.mxu0 0.0
        %4320 = vmatprep.subr.mxu0 0.0
        %4321 = vmatpush1.xpose.msra.mxu0 0.0
        %4322 = vmatprep.subr.mxu0 0.0
        %4323 = vmatpush1.xpose.msra.mxu0 0.0
        %4324 = vmatprep.subr.mxu0 0.0
        %4325 = vmatpush1.xpose.msra.mxu0 0.0
        %4326 = vmatprep.subr.mxu0 0.0
        %4327 = vmatpush1.xpose.msra.mxu0 0.0
        %4328 = vmatprep.subr.mxu0 0.0
        %4329 = vmatpush1.xpose.msra.mxu0 0.0
        %4330 = vmatprep.subr.mxu0 0.0
        %4331 = vmatpush1.xpose.msra.mxu0 0.0
        %4332 = vmatprep.subr.mxu0 0.0
        %4333 = vmatpush1.xpose.msra.mxu0 0.0
        %4334 = vmatprep.subr.mxu0 0.0
        %4335 = vmatpush1.xpose.msra.mxu0 0.0
        %4336 = vmatprep.subr.mxu0 0.0
        %4337 = vmatpush1.xpose.msra.mxu0 0.0
        %4338 = vmatprep.subr.mxu0 0.0
        %4339 = vmatpush1.xpose.msra.mxu0 0.0
        %4340 = vmatprep.subr.mxu0 0.0
        %4341 = vmatpush1.xpose.msra.mxu0 0.0
        %4342 = vmatprep.subr.mxu0 0.0
        %4343 = vmatpush1.xpose.msra.mxu0 0.0
        %4344 = vmatprep.subr.mxu0 0.0
        %4345 = vmatpush1.xpose.msra.mxu0 0.0
        %4346 = vmatprep.subr.mxu0 0.0
        %4347 = vmatpush1.xpose.msra.mxu0 0.0
        %4348 = vmatprep.subr.mxu0 0.0
        %4349 = vmatpush1.xpose.msra.mxu0 0.0
        %4350 = vmatprep.subr.mxu0 0.0
        %4351 = vmatpush1.xpose.msra.mxu0 0.0
        %4352 = vmatprep.subr.mxu0 0.0
        %4353 = vmatpush1.xpose.msra.mxu0 0.0
        %4354 = vmatprep.subr.mxu0 0.0
        %4355 = vmatpush1.xpose.msra.mxu0 0.0
        %4356 = vmatprep.subr.mxu0 0.0
        %4357 = vmatpush1.xpose.msra.mxu0 0.0
        %4358 = vmatprep.subr.mxu0 0.0
        %4359 = vmatpush1.xpose.msra.mxu0 0.0
        %4360 = vmatprep.subr.mxu0 0.0
        %4361 = vmatpush1.xpose.msra.mxu0 0.0
        %4362 = vmatprep.subr.mxu0 0.0
        %4363 = vmatpush1.xpose.msra.mxu0 0.0
        %4364 = vmatprep.mubr.f32.mxu0 0.0
        %4365 = vmatmul.mubr.f32.gmra.mrb[0].mxu0 %v4296
        %v4366 = vpop.f32.mrb[0].mxu0
        %v4367 = vadd.f32 0.0, %v4366
        %v4368 = vpop.f32.mrb[0].mxu0
        %4369 = vdwg.mxu0
        %4371 = vrot.lane.b32.xlu0 %v4214, 96
        %v4372 = vpop.permute.xlu0 %4371
        %v4373 = vsel %vm330, %v4214, 0
        %v4375 = vsel %vm330, %v4372, 0
        %4377 = vmatprep.subr.mxu0 0.0
        %4378 = vmatpush1.xpose.msra.mxu0 %v4375
        %4379 = vmatprep.subr.mxu0 0.0
        %4380 = vmatpush1.xpose.msra.mxu0 0.0
        %4381 = vmatprep.subr.mxu0 0.0
        %4382 = vmatpush1.xpose.msra.mxu0 0.0
        %4383 = vmatprep.subr.mxu0 0.0
        %4384 = vmatpush1.xpose.msra.mxu0 0.0
        %4385 = vmatprep.subr.mxu0 0.0
        %4386 = vmatpush1.xpose.msra.mxu0 0.0
        %4387 = vmatprep.subr.mxu0 0.0
        %4388 = vmatpush1.xpose.msra.mxu0 0.0
        %4389 = vmatprep.subr.mxu0 0.0
        %4390 = vmatpush1.xpose.msra.mxu0 0.0
        %4391 = vmatprep.subr.mxu0 0.0
        %4392 = vmatpush1.xpose.msra.mxu0 0.0
        %4393 = vmatprep.subr.mxu0 0.0
        %4394 = vmatpush1.xpose.msra.mxu0 0.0
        %4395 = vmatprep.subr.mxu0 0.0
        %4396 = vmatpush1.xpose.msra.mxu0 0.0
        %4397 = vmatprep.subr.mxu0 0.0
        %4398 = vmatpush1.xpose.msra.mxu0 0.0
        %4399 = vmatprep.subr.mxu0 0.0
        %4400 = vmatpush1.xpose.msra.mxu0 0.0
        %4401 = vmatprep.subr.mxu0 0.0
        %4402 = vmatpush1.xpose.msra.mxu0 0.0
        %4403 = vmatprep.subr.mxu0 0.0
        %4404 = vmatpush1.xpose.msra.mxu0 0.0
        %4405 = vmatprep.subr.mxu0 0.0
        %4406 = vmatpush1.xpose.msra.mxu0 0.0
        %4407 = vmatprep.subr.mxu0 0.0
        %4408 = vmatpush1.xpose.msra.mxu0 0.0
        %4409 = vmatprep.subr.mxu0 0.0
        %4410 = vmatpush1.xpose.msra.mxu0 0.0
        %4411 = vmatprep.subr.mxu0 0.0
        %4412 = vmatpush1.xpose.msra.mxu0 0.0
        %4413 = vmatprep.subr.mxu0 0.0
        %4414 = vmatpush1.xpose.msra.mxu0 0.0
        %4415 = vmatprep.subr.mxu0 0.0
        %4416 = vmatpush1.xpose.msra.mxu0 0.0
        %4417 = vmatprep.subr.mxu0 0.0
        %4418 = vmatpush1.xpose.msra.mxu0 0.0
        %4419 = vmatprep.subr.mxu0 0.0
        %4420 = vmatpush1.xpose.msra.mxu0 0.0
        %4421 = vmatprep.subr.mxu0 0.0
        %4422 = vmatpush1.xpose.msra.mxu0 0.0
        %4423 = vmatprep.subr.mxu0 0.0
        %4424 = vmatpush1.xpose.msra.mxu0 0.0
        %4425 = vmatprep.subr.mxu0 0.0
        %4426 = vmatpush1.xpose.msra.mxu0 0.0
        %4427 = vmatprep.subr.mxu0 0.0
        %4428 = vmatpush1.xpose.msra.mxu0 0.0
        %4429 = vmatprep.subr.mxu0 0.0
        %4430 = vmatpush1.xpose.msra.mxu0 0.0
        %4431 = vmatprep.subr.mxu0 0.0
        %4432 = vmatpush1.xpose.msra.mxu0 0.0
        %4433 = vmatprep.subr.mxu0 0.0
        %4434 = vmatpush1.xpose.msra.mxu0 0.0
        %4435 = vmatprep.subr.mxu0 0.0
        %4436 = vmatpush1.xpose.msra.mxu0 0.0
        %4437 = vmatprep.subr.mxu0 0.0
        %4438 = vmatpush1.xpose.msra.mxu0 0.0
        %4439 = vmatprep.subr.mxu0 0.0
        %4440 = vmatpush1.xpose.msra.mxu0 0.0
        %4441 = vmatprep.mubr.f32.mxu0 0.0
        %4442 = vmatmul.mubr.f32.gmra.mrb[0].mxu0 %v4373
        %v4443 = vpop.f32.mrb[0].mxu0
        %v4444 = vadd.f32 0.0, %v4443
        %v4445 = vpop.f32.mrb[0].mxu0
        %4446 = vdwg.mxu0
        %4448 = vrot.lane.b32.xlu0 %v4215, 96
        %v4449 = vpop.permute.xlu0 %4448
        %v4450 = vsel %vm330, %v4215, 0
        %v4452 = vsel %vm330, %v4449, 0
        %4454 = vmatprep.subr.mxu0 0.0
        %4455 = vmatpush1.xpose.msra.mxu0 %v4452
        %4456 = vmatprep.subr.mxu0 0.0
        %4457 = vmatpush1.xpose.msra.mxu0 0.0
        %4458 = vmatprep.subr.mxu0 0.0
        %4459 = vmatpush1.xpose.msra.mxu0 0.0
        %4460 = vmatprep.subr.mxu0 0.0
        %4461 = vmatpush1.xpose.msra.mxu0 0.0
        %4462 = vmatprep.subr.mxu0 0.0
        %4463 = vmatpush1.xpose.msra.mxu0 0.0
        %4464 = vmatprep.subr.mxu0 0.0
        %4465 = vmatpush1.xpose.msra.mxu0 0.0
        %4466 = vmatprep.subr.mxu0 0.0
        %4467 = vmatpush1.xpose.msra.mxu0 0.0
        %4468 = vmatprep.subr.mxu0 0.0
        %4469 = vmatpush1.xpose.msra.mxu0 0.0
        %4470 = vmatprep.subr.mxu0 0.0
        %4471 = vmatpush1.xpose.msra.mxu0 0.0
        %4472 = vmatprep.subr.mxu0 0.0
        %4473 = vmatpush1.xpose.msra.mxu0 0.0
        %4474 = vmatprep.subr.mxu0 0.0
        %4475 = vmatpush1.xpose.msra.mxu0 0.0
        %4476 = vmatprep.subr.mxu0 0.0
        %4477 = vmatpush1.xpose.msra.mxu0 0.0
        %4478 = vmatprep.subr.mxu0 0.0
        %4479 = vmatpush1.xpose.msra.mxu0 0.0
        %4480 = vmatprep.subr.mxu0 0.0
        %4481 = vmatpush1.xpose.msra.mxu0 0.0
        %4482 = vmatprep.subr.mxu0 0.0
        %4483 = vmatpush1.xpose.msra.mxu0 0.0
        %4484 = vmatprep.subr.mxu0 0.0
        %4485 = vmatpush1.xpose.msra.mxu0 0.0
        %4486 = vmatprep.subr.mxu0 0.0
        %4487 = vmatpush1.xpose.msra.mxu0 0.0
        %4488 = vmatprep.subr.mxu0 0.0
        %4489 = vmatpush1.xpose.msra.mxu0 0.0
        %4490 = vmatprep.subr.mxu0 0.0
        %4491 = vmatpush1.xpose.msra.mxu0 0.0
        %4492 = vmatprep.subr.mxu0 0.0
        %4493 = vmatpush1.xpose.msra.mxu0 0.0
        %4494 = vmatprep.subr.mxu0 0.0
        %4495 = vmatpush1.xpose.msra.mxu0 0.0
        %4496 = vmatprep.subr.mxu0 0.0
        %4497 = vmatpush1.xpose.msra.mxu0 0.0
        %4498 = vmatprep.subr.mxu0 0.0
        %4499 = vmatpush1.xpose.msra.mxu0 0.0
        %4500 = vmatprep.subr.mxu0 0.0
        %4501 = vmatpush1.xpose.msra.mxu0 0.0
        %4502 = vmatprep.subr.mxu0 0.0
        %4503 = vmatpush1.xpose.msra.mxu0 0.0
        %4504 = vmatprep.subr.mxu0 0.0
        %4505 = vmatpush1.xpose.msra.mxu0 0.0
        %4506 = vmatprep.subr.mxu0 0.0
        %4507 = vmatpush1.xpose.msra.mxu0 0.0
        %4508 = vmatprep.subr.mxu0 0.0
        %4509 = vmatpush1.xpose.msra.mxu0 0.0
        %4510 = vmatprep.subr.mxu0 0.0
        %4511 = vmatpush1.xpose.msra.mxu0 0.0
        %4512 = vmatprep.subr.mxu0 0.0
        %4513 = vmatpush1.xpose.msra.mxu0 0.0
        %4514 = vmatprep.subr.mxu0 0.0
        %4515 = vmatpush1.xpose.msra.mxu0 0.0
        %4516 = vmatprep.subr.mxu0 0.0
        %4517 = vmatpush1.xpose.msra.mxu0 0.0
        %4518 = vmatprep.mubr.f32.mxu0 0.0
        %4519 = vmatmul.mubr.f32.gmra.mrb[0].mxu0 %v4450
        %v4520 = vpop.f32.mrb[0].mxu0
        %v4521 = vadd.f32 0.0, %v4520
        %v4522 = vpop.f32.mrb[0].mxu0
        %4523 = vdwg.mxu0
        %v4524 = vmul.f32 %v4290, 0.17677669
        %v4525 = vmul.f32 %v4367, 0.17677669
        %v4526 = vmul.f32 %v4444, 0.17677669
        %v4527 = vmul.f32 %v4521, 0.17677669
        %v4528 = vsel %vm859, %v4524, -inf
        %4529 = vmax.xlane.f32.xlu0 %v4528
        %v4530 = vpop.xlane.xlu0 %4529
        %v4531 = vsel %vm859, %v4525, -inf
        %4532 = vmax.xlane.f32.xlu0 %v4531
        %v4533 = vpop.xlane.xlu0 %4532
        %v4534 = vsel %vm859, %v4526, -inf
        %4535 = vmax.xlane.f32.xlu0 %v4534
        %v4536 = vpop.xlane.xlu0 %4535
        %v4537 = vsel %vm859, %v4527, -inf
        %4538 = vmax.xlane.f32.xlu0 %v4537
        %v4539 = vpop.xlane.xlu0 %4538
        %v4540 = vsub.f32 %v4524, %v4530
        %v4541 = vsub.f32 %v4525, %v4533
        %v4542 = vsub.f32 %v4526, %v4536
        %v4543 = vsub.f32 %v4527, %v4539
        %v4544 = vmul.f32 %v4540, 1.442695
        %v4545 = vpow.pop %v4544
        %v4546 = vmul.f32 %v4541, 1.442695
        %v4547 = vpow.pop %v4546
        %v4548 = vmul.f32 %v4542, 1.442695
        %v4549 = vpow.pop %v4548
        %v4550 = vmul.f32 %v4543, 1.442695
        %v4551 = vpow.pop %v4550
        %v4552 = vsel %vm859, %v4545, 0.0
        %4553 = vadd.xlane.f32.xlu0 %v4552
        %v4554 = vpop.xlane.xlu0 %4553
        %v4555 = vsel %vm859, %v4547, 0.0
        %4556 = vadd.xlane.f32.xlu0 %v4555
        %v4557 = vpop.xlane.xlu0 %4556
        %v4558 = vsel %vm859, %v4549, 0.0
        %4559 = vadd.xlane.f32.xlu0 %v4558
        %v4560 = vpop.xlane.xlu0 %4559
        %v4561 = vsel %vm859, %v4551, 0.0
        %4562 = vadd.xlane.f32.xlu0 %v4561
        %v4563 = vpop.xlane.xlu0 %4562
        %v4564 = vrcp.pop %v4554
        %v4565 = vmul.f32 %v4545, %v4564
        %v4566 = vrcp.pop %v4557
        %v4567 = vmul.f32 %v4547, %v4566
        %v4568 = vrcp.pop %v4560
        %v4569 = vmul.f32 %v4549, %v4568
        %v4570 = vrcp.pop %v4563
        %v4571 = vmul.f32 %v4551, %v4570
        %4572 = vrot.lane.b32.xlu0 %v4212, 64
        %v4573 = vpop.permute.xlu0 %4572
        %v4575 = vsel %vm904, %v4565, 0
        %v4577 = vsel %vm908, %v4573, 0
        %4579 = vmatprep.subr.mxu0 0.0
        %4580 = vmatpush1.msra.mxu0 %v4577
        %4581 = vmatprep.subr.mxu0 0.0
        %4582 = vmatpush1.msra.mxu0 0.0
        %4583 = vmatprep.subr.mxu0 0.0
        %4584 = vmatpush1.msra.mxu0 0.0
        %4585 = vmatprep.subr.mxu0 0.0
        %4586 = vmatpush1.msra.mxu0 0.0
        %4587 = vmatprep.subr.mxu0 0.0
        %4588 = vmatpush1.msra.mxu0 0.0
        %4589 = vmatprep.subr.mxu0 0.0
        %4590 = vmatpush1.msra.mxu0 0.0
        %4591 = vmatprep.subr.mxu0 0.0
        %4592 = vmatpush1.msra.mxu0 0.0
        %4593 = vmatprep.subr.mxu0 0.0
        %4594 = vmatpush1.msra.mxu0 0.0
        %4595 = vmatprep.subr.mxu0 0.0
        %4596 = vmatpush1.msra.mxu0 0.0
        %4597 = vmatprep.subr.mxu0 0.0
        %4598 = vmatpush1.msra.mxu0 0.0
        %4599 = vmatprep.subr.mxu0 0.0
        %4600 = vmatpush1.msra.mxu0 0.0
        %4601 = vmatprep.subr.mxu0 0.0
        %4602 = vmatpush1.msra.mxu0 0.0
        %4603 = vmatprep.subr.mxu0 0.0
        %4604 = vmatpush1.msra.mxu0 0.0
        %4605 = vmatprep.subr.mxu0 0.0
        %4606 = vmatpush1.msra.mxu0 0.0
        %4607 = vmatprep.subr.mxu0 0.0
        %4608 = vmatpush1.msra.mxu0 0.0
        %4609 = vmatprep.subr.mxu0 0.0
        %4610 = vmatpush1.msra.mxu0 0.0
        %4611 = vmatprep.subr.mxu0 0.0
        %4612 = vmatpush1.msra.mxu0 0.0
        %4613 = vmatprep.subr.mxu0 0.0
        %4614 = vmatpush1.msra.mxu0 0.0
        %4615 = vmatprep.subr.mxu0 0.0
        %4616 = vmatpush1.msra.mxu0 0.0
        %4617 = vmatprep.subr.mxu0 0.0
        %4618 = vmatpush1.msra.mxu0 0.0
        %4619 = vmatprep.subr.mxu0 0.0
        %4620 = vmatpush1.msra.mxu0 0.0
        %4621 = vmatprep.subr.mxu0 0.0
        %4622 = vmatpush1.msra.mxu0 0.0
        %4623 = vmatprep.subr.mxu0 0.0
        %4624 = vmatpush1.msra.mxu0 0.0
        %4625 = vmatprep.subr.mxu0 0.0
        %4626 = vmatpush1.msra.mxu0 0.0
        %4627 = vmatprep.subr.mxu0 0.0
        %4628 = vmatpush1.msra.mxu0 0.0
        %4629 = vmatprep.subr.mxu0 0.0
        %4630 = vmatpush1.msra.mxu0 0.0
        %4631 = vmatprep.subr.mxu0 0.0
        %4632 = vmatpush1.msra.mxu0 0.0
        %4633 = vmatprep.subr.mxu0 0.0
        %4634 = vmatpush1.msra.mxu0 0.0
        %4635 = vmatprep.subr.mxu0 0.0
        %4636 = vmatpush1.msra.mxu0 0.0
        %4637 = vmatprep.subr.mxu0 0.0
        %4638 = vmatpush1.msra.mxu0 0.0
        %4639 = vmatprep.subr.mxu0 0.0
        %4640 = vmatpush1.msra.mxu0 0.0
        %4641 = vmatprep.subr.mxu0 0.0
        %4642 = vmatpush1.msra.mxu0 0.0
        %4643 = vmatprep.mubr.f32.mxu0 0.0
        %4644 = vmatmul.mubr.f32.gmra.mrb[0].mxu0 %v4575
        %v4645 = vpop.f32.mrb[0].mxu0
        %v4646 = vadd.f32 0.0, %v4645
        %v4647 = vpop.f32.mrb[0].mxu0
        %4648 = vdwg.mxu0
        %4649 = vrot.lane.b32.xlu0 %v4213, 64
        %v4650 = vpop.permute.xlu0 %4649
        %v4652 = vsel %vm904, %v4567, 0
        %v4654 = vsel %vm908, %v4650, 0
        %4656 = vmatprep.subr.mxu0 0.0
        %4657 = vmatpush1.msra.mxu0 %v4654
        %4658 = vmatprep.subr.mxu0 0.0
        %4659 = vmatpush1.msra.mxu0 0.0
        %4660 = vmatprep.subr.mxu0 0.0
        %4661 = vmatpush1.msra.mxu0 0.0
        %4662 = vmatprep.subr.mxu0 0.0
        %4663 = vmatpush1.msra.mxu0 0.0
        %4664 = vmatprep.subr.mxu0 0.0
        %4665 = vmatpush1.msra.mxu0 0.0
        %4666 = vmatprep.subr.mxu0 0.0
        %4667 = vmatpush1.msra.mxu0 0.0
        %4668 = vmatprep.subr.mxu0 0.0
        %4669 = vmatpush1.msra.mxu0 0.0
        %4670 = vmatprep.subr.mxu0 0.0
        %4671 = vmatpush1.msra.mxu0 0.0
        %4672 = vmatprep.subr.mxu0 0.0
        %4673 = vmatpush1.msra.mxu0 0.0
        %4674 = vmatprep.subr.mxu0 0.0
        %4675 = vmatpush1.msra.mxu0 0.0
        %4676 = vmatprep.subr.mxu0 0.0
        %4677 = vmatpush1.msra.mxu0 0.0
        %4678 = vmatprep.subr.mxu0 0.0
        %4679 = vmatpush1.msra.mxu0 0.0
        %4680 = vmatprep.subr.mxu0 0.0
        %4681 = vmatpush1.msra.mxu0 0.0
        %4682 = vmatprep.subr.mxu0 0.0
        %4683 = vmatpush1.msra.mxu0 0.0
        %4684 = vmatprep.subr.mxu0 0.0
        %4685 = vmatpush1.msra.mxu0 0.0
        %4686 = vmatprep.subr.mxu0 0.0
        %4687 = vmatpush1.msra.mxu0 0.0
        %4688 = vmatprep.subr.mxu0 0.0
        %4689 = vmatpush1.msra.mxu0 0.0
        %4690 = vmatprep.subr.mxu0 0.0
        %4691 = vmatpush1.msra.mxu0 0.0
        %4692 = vmatprep.subr.mxu0 0.0
        %4693 = vmatpush1.msra.mxu0 0.0
        %4694 = vmatprep.subr.mxu0 0.0
        %4695 = vmatpush1.msra.mxu0 0.0
        %4696 = vmatprep.subr.mxu0 0.0
        %4697 = vmatpush1.msra.mxu0 0.0
        %4698 = vmatprep.subr.mxu0 0.0
        %4699 = vmatpush1.msra.mxu0 0.0
        %4700 = vmatprep.subr.mxu0 0.0
        %4701 = vmatpush1.msra.mxu0 0.0
        %4702 = vmatprep.subr.mxu0 0.0
        %4703 = vmatpush1.msra.mxu0 0.0
        %4704 = vmatprep.subr.mxu0 0.0
        %4705 = vmatpush1.msra.mxu0 0.0
        %4706 = vmatprep.subr.mxu0 0.0
        %4707 = vmatpush1.msra.mxu0 0.0
        %4708 = vmatprep.subr.mxu0 0.0
        %4709 = vmatpush1.msra.mxu0 0.0
        %4710 = vmatprep.subr.mxu0 0.0
        %4711 = vmatpush1.msra.mxu0 0.0
        %4712 = vmatprep.subr.mxu0 0.0
        %4713 = vmatpush1.msra.mxu0 0.0
        %4714 = vmatprep.subr.mxu0 0.0
        %4715 = vmatpush1.msra.mxu0 0.0
        %4716 = vmatprep.subr.mxu0 0.0
        %4717 = vmatpush1.msra.mxu0 0.0
        %4718 = vmatprep.subr.mxu0 0.0
        %4719 = vmatpush1.msra.mxu0 0.0
        %4720 = vmatprep.mubr.f32.mxu0 0.0
        %4721 = vmatmul.mubr.f32.gmra.mrb[0].mxu0 %v4652
        %v4722 = vpop.f32.mrb[0].mxu0
        %v4723 = vadd.f32 0.0, %v4722
        %v4724 = vpop.f32.mrb[0].mxu0
        %4725 = vdwg.mxu0
        %4726 = vrot.lane.b32.xlu0 %v4214, 64
        %v4727 = vpop.permute.xlu0 %4726
        %v4729 = vsel %vm904, %v4569, 0
        %v4731 = vsel %vm908, %v4727, 0
        %4733 = vmatprep.subr.mxu0 0.0
        %4734 = vmatpush1.msra.mxu0 %v4731
        %4735 = vmatprep.subr.mxu0 0.0
        %4736 = vmatpush1.msra.mxu0 0.0
        %4737 = vmatprep.subr.mxu0 0.0
        %4738 = vmatpush1.msra.mxu0 0.0
        %4739 = vmatprep.subr.mxu0 0.0
        %4740 = vmatpush1.msra.mxu0 0.0
        %4741 = vmatprep.subr.mxu0 0.0
        %4742 = vmatpush1.msra.mxu0 0.0
        %4743 = vmatprep.subr.mxu0 0.0
        %4744 = vmatpush1.msra.mxu0 0.0
        %4745 = vmatprep.subr.mxu0 0.0
        %4746 = vmatpush1.msra.mxu0 0.0
        %4747 = vmatprep.subr.mxu0 0.0
        %4748 = vmatpush1.msra.mxu0 0.0
        %4749 = vmatprep.subr.mxu0 0.0
        %4750 = vmatpush1.msra.mxu0 0.0
        %4751 = vmatprep.subr.mxu0 0.0
        %4752 = vmatpush1.msra.mxu0 0.0
        %4753 = vmatprep.subr.mxu0 0.0
        %4754 = vmatpush1.msra.mxu0 0.0
        %4755 = vmatprep.subr.mxu0 0.0
        %4756 = vmatpush1.msra.mxu0 0.0
        %4757 = vmatprep.subr.mxu0 0.0
        %4758 = vmatpush1.msra.mxu0 0.0
        %4759 = vmatprep.subr.mxu0 0.0
        %4760 = vmatpush1.msra.mxu0 0.0
        %4761 = vmatprep.subr.mxu0 0.0
        %4762 = vmatpush1.msra.mxu0 0.0
        %4763 = vmatprep.subr.mxu0 0.0
        %4764 = vmatpush1.msra.mxu0 0.0
        %4765 = vmatprep.subr.mxu0 0.0
        %4766 = vmatpush1.msra.mxu0 0.0
        %4767 = vmatprep.subr.mxu0 0.0
        %4768 = vmatpush1.msra.mxu0 0.0
        %4769 = vmatprep.subr.mxu0 0.0
        %4770 = vmatpush1.msra.mxu0 0.0
        %4771 = vmatprep.subr.mxu0 0.0
        %4772 = vmatpush1.msra.mxu0 0.0
        %4773 = vmatprep.subr.mxu0 0.0
        %4774 = vmatpush1.msra.mxu0 0.0
        %4775 = vmatprep.subr.mxu0 0.0
        %4776 = vmatpush1.msra.mxu0 0.0
        %4777 = vmatprep.subr.mxu0 0.0
        %4778 = vmatpush1.msra.mxu0 0.0
        %4779 = vmatprep.subr.mxu0 0.0
        %4780 = vmatpush1.msra.mxu0 0.0
        %4781 = vmatprep.subr.mxu0 0.0
        %4782 = vmatpush1.msra.mxu0 0.0
        %4783 = vmatprep.subr.mxu0 0.0
        %4784 = vmatpush1.msra.mxu0 0.0
        %4785 = vmatprep.subr.mxu0 0.0
        %4786 = vmatpush1.msra.mxu0 0.0
        %4787 = vmatprep.subr.mxu0 0.0
        %4788 = vmatpush1.msra.mxu0 0.0
        %4789 = vmatprep.subr.mxu0 0.0
        %4790 = vmatpush1.msra.mxu0 0.0
        %4791 = vmatprep.subr.mxu0 0.0
        %4792 = vmatpush1.msra.mxu0 0.0
        %4793 = vmatprep.subr.mxu0 0.0
        %4794 = vmatpush1.msra.mxu0 0.0
        %4795 = vmatprep.subr.mxu0 0.0
        %4796 = vmatpush1.msra.mxu0 0.0
        %4797 = vmatprep.mubr.f32.mxu0 0.0
        %4798 = vmatmul.mubr.f32.gmra.mrb[0].mxu0 %v4729
        %v4799 = vpop.f32.mrb[0].mxu0
        %v4800 = vadd.f32 0.0, %v4799
        %v4801 = vpop.f32.mrb[0].mxu0
        %4802 = vdwg.mxu0
        %4803 = vrot.lane.b32.xlu0 %v4215, 64
        %v4804 = vpop.permute.xlu0 %4803
        %v4806 = vsel %vm904, %v4571, 0
        %v4808 = vsel %vm908, %v4804, 0
        %4810 = vmatprep.subr.mxu0 0.0
        %4811 = vmatpush1.msra.mxu0 %v4808
        %4812 = vmatprep.subr.mxu0 0.0
        %4813 = vmatpush1.msra.mxu0 0.0
        %4814 = vmatprep.subr.mxu0 0.0
        %4815 = vmatpush1.msra.mxu0 0.0
        %4816 = vmatprep.subr.mxu0 0.0
        %4817 = vmatpush1.msra.mxu0 0.0
        %4818 = vmatprep.subr.mxu0 0.0
        %4819 = vmatpush1.msra.mxu0 0.0
        %4820 = vmatprep.subr.mxu0 0.0
        %4821 = vmatpush1.msra.mxu0 0.0
        %4822 = vmatprep.subr.mxu0 0.0
        %4823 = vmatpush1.msra.mxu0 0.0
        %4824 = vmatprep.subr.mxu0 0.0
        %4825 = vmatpush1.msra.mxu0 0.0
        %4826 = vmatprep.subr.mxu0 0.0
        %4827 = vmatpush1.msra.mxu0 0.0
        %4828 = vmatprep.subr.mxu0 0.0
        %4829 = vmatpush1.msra.mxu0 0.0
        %4830 = vmatprep.subr.mxu0 0.0
        %4831 = vmatpush1.msra.mxu0 0.0
        %4832 = vmatprep.subr.mxu0 0.0
        %4833 = vmatpush1.msra.mxu0 0.0
        %4834 = vmatprep.subr.mxu0 0.0
        %4835 = vmatpush1.msra.mxu0 0.0
        %4836 = vmatprep.subr.mxu0 0.0
        %4837 = vmatpush1.msra.mxu0 0.0
        %4838 = vmatprep.subr.mxu0 0.0
        %4839 = vmatpush1.msra.mxu0 0.0
        %4840 = vmatprep.subr.mxu0 0.0
        %4841 = vmatpush1.msra.mxu0 0.0
        %4842 = vmatprep.subr.mxu0 0.0
        %4843 = vmatpush1.msra.mxu0 0.0
        %4844 = vmatprep.subr.mxu0 0.0
        %4845 = vmatpush1.msra.mxu0 0.0
        %4846 = vmatprep.subr.mxu0 0.0
        %4847 = vmatpush1.msra.mxu0 0.0
        %4848 = vmatprep.subr.mxu0 0.0
        %4849 = vmatpush1.msra.mxu0 0.0
        %4850 = vmatprep.subr.mxu0 0.0
        %4851 = vmatpush1.msra.mxu0 0.0
        %4852 = vmatprep.subr.mxu0 0.0
        %4853 = vmatpush1.msra.mxu0 0.0
        %4854 = vmatprep.subr.mxu0 0.0
        %4855 = vmatpush1.msra.mxu0 0.0
        %4856 = vmatprep.subr.mxu0 0.0
        %4857 = vmatpush1.msra.mxu0 0.0
        %4858 = vmatprep.subr.mxu0 0.0
        %4859 = vmatpush1.msra.mxu0 0.0
        %4860 = vmatprep.subr.mxu0 0.0
        %4861 = vmatpush1.msra.mxu0 0.0
        %4862 = vmatprep.subr.mxu0 0.0
        %4863 = vmatpush1.msra.mxu0 0.0
        %4864 = vmatprep.subr.mxu0 0.0
        %4865 = vmatpush1.msra.mxu0 0.0
        %4866 = vmatprep.subr.mxu0 0.0
        %4867 = vmatpush1.msra.mxu0 0.0
        %4868 = vmatprep.subr.mxu0 0.0
        %4869 = vmatpush1.msra.mxu0 0.0
        %4870 = vmatprep.subr.mxu0 0.0
        %4871 = vmatpush1.msra.mxu0 0.0
        %4872 = vmatprep.subr.mxu0 0.0
        %4873 = vmatpush1.msra.mxu0 0.0
        %4874 = vmatprep.mubr.f32.mxu0 0.0
        %4875 = vmatmul.mubr.f32.gmra.mrb[0].mxu0 %v4806
        %v4876 = vpop.f32.mrb[0].mxu0
        %v4877 = vadd.f32 0.0, %v4876
        %v4878 = vpop.f32.mrb[0].mxu0
        %4879 = vdwg.mxu0
        %v4880 = vpack.c.bf16 %v4646, %v4646
        %v4881 = vpack.c.bf16 %v4723, %v4723
        %v4882 = vpack.c.bf16 %v4800, %v4800
        %v4883 = vpack.c.bf16 %v4877, %v4877
        %v4888 = vunpack.c.l.b16 %v3538
        %v4889 = vunpack.c.l.b16 %v3539
        %v4890 = vunpack.c.l.b16 %v3540
        %v4891 = vunpack.c.l.b16 %v3541
        %v4892 = vpack.c.b16 %v4889, %v4888
        %v4893 = vpack.c.b16 %v4891, %v4890
        %v4897 = vsel %vm330, %v4880, 0
        %4899 = vmatprep.subr.bf16.mxu0 0
        %4900 = vmatpush1.bf16.msra.mxu0 %v4892
        %4901 = vmatprep.subr.bf16.mxu0 0
        %4902 = vmatpush1.bf16.msra.mxu0 %v4893
        %4903 = vmatprep.subr.bf16.mxu0 0
        %4904 = vmatpush1.bf16.msra.mxu0 0
        %4905 = vmatprep.subr.bf16.mxu0 0
        %4906 = vmatpush1.bf16.msra.mxu0 0
        %4907 = vmatprep.subr.bf16.mxu0 0
        %4908 = vmatpush1.bf16.msra.mxu0 0
        %4909 = vmatprep.subr.bf16.mxu0 0
        %4910 = vmatpush1.bf16.msra.mxu0 0
        %4911 = vmatprep.subr.bf16.mxu0 0
        %4912 = vmatpush1.bf16.msra.mxu0 0
        %4913 = vmatprep.subr.bf16.mxu0 0
        %4914 = vmatpush1.bf16.msra.mxu0 0
        %4915 = vmatprep.subr.bf16.mxu0 0
        %4916 = vmatpush1.bf16.msra.mxu0 0
        %4917 = vmatprep.subr.bf16.mxu0 0
        %4918 = vmatpush1.bf16.msra.mxu0 0
        %4919 = vmatprep.subr.bf16.mxu0 0
        %4920 = vmatpush1.bf16.msra.mxu0 0
        %4921 = vmatprep.subr.bf16.mxu0 0
        %4922 = vmatpush1.bf16.msra.mxu0 0
        %4923 = vmatprep.subr.bf16.mxu0 0
        %4924 = vmatpush1.bf16.msra.mxu0 0
        %4925 = vmatprep.subr.bf16.mxu0 0
        %4926 = vmatpush1.bf16.msra.mxu0 0
        %4927 = vmatprep.subr.bf16.mxu0 0
        %4928 = vmatpush1.bf16.msra.mxu0 0
        %4929 = vmatprep.subr.bf16.mxu0 0
        %4930 = vmatpush1.bf16.msra.mxu0 0
        %4931 = vmatprep.mubr.bf16.mxu0 0
        %4932 = vmatmul.mubr.bf16.gmra.mrb[0].mxu0 %v4897
        %v4933 = vpop.f32.mrb[0].mxu0
        %v4934 = vadd.f32 0.0, %v4933
        %v4935 = vpop.f32.mrb[0].mxu0
        %v4936 = vpop.f32.mrb[0].mxu0
        %v4937 = vpop.f32.mrb[0].mxu0
        %4938 = vdwg.mxu0
        %v4940 = vsel %vm330, %v4881, 0
        %4942 = vmatprep.subr.bf16.mxu0 0
        %4943 = vmatpush1.bf16.msra.mxu0 %v4892
        %4944 = vmatprep.subr.bf16.mxu0 0
        %4945 = vmatpush1.bf16.msra.mxu0 %v4893
        %4946 = vmatprep.subr.bf16.mxu0 0
        %4947 = vmatpush1.bf16.msra.mxu0 0
        %4948 = vmatprep.subr.bf16.mxu0 0
        %4949 = vmatpush1.bf16.msra.mxu0 0
        %4950 = vmatprep.subr.bf16.mxu0 0
        %4951 = vmatpush1.bf16.msra.mxu0 0
        %4952 = vmatprep.subr.bf16.mxu0 0
        %4953 = vmatpush1.bf16.msra.mxu0 0
        %4954 = vmatprep.subr.bf16.mxu0 0
        %4955 = vmatpush1.bf16.msra.mxu0 0
        %4956 = vmatprep.subr.bf16.mxu0 0
        %4957 = vmatpush1.bf16.msra.mxu0 0
        %4958 = vmatprep.subr.bf16.mxu0 0
        %4959 = vmatpush1.bf16.msra.mxu0 0
        %4960 = vmatprep.subr.bf16.mxu0 0
        %4961 = vmatpush1.bf16.msra.mxu0 0
        %4962 = vmatprep.subr.bf16.mxu0 0
        %4963 = vmatpush1.bf16.msra.mxu0 0
        %4964 = vmatprep.subr.bf16.mxu0 0
        %4965 = vmatpush1.bf16.msra.mxu0 0
        %4966 = vmatprep.subr.bf16.mxu0 0
        %4967 = vmatpush1.bf16.msra.mxu0 0
        %4968 = vmatprep.subr.bf16.mxu0 0
        %4969 = vmatpush1.bf16.msra.mxu0 0
        %4970 = vmatprep.subr.bf16.mxu0 0
        %4971 = vmatpush1.bf16.msra.mxu0 0
        %4972 = vmatprep.subr.bf16.mxu0 0
        %4973 = vmatpush1.bf16.msra.mxu0 0
        %4974 = vmatprep.mubr.bf16.mxu0 0
        %4975 = vmatmul.mubr.bf16.gmra.mrb[0].mxu0 %v4940
        %v4976 = vpop.f32.mrb[0].mxu0
        %v4977 = vadd.f32 0.0, %v4976
        %v4978 = vpop.f32.mrb[0].mxu0
        %v4979 = vpop.f32.mrb[0].mxu0
        %v4980 = vpop.f32.mrb[0].mxu0
        %4981 = vdwg.mxu0
        %v4983 = vsel %vm330, %v4882, 0
        %4985 = vmatprep.subr.bf16.mxu0 0
        %4986 = vmatpush1.bf16.msra.mxu0 %v4892
        %4987 = vmatprep.subr.bf16.mxu0 0
        %4988 = vmatpush1.bf16.msra.mxu0 %v4893
        %4989 = vmatprep.subr.bf16.mxu0 0
        %4990 = vmatpush1.bf16.msra.mxu0 0
        %4991 = vmatprep.subr.bf16.mxu0 0
        %4992 = vmatpush1.bf16.msra.mxu0 0
        %4993 = vmatprep.subr.bf16.mxu0 0
        %4994 = vmatpush1.bf16.msra.mxu0 0
        %4995 = vmatprep.subr.bf16.mxu0 0
        %4996 = vmatpush1.bf16.msra.mxu0 0
        %4997 = vmatprep.subr.bf16.mxu0 0
        %4998 = vmatpush1.bf16.msra.mxu0 0
        %4999 = vmatprep.subr.bf16.mxu0 0
        %5000 = vmatpush1.bf16.msra.mxu0 0
        %5001 = vmatprep.subr.bf16.mxu0 0
        %5002 = vmatpush1.bf16.msra.mxu0 0
        %5003 = vmatprep.subr.bf16.mxu0 0
        %5004 = vmatpush1.bf16.msra.mxu0 0
        %5005 = vmatprep.subr.bf16.mxu0 0
        %5006 = vmatpush1.bf16.msra.mxu0 0
        %5007 = vmatprep.subr.bf16.mxu0 0
        %5008 = vmatpush1.bf16.msra.mxu0 0
        %5009 = vmatprep.subr.bf16.mxu0 0
        %5010 = vmatpush1.bf16.msra.mxu0 0
        %5011 = vmatprep.subr.bf16.mxu0 0
        %5012 = vmatpush1.bf16.msra.mxu0 0
        %5013 = vmatprep.subr.bf16.mxu0 0
        %5014 = vmatpush1.bf16.msra.mxu0 0
        %5015 = vmatprep.subr.bf16.mxu0 0
        %5016 = vmatpush1.bf16.msra.mxu0 0
        %5017 = vmatprep.mubr.bf16.mxu0 0
        %5018 = vmatmul.mubr.bf16.gmra.mrb[0].mxu0 %v4983
        %v5019 = vpop.f32.mrb[0].mxu0
        %v5020 = vadd.f32 0.0, %v5019
        %v5021 = vpop.f32.mrb[0].mxu0
        %v5022 = vpop.f32.mrb[0].mxu0
        %v5023 = vpop.f32.mrb[0].mxu0
        %5024 = vdwg.mxu0
        %v5026 = vsel %vm330, %v4883, 0
        %5028 = vmatprep.subr.bf16.mxu0 0
        %5029 = vmatpush1.bf16.msra.mxu0 %v4892
        %5030 = vmatprep.subr.bf16.mxu0 0
        %5031 = vmatpush1.bf16.msra.mxu0 %v4893
        %5032 = vmatprep.subr.bf16.mxu0 0
        %5033 = vmatpush1.bf16.msra.mxu0 0
        %5034 = vmatprep.subr.bf16.mxu0 0
        %5035 = vmatpush1.bf16.msra.mxu0 0
        %5036 = vmatprep.subr.bf16.mxu0 0
        %5037 = vmatpush1.bf16.msra.mxu0 0
        %5038 = vmatprep.subr.bf16.mxu0 0
        %5039 = vmatpush1.bf16.msra.mxu0 0
        %5040 = vmatprep.subr.bf16.mxu0 0
        %5041 = vmatpush1.bf16.msra.mxu0 0
        %5042 = vmatprep.subr.bf16.mxu0 0
        %5043 = vmatpush1.bf16.msra.mxu0 0
        %5044 = vmatprep.subr.bf16.mxu0 0
        %5045 = vmatpush1.bf16.msra.mxu0 0
        %5046 = vmatprep.subr.bf16.mxu0 0
        %5047 = vmatpush1.bf16.msra.mxu0 0
        %5048 = vmatprep.subr.bf16.mxu0 0
        %5049 = vmatpush1.bf16.msra.mxu0 0
        %5050 = vmatprep.subr.bf16.mxu0 0
        %5051 = vmatpush1.bf16.msra.mxu0 0
        %5052 = vmatprep.subr.bf16.mxu0 0
        %5053 = vmatpush1.bf16.msra.mxu0 0
        %5054 = vmatprep.subr.bf16.mxu0 0
        %5055 = vmatpush1.bf16.msra.mxu0 0
        %5056 = vmatprep.subr.bf16.mxu0 0
        %5057 = vmatpush1.bf16.msra.mxu0 0
        %5058 = vmatprep.subr.bf16.mxu0 0
        %5059 = vmatpush1.bf16.msra.mxu0 0
        %5060 = vmatprep.mubr.bf16.mxu0 0
        %5061 = vmatmul.mubr.bf16.gmra.mrb[0].mxu0 %v5026
        %v5062 = vpop.f32.mrb[0].mxu0
        %v5063 = vadd.f32 0.0, %v5062
        %v5064 = vpop.f32.mrb[0].mxu0
        %v5065 = vpop.f32.mrb[0].mxu0
        %v5066 = vpop.f32.mrb[0].mxu0
        %5067 = vdwg.mxu0
        %v5068 = vadd.f32 %v3521, %v4934
        %v5069 = vadd.f32 %v3522, %v4977
        %v5070 = vadd.f32 %v3523, %v5020
        %v5071 = vadd.f32 %v3524, %v5063
        %v5072 = vlaneseq
        %v5073 = vshrl.u32 %v5072, 7
        %v5074 = vsub.s32 0, %v5073
        %v5075 = vrot.slane %v308, %v5074
        %v5076 = vadd.f32 %v5068, %v5075
        %v5077 = vadd.f32 %v5069, %v5075
        %v5078 = vadd.f32 %v5070, %v5075
        %v5079 = vadd.f32 %v5071, %v5075
        %v5084 = vrot.slane %v302, 7
        %v5085 = vrot.slane %v303, 7
        %v5086 = vrot.slane %v304, 7
        %v5087 = vrot.slane %v305, 7
        %v5096 = vrot.slane %v5076, 7
        %v5097 = vrot.slane %v5077, 7
        %v5098 = vrot.slane %v5078, 7
        %v5099 = vrot.slane %v5079, 7
        %v5104 = vsel %vm2247, %v5084, %v5096
        %v5105 = vsel %vm2247, %v5085, %v5097
        %v5106 = vsel %vm2247, %v5086, %v5098
        %v5107 = vsel %vm2247, %v5087, %v5099
        %s5108 = scalar_lea.vmem [#allocation7], 32
        %v5109 = vld [vmem:[%s5108] sm:$0xf]
        %v5110 = vld [vmem:[%s5108 + $0x4] sm:$0xf]
        %v5111 = vld [vmem:[%s5108 + $0x8] sm:$0xf]
        %v5112 = vld [vmem:[%s5108 + $0xc] sm:$0xf]
        %v5113 = vpack.c.bf16 %v5104, %v5104
        %v5114 = vpack.c.bf16 %v5105, %v5105
        %v5115 = vpack.c.bf16 %v5106, %v5106
        %v5116 = vpack.c.bf16 %v5107, %v5107
        %v5121 = vunpack.c.l.b16 %v5109
        %v5122 = vunpack.c.l.b16 %v5110
        %v5123 = vunpack.c.l.b16 %v5111
        %v5124 = vunpack.c.l.b16 %v5112
        %v5125 = vpack.c.b16 %v5122, %v5121
        %v5126 = vpack.c.b16 %v5124, %v5123
        %v5130 = vsel %vm330, %v5113, 0
        %5132 = vmatprep.subr.bf16.mxu0 0
        %5133 = vmatpush1.bf16.msra.mxu0 %v5125
        %5134 = vmatprep.subr.bf16.mxu0 0
        %5135 = vmatpush1.bf16.msra.mxu0 %v5126
        %5136 = vmatprep.subr.bf16.mxu0 0
        %5137 = vmatpush1.bf16.msra.mxu0 0
        %5138 = vmatprep.subr.bf16.mxu0 0
        %5139 = vmatpush1.bf16.msra.mxu0 0
        %5140 = vmatprep.subr.bf16.mxu0 0
        %5141 = vmatpush1.bf16.msra.mxu0 0
        %5142 = vmatprep.subr.bf16.mxu0 0
        %5143 = vmatpush1.bf16.msra.mxu0 0
        %5144 = vmatprep.subr.bf16.mxu0 0
        %5145 = vmatpush1.bf16.msra.mxu0 0
        %5146 = vmatprep.subr.bf16.mxu0 0
        %5147 = vmatpush1.bf16.msra.mxu0 0
        %5148 = vmatprep.subr.bf16.mxu0 0
        %5149 = vmatpush1.bf16.msra.mxu0 0
        %5150 = vmatprep.subr.bf16.mxu0 0
        %5151 = vmatpush1.bf16.msra.mxu0 0
        %5152 = vmatprep.subr.bf16.mxu0 0
        %5153 = vmatpush1.bf16.msra.mxu0 0
        %5154 = vmatprep.subr.bf16.mxu0 0
        %5155 = vmatpush1.bf16.msra.mxu0 0
        %5156 = vmatprep.subr.bf16.mxu0 0
        %5157 = vmatpush1.bf16.msra.mxu0 0
        %5158 = vmatprep.subr.bf16.mxu0 0
        %5159 = vmatpush1.bf16.msra.mxu0 0
        %5160 = vmatprep.subr.bf16.mxu0 0
        %5161 = vmatpush1.bf16.msra.mxu0 0
        %5162 = vmatprep.subr.bf16.mxu0 0
        %5163 = vmatpush1.bf16.msra.mxu0 0
        %5164 = vmatprep.mubr.bf16.mxu0 0
        %5165 = vmatmul.mubr.bf16.gmra.mrb[0].mxu0 %v5130
        %v5166 = vpop.f32.mrb[0].mxu0
        %v5167 = vadd.f32 0.0, %v5166
        %v5168 = vpop.f32.mrb[0].mxu0
        %v5169 = vpop.f32.mrb[0].mxu0
        %v5170 = vpop.f32.mrb[0].mxu0
        %5171 = vdwg.mxu0
        %v5173 = vsel %vm330, %v5114, 0
        %5175 = vmatprep.subr.bf16.mxu0 0
        %5176 = vmatpush1.bf16.msra.mxu0 %v5125
        %5177 = vmatprep.subr.bf16.mxu0 0
        %5178 = vmatpush1.bf16.msra.mxu0 %v5126
        %5179 = vmatprep.subr.bf16.mxu0 0
        %5180 = vmatpush1.bf16.msra.mxu0 0
        %5181 = vmatprep.subr.bf16.mxu0 0
        %5182 = vmatpush1.bf16.msra.mxu0 0
        %5183 = vmatprep.subr.bf16.mxu0 0
        %5184 = vmatpush1.bf16.msra.mxu0 0
        %5185 = vmatprep.subr.bf16.mxu0 0
        %5186 = vmatpush1.bf16.msra.mxu0 0
        %5187 = vmatprep.subr.bf16.mxu0 0
        %5188 = vmatpush1.bf16.msra.mxu0 0
        %5189 = vmatprep.subr.bf16.mxu0 0
        %5190 = vmatpush1.bf16.msra.mxu0 0
        %5191 = vmatprep.subr.bf16.mxu0 0
        %5192 = vmatpush1.bf16.msra.mxu0 0
        %5193 = vmatprep.subr.bf16.mxu0 0
        %5194 = vmatpush1.bf16.msra.mxu0 0
        %5195 = vmatprep.subr.bf16.mxu0 0
        %5196 = vmatpush1.bf16.msra.mxu0 0
        %5197 = vmatprep.subr.bf16.mxu0 0
        %5198 = vmatpush1.bf16.msra.mxu0 0
        %5199 = vmatprep.subr.bf16.mxu0 0
        %5200 = vmatpush1.bf16.msra.mxu0 0
        %5201 = vmatprep.subr.bf16.mxu0 0
        %5202 = vmatpush1.bf16.msra.mxu0 0
        %5203 = vmatprep.subr.bf16.mxu0 0
        %5204 = vmatpush1.bf16.msra.mxu0 0
        %5205 = vmatprep.subr.bf16.mxu0 0
        %5206 = vmatpush1.bf16.msra.mxu0 0
        %5207 = vmatprep.mubr.bf16.mxu0 0
        %5208 = vmatmul.mubr.bf16.gmra.mrb[0].mxu0 %v5173
        %v5209 = vpop.f32.mrb[0].mxu0
        %v5210 = vadd.f32 0.0, %v5209
        %v5211 = vpop.f32.mrb[0].mxu0
        %v5212 = vpop.f32.mrb[0].mxu0
        %v5213 = vpop.f32.mrb[0].mxu0
        %5214 = vdwg.mxu0
        %v5216 = vsel %vm330, %v5115, 0
        %5218 = vmatprep.subr.bf16.mxu0 0
        %5219 = vmatpush1.bf16.msra.mxu0 %v5125
        %5220 = vmatprep.subr.bf16.mxu0 0
        %5221 = vmatpush1.bf16.msra.mxu0 %v5126
        %5222 = vmatprep.subr.bf16.mxu0 0
        %5223 = vmatpush1.bf16.msra.mxu0 0
        %5224 = vmatprep.subr.bf16.mxu0 0
        %5225 = vmatpush1.bf16.msra.mxu0 0
        %5226 = vmatprep.subr.bf16.mxu0 0
        %5227 = vmatpush1.bf16.msra.mxu0 0
        %5228 = vmatprep.subr.bf16.mxu0 0
        %5229 = vmatpush1.bf16.msra.mxu0 0
        %5230 = vmatprep.subr.bf16.mxu0 0
        %5231 = vmatpush1.bf16.msra.mxu0 0
        %5232 = vmatprep.subr.bf16.mxu0 0
        %5233 = vmatpush1.bf16.msra.mxu0 0
        %5234 = vmatprep.subr.bf16.mxu0 0
        %5235 = vmatpush1.bf16.msra.mxu0 0
        %5236 = vmatprep.subr.bf16.mxu0 0
        %5237 = vmatpush1.bf16.msra.mxu0 0
        %5238 = vmatprep.subr.bf16.mxu0 0
        %5239 = vmatpush1.bf16.msra.mxu0 0
        %5240 = vmatprep.subr.bf16.mxu0 0
        %5241 = vmatpush1.bf16.msra.mxu0 0
        %5242 = vmatprep.subr.bf16.mxu0 0
        %5243 = vmatpush1.bf16.msra.mxu0 0
        %5244 = vmatprep.subr.bf16.mxu0 0
        %5245 = vmatpush1.bf16.msra.mxu0 0
        %5246 = vmatprep.subr.bf16.mxu0 0
        %5247 = vmatpush1.bf16.msra.mxu0 0
        %5248 = vmatprep.subr.bf16.mxu0 0
        %5249 = vmatpush1.bf16.msra.mxu0 0
        %5250 = vmatprep.mubr.bf16.mxu0 0
        %5251 = vmatmul.mubr.bf16.gmra.mrb[0].mxu0 %v5216
        %v5252 = vpop.f32.mrb[0].mxu0
        %v5253 = vadd.f32 0.0, %v5252
        %v5254 = vpop.f32.mrb[0].mxu0
        %v5255 = vpop.f32.mrb[0].mxu0
        %v5256 = vpop.f32.mrb[0].mxu0
        %5257 = vdwg.mxu0
        %v5259 = vsel %vm330, %v5116, 0
        %5261 = vmatprep.subr.bf16.mxu0 0
        %5262 = vmatpush1.bf16.msra.mxu0 %v5125
        %5263 = vmatprep.subr.bf16.mxu0 0
        %5264 = vmatpush1.bf16.msra.mxu0 %v5126
        %5265 = vmatprep.subr.bf16.mxu0 0
        %5266 = vmatpush1.bf16.msra.mxu0 0
        %5267 = vmatprep.subr.bf16.mxu0 0
        %5268 = vmatpush1.bf16.msra.mxu0 0
        %5269 = vmatprep.subr.bf16.mxu0 0
        %5270 = vmatpush1.bf16.msra.mxu0 0
        %5271 = vmatprep.subr.bf16.mxu0 0
        %5272 = vmatpush1.bf16.msra.mxu0 0
        %5273 = vmatprep.subr.bf16.mxu0 0
        %5274 = vmatpush1.bf16.msra.mxu0 0
        %5275 = vmatprep.subr.bf16.mxu0 0
        %5276 = vmatpush1.bf16.msra.mxu0 0
        %5277 = vmatprep.subr.bf16.mxu0 0
        %5278 = vmatpush1.bf16.msra.mxu0 0
        %5279 = vmatprep.subr.bf16.mxu0 0
        %5280 = vmatpush1.bf16.msra.mxu0 0
        %5281 = vmatprep.subr.bf16.mxu0 0
        %5282 = vmatpush1.bf16.msra.mxu0 0
        %5283 = vmatprep.subr.bf16.mxu0 0
        %5284 = vmatpush1.bf16.msra.mxu0 0
        %5285 = vmatprep.subr.bf16.mxu0 0
        %5286 = vmatpush1.bf16.msra.mxu0 0
        %5287 = vmatprep.subr.bf16.mxu0 0
        %5288 = vmatpush1.bf16.msra.mxu0 0
        %5289 = vmatprep.subr.bf16.mxu0 0
        %5290 = vmatpush1.bf16.msra.mxu0 0
        %5291 = vmatprep.subr.bf16.mxu0 0
        %5292 = vmatpush1.bf16.msra.mxu0 0
        %5293 = vmatprep.mubr.bf16.mxu0 0
        %5294 = vmatmul.mubr.bf16.gmra.mrb[0].mxu0 %v5259
        %v5295 = vpop.f32.mrb[0].mxu0
        %v5296 = vadd.f32 0.0, %v5295
        %v5297 = vpop.f32.mrb[0].mxu0
        %v5298 = vpop.f32.mrb[0].mxu0
        %v5299 = vpop.f32.mrb[0].mxu0
        %5300 = vdwg.mxu0
        %v5301 = vlaneseq
        %v5302 = vshrl.u32 %v5301, 7
        %v5303 = vsub.s32 0, %v5302
        %v5304 = vrot.slane %v309, %v5303
        %v5305 = vmul.f32 %v5167, %v5304
        %v5306 = vmul.f32 %v5210, %v5304
        %v5307 = vmul.f32 %v5253, %v5304
        %v5308 = vmul.f32 %v5296, %v5304
        %v5309 = vsel %vm330, %v5305, 0.0
        %5310 = vadd.xlane.f32.xlu0 %v5309
        %v5311 = vpop.xlane.xlu0 %5310
        %v5312 = vsel %vm330, %v5306, 0.0
        %5313 = vadd.xlane.f32.xlu0 %v5312
        %v5314 = vpop.xlane.xlu0 %5313
        %v5315 = vsel %vm330, %v5307, 0.0
        %5316 = vadd.xlane.f32.xlu0 %v5315
        %v5317 = vpop.xlane.xlu0 %5316
        %v5318 = vsel %vm330, %v5308, 0.0
        %5319 = vadd.xlane.f32.xlu0 %v5318
        %v5320 = vpop.xlane.xlu0 %5319
        %v5322 = vrot.slane %v309, 1
        %v5323 = vsel %vm330, %v5322, 0
        %v5326 = vsel %vm330, %v5167, 0
        %5328 = vmatprep.subr.mxu0 0.0
        %5329 = vmatpush1.xpose.msra.mxu0 %v5326
        %5330 = vmatprep.subr.mxu0 0.0
        %5331 = vmatpush1.xpose.msra.mxu0 0.0
        %5332 = vmatprep.subr.mxu0 0.0
        %5333 = vmatpush1.xpose.msra.mxu0 0.0
        %5334 = vmatprep.subr.mxu0 0.0
        %5335 = vmatpush1.xpose.msra.mxu0 0.0
        %5336 = vmatprep.subr.mxu0 0.0
        %5337 = vmatpush1.xpose.msra.mxu0 0.0
        %5338 = vmatprep.subr.mxu0 0.0
        %5339 = vmatpush1.xpose.msra.mxu0 0.0
        %5340 = vmatprep.subr.mxu0 0.0
        %5341 = vmatpush1.xpose.msra.mxu0 0.0
        %5342 = vmatprep.subr.mxu0 0.0
        %5343 = vmatpush1.xpose.msra.mxu0 0.0
        %5344 = vmatprep.subr.mxu0 0.0
        %5345 = vmatpush1.xpose.msra.mxu0 0.0
        %5346 = vmatprep.subr.mxu0 0.0
        %5347 = vmatpush1.xpose.msra.mxu0 0.0
        %5348 = vmatprep.subr.mxu0 0.0
        %5349 = vmatpush1.xpose.msra.mxu0 0.0
        %5350 = vmatprep.subr.mxu0 0.0
        %5351 = vmatpush1.xpose.msra.mxu0 0.0
        %5352 = vmatprep.subr.mxu0 0.0
        %5353 = vmatpush1.xpose.msra.mxu0 0.0
        %5354 = vmatprep.subr.mxu0 0.0
        %5355 = vmatpush1.xpose.msra.mxu0 0.0
        %5356 = vmatprep.subr.mxu0 0.0
        %5357 = vmatpush1.xpose.msra.mxu0 0.0
        %5358 = vmatprep.subr.mxu0 0.0
        %5359 = vmatpush1.xpose.msra.mxu0 0.0
        %5360 = vmatprep.subr.mxu0 0.0
        %5361 = vmatpush1.xpose.msra.mxu0 0.0
        %5362 = vmatprep.subr.mxu0 0.0
        %5363 = vmatpush1.xpose.msra.mxu0 0.0
        %5364 = vmatprep.subr.mxu0 0.0
        %5365 = vmatpush1.xpose.msra.mxu0 0.0
        %5366 = vmatprep.subr.mxu0 0.0
        %5367 = vmatpush1.xpose.msra.mxu0 0.0
        %5368 = vmatprep.subr.mxu0 0.0
        %5369 = vmatpush1.xpose.msra.mxu0 0.0
        %5370 = vmatprep.subr.mxu0 0.0
        %5371 = vmatpush1.xpose.msra.mxu0 0.0
        %5372 = vmatprep.subr.mxu0 0.0
        %5373 = vmatpush1.xpose.msra.mxu0 0.0
        %5374 = vmatprep.subr.mxu0 0.0
        %5375 = vmatpush1.xpose.msra.mxu0 0.0
        %5376 = vmatprep.subr.mxu0 0.0
        %5377 = vmatpush1.xpose.msra.mxu0 0.0
        %5378 = vmatprep.subr.mxu0 0.0
        %5379 = vmatpush1.xpose.msra.mxu0 0.0
        %5380 = vmatprep.subr.mxu0 0.0
        %5381 = vmatpush1.xpose.msra.mxu0 0.0
        %5382 = vmatprep.subr.mxu0 0.0
        %5383 = vmatpush1.xpose.msra.mxu0 0.0
        %5384 = vmatprep.subr.mxu0 0.0
        %5385 = vmatpush1.xpose.msra.mxu0 0.0
        %5386 = vmatprep.subr.mxu0 0.0
        %5387 = vmatpush1.xpose.msra.mxu0 0.0
        %5388 = vmatprep.subr.mxu0 0.0
        %5389 = vmatpush1.xpose.msra.mxu0 0.0
        %5390 = vmatprep.subr.mxu0 0.0
        %5391 = vmatpush1.xpose.msra.mxu0 0.0
        %5392 = vmatprep.mubr.f32.mxu0 0.0
        %5393 = vmatmul.mubr.f32.gmra.mrb[0].mxu0 %v5323
        %v5394 = vpop.f32.mrb[0].mxu0
        %v5395 = vadd.f32 0.0, %v5394
        %v5396 = vpop.f32.mrb[0].mxu0
        %5397 = vdwg.mxu0
        %v5399 = vsel %vm330, %v5210, 0
        %5401 = vmatprep.subr.mxu0 0.0
        %5402 = vmatpush1.xpose.msra.mxu0 %v5399
        %5403 = vmatprep.subr.mxu0 0.0
        %5404 = vmatpush1.xpose.msra.mxu0 0.0
        %5405 = vmatprep.subr.mxu0 0.0
        %5406 = vmatpush1.xpose.msra.mxu0 0.0
        %5407 = vmatprep.subr.mxu0 0.0
        %5408 = vmatpush1.xpose.msra.mxu0 0.0
        %5409 = vmatprep.subr.mxu0 0.0
        %5410 = vmatpush1.xpose.msra.mxu0 0.0
        %5411 = vmatprep.subr.mxu0 0.0
        %5412 = vmatpush1.xpose.msra.mxu0 0.0
        %5413 = vmatprep.subr.mxu0 0.0
        %5414 = vmatpush1.xpose.msra.mxu0 0.0
        %5415 = vmatprep.subr.mxu0 0.0
        %5416 = vmatpush1.xpose.msra.mxu0 0.0
        %5417 = vmatprep.subr.mxu0 0.0
        %5418 = vmatpush1.xpose.msra.mxu0 0.0
        %5419 = vmatprep.subr.mxu0 0.0
        %5420 = vmatpush1.xpose.msra.mxu0 0.0
        %5421 = vmatprep.subr.mxu0 0.0
        %5422 = vmatpush1.xpose.msra.mxu0 0.0
        %5423 = vmatprep.subr.mxu0 0.0
        %5424 = vmatpush1.xpose.msra.mxu0 0.0
        %5425 = vmatprep.subr.mxu0 0.0
        %5426 = vmatpush1.xpose.msra.mxu0 0.0
        %5427 = vmatprep.subr.mxu0 0.0
        %5428 = vmatpush1.xpose.msra.mxu0 0.0
        %5429 = vmatprep.subr.mxu0 0.0
        %5430 = vmatpush1.xpose.msra.mxu0 0.0
        %5431 = vmatprep.subr.mxu0 0.0
        %5432 = vmatpush1.xpose.msra.mxu0 0.0
        %5433 = vmatprep.subr.mxu0 0.0
        %5434 = vmatpush1.xpose.msra.mxu0 0.0
        %5435 = vmatprep.subr.mxu0 0.0
        %5436 = vmatpush1.xpose.msra.mxu0 0.0
        %5437 = vmatprep.subr.mxu0 0.0
        %5438 = vmatpush1.xpose.msra.mxu0 0.0
        %5439 = vmatprep.subr.mxu0 0.0
        %5440 = vmatpush1.xpose.msra.mxu0 0.0
        %5441 = vmatprep.subr.mxu0 0.0
        %5442 = vmatpush1.xpose.msra.mxu0 0.0
        %5443 = vmatprep.subr.mxu0 0.0
        %5444 = vmatpush1.xpose.msra.mxu0 0.0
        %5445 = vmatprep.subr.mxu0 0.0
        %5446 = vmatpush1.xpose.msra.mxu0 0.0
        %5447 = vmatprep.subr.mxu0 0.0
        %5448 = vmatpush1.xpose.msra.mxu0 0.0
        %5449 = vmatprep.subr.mxu0 0.0
        %5450 = vmatpush1.xpose.msra.mxu0 0.0
        %5451 = vmatprep.subr.mxu0 0.0
        %5452 = vmatpush1.xpose.msra.mxu0 0.0
        %5453 = vmatprep.subr.mxu0 0.0
        %5454 = vmatpush1.xpose.msra.mxu0 0.0
        %5455 = vmatprep.subr.mxu0 0.0
        %5456 = vmatpush1.xpose.msra.mxu0 0.0
        %5457 = vmatprep.subr.mxu0 0.0
        %5458 = vmatpush1.xpose.msra.mxu0 0.0
        %5459 = vmatprep.subr.mxu0 0.0
        %5460 = vmatpush1.xpose.msra.mxu0 0.0
        %5461 = vmatprep.subr.mxu0 0.0
        %5462 = vmatpush1.xpose.msra.mxu0 0.0
        %5463 = vmatprep.subr.mxu0 0.0
        %5464 = vmatpush1.xpose.msra.mxu0 0.0
        %5465 = vmatprep.mubr.f32.mxu0 0.0
        %5466 = vmatmul.mubr.f32.gmra.mrb[0].mxu0 %v5323
        %v5467 = vpop.f32.mrb[0].mxu0
        %v5468 = vadd.f32 0.0, %v5467
        %v5469 = vpop.f32.mrb[0].mxu0
        %5470 = vdwg.mxu0
        %v5472 = vsel %vm330, %v5253, 0
        %5474 = vmatprep.subr.mxu0 0.0
        %5475 = vmatpush1.xpose.msra.mxu0 %v5472
        %5476 = vmatprep.subr.mxu0 0.0
        %5477 = vmatpush1.xpose.msra.mxu0 0.0
        %5478 = vmatprep.subr.mxu0 0.0
        %5479 = vmatpush1.xpose.msra.mxu0 0.0
        %5480 = vmatprep.subr.mxu0 0.0
        %5481 = vmatpush1.xpose.msra.mxu0 0.0
        %5482 = vmatprep.subr.mxu0 0.0
        %5483 = vmatpush1.xpose.msra.mxu0 0.0
        %5484 = vmatprep.subr.mxu0 0.0
        %5485 = vmatpush1.xpose.msra.mxu0 0.0
        %5486 = vmatprep.subr.mxu0 0.0
        %5487 = vmatpush1.xpose.msra.mxu0 0.0
        %5488 = vmatprep.subr.mxu0 0.0
        %5489 = vmatpush1.xpose.msra.mxu0 0.0
        %5490 = vmatprep.subr.mxu0 0.0
        %5491 = vmatpush1.xpose.msra.mxu0 0.0
        %5492 = vmatprep.subr.mxu0 0.0
        %5493 = vmatpush1.xpose.msra.mxu0 0.0
        %5494 = vmatprep.subr.mxu0 0.0
        %5495 = vmatpush1.xpose.msra.mxu0 0.0
        %5496 = vmatprep.subr.mxu0 0.0
        %5497 = vmatpush1.xpose.msra.mxu0 0.0
        %5498 = vmatprep.subr.mxu0 0.0
        %5499 = vmatpush1.xpose.msra.mxu0 0.0
        %5500 = vmatprep.subr.mxu0 0.0
        %5501 = vmatpush1.xpose.msra.mxu0 0.0
        %5502 = vmatprep.subr.mxu0 0.0
        %5503 = vmatpush1.xpose.msra.mxu0 0.0
        %5504 = vmatprep.subr.mxu0 0.0
        %5505 = vmatpush1.xpose.msra.mxu0 0.0
        %5506 = vmatprep.subr.mxu0 0.0
        %5507 = vmatpush1.xpose.msra.mxu0 0.0
        %5508 = vmatprep.subr.mxu0 0.0
        %5509 = vmatpush1.xpose.msra.mxu0 0.0
        %5510 = vmatprep.subr.mxu0 0.0
        %5511 = vmatpush1.xpose.msra.mxu0 0.0
        %5512 = vmatprep.subr.mxu0 0.0
        %5513 = vmatpush1.xpose.msra.mxu0 0.0
        %5514 = vmatprep.subr.mxu0 0.0
        %5515 = vmatpush1.xpose.msra.mxu0 0.0
        %5516 = vmatprep.subr.mxu0 0.0
        %5517 = vmatpush1.xpose.msra.mxu0 0.0
        %5518 = vmatprep.subr.mxu0 0.0
        %5519 = vmatpush1.xpose.msra.mxu0 0.0
        %5520 = vmatprep.subr.mxu0 0.0
        %5521 = vmatpush1.xpose.msra.mxu0 0.0
        %5522 = vmatprep.subr.mxu0 0.0
        %5523 = vmatpush1.xpose.msra.mxu0 0.0
        %5524 = vmatprep.subr.mxu0 0.0
        %5525 = vmatpush1.xpose.msra.mxu0 0.0
        %5526 = vmatprep.subr.mxu0 0.0
        %5527 = vmatpush1.xpose.msra.mxu0 0.0
        %5528 = vmatprep.subr.mxu0 0.0
        %5529 = vmatpush1.xpose.msra.mxu0 0.0
        %5530 = vmatprep.subr.mxu0 0.0
        %5531 = vmatpush1.xpose.msra.mxu0 0.0
        %5532 = vmatprep.subr.mxu0 0.0
        %5533 = vmatpush1.xpose.msra.mxu0 0.0
        %5534 = vmatprep.subr.mxu0 0.0
        %5535 = vmatpush1.xpose.msra.mxu0 0.0
        %5536 = vmatprep.subr.mxu0 0.0
        %5537 = vmatpush1.xpose.msra.mxu0 0.0
        %5538 = vmatprep.mubr.f32.mxu0 0.0
        %5539 = vmatmul.mubr.f32.gmra.mrb[0].mxu0 %v5323
        %v5540 = vpop.f32.mrb[0].mxu0
        %v5541 = vadd.f32 0.0, %v5540
        %v5542 = vpop.f32.mrb[0].mxu0
        %5543 = vdwg.mxu0
        %v5545 = vsel %vm330, %v5296, 0
        %5547 = vmatprep.subr.mxu0 0.0
        %5548 = vmatpush1.xpose.msra.mxu0 %v5545
        %5549 = vmatprep.subr.mxu0 0.0
        %5550 = vmatpush1.xpose.msra.mxu0 0.0
        %5551 = vmatprep.subr.mxu0 0.0
        %5552 = vmatpush1.xpose.msra.mxu0 0.0
        %5553 = vmatprep.subr.mxu0 0.0
        %5554 = vmatpush1.xpose.msra.mxu0 0.0
        %5555 = vmatprep.subr.mxu0 0.0
        %5556 = vmatpush1.xpose.msra.mxu0 0.0
        %5557 = vmatprep.subr.mxu0 0.0
        %5558 = vmatpush1.xpose.msra.mxu0 0.0
        %5559 = vmatprep.subr.mxu0 0.0
        %5560 = vmatpush1.xpose.msra.mxu0 0.0
        %5561 = vmatprep.subr.mxu0 0.0
        %5562 = vmatpush1.xpose.msra.mxu0 0.0
        %5563 = vmatprep.subr.mxu0 0.0
        %5564 = vmatpush1.xpose.msra.mxu0 0.0
        %5565 = vmatprep.subr.mxu0 0.0
        %5566 = vmatpush1.xpose.msra.mxu0 0.0
        %5567 = vmatprep.subr.mxu0 0.0
        %5568 = vmatpush1.xpose.msra.mxu0 0.0
        %5569 = vmatprep.subr.mxu0 0.0
        %5570 = vmatpush1.xpose.msra.mxu0 0.0
        %5571 = vmatprep.subr.mxu0 0.0
        %5572 = vmatpush1.xpose.msra.mxu0 0.0
        %5573 = vmatprep.subr.mxu0 0.0
        %5574 = vmatpush1.xpose.msra.mxu0 0.0
        %5575 = vmatprep.subr.mxu0 0.0
        %5576 = vmatpush1.xpose.msra.mxu0 0.0
        %5577 = vmatprep.subr.mxu0 0.0
        %5578 = vmatpush1.xpose.msra.mxu0 0.0
        %5579 = vmatprep.subr.mxu0 0.0
        %5580 = vmatpush1.xpose.msra.mxu0 0.0
        %5581 = vmatprep.subr.mxu0 0.0
        %5582 = vmatpush1.xpose.msra.mxu0 0.0
        %5583 = vmatprep.subr.mxu0 0.0
        %5584 = vmatpush1.xpose.msra.mxu0 0.0
        %5585 = vmatprep.subr.mxu0 0.0
        %5586 = vmatpush1.xpose.msra.mxu0 0.0
        %5587 = vmatprep.subr.mxu0 0.0
        %5588 = vmatpush1.xpose.msra.mxu0 0.0
        %5589 = vmatprep.subr.mxu0 0.0
        %5590 = vmatpush1.xpose.msra.mxu0 0.0
        %5591 = vmatprep.subr.mxu0 0.0
        %5592 = vmatpush1.xpose.msra.mxu0 0.0
        %5593 = vmatprep.subr.mxu0 0.0
        %5594 = vmatpush1.xpose.msra.mxu0 0.0
        %5595 = vmatprep.subr.mxu0 0.0
        %5596 = vmatpush1.xpose.msra.mxu0 0.0
        %5597 = vmatprep.subr.mxu0 0.0
        %5598 = vmatpush1.xpose.msra.mxu0 0.0
        %5599 = vmatprep.subr.mxu0 0.0
        %5600 = vmatpush1.xpose.msra.mxu0 0.0
        %5601 = vmatprep.subr.mxu0 0.0
        %5602 = vmatpush1.xpose.msra.mxu0 0.0
        %5603 = vmatprep.subr.mxu0 0.0
        %5604 = vmatpush1.xpose.msra.mxu0 0.0
        %5605 = vmatprep.subr.mxu0 0.0
        %5606 = vmatpush1.xpose.msra.mxu0 0.0
        %5607 = vmatprep.subr.mxu0 0.0
        %5608 = vmatpush1.xpose.msra.mxu0 0.0
        %5609 = vmatprep.subr.mxu0 0.0
        %5610 = vmatpush1.xpose.msra.mxu0 0.0
        %5611 = vmatprep.mubr.f32.mxu0 0.0
        %5612 = vmatmul.mubr.f32.gmra.mrb[0].mxu0 %v5323
        %v5613 = vpop.f32.mrb[0].mxu0
        %v5614 = vadd.f32 0.0, %v5613
        %v5615 = vpop.f32.mrb[0].mxu0
        %5616 = vdwg.mxu0
        %v5617 = vlaneseq
        %v5618 = vshrl.u32 %v5617, 7
        %v5619 = vsub.s32 0, %v5618
        %v5620 = vrot.slane %v5395, %v5619
        %v5621 = vlaneseq
        %v5622 = vshrl.u32 %v5621, 7
        %v5623 = vsub.s32 0, %v5622
        %v5624 = vrot.slane %v5468, %v5623
        %v5625 = vlaneseq
        %v5626 = vshrl.u32 %v5625, 7
        %v5627 = vsub.s32 0, %v5626
        %v5628 = vrot.slane %v5541, %v5627
        %v5629 = vlaneseq
        %v5630 = vshrl.u32 %v5629, 7
        %v5631 = vsub.s32 0, %v5630
        %v5632 = vrot.slane %v5614, %v5631
        %v5633 = vadd.f32 %v5311, %v5620
        %v5634 = vadd.f32 %v5314, %v5624
        %v5635 = vadd.f32 %v5317, %v5628
        %v5636 = vadd.f32 %v5320, %v5632
        %vm5637 = vcmp.gt.f32.partialorder %v5633, 0.0
        %vm5638 = vcmp.gt.f32.partialorder %v5634, 0.0
        %vm5639 = vcmp.gt.f32.partialorder %v5635, 0.0
        %vm5640 = vcmp.gt.f32.partialorder %v5636, 0.0
        %v5641 = vmul.f32 %v5633, 0.2
        %v5642 = vmul.f32 %v5634, 0.2
        %v5643 = vmul.f32 %v5635, 0.2
        %v5644 = vmul.f32 %v5636, 0.2
        %v5645 = vsel %vm5637, %v5633, %v5641
        %v5646 = vsel %vm5638, %v5634, %v5642
        %v5647 = vsel %vm5639, %v5635, %v5643
        %v5648 = vsel %vm5640, %v5636, %v5644
        %v5649 = vsel %vm854, %v5645, -1e+09
        %v5650 = vsel %vm854, %v5646, -1e+09
        %v5651 = vsel %vm854, %v5647, -1e+09
        %v5652 = vsel %vm854, %v5648, -1e+09
        %vm5653 = vcmask 64512
        %v5654 = vsel %vm5653, %v5649, -inf
        %5655 = vmax.xlane.f32.xlu0 %v5654
        %v5656 = vpop.xlane.xlu0 %5655
        %v5657 = vsel %vm5653, %v5650, -inf
        %5658 = vmax.xlane.f32.xlu0 %v5657
        %v5659 = vpop.xlane.xlu0 %5658
        %v5660 = vsel %vm5653, %v5651, -inf
        %5661 = vmax.xlane.f32.xlu0 %v5660
        %v5662 = vpop.xlane.xlu0 %5661
        %v5663 = vsel %vm5653, %v5652, -inf
        %5664 = vmax.xlane.f32.xlu0 %v5663
        %v5665 = vpop.xlane.xlu0 %5664
        %v5666 = vsub.f32 %v5649, %v5656
        %v5667 = vsub.f32 %v5650, %v5659
        %v5668 = vsub.f32 %v5651, %v5662
        %v5669 = vsub.f32 %v5652, %v5665
        %v5670 = vmul.f32 %v5666, 1.442695
        %v5671 = vpow.pop %v5670
        %v5672 = vmul.f32 %v5667, 1.442695
        %v5673 = vpow.pop %v5672
        %v5674 = vmul.f32 %v5668, 1.442695
        %v5675 = vpow.pop %v5674
        %v5676 = vmul.f32 %v5669, 1.442695
        %v5677 = vpow.pop %v5676
        %v5678 = vsel %vm5653, %v5671, 0.0
        %5679 = vadd.xlane.f32.xlu0 %v5678
        %v5680 = vpop.xlane.xlu0 %5679
        %v5681 = vsel %vm5653, %v5673, 0.0
        %5682 = vadd.xlane.f32.xlu0 %v5681
        %v5683 = vpop.xlane.xlu0 %5682
        %v5684 = vsel %vm5653, %v5675, 0.0
        %5685 = vadd.xlane.f32.xlu0 %v5684
        %v5686 = vpop.xlane.xlu0 %5685
        %v5687 = vsel %vm5653, %v5677, 0.0
        %5688 = vadd.xlane.f32.xlu0 %v5687
        %v5689 = vpop.xlane.xlu0 %5688
        %v5690 = vrcp.pop %v5680
        %v5691 = vmul.f32 %v5671, %v5690
        %v5692 = vrcp.pop %v5683
        %v5693 = vmul.f32 %v5673, %v5692
        %v5694 = vrcp.pop %v5686
        %v5695 = vmul.f32 %v5675, %v5694
        %v5696 = vrcp.pop %v5689
        %v5697 = vmul.f32 %v5677, %v5696
        %v5699 = vsel %vm5653, %v5691, 0
        %5701 = vmatprep.subr.mxu0 0.0
        %5702 = vmatpush1.msra.mxu0 %v5167
        %5703 = vmatprep.subr.mxu0 0.0
        %5704 = vmatpush1.msra.mxu0 0.0
        %5705 = vmatprep.subr.mxu0 0.0
        %5706 = vmatpush1.msra.mxu0 0.0
        %5707 = vmatprep.subr.mxu0 0.0
        %5708 = vmatpush1.msra.mxu0 0.0
        %5709 = vmatprep.subr.mxu0 0.0
        %5710 = vmatpush1.msra.mxu0 0.0
        %5711 = vmatprep.subr.mxu0 0.0
        %5712 = vmatpush1.msra.mxu0 0.0
        %5713 = vmatprep.subr.mxu0 0.0
        %5714 = vmatpush1.msra.mxu0 0.0
        %5715 = vmatprep.subr.mxu0 0.0
        %5716 = vmatpush1.msra.mxu0 0.0
        %5717 = vmatprep.subr.mxu0 0.0
        %5718 = vmatpush1.msra.mxu0 0.0
        %5719 = vmatprep.subr.mxu0 0.0
        %5720 = vmatpush1.msra.mxu0 0.0
        %5721 = vmatprep.subr.mxu0 0.0
        %5722 = vmatpush1.msra.mxu0 0.0
        %5723 = vmatprep.subr.mxu0 0.0
        %5724 = vmatpush1.msra.mxu0 0.0
        %5725 = vmatprep.subr.mxu0 0.0
        %5726 = vmatpush1.msra.mxu0 0.0
        %5727 = vmatprep.subr.mxu0 0.0
        %5728 = vmatpush1.msra.mxu0 0.0
        %5729 = vmatprep.subr.mxu0 0.0
        %5730 = vmatpush1.msra.mxu0 0.0
        %5731 = vmatprep.subr.mxu0 0.0
        %5732 = vmatpush1.msra.mxu0 0.0
        %5733 = vmatprep.subr.mxu0 0.0
        %5734 = vmatpush1.msra.mxu0 0.0
        %5735 = vmatprep.subr.mxu0 0.0
        %5736 = vmatpush1.msra.mxu0 0.0
        %5737 = vmatprep.subr.mxu0 0.0
        %5738 = vmatpush1.msra.mxu0 0.0
        %5739 = vmatprep.subr.mxu0 0.0
        %5740 = vmatpush1.msra.mxu0 0.0
        %5741 = vmatprep.subr.mxu0 0.0
        %5742 = vmatpush1.msra.mxu0 0.0
        %5743 = vmatprep.subr.mxu0 0.0
        %5744 = vmatpush1.msra.mxu0 0.0
        %5745 = vmatprep.subr.mxu0 0.0
        %5746 = vmatpush1.msra.mxu0 0.0
        %5747 = vmatprep.subr.mxu0 0.0
        %5748 = vmatpush1.msra.mxu0 0.0
        %5749 = vmatprep.subr.mxu0 0.0
        %5750 = vmatpush1.msra.mxu0 0.0
        %5751 = vmatprep.subr.mxu0 0.0
        %5752 = vmatpush1.msra.mxu0 0.0
        %5753 = vmatprep.subr.mxu0 0.0
        %5754 = vmatpush1.msra.mxu0 0.0
        %5755 = vmatprep.subr.mxu0 0.0
        %5756 = vmatpush1.msra.mxu0 0.0
        %5757 = vmatprep.subr.mxu0 0.0
        %5758 = vmatpush1.msra.mxu0 0.0
        %5759 = vmatprep.subr.mxu0 0.0
        %5760 = vmatpush1.msra.mxu0 0.0
        %5761 = vmatprep.subr.mxu0 0.0
        %5762 = vmatpush1.msra.mxu0 0.0
        %5763 = vmatprep.subr.mxu0 0.0
        %5764 = vmatpush1.msra.mxu0 0.0
        %5765 = vmatprep.mubr.f32.mxu0 0.0
        %5766 = vmatmul.mubr.f32.gmra.mrb[0].mxu0 %v5699
        %v5767 = vpop.f32.mrb[0].mxu0
        %v5768 = vadd.f32 0.0, %v5767
        %v5769 = vpop.f32.mrb[0].mxu0
        %5770 = vdwg.mxu0
        %v5772 = vsel %vm5653, %v5693, 0
        %5774 = vmatprep.subr.mxu0 0.0
        %5775 = vmatpush1.msra.mxu0 %v5210
        %5776 = vmatprep.subr.mxu0 0.0
        %5777 = vmatpush1.msra.mxu0 0.0
        %5778 = vmatprep.subr.mxu0 0.0
        %5779 = vmatpush1.msra.mxu0 0.0
        %5780 = vmatprep.subr.mxu0 0.0
        %5781 = vmatpush1.msra.mxu0 0.0
        %5782 = vmatprep.subr.mxu0 0.0
        %5783 = vmatpush1.msra.mxu0 0.0
        %5784 = vmatprep.subr.mxu0 0.0
        %5785 = vmatpush1.msra.mxu0 0.0
        %5786 = vmatprep.subr.mxu0 0.0
        %5787 = vmatpush1.msra.mxu0 0.0
        %5788 = vmatprep.subr.mxu0 0.0
        %5789 = vmatpush1.msra.mxu0 0.0
        %5790 = vmatprep.subr.mxu0 0.0
        %5791 = vmatpush1.msra.mxu0 0.0
        %5792 = vmatprep.subr.mxu0 0.0
        %5793 = vmatpush1.msra.mxu0 0.0
        %5794 = vmatprep.subr.mxu0 0.0
        %5795 = vmatpush1.msra.mxu0 0.0
        %5796 = vmatprep.subr.mxu0 0.0
        %5797 = vmatpush1.msra.mxu0 0.0
        %5798 = vmatprep.subr.mxu0 0.0
        %5799 = vmatpush1.msra.mxu0 0.0
        %5800 = vmatprep.subr.mxu0 0.0
        %5801 = vmatpush1.msra.mxu0 0.0
        %5802 = vmatprep.subr.mxu0 0.0
        %5803 = vmatpush1.msra.mxu0 0.0
        %5804 = vmatprep.subr.mxu0 0.0
        %5805 = vmatpush1.msra.mxu0 0.0
        %5806 = vmatprep.subr.mxu0 0.0
        %5807 = vmatpush1.msra.mxu0 0.0
        %5808 = vmatprep.subr.mxu0 0.0
        %5809 = vmatpush1.msra.mxu0 0.0
        %5810 = vmatprep.subr.mxu0 0.0
        %5811 = vmatpush1.msra.mxu0 0.0
        %5812 = vmatprep.subr.mxu0 0.0
        %5813 = vmatpush1.msra.mxu0 0.0
        %5814 = vmatprep.subr.mxu0 0.0
        %5815 = vmatpush1.msra.mxu0 0.0
        %5816 = vmatprep.subr.mxu0 0.0
        %5817 = vmatpush1.msra.mxu0 0.0
        %5818 = vmatprep.subr.mxu0 0.0
        %5819 = vmatpush1.msra.mxu0 0.0
        %5820 = vmatprep.subr.mxu0 0.0
        %5821 = vmatpush1.msra.mxu0 0.0
        %5822 = vmatprep.subr.mxu0 0.0
        %5823 = vmatpush1.msra.mxu0 0.0
        %5824 = vmatprep.subr.mxu0 0.0
        %5825 = vmatpush1.msra.mxu0 0.0
        %5826 = vmatprep.subr.mxu0 0.0
        %5827 = vmatpush1.msra.mxu0 0.0
        %5828 = vmatprep.subr.mxu0 0.0
        %5829 = vmatpush1.msra.mxu0 0.0
        %5830 = vmatprep.subr.mxu0 0.0
        %5831 = vmatpush1.msra.mxu0 0.0
        %5832 = vmatprep.subr.mxu0 0.0
        %5833 = vmatpush1.msra.mxu0 0.0
        %5834 = vmatprep.subr.mxu0 0.0
        %5835 = vmatpush1.msra.mxu0 0.0
        %5836 = vmatprep.subr.mxu0 0.0
        %5837 = vmatpush1.msra.mxu0 0.0
        %5838 = vmatprep.mubr.f32.mxu0 0.0
        %5839 = vmatmul.mubr.f32.gmra.mrb[0].mxu0 %v5772
        %v5840 = vpop.f32.mrb[0].mxu0
        %v5841 = vadd.f32 0.0, %v5840
        %v5842 = vpop.f32.mrb[0].mxu0
        %5843 = vdwg.mxu0
        %v5845 = vsel %vm5653, %v5695, 0
        %5847 = vmatprep.subr.mxu0 0.0
        %5848 = vmatpush1.msra.mxu0 %v5253
        %5849 = vmatprep.subr.mxu0 0.0
        %5850 = vmatpush1.msra.mxu0 0.0
        %5851 = vmatprep.subr.mxu0 0.0
        %5852 = vmatpush1.msra.mxu0 0.0
        %5853 = vmatprep.subr.mxu0 0.0
        %5854 = vmatpush1.msra.mxu0 0.0
        %5855 = vmatprep.subr.mxu0 0.0
        %5856 = vmatpush1.msra.mxu0 0.0
        %5857 = vmatprep.subr.mxu0 0.0
        %5858 = vmatpush1.msra.mxu0 0.0
        %5859 = vmatprep.subr.mxu0 0.0
        %5860 = vmatpush1.msra.mxu0 0.0
        %5861 = vmatprep.subr.mxu0 0.0
        %5862 = vmatpush1.msra.mxu0 0.0
        %5863 = vmatprep.subr.mxu0 0.0
        %5864 = vmatpush1.msra.mxu0 0.0
        %5865 = vmatprep.subr.mxu0 0.0
        %5866 = vmatpush1.msra.mxu0 0.0
        %5867 = vmatprep.subr.mxu0 0.0
        %5868 = vmatpush1.msra.mxu0 0.0
        %5869 = vmatprep.subr.mxu0 0.0
        %5870 = vmatpush1.msra.mxu0 0.0
        %5871 = vmatprep.subr.mxu0 0.0
        %5872 = vmatpush1.msra.mxu0 0.0
        %5873 = vmatprep.subr.mxu0 0.0
        %5874 = vmatpush1.msra.mxu0 0.0
        %5875 = vmatprep.subr.mxu0 0.0
        %5876 = vmatpush1.msra.mxu0 0.0
        %5877 = vmatprep.subr.mxu0 0.0
        %5878 = vmatpush1.msra.mxu0 0.0
        %5879 = vmatprep.subr.mxu0 0.0
        %5880 = vmatpush1.msra.mxu0 0.0
        %5881 = vmatprep.subr.mxu0 0.0
        %5882 = vmatpush1.msra.mxu0 0.0
        %5883 = vmatprep.subr.mxu0 0.0
        %5884 = vmatpush1.msra.mxu0 0.0
        %5885 = vmatprep.subr.mxu0 0.0
        %5886 = vmatpush1.msra.mxu0 0.0
        %5887 = vmatprep.subr.mxu0 0.0
        %5888 = vmatpush1.msra.mxu0 0.0
        %5889 = vmatprep.subr.mxu0 0.0
        %5890 = vmatpush1.msra.mxu0 0.0
        %5891 = vmatprep.subr.mxu0 0.0
        %5892 = vmatpush1.msra.mxu0 0.0
        %5893 = vmatprep.subr.mxu0 0.0
        %5894 = vmatpush1.msra.mxu0 0.0
        %5895 = vmatprep.subr.mxu0 0.0
        %5896 = vmatpush1.msra.mxu0 0.0
        %5897 = vmatprep.subr.mxu0 0.0
        %5898 = vmatpush1.msra.mxu0 0.0
        %5899 = vmatprep.subr.mxu0 0.0
        %5900 = vmatpush1.msra.mxu0 0.0
        %5901 = vmatprep.subr.mxu0 0.0
        %5902 = vmatpush1.msra.mxu0 0.0
        %5903 = vmatprep.subr.mxu0 0.0
        %5904 = vmatpush1.msra.mxu0 0.0
        %5905 = vmatprep.subr.mxu0 0.0
        %5906 = vmatpush1.msra.mxu0 0.0
        %5907 = vmatprep.subr.mxu0 0.0
        %5908 = vmatpush1.msra.mxu0 0.0
        %5909 = vmatprep.subr.mxu0 0.0
        %5910 = vmatpush1.msra.mxu0 0.0
        %5911 = vmatprep.mubr.f32.mxu0 0.0
        %5912 = vmatmul.mubr.f32.gmra.mrb[0].mxu0 %v5845
        %v5913 = vpop.f32.mrb[0].mxu0
        %v5914 = vadd.f32 0.0, %v5913
        %v5915 = vpop.f32.mrb[0].mxu0
        %5916 = vdwg.mxu0
        %v5918 = vsel %vm5653, %v5697, 0
        %5920 = vmatprep.subr.mxu0 0.0
        %5921 = vmatpush1.msra.mxu0 %v5296
        %5922 = vmatprep.subr.mxu0 0.0
        %5923 = vmatpush1.msra.mxu0 0.0
        %5924 = vmatprep.subr.mxu0 0.0
        %5925 = vmatpush1.msra.mxu0 0.0
        %5926 = vmatprep.subr.mxu0 0.0
        %5927 = vmatpush1.msra.mxu0 0.0
        %5928 = vmatprep.subr.mxu0 0.0
        %5929 = vmatpush1.msra.mxu0 0.0
        %5930 = vmatprep.subr.mxu0 0.0
        %5931 = vmatpush1.msra.mxu0 0.0
        %5932 = vmatprep.subr.mxu0 0.0
        %5933 = vmatpush1.msra.mxu0 0.0
        %5934 = vmatprep.subr.mxu0 0.0
        %5935 = vmatpush1.msra.mxu0 0.0
        %5936 = vmatprep.subr.mxu0 0.0
        %5937 = vmatpush1.msra.mxu0 0.0
        %5938 = vmatprep.subr.mxu0 0.0
        %5939 = vmatpush1.msra.mxu0 0.0
        %5940 = vmatprep.subr.mxu0 0.0
        %5941 = vmatpush1.msra.mxu0 0.0
        %5942 = vmatprep.subr.mxu0 0.0
        %5943 = vmatpush1.msra.mxu0 0.0
        %5944 = vmatprep.subr.mxu0 0.0
        %5945 = vmatpush1.msra.mxu0 0.0
        %5946 = vmatprep.subr.mxu0 0.0
        %5947 = vmatpush1.msra.mxu0 0.0
        %5948 = vmatprep.subr.mxu0 0.0
        %5949 = vmatpush1.msra.mxu0 0.0
        %5950 = vmatprep.subr.mxu0 0.0
        %5951 = vmatpush1.msra.mxu0 0.0
        %5952 = vmatprep.subr.mxu0 0.0
        %5953 = vmatpush1.msra.mxu0 0.0
        %5954 = vmatprep.subr.mxu0 0.0
        %5955 = vmatpush1.msra.mxu0 0.0
        %5956 = vmatprep.subr.mxu0 0.0
        %5957 = vmatpush1.msra.mxu0 0.0
        %5958 = vmatprep.subr.mxu0 0.0
        %5959 = vmatpush1.msra.mxu0 0.0
        %5960 = vmatprep.subr.mxu0 0.0
        %5961 = vmatpush1.msra.mxu0 0.0
        %5962 = vmatprep.subr.mxu0 0.0
        %5963 = vmatpush1.msra.mxu0 0.0
        %5964 = vmatprep.subr.mxu0 0.0
        %5965 = vmatpush1.msra.mxu0 0.0
        %5966 = vmatprep.subr.mxu0 0.0
        %5967 = vmatpush1.msra.mxu0 0.0
        %5968 = vmatprep.subr.mxu0 0.0
        %5969 = vmatpush1.msra.mxu0 0.0
        %5970 = vmatprep.subr.mxu0 0.0
        %5971 = vmatpush1.msra.mxu0 0.0
        %5972 = vmatprep.subr.mxu0 0.0
        %5973 = vmatpush1.msra.mxu0 0.0
        %5974 = vmatprep.subr.mxu0 0.0
        %5975 = vmatpush1.msra.mxu0 0.0
        %5976 = vmatprep.subr.mxu0 0.0
        %5977 = vmatpush1.msra.mxu0 0.0
        %5978 = vmatprep.subr.mxu0 0.0
        %5979 = vmatpush1.msra.mxu0 0.0
        %5980 = vmatprep.subr.mxu0 0.0
        %5981 = vmatpush1.msra.mxu0 0.0
        %5982 = vmatprep.subr.mxu0 0.0
        %5983 = vmatpush1.msra.mxu0 0.0
        %5984 = vmatprep.mubr.f32.mxu0 0.0
        %5985 = vmatmul.mubr.f32.gmra.mrb[0].mxu0 %v5918
        %v5986 = vpop.f32.mrb[0].mxu0
        %v5987 = vadd.f32 0.0, %v5986
        %v5988 = vpop.f32.mrb[0].mxu0
        %5989 = vdwg.mxu0
        %vm5990 = vcmp.gt.f32.partialorder %v5768, 0.0
        %vm5991 = vcmp.gt.f32.partialorder %v5841, 0.0
        %vm5992 = vcmp.gt.f32.partialorder %v5914, 0.0
        %vm5993 = vcmp.gt.f32.partialorder %v5987, 0.0
        %v5994 = vmin.f32 %v5768, 0.0
        %v5995 = vmin.f32 %v5841, 0.0
        %v5996 = vmin.f32 %v5914, 0.0
        %v5997 = vmin.f32 %v5987, 0.0
        %v5998 = vmul.f32 %v5994, 1.442695
        %v5999 = vpow.pop %v5998
        %v6000 = vmul.f32 %v5995, 1.442695
        %v6001 = vpow.pop %v6000
        %v6002 = vmul.f32 %v5996, 1.442695
        %v6003 = vpow.pop %v6002
        %v6004 = vmul.f32 %v5997, 1.442695
        %v6005 = vpow.pop %v6004
        %v6006 = vsub.f32 %v5999, 1.0
        %v6007 = vsub.f32 %v6001, 1.0
        %v6008 = vsub.f32 %v6003, 1.0
        %v6009 = vsub.f32 %v6005, 1.0
        %v6010 = vsel %vm5990, %v5768, %v6006
        %v6011 = vsel %vm5991, %v5841, %v6007
        %v6012 = vsel %vm5992, %v5914, %v6008
        %v6013 = vsel %vm5993, %v5987, %v6009
        %s6014 = scalar_lea.vmem [#allocation7], 48
        %v6015 = vld [vmem:[%s6014] sm:$0xf]
        %v6016 = vld [vmem:[%s6014 + $0x4] sm:$0xf]
        %v6017 = vld [vmem:[%s6014 + $0x8] sm:$0xf]
        %v6018 = vld [vmem:[%s6014 + $0xc] sm:$0xf]
        %v6019 = vpack.c.bf16 %v6010, %v6010
        %v6020 = vpack.c.bf16 %v6011, %v6011
        %v6021 = vpack.c.bf16 %v6012, %v6012
        %v6022 = vpack.c.bf16 %v6013, %v6013
        %v6027 = vunpack.c.l.b16 %v6015
        %v6028 = vunpack.c.l.b16 %v6016
        %v6029 = vunpack.c.l.b16 %v6017
        %v6030 = vunpack.c.l.b16 %v6018
        %v6031 = vpack.c.b16 %v6028, %v6027
        %v6032 = vpack.c.b16 %v6030, %v6029
        %v6036 = vsel %vm330, %v6019, 0
        %6038 = vmatprep.subr.bf16.mxu0 0
        %6039 = vmatpush1.bf16.msra.mxu0 %v6031
        %6040 = vmatprep.subr.bf16.mxu0 0
        %6041 = vmatpush1.bf16.msra.mxu0 %v6032
        %6042 = vmatprep.subr.bf16.mxu0 0
        %6043 = vmatpush1.bf16.msra.mxu0 0
        %6044 = vmatprep.subr.bf16.mxu0 0
        %6045 = vmatpush1.bf16.msra.mxu0 0
        %6046 = vmatprep.subr.bf16.mxu0 0
        %6047 = vmatpush1.bf16.msra.mxu0 0
        %6048 = vmatprep.subr.bf16.mxu0 0
        %6049 = vmatpush1.bf16.msra.mxu0 0
        %6050 = vmatprep.subr.bf16.mxu0 0
        %6051 = vmatpush1.bf16.msra.mxu0 0
        %6052 = vmatprep.subr.bf16.mxu0 0
        %6053 = vmatpush1.bf16.msra.mxu0 0
        %6054 = vmatprep.subr.bf16.mxu0 0
        %6055 = vmatpush1.bf16.msra.mxu0 0
        %6056 = vmatprep.subr.bf16.mxu0 0
        %6057 = vmatpush1.bf16.msra.mxu0 0
        %6058 = vmatprep.subr.bf16.mxu0 0
        %6059 = vmatpush1.bf16.msra.mxu0 0
        %6060 = vmatprep.subr.bf16.mxu0 0
        %6061 = vmatpush1.bf16.msra.mxu0 0
        %6062 = vmatprep.subr.bf16.mxu0 0
        %6063 = vmatpush1.bf16.msra.mxu0 0
        %6064 = vmatprep.subr.bf16.mxu0 0
        %6065 = vmatpush1.bf16.msra.mxu0 0
        %6066 = vmatprep.subr.bf16.mxu0 0
        %6067 = vmatpush1.bf16.msra.mxu0 0
        %6068 = vmatprep.subr.bf16.mxu0 0
        %6069 = vmatpush1.bf16.msra.mxu0 0
        %6070 = vmatprep.mubr.bf16.mxu0 0
        %6071 = vmatmul.mubr.bf16.gmra.mrb[0].mxu0 %v6036
        %v6072 = vpop.f32.mrb[0].mxu0
        %v6073 = vadd.f32 0.0, %v6072
        %v6074 = vpop.f32.mrb[0].mxu0
        %v6075 = vpop.f32.mrb[0].mxu0
        %v6076 = vpop.f32.mrb[0].mxu0
        %6077 = vdwg.mxu0
        %v6079 = vsel %vm330, %v6020, 0
        %6081 = vmatprep.subr.bf16.mxu0 0
        %6082 = vmatpush1.bf16.msra.mxu0 %v6031
        %6083 = vmatprep.subr.bf16.mxu0 0
        %6084 = vmatpush1.bf16.msra.mxu0 %v6032
        %6085 = vmatprep.subr.bf16.mxu0 0
        %6086 = vmatpush1.bf16.msra.mxu0 0
        %6087 = vmatprep.subr.bf16.mxu0 0
        %6088 = vmatpush1.bf16.msra.mxu0 0
        %6089 = vmatprep.subr.bf16.mxu0 0
        %6090 = vmatpush1.bf16.msra.mxu0 0
        %6091 = vmatprep.subr.bf16.mxu0 0
        %6092 = vmatpush1.bf16.msra.mxu0 0
        %6093 = vmatprep.subr.bf16.mxu0 0
        %6094 = vmatpush1.bf16.msra.mxu0 0
        %6095 = vmatprep.subr.bf16.mxu0 0
        %6096 = vmatpush1.bf16.msra.mxu0 0
        %6097 = vmatprep.subr.bf16.mxu0 0
        %6098 = vmatpush1.bf16.msra.mxu0 0
        %6099 = vmatprep.subr.bf16.mxu0 0
        %6100 = vmatpush1.bf16.msra.mxu0 0
        %6101 = vmatprep.subr.bf16.mxu0 0
        %6102 = vmatpush1.bf16.msra.mxu0 0
        %6103 = vmatprep.subr.bf16.mxu0 0
        %6104 = vmatpush1.bf16.msra.mxu0 0
        %6105 = vmatprep.subr.bf16.mxu0 0
        %6106 = vmatpush1.bf16.msra.mxu0 0
        %6107 = vmatprep.subr.bf16.mxu0 0
        %6108 = vmatpush1.bf16.msra.mxu0 0
        %6109 = vmatprep.subr.bf16.mxu0 0
        %6110 = vmatpush1.bf16.msra.mxu0 0
        %6111 = vmatprep.subr.bf16.mxu0 0
        %6112 = vmatpush1.bf16.msra.mxu0 0
        %6113 = vmatprep.mubr.bf16.mxu0 0
        %6114 = vmatmul.mubr.bf16.gmra.mrb[0].mxu0 %v6079
        %v6115 = vpop.f32.mrb[0].mxu0
        %v6116 = vadd.f32 0.0, %v6115
        %v6117 = vpop.f32.mrb[0].mxu0
        %v6118 = vpop.f32.mrb[0].mxu0
        %v6119 = vpop.f32.mrb[0].mxu0
        %6120 = vdwg.mxu0
        %v6122 = vsel %vm330, %v6021, 0
        %6124 = vmatprep.subr.bf16.mxu0 0
        %6125 = vmatpush1.bf16.msra.mxu0 %v6031
        %6126 = vmatprep.subr.bf16.mxu0 0
        %6127 = vmatpush1.bf16.msra.mxu0 %v6032
        %6128 = vmatprep.subr.bf16.mxu0 0
        %6129 = vmatpush1.bf16.msra.mxu0 0
        %6130 = vmatprep.subr.bf16.mxu0 0
        %6131 = vmatpush1.bf16.msra.mxu0 0
        %6132 = vmatprep.subr.bf16.mxu0 0
        %6133 = vmatpush1.bf16.msra.mxu0 0
        %6134 = vmatprep.subr.bf16.mxu0 0
        %6135 = vmatpush1.bf16.msra.mxu0 0
        %6136 = vmatprep.subr.bf16.mxu0 0
        %6137 = vmatpush1.bf16.msra.mxu0 0
        %6138 = vmatprep.subr.bf16.mxu0 0
        %6139 = vmatpush1.bf16.msra.mxu0 0
        %6140 = vmatprep.subr.bf16.mxu0 0
        %6141 = vmatpush1.bf16.msra.mxu0 0
        %6142 = vmatprep.subr.bf16.mxu0 0
        %6143 = vmatpush1.bf16.msra.mxu0 0
        %6144 = vmatprep.subr.bf16.mxu0 0
        %6145 = vmatpush1.bf16.msra.mxu0 0
        %6146 = vmatprep.subr.bf16.mxu0 0
        %6147 = vmatpush1.bf16.msra.mxu0 0
        %6148 = vmatprep.subr.bf16.mxu0 0
        %6149 = vmatpush1.bf16.msra.mxu0 0
        %6150 = vmatprep.subr.bf16.mxu0 0
        %6151 = vmatpush1.bf16.msra.mxu0 0
        %6152 = vmatprep.subr.bf16.mxu0 0
        %6153 = vmatpush1.bf16.msra.mxu0 0
        %6154 = vmatprep.subr.bf16.mxu0 0
        %6155 = vmatpush1.bf16.msra.mxu0 0
        %6156 = vmatprep.mubr.bf16.mxu0 0
        %6157 = vmatmul.mubr.bf16.gmra.mrb[0].mxu0 %v6122
        %v6158 = vpop.f32.mrb[0].mxu0
        %v6159 = vadd.f32 0.0, %v6158
        %v6160 = vpop.f32.mrb[0].mxu0
        %v6161 = vpop.f32.mrb[0].mxu0
        %v6162 = vpop.f32.mrb[0].mxu0
        %6163 = vdwg.mxu0
        %v6165 = vsel %vm330, %v6022, 0
        %6167 = vmatprep.subr.bf16.mxu0 0
        %6168 = vmatpush1.bf16.msra.mxu0 %v6031
        %6169 = vmatprep.subr.bf16.mxu0 0
        %6170 = vmatpush1.bf16.msra.mxu0 %v6032
        %6171 = vmatprep.subr.bf16.mxu0 0
        %6172 = vmatpush1.bf16.msra.mxu0 0
        %6173 = vmatprep.subr.bf16.mxu0 0
        %6174 = vmatpush1.bf16.msra.mxu0 0
        %6175 = vmatprep.subr.bf16.mxu0 0
        %6176 = vmatpush1.bf16.msra.mxu0 0
        %6177 = vmatprep.subr.bf16.mxu0 0
        %6178 = vmatpush1.bf16.msra.mxu0 0
        %6179 = vmatprep.subr.bf16.mxu0 0
        %6180 = vmatpush1.bf16.msra.mxu0 0
        %6181 = vmatprep.subr.bf16.mxu0 0
        %6182 = vmatpush1.bf16.msra.mxu0 0
        %6183 = vmatprep.subr.bf16.mxu0 0
        %6184 = vmatpush1.bf16.msra.mxu0 0
        %6185 = vmatprep.subr.bf16.mxu0 0
        %6186 = vmatpush1.bf16.msra.mxu0 0
        %6187 = vmatprep.subr.bf16.mxu0 0
        %6188 = vmatpush1.bf16.msra.mxu0 0
        %6189 = vmatprep.subr.bf16.mxu0 0
        %6190 = vmatpush1.bf16.msra.mxu0 0
        %6191 = vmatprep.subr.bf16.mxu0 0
        %6192 = vmatpush1.bf16.msra.mxu0 0
        %6193 = vmatprep.subr.bf16.mxu0 0
        %6194 = vmatpush1.bf16.msra.mxu0 0
        %6195 = vmatprep.subr.bf16.mxu0 0
        %6196 = vmatpush1.bf16.msra.mxu0 0
        %6197 = vmatprep.subr.bf16.mxu0 0
        %6198 = vmatpush1.bf16.msra.mxu0 0
        %6199 = vmatprep.mubr.bf16.mxu0 0
        %6200 = vmatmul.mubr.bf16.gmra.mrb[0].mxu0 %v6165
        %v6201 = vpop.f32.mrb[0].mxu0
        %v6202 = vadd.f32 0.0, %v6201
        %v6203 = vpop.f32.mrb[0].mxu0
        %v6204 = vpop.f32.mrb[0].mxu0
        %v6205 = vpop.f32.mrb[0].mxu0
        %6206 = vdwg.mxu0
        %v6207 = vlaneseq
        %v6208 = vshrl.u32 %v6207, 7
        %v6209 = vsub.s32 2, %v6208
        %v6210 = vrot.slane %v309, %v6209
        %v6211 = vmul.f32 %v6073, %v6210
        %v6212 = vmul.f32 %v6116, %v6210
        %v6213 = vmul.f32 %v6159, %v6210
        %v6214 = vmul.f32 %v6202, %v6210
        %v6215 = vsel %vm330, %v6211, 0.0
        %6216 = vadd.xlane.f32.xlu0 %v6215
        %v6217 = vpop.xlane.xlu0 %6216
        %v6218 = vsel %vm330, %v6212, 0.0
        %6219 = vadd.xlane.f32.xlu0 %v6218
        %v6220 = vpop.xlane.xlu0 %6219
        %v6221 = vsel %vm330, %v6213, 0.0
        %6222 = vadd.xlane.f32.xlu0 %v6221
        %v6223 = vpop.xlane.xlu0 %6222
        %v6224 = vsel %vm330, %v6214, 0.0
        %6225 = vadd.xlane.f32.xlu0 %v6224
        %v6226 = vpop.xlane.xlu0 %6225
        %v6227 = vrot.slane %v309, 3
        %v6228 = vsel %vm330, %v6227, 0
        %v6231 = vsel %vm330, %v6073, 0
        %6233 = vmatprep.subr.mxu0 0.0
        %6234 = vmatpush1.xpose.msra.mxu0 %v6231
        %6235 = vmatprep.subr.mxu0 0.0
        %6236 = vmatpush1.xpose.msra.mxu0 0.0
        %6237 = vmatprep.subr.mxu0 0.0
        %6238 = vmatpush1.xpose.msra.mxu0 0.0
        %6239 = vmatprep.subr.mxu0 0.0
        %6240 = vmatpush1.xpose.msra.mxu0 0.0
        %6241 = vmatprep.subr.mxu0 0.0
        %6242 = vmatpush1.xpose.msra.mxu0 0.0
        %6243 = vmatprep.subr.mxu0 0.0
        %6244 = vmatpush1.xpose.msra.mxu0 0.0
        %6245 = vmatprep.subr.mxu0 0.0
        %6246 = vmatpush1.xpose.msra.mxu0 0.0
        %6247 = vmatprep.subr.mxu0 0.0
        %6248 = vmatpush1.xpose.msra.mxu0 0.0
        %6249 = vmatprep.subr.mxu0 0.0
        %6250 = vmatpush1.xpose.msra.mxu0 0.0
        %6251 = vmatprep.subr.mxu0 0.0
        %6252 = vmatpush1.xpose.msra.mxu0 0.0
        %6253 = vmatprep.subr.mxu0 0.0
        %6254 = vmatpush1.xpose.msra.mxu0 0.0
        %6255 = vmatprep.subr.mxu0 0.0
        %6256 = vmatpush1.xpose.msra.mxu0 0.0
        %6257 = vmatprep.subr.mxu0 0.0
        %6258 = vmatpush1.xpose.msra.mxu0 0.0
        %6259 = vmatprep.subr.mxu0 0.0
        %6260 = vmatpush1.xpose.msra.mxu0 0.0
        %6261 = vmatprep.subr.mxu0 0.0
        %6262 = vmatpush1.xpose.msra.mxu0 0.0
        %6263 = vmatprep.subr.mxu0 0.0
        %6264 = vmatpush1.xpose.msra.mxu0 0.0
        %6265 = vmatprep.subr.mxu0 0.0
        %6266 = vmatpush1.xpose.msra.mxu0 0.0
        %6267 = vmatprep.subr.mxu0 0.0
        %6268 = vmatpush1.xpose.msra.mxu0 0.0
        %6269 = vmatprep.subr.mxu0 0.0
        %6270 = vmatpush1.xpose.msra.mxu0 0.0
        %6271 = vmatprep.subr.mxu0 0.0
        %6272 = vmatpush1.xpose.msra.mxu0 0.0
        %6273 = vmatprep.subr.mxu0 0.0
        %6274 = vmatpush1.xpose.msra.mxu0 0.0
        %6275 = vmatprep.subr.mxu0 0.0
        %6276 = vmatpush1.xpose.msra.mxu0 0.0
        %6277 = vmatprep.subr.mxu0 0.0
        %6278 = vmatpush1.xpose.msra.mxu0 0.0
        %6279 = vmatprep.subr.mxu0 0.0
        %6280 = vmatpush1.xpose.msra.mxu0 0.0
        %6281 = vmatprep.subr.mxu0 0.0
        %6282 = vmatpush1.xpose.msra.mxu0 0.0
        %6283 = vmatprep.subr.mxu0 0.0
        %6284 = vmatpush1.xpose.msra.mxu0 0.0
        %6285 = vmatprep.subr.mxu0 0.0
        %6286 = vmatpush1.xpose.msra.mxu0 0.0
        %6287 = vmatprep.subr.mxu0 0.0
        %6288 = vmatpush1.xpose.msra.mxu0 0.0
        %6289 = vmatprep.subr.mxu0 0.0
        %6290 = vmatpush1.xpose.msra.mxu0 0.0
        %6291 = vmatprep.subr.mxu0 0.0
        %6292 = vmatpush1.xpose.msra.mxu0 0.0
        %6293 = vmatprep.subr.mxu0 0.0
        %6294 = vmatpush1.xpose.msra.mxu0 0.0
        %6295 = vmatprep.subr.mxu0 0.0
        %6296 = vmatpush1.xpose.msra.mxu0 0.0
        %6297 = vmatprep.mubr.f32.mxu0 0.0
        %6298 = vmatmul.mubr.f32.gmra.mrb[0].mxu0 %v6228
        %v6299 = vpop.f32.mrb[0].mxu0
        %v6300 = vadd.f32 0.0, %v6299
        %v6301 = vpop.f32.mrb[0].mxu0
        %6302 = vdwg.mxu0
        %v6304 = vsel %vm330, %v6116, 0
        %6306 = vmatprep.subr.mxu0 0.0
        %6307 = vmatpush1.xpose.msra.mxu0 %v6304
        %6308 = vmatprep.subr.mxu0 0.0
        %6309 = vmatpush1.xpose.msra.mxu0 0.0
        %6310 = vmatprep.subr.mxu0 0.0
        %6311 = vmatpush1.xpose.msra.mxu0 0.0
        %6312 = vmatprep.subr.mxu0 0.0
        %6313 = vmatpush1.xpose.msra.mxu0 0.0
        %6314 = vmatprep.subr.mxu0 0.0
        %6315 = vmatpush1.xpose.msra.mxu0 0.0
        %6316 = vmatprep.subr.mxu0 0.0
        %6317 = vmatpush1.xpose.msra.mxu0 0.0
        %6318 = vmatprep.subr.mxu0 0.0
        %6319 = vmatpush1.xpose.msra.mxu0 0.0
        %6320 = vmatprep.subr.mxu0 0.0
        %6321 = vmatpush1.xpose.msra.mxu0 0.0
        %6322 = vmatprep.subr.mxu0 0.0
        %6323 = vmatpush1.xpose.msra.mxu0 0.0
        %6324 = vmatprep.subr.mxu0 0.0
        %6325 = vmatpush1.xpose.msra.mxu0 0.0
        %6326 = vmatprep.subr.mxu0 0.0
        %6327 = vmatpush1.xpose.msra.mxu0 0.0
        %6328 = vmatprep.subr.mxu0 0.0
        %6329 = vmatpush1.xpose.msra.mxu0 0.0
        %6330 = vmatprep.subr.mxu0 0.0
        %6331 = vmatpush1.xpose.msra.mxu0 0.0
        %6332 = vmatprep.subr.mxu0 0.0
        %6333 = vmatpush1.xpose.msra.mxu0 0.0
        %6334 = vmatprep.subr.mxu0 0.0
        %6335 = vmatpush1.xpose.msra.mxu0 0.0
        %6336 = vmatprep.subr.mxu0 0.0
        %6337 = vmatpush1.xpose.msra.mxu0 0.0
        %6338 = vmatprep.subr.mxu0 0.0
        %6339 = vmatpush1.xpose.msra.mxu0 0.0
        %6340 = vmatprep.subr.mxu0 0.0
        %6341 = vmatpush1.xpose.msra.mxu0 0.0
        %6342 = vmatprep.subr.mxu0 0.0
        %6343 = vmatpush1.xpose.msra.mxu0 0.0
        %6344 = vmatprep.subr.mxu0 0.0
        %6345 = vmatpush1.xpose.msra.mxu0 0.0
        %6346 = vmatprep.subr.mxu0 0.0
        %6347 = vmatpush1.xpose.msra.mxu0 0.0
        %6348 = vmatprep.subr.mxu0 0.0
        %6349 = vmatpush1.xpose.msra.mxu0 0.0
        %6350 = vmatprep.subr.mxu0 0.0
        %6351 = vmatpush1.xpose.msra.mxu0 0.0
        %6352 = vmatprep.subr.mxu0 0.0
        %6353 = vmatpush1.xpose.msra.mxu0 0.0
        %6354 = vmatprep.subr.mxu0 0.0
        %6355 = vmatpush1.xpose.msra.mxu0 0.0
        %6356 = vmatprep.subr.mxu0 0.0
        %6357 = vmatpush1.xpose.msra.mxu0 0.0
        %6358 = vmatprep.subr.mxu0 0.0
        %6359 = vmatpush1.xpose.msra.mxu0 0.0
        %6360 = vmatprep.subr.mxu0 0.0
        %6361 = vmatpush1.xpose.msra.mxu0 0.0
        %6362 = vmatprep.subr.mxu0 0.0
        %6363 = vmatpush1.xpose.msra.mxu0 0.0
        %6364 = vmatprep.subr.mxu0 0.0
        %6365 = vmatpush1.xpose.msra.mxu0 0.0
        %6366 = vmatprep.subr.mxu0 0.0
        %6367 = vmatpush1.xpose.msra.mxu0 0.0
        %6368 = vmatprep.subr.mxu0 0.0
        %6369 = vmatpush1.xpose.msra.mxu0 0.0
        %6370 = vmatprep.mubr.f32.mxu0 0.0
        %6371 = vmatmul.mubr.f32.gmra.mrb[0].mxu0 %v6228
        %v6372 = vpop.f32.mrb[0].mxu0
        %v6373 = vadd.f32 0.0, %v6372
        %v6374 = vpop.f32.mrb[0].mxu0
        %6375 = vdwg.mxu0
        %v6377 = vsel %vm330, %v6159, 0
        %6379 = vmatprep.subr.mxu0 0.0
        %6380 = vmatpush1.xpose.msra.mxu0 %v6377
        %6381 = vmatprep.subr.mxu0 0.0
        %6382 = vmatpush1.xpose.msra.mxu0 0.0
        %6383 = vmatprep.subr.mxu0 0.0
        %6384 = vmatpush1.xpose.msra.mxu0 0.0
        %6385 = vmatprep.subr.mxu0 0.0
        %6386 = vmatpush1.xpose.msra.mxu0 0.0
        %6387 = vmatprep.subr.mxu0 0.0
        %6388 = vmatpush1.xpose.msra.mxu0 0.0
        %6389 = vmatprep.subr.mxu0 0.0
        %6390 = vmatpush1.xpose.msra.mxu0 0.0
        %6391 = vmatprep.subr.mxu0 0.0
        %6392 = vmatpush1.xpose.msra.mxu0 0.0
        %6393 = vmatprep.subr.mxu0 0.0
        %6394 = vmatpush1.xpose.msra.mxu0 0.0
        %6395 = vmatprep.subr.mxu0 0.0
        %6396 = vmatpush1.xpose.msra.mxu0 0.0
        %6397 = vmatprep.subr.mxu0 0.0
        %6398 = vmatpush1.xpose.msra.mxu0 0.0
        %6399 = vmatprep.subr.mxu0 0.0
        %6400 = vmatpush1.xpose.msra.mxu0 0.0
        %6401 = vmatprep.subr.mxu0 0.0
        %6402 = vmatpush1.xpose.msra.mxu0 0.0
        %6403 = vmatprep.subr.mxu0 0.0
        %6404 = vmatpush1.xpose.msra.mxu0 0.0
        %6405 = vmatprep.subr.mxu0 0.0
        %6406 = vmatpush1.xpose.msra.mxu0 0.0
        %6407 = vmatprep.subr.mxu0 0.0
        %6408 = vmatpush1.xpose.msra.mxu0 0.0
        %6409 = vmatprep.subr.mxu0 0.0
        %6410 = vmatpush1.xpose.msra.mxu0 0.0
        %6411 = vmatprep.subr.mxu0 0.0
        %6412 = vmatpush1.xpose.msra.mxu0 0.0
        %6413 = vmatprep.subr.mxu0 0.0
        %6414 = vmatpush1.xpose.msra.mxu0 0.0
        %6415 = vmatprep.subr.mxu0 0.0
        %6416 = vmatpush1.xpose.msra.mxu0 0.0
        %6417 = vmatprep.subr.mxu0 0.0
        %6418 = vmatpush1.xpose.msra.mxu0 0.0
        %6419 = vmatprep.subr.mxu0 0.0
        %6420 = vmatpush1.xpose.msra.mxu0 0.0
        %6421 = vmatprep.subr.mxu0 0.0
        %6422 = vmatpush1.xpose.msra.mxu0 0.0
        %6423 = vmatprep.subr.mxu0 0.0
        %6424 = vmatpush1.xpose.msra.mxu0 0.0
        %6425 = vmatprep.subr.mxu0 0.0
        %6426 = vmatpush1.xpose.msra.mxu0 0.0
        %6427 = vmatprep.subr.mxu0 0.0
        %6428 = vmatpush1.xpose.msra.mxu0 0.0
        %6429 = vmatprep.subr.mxu0 0.0
        %6430 = vmatpush1.xpose.msra.mxu0 0.0
        %6431 = vmatprep.subr.mxu0 0.0
        %6432 = vmatpush1.xpose.msra.mxu0 0.0
        %6433 = vmatprep.subr.mxu0 0.0
        %6434 = vmatpush1.xpose.msra.mxu0 0.0
        %6435 = vmatprep.subr.mxu0 0.0
        %6436 = vmatpush1.xpose.msra.mxu0 0.0
        %6437 = vmatprep.subr.mxu0 0.0
        %6438 = vmatpush1.xpose.msra.mxu0 0.0
        %6439 = vmatprep.subr.mxu0 0.0
        %6440 = vmatpush1.xpose.msra.mxu0 0.0
        %6441 = vmatprep.subr.mxu0 0.0
        %6442 = vmatpush1.xpose.msra.mxu0 0.0
        %6443 = vmatprep.mubr.f32.mxu0 0.0
        %6444 = vmatmul.mubr.f32.gmra.mrb[0].mxu0 %v6228
        %v6445 = vpop.f32.mrb[0].mxu0
        %v6446 = vadd.f32 0.0, %v6445
        %v6447 = vpop.f32.mrb[0].mxu0
        %6448 = vdwg.mxu0
        %v6450 = vsel %vm330, %v6202, 0
        %6452 = vmatprep.subr.mxu0 0.0
        %6453 = vmatpush1.xpose.msra.mxu0 %v6450
        %6454 = vmatprep.subr.mxu0 0.0
        %6455 = vmatpush1.xpose.msra.mxu0 0.0
        %6456 = vmatprep.subr.mxu0 0.0
        %6457 = vmatpush1.xpose.msra.mxu0 0.0
        %6458 = vmatprep.subr.mxu0 0.0
        %6459 = vmatpush1.xpose.msra.mxu0 0.0
        %6460 = vmatprep.subr.mxu0 0.0
        %6461 = vmatpush1.xpose.msra.mxu0 0.0
        %6462 = vmatprep.subr.mxu0 0.0
        %6463 = vmatpush1.xpose.msra.mxu0 0.0
        %6464 = vmatprep.subr.mxu0 0.0
        %6465 = vmatpush1.xpose.msra.mxu0 0.0
        %6466 = vmatprep.subr.mxu0 0.0
        %6467 = vmatpush1.xpose.msra.mxu0 0.0
        %6468 = vmatprep.subr.mxu0 0.0
        %6469 = vmatpush1.xpose.msra.mxu0 0.0
        %6470 = vmatprep.subr.mxu0 0.0
        %6471 = vmatpush1.xpose.msra.mxu0 0.0
        %6472 = vmatprep.subr.mxu0 0.0
        %6473 = vmatpush1.xpose.msra.mxu0 0.0
        %6474 = vmatprep.subr.mxu0 0.0
        %6475 = vmatpush1.xpose.msra.mxu0 0.0
        %6476 = vmatprep.subr.mxu0 0.0
        %6477 = vmatpush1.xpose.msra.mxu0 0.0
        %6478 = vmatprep.subr.mxu0 0.0
        %6479 = vmatpush1.xpose.msra.mxu0 0.0
        %6480 = vmatprep.subr.mxu0 0.0
        %6481 = vmatpush1.xpose.msra.mxu0 0.0
        %6482 = vmatprep.subr.mxu0 0.0
        %6483 = vmatpush1.xpose.msra.mxu0 0.0
        %6484 = vmatprep.subr.mxu0 0.0
        %6485 = vmatpush1.xpose.msra.mxu0 0.0
        %6486 = vmatprep.subr.mxu0 0.0
        %6487 = vmatpush1.xpose.msra.mxu0 0.0
        %6488 = vmatprep.subr.mxu0 0.0
        %6489 = vmatpush1.xpose.msra.mxu0 0.0
        %6490 = vmatprep.subr.mxu0 0.0
        %6491 = vmatpush1.xpose.msra.mxu0 0.0
        %6492 = vmatprep.subr.mxu0 0.0
        %6493 = vmatpush1.xpose.msra.mxu0 0.0
        %6494 = vmatprep.subr.mxu0 0.0
        %6495 = vmatpush1.xpose.msra.mxu0 0.0
        %6496 = vmatprep.subr.mxu0 0.0
        %6497 = vmatpush1.xpose.msra.mxu0 0.0
        %6498 = vmatprep.subr.mxu0 0.0
        %6499 = vmatpush1.xpose.msra.mxu0 0.0
        %6500 = vmatprep.subr.mxu0 0.0
        %6501 = vmatpush1.xpose.msra.mxu0 0.0
        %6502 = vmatprep.subr.mxu0 0.0
        %6503 = vmatpush1.xpose.msra.mxu0 0.0
        %6504 = vmatprep.subr.mxu0 0.0
        %6505 = vmatpush1.xpose.msra.mxu0 0.0
        %6506 = vmatprep.subr.mxu0 0.0
        %6507 = vmatpush1.xpose.msra.mxu0 0.0
        %6508 = vmatprep.subr.mxu0 0.0
        %6509 = vmatpush1.xpose.msra.mxu0 0.0
        %6510 = vmatprep.subr.mxu0 0.0
        %6511 = vmatpush1.xpose.msra.mxu0 0.0
        %6512 = vmatprep.subr.mxu0 0.0
        %6513 = vmatpush1.xpose.msra.mxu0 0.0
        %6514 = vmatprep.subr.mxu0 0.0
        %6515 = vmatpush1.xpose.msra.mxu0 0.0
        %6516 = vmatprep.mubr.f32.mxu0 0.0
        %6517 = vmatmul.mubr.f32.gmra.mrb[0].mxu0 %v6228
        %v6518 = vpop.f32.mrb[0].mxu0
        %v6519 = vadd.f32 0.0, %v6518
        %v6520 = vpop.f32.mrb[0].mxu0
        %6521 = vdwg.mxu0
        %v6522 = vlaneseq
        %v6523 = vshrl.u32 %v6522, 7
        %v6524 = vsub.s32 0, %v6523
        %v6525 = vrot.slane %v6300, %v6524
        %v6526 = vlaneseq
        %v6527 = vshrl.u32 %v6526, 7
        %v6528 = vsub.s32 0, %v6527
        %v6529 = vrot.slane %v6373, %v6528
        %v6530 = vlaneseq
        %v6531 = vshrl.u32 %v6530, 7
        %v6532 = vsub.s32 0, %v6531
        %v6533 = vrot.slane %v6446, %v6532
        %v6534 = vlaneseq
        %v6535 = vshrl.u32 %v6534, 7
        %v6536 = vsub.s32 0, %v6535
        %v6537 = vrot.slane %v6519, %v6536
        %v6538 = vadd.f32 %v6217, %v6525
        %v6539 = vadd.f32 %v6220, %v6529
        %v6540 = vadd.f32 %v6223, %v6533
        %v6541 = vadd.f32 %v6226, %v6537
        %vm6542 = vcmp.gt.f32.partialorder %v6538, 0.0
        %vm6543 = vcmp.gt.f32.partialorder %v6539, 0.0
        %vm6544 = vcmp.gt.f32.partialorder %v6540, 0.0
        %vm6545 = vcmp.gt.f32.partialorder %v6541, 0.0
        %v6546 = vmul.f32 %v6538, 0.2
        %v6547 = vmul.f32 %v6539, 0.2
        %v6548 = vmul.f32 %v6540, 0.2
        %v6549 = vmul.f32 %v6541, 0.2
        %v6550 = vsel %vm6542, %v6538, %v6546
        %v6551 = vsel %vm6543, %v6539, %v6547
        %v6552 = vsel %vm6544, %v6540, %v6548
        %v6553 = vsel %vm6545, %v6541, %v6549
        %v6554 = vsel %vm854, %v6550, -1e+09
        %v6555 = vsel %vm854, %v6551, -1e+09
        %v6556 = vsel %vm854, %v6552, -1e+09
        %v6557 = vsel %vm854, %v6553, -1e+09
        %v6558 = vsel %vm5653, %v6554, -inf
        %6559 = vmax.xlane.f32.xlu0 %v6558
        %v6560 = vpop.xlane.xlu0 %6559
        %v6561 = vsel %vm5653, %v6555, -inf
        %6562 = vmax.xlane.f32.xlu0 %v6561
        %v6563 = vpop.xlane.xlu0 %6562
        %v6564 = vsel %vm5653, %v6556, -inf
        %6565 = vmax.xlane.f32.xlu0 %v6564
        %v6566 = vpop.xlane.xlu0 %6565
        %v6567 = vsel %vm5653, %v6557, -inf
        %6568 = vmax.xlane.f32.xlu0 %v6567
        %v6569 = vpop.xlane.xlu0 %6568
        %v6570 = vsub.f32 %v6554, %v6560
        %v6571 = vsub.f32 %v6555, %v6563
        %v6572 = vsub.f32 %v6556, %v6566
        %v6573 = vsub.f32 %v6557, %v6569
        %v6574 = vmul.f32 %v6570, 1.442695
        %v6575 = vpow.pop %v6574
        %v6576 = vmul.f32 %v6571, 1.442695
        %v6577 = vpow.pop %v6576
        %v6578 = vmul.f32 %v6572, 1.442695
        %v6579 = vpow.pop %v6578
        %v6580 = vmul.f32 %v6573, 1.442695
        %v6581 = vpow.pop %v6580
        %v6582 = vsel %vm5653, %v6575, 0.0
        %6583 = vadd.xlane.f32.xlu0 %v6582
        %v6584 = vpop.xlane.xlu0 %6583
        %v6585 = vsel %vm5653, %v6577, 0.0
        %6586 = vadd.xlane.f32.xlu0 %v6585
        %v6587 = vpop.xlane.xlu0 %6586
        %v6588 = vsel %vm5653, %v6579, 0.0
        %6589 = vadd.xlane.f32.xlu0 %v6588
        %v6590 = vpop.xlane.xlu0 %6589
        %v6591 = vsel %vm5653, %v6581, 0.0
        %6592 = vadd.xlane.f32.xlu0 %v6591
        %v6593 = vpop.xlane.xlu0 %6592
        %v6594 = vrcp.pop %v6584
        %v6595 = vmul.f32 %v6575, %v6594
        %v6596 = vrcp.pop %v6587
        %v6597 = vmul.f32 %v6577, %v6596
        %v6598 = vrcp.pop %v6590
        %v6599 = vmul.f32 %v6579, %v6598
        %v6600 = vrcp.pop %v6593
        %v6601 = vmul.f32 %v6581, %v6600
        %v6603 = vsel %vm5653, %v6595, 0
        %6605 = vmatprep.subr.mxu0 0.0
        %6606 = vmatpush1.msra.mxu0 %v6073
        %6607 = vmatprep.subr.mxu0 0.0
        %6608 = vmatpush1.msra.mxu0 0.0
        %6609 = vmatprep.subr.mxu0 0.0
        %6610 = vmatpush1.msra.mxu0 0.0
        %6611 = vmatprep.subr.mxu0 0.0
        %6612 = vmatpush1.msra.mxu0 0.0
        %6613 = vmatprep.subr.mxu0 0.0
        %6614 = vmatpush1.msra.mxu0 0.0
        %6615 = vmatprep.subr.mxu0 0.0
        %6616 = vmatpush1.msra.mxu0 0.0
        %6617 = vmatprep.subr.mxu0 0.0
        %6618 = vmatpush1.msra.mxu0 0.0
        %6619 = vmatprep.subr.mxu0 0.0
        %6620 = vmatpush1.msra.mxu0 0.0
        %6621 = vmatprep.subr.mxu0 0.0
        %6622 = vmatpush1.msra.mxu0 0.0
        %6623 = vmatprep.subr.mxu0 0.0
        %6624 = vmatpush1.msra.mxu0 0.0
        %6625 = vmatprep.subr.mxu0 0.0
        %6626 = vmatpush1.msra.mxu0 0.0
        %6627 = vmatprep.subr.mxu0 0.0
        %6628 = vmatpush1.msra.mxu0 0.0
        %6629 = vmatprep.subr.mxu0 0.0
        %6630 = vmatpush1.msra.mxu0 0.0
        %6631 = vmatprep.subr.mxu0 0.0
        %6632 = vmatpush1.msra.mxu0 0.0
        %6633 = vmatprep.subr.mxu0 0.0
        %6634 = vmatpush1.msra.mxu0 0.0
        %6635 = vmatprep.subr.mxu0 0.0
        %6636 = vmatpush1.msra.mxu0 0.0
        %6637 = vmatprep.subr.mxu0 0.0
        %6638 = vmatpush1.msra.mxu0 0.0
        %6639 = vmatprep.subr.mxu0 0.0
        %6640 = vmatpush1.msra.mxu0 0.0
        %6641 = vmatprep.subr.mxu0 0.0
        %6642 = vmatpush1.msra.mxu0 0.0
        %6643 = vmatprep.subr.mxu0 0.0
        %6644 = vmatpush1.msra.mxu0 0.0
        %6645 = vmatprep.subr.mxu0 0.0
        %6646 = vmatpush1.msra.mxu0 0.0
        %6647 = vmatprep.subr.mxu0 0.0
        %6648 = vmatpush1.msra.mxu0 0.0
        %6649 = vmatprep.subr.mxu0 0.0
        %6650 = vmatpush1.msra.mxu0 0.0
        %6651 = vmatprep.subr.mxu0 0.0
        %6652 = vmatpush1.msra.mxu0 0.0
        %6653 = vmatprep.subr.mxu0 0.0
        %6654 = vmatpush1.msra.mxu0 0.0
        %6655 = vmatprep.subr.mxu0 0.0
        %6656 = vmatpush1.msra.mxu0 0.0
        %6657 = vmatprep.subr.mxu0 0.0
        %6658 = vmatpush1.msra.mxu0 0.0
        %6659 = vmatprep.subr.mxu0 0.0
        %6660 = vmatpush1.msra.mxu0 0.0
        %6661 = vmatprep.subr.mxu0 0.0
        %6662 = vmatpush1.msra.mxu0 0.0
        %6663 = vmatprep.subr.mxu0 0.0
        %6664 = vmatpush1.msra.mxu0 0.0
        %6665 = vmatprep.subr.mxu0 0.0
        %6666 = vmatpush1.msra.mxu0 0.0
        %6667 = vmatprep.subr.mxu0 0.0
        %6668 = vmatpush1.msra.mxu0 0.0
        %6669 = vmatprep.mubr.f32.mxu0 0.0
        %6670 = vmatmul.mubr.f32.gmra.mrb[0].mxu0 %v6603
        %v6671 = vpop.f32.mrb[0].mxu0
        %v6672 = vadd.f32 0.0, %v6671
        %v6673 = vpop.f32.mrb[0].mxu0
        %6674 = vdwg.mxu0
        %v6676 = vsel %vm5653, %v6597, 0
        %6678 = vmatprep.subr.mxu0 0.0
        %6679 = vmatpush1.msra.mxu0 %v6116
        %6680 = vmatprep.subr.mxu0 0.0
        %6681 = vmatpush1.msra.mxu0 0.0
        %6682 = vmatprep.subr.mxu0 0.0
        %6683 = vmatpush1.msra.mxu0 0.0
        %6684 = vmatprep.subr.mxu0 0.0
        %6685 = vmatpush1.msra.mxu0 0.0
        %6686 = vmatprep.subr.mxu0 0.0
        %6687 = vmatpush1.msra.mxu0 0.0
        %6688 = vmatprep.subr.mxu0 0.0
        %6689 = vmatpush1.msra.mxu0 0.0
        %6690 = vmatprep.subr.mxu0 0.0
        %6691 = vmatpush1.msra.mxu0 0.0
        %6692 = vmatprep.subr.mxu0 0.0
        %6693 = vmatpush1.msra.mxu0 0.0
        %6694 = vmatprep.subr.mxu0 0.0
        %6695 = vmatpush1.msra.mxu0 0.0
        %6696 = vmatprep.subr.mxu0 0.0
        %6697 = vmatpush1.msra.mxu0 0.0
        %6698 = vmatprep.subr.mxu0 0.0
        %6699 = vmatpush1.msra.mxu0 0.0
        %6700 = vmatprep.subr.mxu0 0.0
        %6701 = vmatpush1.msra.mxu0 0.0
        %6702 = vmatprep.subr.mxu0 0.0
        %6703 = vmatpush1.msra.mxu0 0.0
        %6704 = vmatprep.subr.mxu0 0.0
        %6705 = vmatpush1.msra.mxu0 0.0
        %6706 = vmatprep.subr.mxu0 0.0
        %6707 = vmatpush1.msra.mxu0 0.0
        %6708 = vmatprep.subr.mxu0 0.0
        %6709 = vmatpush1.msra.mxu0 0.0
        %6710 = vmatprep.subr.mxu0 0.0
        %6711 = vmatpush1.msra.mxu0 0.0
        %6712 = vmatprep.subr.mxu0 0.0
        %6713 = vmatpush1.msra.mxu0 0.0
        %6714 = vmatprep.subr.mxu0 0.0
        %6715 = vmatpush1.msra.mxu0 0.0
        %6716 = vmatprep.subr.mxu0 0.0
        %6717 = vmatpush1.msra.mxu0 0.0
        %6718 = vmatprep.subr.mxu0 0.0
        %6719 = vmatpush1.msra.mxu0 0.0
        %6720 = vmatprep.subr.mxu0 0.0
        %6721 = vmatpush1.msra.mxu0 0.0
        %6722 = vmatprep.subr.mxu0 0.0
        %6723 = vmatpush1.msra.mxu0 0.0
        %6724 = vmatprep.subr.mxu0 0.0
        %6725 = vmatpush1.msra.mxu0 0.0
        %6726 = vmatprep.subr.mxu0 0.0
        %6727 = vmatpush1.msra.mxu0 0.0
        %6728 = vmatprep.subr.mxu0 0.0
        %6729 = vmatpush1.msra.mxu0 0.0
        %6730 = vmatprep.subr.mxu0 0.0
        %6731 = vmatpush1.msra.mxu0 0.0
        %6732 = vmatprep.subr.mxu0 0.0
        %6733 = vmatpush1.msra.mxu0 0.0
        %6734 = vmatprep.subr.mxu0 0.0
        %6735 = vmatpush1.msra.mxu0 0.0
        %6736 = vmatprep.subr.mxu0 0.0
        %6737 = vmatpush1.msra.mxu0 0.0
        %6738 = vmatprep.subr.mxu0 0.0
        %6739 = vmatpush1.msra.mxu0 0.0
        %6740 = vmatprep.subr.mxu0 0.0
        %6741 = vmatpush1.msra.mxu0 0.0
        %6742 = vmatprep.mubr.f32.mxu0 0.0
        %6743 = vmatmul.mubr.f32.gmra.mrb[0].mxu0 %v6676
        %v6744 = vpop.f32.mrb[0].mxu0
        %v6745 = vadd.f32 0.0, %v6744
        %v6746 = vpop.f32.mrb[0].mxu0
        %6747 = vdwg.mxu0
        %v6749 = vsel %vm5653, %v6599, 0
        %6751 = vmatprep.subr.mxu0 0.0
        %6752 = vmatpush1.msra.mxu0 %v6159
        %6753 = vmatprep.subr.mxu0 0.0
        %6754 = vmatpush1.msra.mxu0 0.0
        %6755 = vmatprep.subr.mxu0 0.0
        %6756 = vmatpush1.msra.mxu0 0.0
        %6757 = vmatprep.subr.mxu0 0.0
        %6758 = vmatpush1.msra.mxu0 0.0
        %6759 = vmatprep.subr.mxu0 0.0
        %6760 = vmatpush1.msra.mxu0 0.0
        %6761 = vmatprep.subr.mxu0 0.0
        %6762 = vmatpush1.msra.mxu0 0.0
        %6763 = vmatprep.subr.mxu0 0.0
        %6764 = vmatpush1.msra.mxu0 0.0
        %6765 = vmatprep.subr.mxu0 0.0
        %6766 = vmatpush1.msra.mxu0 0.0
        %6767 = vmatprep.subr.mxu0 0.0
        %6768 = vmatpush1.msra.mxu0 0.0
        %6769 = vmatprep.subr.mxu0 0.0
        %6770 = vmatpush1.msra.mxu0 0.0
        %6771 = vmatprep.subr.mxu0 0.0
        %6772 = vmatpush1.msra.mxu0 0.0
        %6773 = vmatprep.subr.mxu0 0.0
        %6774 = vmatpush1.msra.mxu0 0.0
        %6775 = vmatprep.subr.mxu0 0.0
        %6776 = vmatpush1.msra.mxu0 0.0
        %6777 = vmatprep.subr.mxu0 0.0
        %6778 = vmatpush1.msra.mxu0 0.0
        %6779 = vmatprep.subr.mxu0 0.0
        %6780 = vmatpush1.msra.mxu0 0.0
        %6781 = vmatprep.subr.mxu0 0.0
        %6782 = vmatpush1.msra.mxu0 0.0
        %6783 = vmatprep.subr.mxu0 0.0
        %6784 = vmatpush1.msra.mxu0 0.0
        %6785 = vmatprep.subr.mxu0 0.0
        %6786 = vmatpush1.msra.mxu0 0.0
        %6787 = vmatprep.subr.mxu0 0.0
        %6788 = vmatpush1.msra.mxu0 0.0
        %6789 = vmatprep.subr.mxu0 0.0
        %6790 = vmatpush1.msra.mxu0 0.0
        %6791 = vmatprep.subr.mxu0 0.0
        %6792 = vmatpush1.msra.mxu0 0.0
        %6793 = vmatprep.subr.mxu0 0.0
        %6794 = vmatpush1.msra.mxu0 0.0
        %6795 = vmatprep.subr.mxu0 0.0
        %6796 = vmatpush1.msra.mxu0 0.0
        %6797 = vmatprep.subr.mxu0 0.0
        %6798 = vmatpush1.msra.mxu0 0.0
        %6799 = vmatprep.subr.mxu0 0.0
        %6800 = vmatpush1.msra.mxu0 0.0
        %6801 = vmatprep.subr.mxu0 0.0
        %6802 = vmatpush1.msra.mxu0 0.0
        %6803 = vmatprep.subr.mxu0 0.0
        %6804 = vmatpush1.msra.mxu0 0.0
        %6805 = vmatprep.subr.mxu0 0.0
        %6806 = vmatpush1.msra.mxu0 0.0
        %6807 = vmatprep.subr.mxu0 0.0
        %6808 = vmatpush1.msra.mxu0 0.0
        %6809 = vmatprep.subr.mxu0 0.0
        %6810 = vmatpush1.msra.mxu0 0.0
        %6811 = vmatprep.subr.mxu0 0.0
        %6812 = vmatpush1.msra.mxu0 0.0
        %6813 = vmatprep.subr.mxu0 0.0
        %6814 = vmatpush1.msra.mxu0 0.0
        %6815 = vmatprep.mubr.f32.mxu0 0.0
        %6816 = vmatmul.mubr.f32.gmra.mrb[0].mxu0 %v6749
        %v6817 = vpop.f32.mrb[0].mxu0
        %v6818 = vadd.f32 0.0, %v6817
        %v6819 = vpop.f32.mrb[0].mxu0
        %6820 = vdwg.mxu0
        %v6822 = vsel %vm5653, %v6601, 0
        %6824 = vmatprep.subr.mxu0 0.0
        %6825 = vmatpush1.msra.mxu0 %v6202
        %6826 = vmatprep.subr.mxu0 0.0
        %6827 = vmatpush1.msra.mxu0 0.0
        %6828 = vmatprep.subr.mxu0 0.0
        %6829 = vmatpush1.msra.mxu0 0.0
        %6830 = vmatprep.subr.mxu0 0.0
        %6831 = vmatpush1.msra.mxu0 0.0
        %6832 = vmatprep.subr.mxu0 0.0
        %6833 = vmatpush1.msra.mxu0 0.0
        %6834 = vmatprep.subr.mxu0 0.0
        %6835 = vmatpush1.msra.mxu0 0.0
        %6836 = vmatprep.subr.mxu0 0.0
        %6837 = vmatpush1.msra.mxu0 0.0
        %6838 = vmatprep.subr.mxu0 0.0
        %6839 = vmatpush1.msra.mxu0 0.0
        %6840 = vmatprep.subr.mxu0 0.0
        %6841 = vmatpush1.msra.mxu0 0.0
        %6842 = vmatprep.subr.mxu0 0.0
        %6843 = vmatpush1.msra.mxu0 0.0
        %6844 = vmatprep.subr.mxu0 0.0
        %6845 = vmatpush1.msra.mxu0 0.0
        %6846 = vmatprep.subr.mxu0 0.0
        %6847 = vmatpush1.msra.mxu0 0.0
        %6848 = vmatprep.subr.mxu0 0.0
        %6849 = vmatpush1.msra.mxu0 0.0
        %6850 = vmatprep.subr.mxu0 0.0
        %6851 = vmatpush1.msra.mxu0 0.0
        %6852 = vmatprep.subr.mxu0 0.0
        %6853 = vmatpush1.msra.mxu0 0.0
        %6854 = vmatprep.subr.mxu0 0.0
        %6855 = vmatpush1.msra.mxu0 0.0
        %6856 = vmatprep.subr.mxu0 0.0
        %6857 = vmatpush1.msra.mxu0 0.0
        %6858 = vmatprep.subr.mxu0 0.0
        %6859 = vmatpush1.msra.mxu0 0.0
        %6860 = vmatprep.subr.mxu0 0.0
        %6861 = vmatpush1.msra.mxu0 0.0
        %6862 = vmatprep.subr.mxu0 0.0
        %6863 = vmatpush1.msra.mxu0 0.0
        %6864 = vmatprep.subr.mxu0 0.0
        %6865 = vmatpush1.msra.mxu0 0.0
        %6866 = vmatprep.subr.mxu0 0.0
        %6867 = vmatpush1.msra.mxu0 0.0
        %6868 = vmatprep.subr.mxu0 0.0
        %6869 = vmatpush1.msra.mxu0 0.0
        %6870 = vmatprep.subr.mxu0 0.0
        %6871 = vmatpush1.msra.mxu0 0.0
        %6872 = vmatprep.subr.mxu0 0.0
        %6873 = vmatpush1.msra.mxu0 0.0
        %6874 = vmatprep.subr.mxu0 0.0
        %6875 = vmatpush1.msra.mxu0 0.0
        %6876 = vmatprep.subr.mxu0 0.0
        %6877 = vmatpush1.msra.mxu0 0.0
        %6878 = vmatprep.subr.mxu0 0.0
        %6879 = vmatpush1.msra.mxu0 0.0
        %6880 = vmatprep.subr.mxu0 0.0
        %6881 = vmatpush1.msra.mxu0 0.0
        %6882 = vmatprep.subr.mxu0 0.0
        %6883 = vmatpush1.msra.mxu0 0.0
        %6884 = vmatprep.subr.mxu0 0.0
        %6885 = vmatpush1.msra.mxu0 0.0
        %6886 = vmatprep.subr.mxu0 0.0
        %6887 = vmatpush1.msra.mxu0 0.0
        %6888 = vmatprep.mubr.f32.mxu0 0.0
        %6889 = vmatmul.mubr.f32.gmra.mrb[0].mxu0 %v6822
        %v6890 = vpop.f32.mrb[0].mxu0
        %v6891 = vadd.f32 0.0, %v6890
        %v6892 = vpop.f32.mrb[0].mxu0
        %6893 = vdwg.mxu0
        %vm6894 = vcmp.gt.f32.partialorder %v6672, 0.0
        %vm6895 = vcmp.gt.f32.partialorder %v6745, 0.0
        %vm6896 = vcmp.gt.f32.partialorder %v6818, 0.0
        %vm6897 = vcmp.gt.f32.partialorder %v6891, 0.0
        %v6898 = vmin.f32 %v6672, 0.0
        %v6899 = vmin.f32 %v6745, 0.0
        %v6900 = vmin.f32 %v6818, 0.0
        %v6901 = vmin.f32 %v6891, 0.0
        %v6902 = vmul.f32 %v6898, 1.442695
        %v6903 = vpow.pop %v6902
        %v6904 = vmul.f32 %v6899, 1.442695
        %v6905 = vpow.pop %v6904
        %v6906 = vmul.f32 %v6900, 1.442695
        %v6907 = vpow.pop %v6906
        %v6908 = vmul.f32 %v6901, 1.442695
        %v6909 = vpow.pop %v6908
        %v6910 = vsub.f32 %v6903, 1.0
        %v6911 = vsub.f32 %v6905, 1.0
        %v6912 = vsub.f32 %v6907, 1.0
        %v6913 = vsub.f32 %v6909, 1.0
        %v6914 = vsel %vm6894, %v6672, %v6910
        %v6915 = vsel %vm6895, %v6745, %v6911
        %v6916 = vsel %vm6896, %v6818, %v6912
        %v6917 = vsel %vm6897, %v6891, %v6913
        %v6918 = vsel %vm330, %v6914, 0.0
        %6919 = vadd.xlane.f32.xlu0 %v6918
        %v6920 = vpop.xlane.xlu0 %6919
        %v6921 = vsel %vm330, %v6915, 0.0
        %6922 = vadd.xlane.f32.xlu0 %v6921
        %v6923 = vpop.xlane.xlu0 %6922
        %v6924 = vsel %vm330, %v6916, 0.0
        %6925 = vadd.xlane.f32.xlu0 %v6924
        %v6926 = vpop.xlane.xlu0 %6925
        %v6927 = vsel %vm330, %v6917, 0.0
        %6928 = vadd.xlane.f32.xlu0 %v6927
        %v6929 = vpop.xlane.xlu0 %6928
        %v6930 = vmul.f32 %v6920, %v2154
        %v6931 = vmul.f32 %v6923, %v2154
        %v6932 = vmul.f32 %v6926, %v2154
        %v6933 = vmul.f32 %v6929, %v2154
        %v6934 = vsub.f32 %v6914, %v6930
        %v6935 = vsub.f32 %v6915, %v6931
        %v6936 = vsub.f32 %v6916, %v6932
        %v6937 = vsub.f32 %v6917, %v6933
        %v6938 = vmul.f32 %v6934, %v6934
        %v6939 = vmul.f32 %v6935, %v6935
        %v6940 = vmul.f32 %v6936, %v6936
        %v6941 = vmul.f32 %v6937, %v6937
        %v6942 = vsel %vm330, %v6938, 0.0
        %6943 = vadd.xlane.f32.xlu0 %v6942
        %v6944 = vpop.xlane.xlu0 %6943
        %v6945 = vsel %vm330, %v6939, 0.0
        %6946 = vadd.xlane.f32.xlu0 %v6945
        %v6947 = vpop.xlane.xlu0 %6946
        %v6948 = vsel %vm330, %v6940, 0.0
        %6949 = vadd.xlane.f32.xlu0 %v6948
        %v6950 = vpop.xlane.xlu0 %6949
        %v6951 = vsel %vm330, %v6941, 0.0
        %6952 = vadd.xlane.f32.xlu0 %v6951
        %v6953 = vpop.xlane.xlu0 %6952
        %v6954 = vmul.f32 %v6944, %v2154
        %v6955 = vmul.f32 %v6947, %v2154
        %v6956 = vmul.f32 %v6950, %v2154
        %v6957 = vmul.f32 %v6953, %v2154
        %v6958 = vadd.f32 %v6954, 1e-05
        %v6959 = vadd.f32 %v6955, 1e-05
        %v6960 = vadd.f32 %v6956, 1e-05
        %v6961 = vadd.f32 %v6957, 1e-05
        %v6962 = vrsqrt.pop %v6958
        %v6963 = vrsqrt.pop %v6959
        %v6964 = vrsqrt.pop %v6960
        %v6965 = vrsqrt.pop %v6961
        %v6966 = vmul.f32 %v6934, %v6962
        %v6967 = vmul.f32 %v6935, %v6963
        %v6968 = vmul.f32 %v6936, %v6964
        %v6969 = vmul.f32 %v6937, %v6965
        %v6970 = vlaneseq
        %v6971 = vshrl.u32 %v6970, 7
        %v6972 = vsub.s32 2, %v6971
        %v6973 = vrot.slane %v307, %v6972
        %v6974 = vmul.f32 %v6966, %v6973
        %v6975 = vmul.f32 %v6967, %v6973
        %v6976 = vmul.f32 %v6968, %v6973
        %v6977 = vmul.f32 %v6969, %v6973
        %v6978 = vlaneseq
        %v6979 = vshrl.u32 %v6978, 7
        %v6980 = vsub.s32 3, %v6979
        %v6981 = vrot.slane %v307, %v6980
        %v6982 = vadd.f32 %v6974, %v6981
        %v6983 = vadd.f32 %v6975, %v6981
        %v6984 = vadd.f32 %v6976, %v6981
        %v6985 = vadd.f32 %v6977, %v6981
        %v6986 = vld [vmem:[#allocation10 + $0x4] sm:$0xff]
        %v6987 = vld [vmem:[#allocation10 + $0x10] sm:$0xff]
        %v6988 = vld [vmem:[#allocation10 + $0x1c] sm:$0xff]
        %v6989 = vld [vmem:[#allocation10 + $0x28] sm:$0xff]
        %v6990 = vld [vmem:[#allocation10 + $0x64] sm:$0xff]
        %v6991 = vld [vmem:[#allocation10 + $0x70] sm:$0xff]
        %v6992 = vld [vmem:[#allocation10 + $0x7c] sm:$0xff]
        %v6993 = vld [vmem:[#allocation10 + $0x88] sm:$0xff]
        %v6994 = vld [vmem:[#allocation10 + $0xc4] sm:$0xff]
        %v6995 = vld [vmem:[#allocation10 + $0xd0] sm:$0xff]
        %v6996 = vld [vmem:[#allocation10 + $0xdc] sm:$0xff]
        %v6997 = vld [vmem:[#allocation10 + $0xe8] sm:$0xff]
        %s6998 = scalar_lea.vmem [#allocation7], 80
        %v6999 = vld [vmem:[%s6998] sm:$0xf]
        %v7000 = vld [vmem:[%s6998 + $0x4] sm:$0xf]
        %v7001 = vld [vmem:[%s6998 + $0x8] sm:$0xf]
        %v7002 = vld [vmem:[%s6998 + $0xc] sm:$0xf]
        %v7007 = vrot.slane %v6982, 7
        %v7008 = vrot.slane %v6983, 7
        %v7009 = vrot.slane %v6984, 7
        %v7010 = vrot.slane %v6985, 7
        %v7015 = vsel %vm2247, 0.0, %v7007
        %v7016 = vsel %vm2247, 0.0, %v7008
        %v7017 = vsel %vm2247, 0.0, %v7009
        %v7018 = vsel %vm2247, 0.0, %v7010
        %v7019 = vsel %vm2247, %v7007, 0.0
        %v7020 = vsel %vm2247, %v7008, 0.0
        %v7021 = vsel %vm2247, %v7009, 0.0
        %v7022 = vsel %vm2247, %v7010, 0.0
        %v7023 = vlaneseq
        %v7024 = vshrl.u32 %v7023, 7
        %v7025 = vsub.s32 7, %v7024
        %v7026 = vrot.slane %v307, %v7025
        %v7027 = vadd.f32 %v7026, 0.0
        %v7028 = vpack.c.bf16 %v7015, %v7015
        %v7029 = vpack.c.bf16 %v7016, %v7016
        %v7030 = vpack.c.bf16 %v7017, %v7017
        %v7031 = vpack.c.bf16 %v7018, %v7018
        %v7036 = vunpack.c.l.b16 %v6986
        %v7037 = vunpack.c.h.b16 %v6986
        %v7038 = vunpack.c.l.b16 %v6987
        %v7039 = vunpack.c.h.b16 %v6987
        %v7040 = vunpack.c.l.b16 %v6988
        %v7041 = vunpack.c.h.b16 %v6988
        %v7042 = vunpack.c.l.b16 %v6989
        %v7043 = vunpack.c.h.b16 %v6989
        %v7044 = vpack.c.b16 %v7038, %v7036
        %v7045 = vpack.c.b16 %v7039, %v7037
        %v7046 = vpack.c.b16 %v7042, %v7040
        %v7047 = vpack.c.b16 %v7043, %v7041
        %7048 = vrot.lane.b32.xlu0 %v7044, 64
        %v7049 = vpop.permute.xlu0 %7048
        %7050 = vrot.lane.b32.xlu0 %v7045, 64
        %v7051 = vpop.permute.xlu0 %7050
        %7052 = vrot.lane.b32.xlu0 %v7046, 64
        %v7053 = vpop.permute.xlu0 %7052
        %7054 = vrot.lane.b32.xlu0 %v7047, 64
        %v7055 = vpop.permute.xlu0 %7054
        %vm7056 = vcmask 523264
        %v7057 = vsel %vm7056, %v7049, %v7051
        %v7058 = vsel %vm7056, %v7053, %v7055
        %v7062 = vsel %vm330, %v7028, 0
        %7064 = vmatprep.subr.bf16.mxu0 0
        %7065 = vmatpush1.bf16.msra.mxu0 %v7057
        %7066 = vmatprep.subr.bf16.mxu0 0
        %7067 = vmatpush1.bf16.msra.mxu0 %v7058
        %7068 = vmatprep.subr.bf16.mxu0 0
        %7069 = vmatpush1.bf16.msra.mxu0 0
        %7070 = vmatprep.subr.bf16.mxu0 0
        %7071 = vmatpush1.bf16.msra.mxu0 0
        %7072 = vmatprep.subr.bf16.mxu0 0
        %7073 = vmatpush1.bf16.msra.mxu0 0
        %7074 = vmatprep.subr.bf16.mxu0 0
        %7075 = vmatpush1.bf16.msra.mxu0 0
        %7076 = vmatprep.subr.bf16.mxu0 0
        %7077 = vmatpush1.bf16.msra.mxu0 0
        %7078 = vmatprep.subr.bf16.mxu0 0
        %7079 = vmatpush1.bf16.msra.mxu0 0
        %7080 = vmatprep.subr.bf16.mxu0 0
        %7081 = vmatpush1.bf16.msra.mxu0 0
        %7082 = vmatprep.subr.bf16.mxu0 0
        %7083 = vmatpush1.bf16.msra.mxu0 0
        %7084 = vmatprep.subr.bf16.mxu0 0
        %7085 = vmatpush1.bf16.msra.mxu0 0
        %7086 = vmatprep.subr.bf16.mxu0 0
        %7087 = vmatpush1.bf16.msra.mxu0 0
        %7088 = vmatprep.subr.bf16.mxu0 0
        %7089 = vmatpush1.bf16.msra.mxu0 0
        %7090 = vmatprep.subr.bf16.mxu0 0
        %7091 = vmatpush1.bf16.msra.mxu0 0
        %7092 = vmatprep.subr.bf16.mxu0 0
        %7093 = vmatpush1.bf16.msra.mxu0 0
        %7094 = vmatprep.subr.bf16.mxu0 0
        %7095 = vmatpush1.bf16.msra.mxu0 0
        %7096 = vmatprep.mubr.bf16.mxu0 0
        %7097 = vmatmul.mubr.bf16.gmra.mrb[0].mxu0 %v7062
        %v7098 = vpop.f32.mrb[0].mxu0
        %v7099 = vadd.f32 0.0, %v7098
        %v7100 = vpop.f32.mrb[0].mxu0
        %v7101 = vpop.f32.mrb[0].mxu0
        %v7102 = vpop.f32.mrb[0].mxu0
        %7103 = vdwg.mxu0
        %v7105 = vsel %vm330, %v7029, 0
        %7107 = vmatprep.subr.bf16.mxu0 0
        %7108 = vmatpush1.bf16.msra.mxu0 %v7057
        %7109 = vmatprep.subr.bf16.mxu0 0
        %7110 = vmatpush1.bf16.msra.mxu0 %v7058
        %7111 = vmatprep.subr.bf16.mxu0 0
        %7112 = vmatpush1.bf16.msra.mxu0 0
        %7113 = vmatprep.subr.bf16.mxu0 0
        %7114 = vmatpush1.bf16.msra.mxu0 0
        %7115 = vmatprep.subr.bf16.mxu0 0
        %7116 = vmatpush1.bf16.msra.mxu0 0
        %7117 = vmatprep.subr.bf16.mxu0 0
        %7118 = vmatpush1.bf16.msra.mxu0 0
        %7119 = vmatprep.subr.bf16.mxu0 0
        %7120 = vmatpush1.bf16.msra.mxu0 0
        %7121 = vmatprep.subr.bf16.mxu0 0
        %7122 = vmatpush1.bf16.msra.mxu0 0
        %7123 = vmatprep.subr.bf16.mxu0 0
        %7124 = vmatpush1.bf16.msra.mxu0 0
        %7125 = vmatprep.subr.bf16.mxu0 0
        %7126 = vmatpush1.bf16.msra.mxu0 0
        %7127 = vmatprep.subr.bf16.mxu0 0
        %7128 = vmatpush1.bf16.msra.mxu0 0
        %7129 = vmatprep.subr.bf16.mxu0 0
        %7130 = vmatpush1.bf16.msra.mxu0 0
        %7131 = vmatprep.subr.bf16.mxu0 0
        %7132 = vmatpush1.bf16.msra.mxu0 0
        %7133 = vmatprep.subr.bf16.mxu0 0
        %7134 = vmatpush1.bf16.msra.mxu0 0
        %7135 = vmatprep.subr.bf16.mxu0 0
        %7136 = vmatpush1.bf16.msra.mxu0 0
        %7137 = vmatprep.subr.bf16.mxu0 0
        %7138 = vmatpush1.bf16.msra.mxu0 0
        %7139 = vmatprep.mubr.bf16.mxu0 0
        %7140 = vmatmul.mubr.bf16.gmra.mrb[0].mxu0 %v7105
        %v7141 = vpop.f32.mrb[0].mxu0
        %v7142 = vadd.f32 0.0, %v7141
        %v7143 = vpop.f32.mrb[0].mxu0
        %v7144 = vpop.f32.mrb[0].mxu0
        %v7145 = vpop.f32.mrb[0].mxu0
        %7146 = vdwg.mxu0
        %v7148 = vsel %vm330, %v7030, 0
        %7150 = vmatprep.subr.bf16.mxu0 0
        %7151 = vmatpush1.bf16.msra.mxu0 %v7057
        %7152 = vmatprep.subr.bf16.mxu0 0
        %7153 = vmatpush1.bf16.msra.mxu0 %v7058
        %7154 = vmatprep.subr.bf16.mxu0 0
        %7155 = vmatpush1.bf16.msra.mxu0 0
        %7156 = vmatprep.subr.bf16.mxu0 0
        %7157 = vmatpush1.bf16.msra.mxu0 0
        %7158 = vmatprep.subr.bf16.mxu0 0
        %7159 = vmatpush1.bf16.msra.mxu0 0
        %7160 = vmatprep.subr.bf16.mxu0 0
        %7161 = vmatpush1.bf16.msra.mxu0 0
        %7162 = vmatprep.subr.bf16.mxu0 0
        %7163 = vmatpush1.bf16.msra.mxu0 0
        %7164 = vmatprep.subr.bf16.mxu0 0
        %7165 = vmatpush1.bf16.msra.mxu0 0
        %7166 = vmatprep.subr.bf16.mxu0 0
        %7167 = vmatpush1.bf16.msra.mxu0 0
        %7168 = vmatprep.subr.bf16.mxu0 0
        %7169 = vmatpush1.bf16.msra.mxu0 0
        %7170 = vmatprep.subr.bf16.mxu0 0
        %7171 = vmatpush1.bf16.msra.mxu0 0
        %7172 = vmatprep.subr.bf16.mxu0 0
        %7173 = vmatpush1.bf16.msra.mxu0 0
        %7174 = vmatprep.subr.bf16.mxu0 0
        %7175 = vmatpush1.bf16.msra.mxu0 0
        %7176 = vmatprep.subr.bf16.mxu0 0
        %7177 = vmatpush1.bf16.msra.mxu0 0
        %7178 = vmatprep.subr.bf16.mxu0 0
        %7179 = vmatpush1.bf16.msra.mxu0 0
        %7180 = vmatprep.subr.bf16.mxu0 0
        %7181 = vmatpush1.bf16.msra.mxu0 0
        %7182 = vmatprep.mubr.bf16.mxu0 0
        %7183 = vmatmul.mubr.bf16.gmra.mrb[0].mxu0 %v7148
        %v7184 = vpop.f32.mrb[0].mxu0
        %v7185 = vadd.f32 0.0, %v7184
        %v7186 = vpop.f32.mrb[0].mxu0
        %v7187 = vpop.f32.mrb[0].mxu0
        %v7188 = vpop.f32.mrb[0].mxu0
        %7189 = vdwg.mxu0
        %v7191 = vsel %vm330, %v7031, 0
        %7193 = vmatprep.subr.bf16.mxu0 0
        %7194 = vmatpush1.bf16.msra.mxu0 %v7057
        %7195 = vmatprep.subr.bf16.mxu0 0
        %7196 = vmatpush1.bf16.msra.mxu0 %v7058
        %7197 = vmatprep.subr.bf16.mxu0 0
        %7198 = vmatpush1.bf16.msra.mxu0 0
        %7199 = vmatprep.subr.bf16.mxu0 0
        %7200 = vmatpush1.bf16.msra.mxu0 0
        %7201 = vmatprep.subr.bf16.mxu0 0
        %7202 = vmatpush1.bf16.msra.mxu0 0
        %7203 = vmatprep.subr.bf16.mxu0 0
        %7204 = vmatpush1.bf16.msra.mxu0 0
        %7205 = vmatprep.subr.bf16.mxu0 0
        %7206 = vmatpush1.bf16.msra.mxu0 0
        %7207 = vmatprep.subr.bf16.mxu0 0
        %7208 = vmatpush1.bf16.msra.mxu0 0
        %7209 = vmatprep.subr.bf16.mxu0 0
        %7210 = vmatpush1.bf16.msra.mxu0 0
        %7211 = vmatprep.subr.bf16.mxu0 0
        %7212 = vmatpush1.bf16.msra.mxu0 0
        %7213 = vmatprep.subr.bf16.mxu0 0
        %7214 = vmatpush1.bf16.msra.mxu0 0
        %7215 = vmatprep.subr.bf16.mxu0 0
        %7216 = vmatpush1.bf16.msra.mxu0 0
        %7217 = vmatprep.subr.bf16.mxu0 0
        %7218 = vmatpush1.bf16.msra.mxu0 0
        %7219 = vmatprep.subr.bf16.mxu0 0
        %7220 = vmatpush1.bf16.msra.mxu0 0
        %7221 = vmatprep.subr.bf16.mxu0 0
        %7222 = vmatpush1.bf16.msra.mxu0 0
        %7223 = vmatprep.subr.bf16.mxu0 0
        %7224 = vmatpush1.bf16.msra.mxu0 0
        %7225 = vmatprep.mubr.bf16.mxu0 0
        %7226 = vmatmul.mubr.bf16.gmra.mrb[0].mxu0 %v7191
        %v7227 = vpop.f32.mrb[0].mxu0
        %v7228 = vadd.f32 0.0, %v7227
        %v7229 = vpop.f32.mrb[0].mxu0
        %v7230 = vpop.f32.mrb[0].mxu0
        %v7231 = vpop.f32.mrb[0].mxu0
        %7232 = vdwg.mxu0
        %v7233 = vadd.f32 %v7027, %v7099
        %v7234 = vadd.f32 %v7027, %v7142
        %v7235 = vadd.f32 %v7027, %v7185
        %v7236 = vadd.f32 %v7027, %v7228
        %v7237 = vpack.c.bf16 %v7019, %v7015
        %v7238 = vpack.c.bf16 %v7020, %v7016
        %v7239 = vpack.c.bf16 %v7021, %v7017
        %v7240 = vpack.c.bf16 %v7022, %v7018
        %v7242 = vshrl.u32 %v7237, 16
        %v7244 = vshll.u32 %v7237, 16
        %v7246 = vrot.slane %v7244, 1
        %v7247 = vor.u32 %v7242, %v7246
        %v7252 = vunpack.c.l.b16 %v6990
        %v7253 = vunpack.c.h.b16 %v6990
        %v7254 = vunpack.c.l.b16 %v6991
        %v7255 = vunpack.c.h.b16 %v6991
        %v7256 = vunpack.c.l.b16 %v6992
        %v7257 = vunpack.c.h.b16 %v6992
        %v7258 = vunpack.c.l.b16 %v6993
        %v7259 = vunpack.c.h.b16 %v6993
        %v7260 = vpack.c.b16 %v7254, %v7252
        %v7261 = vpack.c.b16 %v7255, %v7253
        %v7262 = vpack.c.b16 %v7258, %v7256
        %v7263 = vpack.c.b16 %v7259, %v7257
        %7264 = vrot.lane.b32.xlu0 %v7260, 64
        %v7265 = vpop.permute.xlu0 %7264
        %7266 = vrot.lane.b32.xlu0 %v7261, 64
        %v7267 = vpop.permute.xlu0 %7266
        %7268 = vrot.lane.b32.xlu0 %v7262, 64
        %v7269 = vpop.permute.xlu0 %7268
        %7270 = vrot.lane.b32.xlu0 %v7263, 64
        %v7271 = vpop.permute.xlu0 %7270
        %v7272 = vsel %vm7056, %v7265, %v7267
        %v7273 = vsel %vm7056, %v7269, %v7271
        %v7277 = vsel %vm330, %v7247, 0
        %7279 = vmatprep.subr.bf16.mxu0 0
        %7280 = vmatpush1.bf16.msra.mxu0 %v7272
        %7281 = vmatprep.subr.bf16.mxu0 0
        %7282 = vmatpush1.bf16.msra.mxu0 %v7273
        %7283 = vmatprep.subr.bf16.mxu0 0
        %7284 = vmatpush1.bf16.msra.mxu0 0
        %7285 = vmatprep.subr.bf16.mxu0 0
        %7286 = vmatpush1.bf16.msra.mxu0 0
        %7287 = vmatprep.subr.bf16.mxu0 0
        %7288 = vmatpush1.bf16.msra.mxu0 0
        %7289 = vmatprep.subr.bf16.mxu0 0
        %7290 = vmatpush1.bf16.msra.mxu0 0
        %7291 = vmatprep.subr.bf16.mxu0 0
        %7292 = vmatpush1.bf16.msra.mxu0 0
        %7293 = vmatprep.subr.bf16.mxu0 0
        %7294 = vmatpush1.bf16.msra.mxu0 0
        %7295 = vmatprep.subr.bf16.mxu0 0
        %7296 = vmatpush1.bf16.msra.mxu0 0
        %7297 = vmatprep.subr.bf16.mxu0 0
        %7298 = vmatpush1.bf16.msra.mxu0 0
        %7299 = vmatprep.subr.bf16.mxu0 0
        %7300 = vmatpush1.bf16.msra.mxu0 0
        %7301 = vmatprep.subr.bf16.mxu0 0
        %7302 = vmatpush1.bf16.msra.mxu0 0
        %7303 = vmatprep.subr.bf16.mxu0 0
        %7304 = vmatpush1.bf16.msra.mxu0 0
        %7305 = vmatprep.subr.bf16.mxu0 0
        %7306 = vmatpush1.bf16.msra.mxu0 0
        %7307 = vmatprep.subr.bf16.mxu0 0
        %7308 = vmatpush1.bf16.msra.mxu0 0
        %7309 = vmatprep.subr.bf16.mxu0 0
        %7310 = vmatpush1.bf16.msra.mxu0 0
        %7311 = vmatprep.mubr.bf16.mxu0 0
        %7312 = vmatmul.mubr.bf16.gmra.mrb[0].mxu0 %v7277
        %v7313 = vpop.f32.mrb[0].mxu0
        %v7314 = vadd.f32 0.0, %v7313
        %v7315 = vpop.f32.mrb[0].mxu0
        %v7316 = vpop.f32.mrb[0].mxu0
        %v7317 = vpop.f32.mrb[0].mxu0
        %7318 = vdwg.mxu0
        %v7320 = vshrl.u32 %v7238, 16
        %v7322 = vshll.u32 %v7238, 16
        %v7324 = vrot.slane %v7322, 1
        %v7325 = vor.u32 %v7320, %v7324
        %v7327 = vsel %vm330, %v7325, 0
        %7329 = vmatprep.subr.bf16.mxu0 0
        %7330 = vmatpush1.bf16.msra.mxu0 %v7272
        %7331 = vmatprep.subr.bf16.mxu0 0
        %7332 = vmatpush1.bf16.msra.mxu0 %v7273
        %7333 = vmatprep.subr.bf16.mxu0 0
        %7334 = vmatpush1.bf16.msra.mxu0 0
        %7335 = vmatprep.subr.bf16.mxu0 0
        %7336 = vmatpush1.bf16.msra.mxu0 0
        %7337 = vmatprep.subr.bf16.mxu0 0
        %7338 = vmatpush1.bf16.msra.mxu0 0
        %7339 = vmatprep.subr.bf16.mxu0 0
        %7340 = vmatpush1.bf16.msra.mxu0 0
        %7341 = vmatprep.subr.bf16.mxu0 0
        %7342 = vmatpush1.bf16.msra.mxu0 0
        %7343 = vmatprep.subr.bf16.mxu0 0
        %7344 = vmatpush1.bf16.msra.mxu0 0
        %7345 = vmatprep.subr.bf16.mxu0 0
        %7346 = vmatpush1.bf16.msra.mxu0 0
        %7347 = vmatprep.subr.bf16.mxu0 0
        %7348 = vmatpush1.bf16.msra.mxu0 0
        %7349 = vmatprep.subr.bf16.mxu0 0
        %7350 = vmatpush1.bf16.msra.mxu0 0
        %7351 = vmatprep.subr.bf16.mxu0 0
        %7352 = vmatpush1.bf16.msra.mxu0 0
        %7353 = vmatprep.subr.bf16.mxu0 0
        %7354 = vmatpush1.bf16.msra.mxu0 0
        %7355 = vmatprep.subr.bf16.mxu0 0
        %7356 = vmatpush1.bf16.msra.mxu0 0
        %7357 = vmatprep.subr.bf16.mxu0 0
        %7358 = vmatpush1.bf16.msra.mxu0 0
        %7359 = vmatprep.subr.bf16.mxu0 0
        %7360 = vmatpush1.bf16.msra.mxu0 0
        %7361 = vmatprep.mubr.bf16.mxu0 0
        %7362 = vmatmul.mubr.bf16.gmra.mrb[0].mxu0 %v7327
        %v7363 = vpop.f32.mrb[0].mxu0
        %v7364 = vadd.f32 0.0, %v7363
        %v7365 = vpop.f32.mrb[0].mxu0
        %v7366 = vpop.f32.mrb[0].mxu0
        %v7367 = vpop.f32.mrb[0].mxu0
        %7368 = vdwg.mxu0
        %v7370 = vshrl.u32 %v7239, 16
        %v7372 = vshll.u32 %v7239, 16
        %v7374 = vrot.slane %v7372, 1
        %v7375 = vor.u32 %v7370, %v7374
        %v7377 = vsel %vm330, %v7375, 0
        %7379 = vmatprep.subr.bf16.mxu0 0
        %7380 = vmatpush1.bf16.msra.mxu0 %v7272
        %7381 = vmatprep.subr.bf16.mxu0 0
        %7382 = vmatpush1.bf16.msra.mxu0 %v7273
        %7383 = vmatprep.subr.bf16.mxu0 0
        %7384 = vmatpush1.bf16.msra.mxu0 0
        %7385 = vmatprep.subr.bf16.mxu0 0
        %7386 = vmatpush1.bf16.msra.mxu0 0
        %7387 = vmatprep.subr.bf16.mxu0 0
        %7388 = vmatpush1.bf16.msra.mxu0 0
        %7389 = vmatprep.subr.bf16.mxu0 0
        %7390 = vmatpush1.bf16.msra.mxu0 0
        %7391 = vmatprep.subr.bf16.mxu0 0
        %7392 = vmatpush1.bf16.msra.mxu0 0
        %7393 = vmatprep.subr.bf16.mxu0 0
        %7394 = vmatpush1.bf16.msra.mxu0 0
        %7395 = vmatprep.subr.bf16.mxu0 0
        %7396 = vmatpush1.bf16.msra.mxu0 0
        %7397 = vmatprep.subr.bf16.mxu0 0
        %7398 = vmatpush1.bf16.msra.mxu0 0
        %7399 = vmatprep.subr.bf16.mxu0 0
        %7400 = vmatpush1.bf16.msra.mxu0 0
        %7401 = vmatprep.subr.bf16.mxu0 0
        %7402 = vmatpush1.bf16.msra.mxu0 0
        %7403 = vmatprep.subr.bf16.mxu0 0
        %7404 = vmatpush1.bf16.msra.mxu0 0
        %7405 = vmatprep.subr.bf16.mxu0 0
        %7406 = vmatpush1.bf16.msra.mxu0 0
        %7407 = vmatprep.subr.bf16.mxu0 0
        %7408 = vmatpush1.bf16.msra.mxu0 0
        %7409 = vmatprep.subr.bf16.mxu0 0
        %7410 = vmatpush1.bf16.msra.mxu0 0
        %7411 = vmatprep.mubr.bf16.mxu0 0
        %7412 = vmatmul.mubr.bf16.gmra.mrb[0].mxu0 %v7377
        %v7413 = vpop.f32.mrb[0].mxu0
        %v7414 = vadd.f32 0.0, %v7413
        %v7415 = vpop.f32.mrb[0].mxu0
        %v7416 = vpop.f32.mrb[0].mxu0
        %v7417 = vpop.f32.mrb[0].mxu0
        %7418 = vdwg.mxu0
        %v7420 = vshrl.u32 %v7240, 16
        %v7422 = vshll.u32 %v7240, 16
        %v7424 = vrot.slane %v7422, 1
        %v7425 = vor.u32 %v7420, %v7424
        %v7427 = vsel %vm330, %v7425, 0
        %7429 = vmatprep.subr.bf16.mxu0 0
        %7430 = vmatpush1.bf16.msra.mxu0 %v7272
        %7431 = vmatprep.subr.bf16.mxu0 0
        %7432 = vmatpush1.bf16.msra.mxu0 %v7273
        %7433 = vmatprep.subr.bf16.mxu0 0
        %7434 = vmatpush1.bf16.msra.mxu0 0
        %7435 = vmatprep.subr.bf16.mxu0 0
        %7436 = vmatpush1.bf16.msra.mxu0 0
        %7437 = vmatprep.subr.bf16.mxu0 0
        %7438 = vmatpush1.bf16.msra.mxu0 0
        %7439 = vmatprep.subr.bf16.mxu0 0
        %7440 = vmatpush1.bf16.msra.mxu0 0
        %7441 = vmatprep.subr.bf16.mxu0 0
        %7442 = vmatpush1.bf16.msra.mxu0 0
        %7443 = vmatprep.subr.bf16.mxu0 0
        %7444 = vmatpush1.bf16.msra.mxu0 0
        %7445 = vmatprep.subr.bf16.mxu0 0
        %7446 = vmatpush1.bf16.msra.mxu0 0
        %7447 = vmatprep.subr.bf16.mxu0 0
        %7448 = vmatpush1.bf16.msra.mxu0 0
        %7449 = vmatprep.subr.bf16.mxu0 0
        %7450 = vmatpush1.bf16.msra.mxu0 0
        %7451 = vmatprep.subr.bf16.mxu0 0
        %7452 = vmatpush1.bf16.msra.mxu0 0
        %7453 = vmatprep.subr.bf16.mxu0 0
        %7454 = vmatpush1.bf16.msra.mxu0 0
        %7455 = vmatprep.subr.bf16.mxu0 0
        %7456 = vmatpush1.bf16.msra.mxu0 0
        %7457 = vmatprep.subr.bf16.mxu0 0
        %7458 = vmatpush1.bf16.msra.mxu0 0
        %7459 = vmatprep.subr.bf16.mxu0 0
        %7460 = vmatpush1.bf16.msra.mxu0 0
        %7461 = vmatprep.mubr.bf16.mxu0 0
        %7462 = vmatmul.mubr.bf16.gmra.mrb[0].mxu0 %v7427
        %v7463 = vpop.f32.mrb[0].mxu0
        %v7464 = vadd.f32 0.0, %v7463
        %v7465 = vpop.f32.mrb[0].mxu0
        %v7466 = vpop.f32.mrb[0].mxu0
        %v7467 = vpop.f32.mrb[0].mxu0
        %7468 = vdwg.mxu0
        %v7469 = vadd.f32 %v7233, %v7314
        %v7470 = vadd.f32 %v7234, %v7364
        %v7471 = vadd.f32 %v7235, %v7414
        %v7472 = vadd.f32 %v7236, %v7464
        %v7474 = vrot.slane %v7237, 1
        %v7479 = vunpack.c.l.b16 %v6994
        %v7480 = vunpack.c.h.b16 %v6994
        %v7481 = vunpack.c.l.b16 %v6995
        %v7482 = vunpack.c.h.b16 %v6995
        %v7483 = vunpack.c.l.b16 %v6996
        %v7484 = vunpack.c.h.b16 %v6996
        %v7485 = vunpack.c.l.b16 %v6997
        %v7486 = vunpack.c.h.b16 %v6997
        %v7487 = vpack.c.b16 %v7481, %v7479
        %v7488 = vpack.c.b16 %v7482, %v7480
        %v7489 = vpack.c.b16 %v7485, %v7483
        %v7490 = vpack.c.b16 %v7486, %v7484
        %7491 = vrot.lane.b32.xlu0 %v7487, 64
        %v7492 = vpop.permute.xlu0 %7491
        %7493 = vrot.lane.b32.xlu0 %v7488, 64
        %v7494 = vpop.permute.xlu0 %7493
        %7495 = vrot.lane.b32.xlu0 %v7489, 64
        %v7496 = vpop.permute.xlu0 %7495
        %7497 = vrot.lane.b32.xlu0 %v7490, 64
        %v7498 = vpop.permute.xlu0 %7497
        %v7499 = vsel %vm7056, %v7492, %v7494
        %v7500 = vsel %vm7056, %v7496, %v7498
        %v7504 = vsel %vm330, %v7474, 0
        %7506 = vmatprep.subr.bf16.mxu0 0
        %7507 = vmatpush1.bf16.msra.mxu0 %v7499
        %7508 = vmatprep.subr.bf16.mxu0 0
        %7509 = vmatpush1.bf16.msra.mxu0 %v7500
        %7510 = vmatprep.subr.bf16.mxu0 0
        %7511 = vmatpush1.bf16.msra.mxu0 0
        %7512 = vmatprep.subr.bf16.mxu0 0
        %7513 = vmatpush1.bf16.msra.mxu0 0
        %7514 = vmatprep.subr.bf16.mxu0 0
        %7515 = vmatpush1.bf16.msra.mxu0 0
        %7516 = vmatprep.subr.bf16.mxu0 0
        %7517 = vmatpush1.bf16.msra.mxu0 0
        %7518 = vmatprep.subr.bf16.mxu0 0
        %7519 = vmatpush1.bf16.msra.mxu0 0
        %7520 = vmatprep.subr.bf16.mxu0 0
        %7521 = vmatpush1.bf16.msra.mxu0 0
        %7522 = vmatprep.subr.bf16.mxu0 0
        %7523 = vmatpush1.bf16.msra.mxu0 0
        %7524 = vmatprep.subr.bf16.mxu0 0
        %7525 = vmatpush1.bf16.msra.mxu0 0
        %7526 = vmatprep.subr.bf16.mxu0 0
        %7527 = vmatpush1.bf16.msra.mxu0 0
        %7528 = vmatprep.subr.bf16.mxu0 0
        %7529 = vmatpush1.bf16.msra.mxu0 0
        %7530 = vmatprep.subr.bf16.mxu0 0
        %7531 = vmatpush1.bf16.msra.mxu0 0
        %7532 = vmatprep.subr.bf16.mxu0 0
        %7533 = vmatpush1.bf16.msra.mxu0 0
        %7534 = vmatprep.subr.bf16.mxu0 0
        %7535 = vmatpush1.bf16.msra.mxu0 0
        %7536 = vmatprep.subr.bf16.mxu0 0
        %7537 = vmatpush1.bf16.msra.mxu0 0
        %7538 = vmatprep.mubr.bf16.mxu0 0
        %7539 = vmatmul.mubr.bf16.gmra.mrb[0].mxu0 %v7504
        %v7540 = vpop.f32.mrb[0].mxu0
        %v7541 = vadd.f32 0.0, %v7540
        %v7542 = vpop.f32.mrb[0].mxu0
        %v7543 = vpop.f32.mrb[0].mxu0
        %v7544 = vpop.f32.mrb[0].mxu0
        %7545 = vdwg.mxu0
        %v7547 = vrot.slane %v7238, 1
        %v7549 = vsel %vm330, %v7547, 0
        %7551 = vmatprep.subr.bf16.mxu0 0
        %7552 = vmatpush1.bf16.msra.mxu0 %v7499
        %7553 = vmatprep.subr.bf16.mxu0 0
        %7554 = vmatpush1.bf16.msra.mxu0 %v7500
        %7555 = vmatprep.subr.bf16.mxu0 0
        %7556 = vmatpush1.bf16.msra.mxu0 0
        %7557 = vmatprep.subr.bf16.mxu0 0
        %7558 = vmatpush1.bf16.msra.mxu0 0
        %7559 = vmatprep.subr.bf16.mxu0 0
        %7560 = vmatpush1.bf16.msra.mxu0 0
        %7561 = vmatprep.subr.bf16.mxu0 0
        %7562 = vmatpush1.bf16.msra.mxu0 0
        %7563 = vmatprep.subr.bf16.mxu0 0
        %7564 = vmatpush1.bf16.msra.mxu0 0
        %7565 = vmatprep.subr.bf16.mxu0 0
        %7566 = vmatpush1.bf16.msra.mxu0 0
        %7567 = vmatprep.subr.bf16.mxu0 0
        %7568 = vmatpush1.bf16.msra.mxu0 0
        %7569 = vmatprep.subr.bf16.mxu0 0
        %7570 = vmatpush1.bf16.msra.mxu0 0
        %7571 = vmatprep.subr.bf16.mxu0 0
        %7572 = vmatpush1.bf16.msra.mxu0 0
        %7573 = vmatprep.subr.bf16.mxu0 0
        %7574 = vmatpush1.bf16.msra.mxu0 0
        %7575 = vmatprep.subr.bf16.mxu0 0
        %7576 = vmatpush1.bf16.msra.mxu0 0
        %7577 = vmatprep.subr.bf16.mxu0 0
        %7578 = vmatpush1.bf16.msra.mxu0 0
        %7579 = vmatprep.subr.bf16.mxu0 0
        %7580 = vmatpush1.bf16.msra.mxu0 0
        %7581 = vmatprep.subr.bf16.mxu0 0
        %7582 = vmatpush1.bf16.msra.mxu0 0
        %7583 = vmatprep.mubr.bf16.mxu0 0
        %7584 = vmatmul.mubr.bf16.gmra.mrb[0].mxu0 %v7549
        %v7585 = vpop.f32.mrb[0].mxu0
        %v7586 = vadd.f32 0.0, %v7585
        %v7587 = vpop.f32.mrb[0].mxu0
        %v7588 = vpop.f32.mrb[0].mxu0
        %v7589 = vpop.f32.mrb[0].mxu0
        %7590 = vdwg.mxu0
        %v7592 = vrot.slane %v7239, 1
        %v7594 = vsel %vm330, %v7592, 0
        %7596 = vmatprep.subr.bf16.mxu0 0
        %7597 = vmatpush1.bf16.msra.mxu0 %v7499
        %7598 = vmatprep.subr.bf16.mxu0 0
        %7599 = vmatpush1.bf16.msra.mxu0 %v7500
        %7600 = vmatprep.subr.bf16.mxu0 0
        %7601 = vmatpush1.bf16.msra.mxu0 0
        %7602 = vmatprep.subr.bf16.mxu0 0
        %7603 = vmatpush1.bf16.msra.mxu0 0
        %7604 = vmatprep.subr.bf16.mxu0 0
        %7605 = vmatpush1.bf16.msra.mxu0 0
        %7606 = vmatprep.subr.bf16.mxu0 0
        %7607 = vmatpush1.bf16.msra.mxu0 0
        %7608 = vmatprep.subr.bf16.mxu0 0
        %7609 = vmatpush1.bf16.msra.mxu0 0
        %7610 = vmatprep.subr.bf16.mxu0 0
        %7611 = vmatpush1.bf16.msra.mxu0 0
        %7612 = vmatprep.subr.bf16.mxu0 0
        %7613 = vmatpush1.bf16.msra.mxu0 0
        %7614 = vmatprep.subr.bf16.mxu0 0
        %7615 = vmatpush1.bf16.msra.mxu0 0
        %7616 = vmatprep.subr.bf16.mxu0 0
        %7617 = vmatpush1.bf16.msra.mxu0 0
        %7618 = vmatprep.subr.bf16.mxu0 0
        %7619 = vmatpush1.bf16.msra.mxu0 0
        %7620 = vmatprep.subr.bf16.mxu0 0
        %7621 = vmatpush1.bf16.msra.mxu0 0
        %7622 = vmatprep.subr.bf16.mxu0 0
        %7623 = vmatpush1.bf16.msra.mxu0 0
        %7624 = vmatprep.subr.bf16.mxu0 0
        %7625 = vmatpush1.bf16.msra.mxu0 0
        %7626 = vmatprep.subr.bf16.mxu0 0
        %7627 = vmatpush1.bf16.msra.mxu0 0
        %7628 = vmatprep.mubr.bf16.mxu0 0
        %7629 = vmatmul.mubr.bf16.gmra.mrb[0].mxu0 %v7594
        %v7630 = vpop.f32.mrb[0].mxu0
        %v7631 = vadd.f32 0.0, %v7630
        %v7632 = vpop.f32.mrb[0].mxu0
        %v7633 = vpop.f32.mrb[0].mxu0
        %v7634 = vpop.f32.mrb[0].mxu0
        %7635 = vdwg.mxu0
        %v7637 = vrot.slane %v7240, 1
        %v7639 = vsel %vm330, %v7637, 0
        %7641 = vmatprep.subr.bf16.mxu0 0
        %7642 = vmatpush1.bf16.msra.mxu0 %v7499
        %7643 = vmatprep.subr.bf16.mxu0 0
        %7644 = vmatpush1.bf16.msra.mxu0 %v7500
        %7645 = vmatprep.subr.bf16.mxu0 0
        %7646 = vmatpush1.bf16.msra.mxu0 0
        %7647 = vmatprep.subr.bf16.mxu0 0
        %7648 = vmatpush1.bf16.msra.mxu0 0
        %7649 = vmatprep.subr.bf16.mxu0 0
        %7650 = vmatpush1.bf16.msra.mxu0 0
        %7651 = vmatprep.subr.bf16.mxu0 0
        %7652 = vmatpush1.bf16.msra.mxu0 0
        %7653 = vmatprep.subr.bf16.mxu0 0
        %7654 = vmatpush1.bf16.msra.mxu0 0
        %7655 = vmatprep.subr.bf16.mxu0 0
        %7656 = vmatpush1.bf16.msra.mxu0 0
        %7657 = vmatprep.subr.bf16.mxu0 0
        %7658 = vmatpush1.bf16.msra.mxu0 0
        %7659 = vmatprep.subr.bf16.mxu0 0
        %7660 = vmatpush1.bf16.msra.mxu0 0
        %7661 = vmatprep.subr.bf16.mxu0 0
        %7662 = vmatpush1.bf16.msra.mxu0 0
        %7663 = vmatprep.subr.bf16.mxu0 0
        %7664 = vmatpush1.bf16.msra.mxu0 0
        %7665 = vmatprep.subr.bf16.mxu0 0
        %7666 = vmatpush1.bf16.msra.mxu0 0
        %7667 = vmatprep.subr.bf16.mxu0 0
        %7668 = vmatpush1.bf16.msra.mxu0 0
        %7669 = vmatprep.subr.bf16.mxu0 0
        %7670 = vmatpush1.bf16.msra.mxu0 0
        %7671 = vmatprep.subr.bf16.mxu0 0
        %7672 = vmatpush1.bf16.msra.mxu0 0
        %7673 = vmatprep.mubr.bf16.mxu0 0
        %7674 = vmatmul.mubr.bf16.gmra.mrb[0].mxu0 %v7639
        %v7675 = vpop.f32.mrb[0].mxu0
        %v7676 = vadd.f32 0.0, %v7675
        %v7677 = vpop.f32.mrb[0].mxu0
        %v7678 = vpop.f32.mrb[0].mxu0
        %v7679 = vpop.f32.mrb[0].mxu0
        %7680 = vdwg.mxu0
        %v7681 = vadd.f32 %v7469, %v7541
        %v7682 = vadd.f32 %v7470, %v7586
        %v7683 = vadd.f32 %v7471, %v7631
        %v7684 = vadd.f32 %v7472, %v7676
        %7686 = vrot.lane.b32.xlu0 %v7681, 96
        %v7687 = vpop.permute.xlu0 %7686
        %v7688 = vsel %vm330, %v7681, 0
        %v7690 = vsel %vm330, %v7687, 0
        %7692 = vmatprep.subr.mxu0 0.0
        %7693 = vmatpush1.xpose.msra.mxu0 %v7690
        %7694 = vmatprep.subr.mxu0 0.0
        %7695 = vmatpush1.xpose.msra.mxu0 0.0
        %7696 = vmatprep.subr.mxu0 0.0
        %7697 = vmatpush1.xpose.msra.mxu0 0.0
        %7698 = vmatprep.subr.mxu0 0.0
        %7699 = vmatpush1.xpose.msra.mxu0 0.0
        %7700 = vmatprep.subr.mxu0 0.0
        %7701 = vmatpush1.xpose.msra.mxu0 0.0
        %7702 = vmatprep.subr.mxu0 0.0
        %7703 = vmatpush1.xpose.msra.mxu0 0.0
        %7704 = vmatprep.subr.mxu0 0.0
        %7705 = vmatpush1.xpose.msra.mxu0 0.0
        %7706 = vmatprep.subr.mxu0 0.0
        %7707 = vmatpush1.xpose.msra.mxu0 0.0
        %7708 = vmatprep.subr.mxu0 0.0
        %7709 = vmatpush1.xpose.msra.mxu0 0.0
        %7710 = vmatprep.subr.mxu0 0.0
        %7711 = vmatpush1.xpose.msra.mxu0 0.0
        %7712 = vmatprep.subr.mxu0 0.0
        %7713 = vmatpush1.xpose.msra.mxu0 0.0
        %7714 = vmatprep.subr.mxu0 0.0
        %7715 = vmatpush1.xpose.msra.mxu0 0.0
        %7716 = vmatprep.subr.mxu0 0.0
        %7717 = vmatpush1.xpose.msra.mxu0 0.0
        %7718 = vmatprep.subr.mxu0 0.0
        %7719 = vmatpush1.xpose.msra.mxu0 0.0
        %7720 = vmatprep.subr.mxu0 0.0
        %7721 = vmatpush1.xpose.msra.mxu0 0.0
        %7722 = vmatprep.subr.mxu0 0.0
        %7723 = vmatpush1.xpose.msra.mxu0 0.0
        %7724 = vmatprep.subr.mxu0 0.0
        %7725 = vmatpush1.xpose.msra.mxu0 0.0
        %7726 = vmatprep.subr.mxu0 0.0
        %7727 = vmatpush1.xpose.msra.mxu0 0.0
        %7728 = vmatprep.subr.mxu0 0.0
        %7729 = vmatpush1.xpose.msra.mxu0 0.0
        %7730 = vmatprep.subr.mxu0 0.0
        %7731 = vmatpush1.xpose.msra.mxu0 0.0
        %7732 = vmatprep.subr.mxu0 0.0
        %7733 = vmatpush1.xpose.msra.mxu0 0.0
        %7734 = vmatprep.subr.mxu0 0.0
        %7735 = vmatpush1.xpose.msra.mxu0 0.0
        %7736 = vmatprep.subr.mxu0 0.0
        %7737 = vmatpush1.xpose.msra.mxu0 0.0
        %7738 = vmatprep.subr.mxu0 0.0
        %7739 = vmatpush1.xpose.msra.mxu0 0.0
        %7740 = vmatprep.subr.mxu0 0.0
        %7741 = vmatpush1.xpose.msra.mxu0 0.0
        %7742 = vmatprep.subr.mxu0 0.0
        %7743 = vmatpush1.xpose.msra.mxu0 0.0
        %7744 = vmatprep.subr.mxu0 0.0
        %7745 = vmatpush1.xpose.msra.mxu0 0.0
        %7746 = vmatprep.subr.mxu0 0.0
        %7747 = vmatpush1.xpose.msra.mxu0 0.0
        %7748 = vmatprep.subr.mxu0 0.0
        %7749 = vmatpush1.xpose.msra.mxu0 0.0
        %7750 = vmatprep.subr.mxu0 0.0
        %7751 = vmatpush1.xpose.msra.mxu0 0.0
        %7752 = vmatprep.subr.mxu0 0.0
        %7753 = vmatpush1.xpose.msra.mxu0 0.0
        %7754 = vmatprep.subr.mxu0 0.0
        %7755 = vmatpush1.xpose.msra.mxu0 0.0
        %7756 = vmatprep.mubr.f32.mxu0 0.0
        %7757 = vmatmul.mubr.f32.gmra.mrb[0].mxu0 %v7688
        %v7758 = vpop.f32.mrb[0].mxu0
        %v7759 = vadd.f32 0.0, %v7758
        %v7760 = vpop.f32.mrb[0].mxu0
        %7761 = vdwg.mxu0
        %7763 = vrot.lane.b32.xlu0 %v7682, 96
        %v7764 = vpop.permute.xlu0 %7763
        %v7765 = vsel %vm330, %v7682, 0
        %v7767 = vsel %vm330, %v7764, 0
        %7769 = vmatprep.subr.mxu0 0.0
        %7770 = vmatpush1.xpose.msra.mxu0 %v7767
        %7771 = vmatprep.subr.mxu0 0.0
        %7772 = vmatpush1.xpose.msra.mxu0 0.0
        %7773 = vmatprep.subr.mxu0 0.0
        %7774 = vmatpush1.xpose.msra.mxu0 0.0
        %7775 = vmatprep.subr.mxu0 0.0
        %7776 = vmatpush1.xpose.msra.mxu0 0.0
        %7777 = vmatprep.subr.mxu0 0.0
        %7778 = vmatpush1.xpose.msra.mxu0 0.0
        %7779 = vmatprep.subr.mxu0 0.0
        %7780 = vmatpush1.xpose.msra.mxu0 0.0
        %7781 = vmatprep.subr.mxu0 0.0
        %7782 = vmatpush1.xpose.msra.mxu0 0.0
        %7783 = vmatprep.subr.mxu0 0.0
        %7784 = vmatpush1.xpose.msra.mxu0 0.0
        %7785 = vmatprep.subr.mxu0 0.0
        %7786 = vmatpush1.xpose.msra.mxu0 0.0
        %7787 = vmatprep.subr.mxu0 0.0
        %7788 = vmatpush1.xpose.msra.mxu0 0.0
        %7789 = vmatprep.subr.mxu0 0.0
        %7790 = vmatpush1.xpose.msra.mxu0 0.0
        %7791 = vmatprep.subr.mxu0 0.0
        %7792 = vmatpush1.xpose.msra.mxu0 0.0
        %7793 = vmatprep.subr.mxu0 0.0
        %7794 = vmatpush1.xpose.msra.mxu0 0.0
        %7795 = vmatprep.subr.mxu0 0.0
        %7796 = vmatpush1.xpose.msra.mxu0 0.0
        %7797 = vmatprep.subr.mxu0 0.0
        %7798 = vmatpush1.xpose.msra.mxu0 0.0
        %7799 = vmatprep.subr.mxu0 0.0
        %7800 = vmatpush1.xpose.msra.mxu0 0.0
        %7801 = vmatprep.subr.mxu0 0.0
        %7802 = vmatpush1.xpose.msra.mxu0 0.0
        %7803 = vmatprep.subr.mxu0 0.0
        %7804 = vmatpush1.xpose.msra.mxu0 0.0
        %7805 = vmatprep.subr.mxu0 0.0
        %7806 = vmatpush1.xpose.msra.mxu0 0.0
        %7807 = vmatprep.subr.mxu0 0.0
        %7808 = vmatpush1.xpose.msra.mxu0 0.0
        %7809 = vmatprep.subr.mxu0 0.0
        %7810 = vmatpush1.xpose.msra.mxu0 0.0
        %7811 = vmatprep.subr.mxu0 0.0
        %7812 = vmatpush1.xpose.msra.mxu0 0.0
        %7813 = vmatprep.subr.mxu0 0.0
        %7814 = vmatpush1.xpose.msra.mxu0 0.0
        %7815 = vmatprep.subr.mxu0 0.0
        %7816 = vmatpush1.xpose.msra.mxu0 0.0
        %7817 = vmatprep.subr.mxu0 0.0
        %7818 = vmatpush1.xpose.msra.mxu0 0.0
        %7819 = vmatprep.subr.mxu0 0.0
        %7820 = vmatpush1.xpose.msra.mxu0 0.0
        %7821 = vmatprep.subr.mxu0 0.0
        %7822 = vmatpush1.xpose.msra.mxu0 0.0
        %7823 = vmatprep.subr.mxu0 0.0
        %7824 = vmatpush1.xpose.msra.mxu0 0.0
        %7825 = vmatprep.subr.mxu0 0.0
        %7826 = vmatpush1.xpose.msra.mxu0 0.0
        %7827 = vmatprep.subr.mxu0 0.0
        %7828 = vmatpush1.xpose.msra.mxu0 0.0
        %7829 = vmatprep.subr.mxu0 0.0
        %7830 = vmatpush1.xpose.msra.mxu0 0.0
        %7831 = vmatprep.subr.mxu0 0.0
        %7832 = vmatpush1.xpose.msra.mxu0 0.0
        %7833 = vmatprep.mubr.f32.mxu0 0.0
        %7834 = vmatmul.mubr.f32.gmra.mrb[0].mxu0 %v7765
        %v7835 = vpop.f32.mrb[0].mxu0
        %v7836 = vadd.f32 0.0, %v7835
        %v7837 = vpop.f32.mrb[0].mxu0
        %7838 = vdwg.mxu0
        %7840 = vrot.lane.b32.xlu0 %v7683, 96
        %v7841 = vpop.permute.xlu0 %7840
        %v7842 = vsel %vm330, %v7683, 0
        %v7844 = vsel %vm330, %v7841, 0
        %7846 = vmatprep.subr.mxu0 0.0
        %7847 = vmatpush1.xpose.msra.mxu0 %v7844
        %7848 = vmatprep.subr.mxu0 0.0
        %7849 = vmatpush1.xpose.msra.mxu0 0.0
        %7850 = vmatprep.subr.mxu0 0.0
        %7851 = vmatpush1.xpose.msra.mxu0 0.0
        %7852 = vmatprep.subr.mxu0 0.0
        %7853 = vmatpush1.xpose.msra.mxu0 0.0
        %7854 = vmatprep.subr.mxu0 0.0
        %7855 = vmatpush1.xpose.msra.mxu0 0.0
        %7856 = vmatprep.subr.mxu0 0.0
        %7857 = vmatpush1.xpose.msra.mxu0 0.0
        %7858 = vmatprep.subr.mxu0 0.0
        %7859 = vmatpush1.xpose.msra.mxu0 0.0
        %7860 = vmatprep.subr.mxu0 0.0
        %7861 = vmatpush1.xpose.msra.mxu0 0.0
        %7862 = vmatprep.subr.mxu0 0.0
        %7863 = vmatpush1.xpose.msra.mxu0 0.0
        %7864 = vmatprep.subr.mxu0 0.0
        %7865 = vmatpush1.xpose.msra.mxu0 0.0
        %7866 = vmatprep.subr.mxu0 0.0
        %7867 = vmatpush1.xpose.msra.mxu0 0.0
        %7868 = vmatprep.subr.mxu0 0.0
        %7869 = vmatpush1.xpose.msra.mxu0 0.0
        %7870 = vmatprep.subr.mxu0 0.0
        %7871 = vmatpush1.xpose.msra.mxu0 0.0
        %7872 = vmatprep.subr.mxu0 0.0
        %7873 = vmatpush1.xpose.msra.mxu0 0.0
        %7874 = vmatprep.subr.mxu0 0.0
        %7875 = vmatpush1.xpose.msra.mxu0 0.0
        %7876 = vmatprep.subr.mxu0 0.0
        %7877 = vmatpush1.xpose.msra.mxu0 0.0
        %7878 = vmatprep.subr.mxu0 0.0
        %7879 = vmatpush1.xpose.msra.mxu0 0.0
        %7880 = vmatprep.subr.mxu0 0.0
        %7881 = vmatpush1.xpose.msra.mxu0 0.0
        %7882 = vmatprep.subr.mxu0 0.0
        %7883 = vmatpush1.xpose.msra.mxu0 0.0
        %7884 = vmatprep.subr.mxu0 0.0
        %7885 = vmatpush1.xpose.msra.mxu0 0.0
        %7886 = vmatprep.subr.mxu0 0.0
        %7887 = vmatpush1.xpose.msra.mxu0 0.0
        %7888 = vmatprep.subr.mxu0 0.0
        %7889 = vmatpush1.xpose.msra.mxu0 0.0
        %7890 = vmatprep.subr.mxu0 0.0
        %7891 = vmatpush1.xpose.msra.mxu0 0.0
        %7892 = vmatprep.subr.mxu0 0.0
        %7893 = vmatpush1.xpose.msra.mxu0 0.0
        %7894 = vmatprep.subr.mxu0 0.0
        %7895 = vmatpush1.xpose.msra.mxu0 0.0
        %7896 = vmatprep.subr.mxu0 0.0
        %7897 = vmatpush1.xpose.msra.mxu0 0.0
        %7898 = vmatprep.subr.mxu0 0.0
        %7899 = vmatpush1.xpose.msra.mxu0 0.0
        %7900 = vmatprep.subr.mxu0 0.0
        %7901 = vmatpush1.xpose.msra.mxu0 0.0
        %7902 = vmatprep.subr.mxu0 0.0
        %7903 = vmatpush1.xpose.msra.mxu0 0.0
        %7904 = vmatprep.subr.mxu0 0.0
        %7905 = vmatpush1.xpose.msra.mxu0 0.0
        %7906 = vmatprep.subr.mxu0 0.0
        %7907 = vmatpush1.xpose.msra.mxu0 0.0
        %7908 = vmatprep.subr.mxu0 0.0
        %7909 = vmatpush1.xpose.msra.mxu0 0.0
        %7910 = vmatprep.mubr.f32.mxu0 0.0
        %7911 = vmatmul.mubr.f32.gmra.mrb[0].mxu0 %v7842
        %v7912 = vpop.f32.mrb[0].mxu0
        %v7913 = vadd.f32 0.0, %v7912
        %v7914 = vpop.f32.mrb[0].mxu0
        %7915 = vdwg.mxu0
        %7917 = vrot.lane.b32.xlu0 %v7684, 96
        %v7918 = vpop.permute.xlu0 %7917
        %v7919 = vsel %vm330, %v7684, 0
        %v7921 = vsel %vm330, %v7918, 0
        %7923 = vmatprep.subr.mxu0 0.0
        %7924 = vmatpush1.xpose.msra.mxu0 %v7921
        %7925 = vmatprep.subr.mxu0 0.0
        %7926 = vmatpush1.xpose.msra.mxu0 0.0
        %7927 = vmatprep.subr.mxu0 0.0
        %7928 = vmatpush1.xpose.msra.mxu0 0.0
        %7929 = vmatprep.subr.mxu0 0.0
        %7930 = vmatpush1.xpose.msra.mxu0 0.0
        %7931 = vmatprep.subr.mxu0 0.0
        %7932 = vmatpush1.xpose.msra.mxu0 0.0
        %7933 = vmatprep.subr.mxu0 0.0
        %7934 = vmatpush1.xpose.msra.mxu0 0.0
        %7935 = vmatprep.subr.mxu0 0.0
        %7936 = vmatpush1.xpose.msra.mxu0 0.0
        %7937 = vmatprep.subr.mxu0 0.0
        %7938 = vmatpush1.xpose.msra.mxu0 0.0
        %7939 = vmatprep.subr.mxu0 0.0
        %7940 = vmatpush1.xpose.msra.mxu0 0.0
        %7941 = vmatprep.subr.mxu0 0.0
        %7942 = vmatpush1.xpose.msra.mxu0 0.0
        %7943 = vmatprep.subr.mxu0 0.0
        %7944 = vmatpush1.xpose.msra.mxu0 0.0
        %7945 = vmatprep.subr.mxu0 0.0
        %7946 = vmatpush1.xpose.msra.mxu0 0.0
        %7947 = vmatprep.subr.mxu0 0.0
        %7948 = vmatpush1.xpose.msra.mxu0 0.0
        %7949 = vmatprep.subr.mxu0 0.0
        %7950 = vmatpush1.xpose.msra.mxu0 0.0
        %7951 = vmatprep.subr.mxu0 0.0
        %7952 = vmatpush1.xpose.msra.mxu0 0.0
        %7953 = vmatprep.subr.mxu0 0.0
        %7954 = vmatpush1.xpose.msra.mxu0 0.0
        %7955 = vmatprep.subr.mxu0 0.0
        %7956 = vmatpush1.xpose.msra.mxu0 0.0
        %7957 = vmatprep.subr.mxu0 0.0
        %7958 = vmatpush1.xpose.msra.mxu0 0.0
        %7959 = vmatprep.subr.mxu0 0.0
        %7960 = vmatpush1.xpose.msra.mxu0 0.0
        %7961 = vmatprep.subr.mxu0 0.0
        %7962 = vmatpush1.xpose.msra.mxu0 0.0
        %7963 = vmatprep.subr.mxu0 0.0
        %7964 = vmatpush1.xpose.msra.mxu0 0.0
        %7965 = vmatprep.subr.mxu0 0.0
        %7966 = vmatpush1.xpose.msra.mxu0 0.0
        %7967 = vmatprep.subr.mxu0 0.0
        %7968 = vmatpush1.xpose.msra.mxu0 0.0
        %7969 = vmatprep.subr.mxu0 0.0
        %7970 = vmatpush1.xpose.msra.mxu0 0.0
        %7971 = vmatprep.subr.mxu0 0.0
        %7972 = vmatpush1.xpose.msra.mxu0 0.0
        %7973 = vmatprep.subr.mxu0 0.0
        %7974 = vmatpush1.xpose.msra.mxu0 0.0
        %7975 = vmatprep.subr.mxu0 0.0
        %7976 = vmatpush1.xpose.msra.mxu0 0.0
        %7977 = vmatprep.subr.mxu0 0.0
        %7978 = vmatpush1.xpose.msra.mxu0 0.0
        %7979 = vmatprep.subr.mxu0 0.0
        %7980 = vmatpush1.xpose.msra.mxu0 0.0
        %7981 = vmatprep.subr.mxu0 0.0
        %7982 = vmatpush1.xpose.msra.mxu0 0.0
        %7983 = vmatprep.subr.mxu0 0.0
        %7984 = vmatpush1.xpose.msra.mxu0 0.0
        %7985 = vmatprep.subr.mxu0 0.0
        %7986 = vmatpush1.xpose.msra.mxu0 0.0
        %7987 = vmatprep.mubr.f32.mxu0 0.0
        %7988 = vmatmul.mubr.f32.gmra.mrb[0].mxu0 %v7919
        %v7989 = vpop.f32.mrb[0].mxu0
        %v7990 = vadd.f32 0.0, %v7989
        %v7991 = vpop.f32.mrb[0].mxu0
        %7992 = vdwg.mxu0
        %v7993 = vmul.f32 %v7759, 0.17677669
        %v7994 = vmul.f32 %v7836, 0.17677669
        %v7995 = vmul.f32 %v7913, 0.17677669
        %v7996 = vmul.f32 %v7990, 0.17677669
        %v7997 = vsel %vm5653, %v7993, -inf
        %7998 = vmax.xlane.f32.xlu0 %v7997
        %v7999 = vpop.xlane.xlu0 %7998
        %v8000 = vsel %vm5653, %v7994, -inf
        %8001 = vmax.xlane.f32.xlu0 %v8000
        %v8002 = vpop.xlane.xlu0 %8001
        %v8003 = vsel %vm5653, %v7995, -inf
        %8004 = vmax.xlane.f32.xlu0 %v8003
        %v8005 = vpop.xlane.xlu0 %8004
        %v8006 = vsel %vm5653, %v7996, -inf
        %8007 = vmax.xlane.f32.xlu0 %v8006
        %v8008 = vpop.xlane.xlu0 %8007
        %v8009 = vsub.f32 %v7993, %v7999
        %v8010 = vsub.f32 %v7994, %v8002
        %v8011 = vsub.f32 %v7995, %v8005
        %v8012 = vsub.f32 %v7996, %v8008
        %v8013 = vmul.f32 %v8009, 1.442695
        %v8014 = vpow.pop %v8013
        %v8015 = vmul.f32 %v8010, 1.442695
        %v8016 = vpow.pop %v8015
        %v8017 = vmul.f32 %v8011, 1.442695
        %v8018 = vpow.pop %v8017
        %v8019 = vmul.f32 %v8012, 1.442695
        %v8020 = vpow.pop %v8019
        %v8021 = vsel %vm5653, %v8014, 0.0
        %8022 = vadd.xlane.f32.xlu0 %v8021
        %v8023 = vpop.xlane.xlu0 %8022
        %v8024 = vsel %vm5653, %v8016, 0.0
        %8025 = vadd.xlane.f32.xlu0 %v8024
        %v8026 = vpop.xlane.xlu0 %8025
        %v8027 = vsel %vm5653, %v8018, 0.0
        %8028 = vadd.xlane.f32.xlu0 %v8027
        %v8029 = vpop.xlane.xlu0 %8028
        %v8030 = vsel %vm5653, %v8020, 0.0
        %8031 = vadd.xlane.f32.xlu0 %v8030
        %v8032 = vpop.xlane.xlu0 %8031
        %v8033 = vrcp.pop %v8023
        %v8034 = vmul.f32 %v8014, %v8033
        %v8035 = vrcp.pop %v8026
        %v8036 = vmul.f32 %v8016, %v8035
        %v8037 = vrcp.pop %v8029
        %v8038 = vmul.f32 %v8018, %v8037
        %v8039 = vrcp.pop %v8032
        %v8040 = vmul.f32 %v8020, %v8039
        %8041 = vrot.lane.b32.xlu0 %v7681, 64
        %v8042 = vpop.permute.xlu0 %8041
        %v8045 = vsel %vm5653, %v8034, 0
        %8047 = vmatprep.subr.mxu0 0.0
        %8048 = vmatpush1.msra.mxu0 %v8042
        %8049 = vmatprep.subr.mxu0 0.0
        %8050 = vmatpush1.msra.mxu0 0.0
        %8051 = vmatprep.subr.mxu0 0.0
        %8052 = vmatpush1.msra.mxu0 0.0
        %8053 = vmatprep.subr.mxu0 0.0
        %8054 = vmatpush1.msra.mxu0 0.0
        %8055 = vmatprep.subr.mxu0 0.0
        %8056 = vmatpush1.msra.mxu0 0.0
        %8057 = vmatprep.subr.mxu0 0.0
        %8058 = vmatpush1.msra.mxu0 0.0
        %8059 = vmatprep.subr.mxu0 0.0
        %8060 = vmatpush1.msra.mxu0 0.0
        %8061 = vmatprep.subr.mxu0 0.0
        %8062 = vmatpush1.msra.mxu0 0.0
        %8063 = vmatprep.subr.mxu0 0.0
        %8064 = vmatpush1.msra.mxu0 0.0
        %8065 = vmatprep.subr.mxu0 0.0
        %8066 = vmatpush1.msra.mxu0 0.0
        %8067 = vmatprep.subr.mxu0 0.0
        %8068 = vmatpush1.msra.mxu0 0.0
        %8069 = vmatprep.subr.mxu0 0.0
        %8070 = vmatpush1.msra.mxu0 0.0
        %8071 = vmatprep.subr.mxu0 0.0
        %8072 = vmatpush1.msra.mxu0 0.0
        %8073 = vmatprep.subr.mxu0 0.0
        %8074 = vmatpush1.msra.mxu0 0.0
        %8075 = vmatprep.subr.mxu0 0.0
        %8076 = vmatpush1.msra.mxu0 0.0
        %8077 = vmatprep.subr.mxu0 0.0
        %8078 = vmatpush1.msra.mxu0 0.0
        %8079 = vmatprep.subr.mxu0 0.0
        %8080 = vmatpush1.msra.mxu0 0.0
        %8081 = vmatprep.subr.mxu0 0.0
        %8082 = vmatpush1.msra.mxu0 0.0
        %8083 = vmatprep.subr.mxu0 0.0
        %8084 = vmatpush1.msra.mxu0 0.0
        %8085 = vmatprep.subr.mxu0 0.0
        %8086 = vmatpush1.msra.mxu0 0.0
        %8087 = vmatprep.subr.mxu0 0.0
        %8088 = vmatpush1.msra.mxu0 0.0
        %8089 = vmatprep.subr.mxu0 0.0
        %8090 = vmatpush1.msra.mxu0 0.0
        %8091 = vmatprep.subr.mxu0 0.0
        %8092 = vmatpush1.msra.mxu0 0.0
        %8093 = vmatprep.subr.mxu0 0.0
        %8094 = vmatpush1.msra.mxu0 0.0
        %8095 = vmatprep.subr.mxu0 0.0
        %8096 = vmatpush1.msra.mxu0 0.0
        %8097 = vmatprep.subr.mxu0 0.0
        %8098 = vmatpush1.msra.mxu0 0.0
        %8099 = vmatprep.subr.mxu0 0.0
        %8100 = vmatpush1.msra.mxu0 0.0
        %8101 = vmatprep.subr.mxu0 0.0
        %8102 = vmatpush1.msra.mxu0 0.0
        %8103 = vmatprep.subr.mxu0 0.0
        %8104 = vmatpush1.msra.mxu0 0.0
        %8105 = vmatprep.subr.mxu0 0.0
        %8106 = vmatpush1.msra.mxu0 0.0
        %8107 = vmatprep.subr.mxu0 0.0
        %8108 = vmatpush1.msra.mxu0 0.0
        %8109 = vmatprep.subr.mxu0 0.0
        %8110 = vmatpush1.msra.mxu0 0.0
        %8111 = vmatprep.mubr.f32.mxu0 0.0
        %8112 = vmatmul.mubr.f32.gmra.mrb[0].mxu0 %v8045
        %v8113 = vpop.f32.mrb[0].mxu0
        %v8114 = vadd.f32 0.0, %v8113
        %v8115 = vpop.f32.mrb[0].mxu0
        %8116 = vdwg.mxu0
        %8117 = vrot.lane.b32.xlu0 %v7682, 64
        %v8118 = vpop.permute.xlu0 %8117
        %v8121 = vsel %vm5653, %v8036, 0
        %8123 = vmatprep.subr.mxu0 0.0
        %8124 = vmatpush1.msra.mxu0 %v8118
        %8125 = vmatprep.subr.mxu0 0.0
        %8126 = vmatpush1.msra.mxu0 0.0
        %8127 = vmatprep.subr.mxu0 0.0
        %8128 = vmatpush1.msra.mxu0 0.0
        %8129 = vmatprep.subr.mxu0 0.0
        %8130 = vmatpush1.msra.mxu0 0.0
        %8131 = vmatprep.subr.mxu0 0.0
        %8132 = vmatpush1.msra.mxu0 0.0
        %8133 = vmatprep.subr.mxu0 0.0
        %8134 = vmatpush1.msra.mxu0 0.0
        %8135 = vmatprep.subr.mxu0 0.0
        %8136 = vmatpush1.msra.mxu0 0.0
        %8137 = vmatprep.subr.mxu0 0.0
        %8138 = vmatpush1.msra.mxu0 0.0
        %8139 = vmatprep.subr.mxu0 0.0
        %8140 = vmatpush1.msra.mxu0 0.0
        %8141 = vmatprep.subr.mxu0 0.0
        %8142 = vmatpush1.msra.mxu0 0.0
        %8143 = vmatprep.subr.mxu0 0.0
        %8144 = vmatpush1.msra.mxu0 0.0
        %8145 = vmatprep.subr.mxu0 0.0
        %8146 = vmatpush1.msra.mxu0 0.0
        %8147 = vmatprep.subr.mxu0 0.0
        %8148 = vmatpush1.msra.mxu0 0.0
        %8149 = vmatprep.subr.mxu0 0.0
        %8150 = vmatpush1.msra.mxu0 0.0
        %8151 = vmatprep.subr.mxu0 0.0
        %8152 = vmatpush1.msra.mxu0 0.0
        %8153 = vmatprep.subr.mxu0 0.0
        %8154 = vmatpush1.msra.mxu0 0.0
        %8155 = vmatprep.subr.mxu0 0.0
        %8156 = vmatpush1.msra.mxu0 0.0
        %8157 = vmatprep.subr.mxu0 0.0
        %8158 = vmatpush1.msra.mxu0 0.0
        %8159 = vmatprep.subr.mxu0 0.0
        %8160 = vmatpush1.msra.mxu0 0.0
        %8161 = vmatprep.subr.mxu0 0.0
        %8162 = vmatpush1.msra.mxu0 0.0
        %8163 = vmatprep.subr.mxu0 0.0
        %8164 = vmatpush1.msra.mxu0 0.0
        %8165 = vmatprep.subr.mxu0 0.0
        %8166 = vmatpush1.msra.mxu0 0.0
        %8167 = vmatprep.subr.mxu0 0.0
        %8168 = vmatpush1.msra.mxu0 0.0
        %8169 = vmatprep.subr.mxu0 0.0
        %8170 = vmatpush1.msra.mxu0 0.0
        %8171 = vmatprep.subr.mxu0 0.0
        %8172 = vmatpush1.msra.mxu0 0.0
        %8173 = vmatprep.subr.mxu0 0.0
        %8174 = vmatpush1.msra.mxu0 0.0
        %8175 = vmatprep.subr.mxu0 0.0
        %8176 = vmatpush1.msra.mxu0 0.0
        %8177 = vmatprep.subr.mxu0 0.0
        %8178 = vmatpush1.msra.mxu0 0.0
        %8179 = vmatprep.subr.mxu0 0.0
        %8180 = vmatpush1.msra.mxu0 0.0
        %8181 = vmatprep.subr.mxu0 0.0
        %8182 = vmatpush1.msra.mxu0 0.0
        %8183 = vmatprep.subr.mxu0 0.0
        %8184 = vmatpush1.msra.mxu0 0.0
        %8185 = vmatprep.subr.mxu0 0.0
        %8186 = vmatpush1.msra.mxu0 0.0
        %8187 = vmatprep.mubr.f32.mxu0 0.0
        %8188 = vmatmul.mubr.f32.gmra.mrb[0].mxu0 %v8121
        %v8189 = vpop.f32.mrb[0].mxu0
        %v8190 = vadd.f32 0.0, %v8189
        %v8191 = vpop.f32.mrb[0].mxu0
        %8192 = vdwg.mxu0
        %8193 = vrot.lane.b32.xlu0 %v7683, 64
        %v8194 = vpop.permute.xlu0 %8193
        %v8197 = vsel %vm5653, %v8038, 0
        %8199 = vmatprep.subr.mxu0 0.0
        %8200 = vmatpush1.msra.mxu0 %v8194
        %8201 = vmatprep.subr.mxu0 0.0
        %8202 = vmatpush1.msra.mxu0 0.0
        %8203 = vmatprep.subr.mxu0 0.0
        %8204 = vmatpush1.msra.mxu0 0.0
        %8205 = vmatprep.subr.mxu0 0.0
        %8206 = vmatpush1.msra.mxu0 0.0
        %8207 = vmatprep.subr.mxu0 0.0
        %8208 = vmatpush1.msra.mxu0 0.0
        %8209 = vmatprep.subr.mxu0 0.0
        %8210 = vmatpush1.msra.mxu0 0.0
        %8211 = vmatprep.subr.mxu0 0.0
        %8212 = vmatpush1.msra.mxu0 0.0
        %8213 = vmatprep.subr.mxu0 0.0
        %8214 = vmatpush1.msra.mxu0 0.0
        %8215 = vmatprep.subr.mxu0 0.0
        %8216 = vmatpush1.msra.mxu0 0.0
        %8217 = vmatprep.subr.mxu0 0.0
        %8218 = vmatpush1.msra.mxu0 0.0
        %8219 = vmatprep.subr.mxu0 0.0
        %8220 = vmatpush1.msra.mxu0 0.0
        %8221 = vmatprep.subr.mxu0 0.0
        %8222 = vmatpush1.msra.mxu0 0.0
        %8223 = vmatprep.subr.mxu0 0.0
        %8224 = vmatpush1.msra.mxu0 0.0
        %8225 = vmatprep.subr.mxu0 0.0
        %8226 = vmatpush1.msra.mxu0 0.0
        %8227 = vmatprep.subr.mxu0 0.0
        %8228 = vmatpush1.msra.mxu0 0.0
        %8229 = vmatprep.subr.mxu0 0.0
        %8230 = vmatpush1.msra.mxu0 0.0
        %8231 = vmatprep.subr.mxu0 0.0
        %8232 = vmatpush1.msra.mxu0 0.0
        %8233 = vmatprep.subr.mxu0 0.0
        %8234 = vmatpush1.msra.mxu0 0.0
        %8235 = vmatprep.subr.mxu0 0.0
        %8236 = vmatpush1.msra.mxu0 0.0
        %8237 = vmatprep.subr.mxu0 0.0
        %8238 = vmatpush1.msra.mxu0 0.0
        %8239 = vmatprep.subr.mxu0 0.0
        %8240 = vmatpush1.msra.mxu0 0.0
        %8241 = vmatprep.subr.mxu0 0.0
        %8242 = vmatpush1.msra.mxu0 0.0
        %8243 = vmatprep.subr.mxu0 0.0
        %8244 = vmatpush1.msra.mxu0 0.0
        %8245 = vmatprep.subr.mxu0 0.0
        %8246 = vmatpush1.msra.mxu0 0.0
        %8247 = vmatprep.subr.mxu0 0.0
        %8248 = vmatpush1.msra.mxu0 0.0
        %8249 = vmatprep.subr.mxu0 0.0
        %8250 = vmatpush1.msra.mxu0 0.0
        %8251 = vmatprep.subr.mxu0 0.0
        %8252 = vmatpush1.msra.mxu0 0.0
        %8253 = vmatprep.subr.mxu0 0.0
        %8254 = vmatpush1.msra.mxu0 0.0
        %8255 = vmatprep.subr.mxu0 0.0
        %8256 = vmatpush1.msra.mxu0 0.0
        %8257 = vmatprep.subr.mxu0 0.0
        %8258 = vmatpush1.msra.mxu0 0.0
        %8259 = vmatprep.subr.mxu0 0.0
        %8260 = vmatpush1.msra.mxu0 0.0
        %8261 = vmatprep.subr.mxu0 0.0
        %8262 = vmatpush1.msra.mxu0 0.0
        %8263 = vmatprep.mubr.f32.mxu0 0.0
        %8264 = vmatmul.mubr.f32.gmra.mrb[0].mxu0 %v8197
        %v8265 = vpop.f32.mrb[0].mxu0
        %v8266 = vadd.f32 0.0, %v8265
        %v8267 = vpop.f32.mrb[0].mxu0
        %8268 = vdwg.mxu0
        %8269 = vrot.lane.b32.xlu0 %v7684, 64
        %v8270 = vpop.permute.xlu0 %8269
        %v8273 = vsel %vm5653, %v8040, 0
        %8275 = vmatprep.subr.mxu0 0.0
        %8276 = vmatpush1.msra.mxu0 %v8270
        %8277 = vmatprep.subr.mxu0 0.0
        %8278 = vmatpush1.msra.mxu0 0.0
        %8279 = vmatprep.subr.mxu0 0.0
        %8280 = vmatpush1.msra.mxu0 0.0
        %8281 = vmatprep.subr.mxu0 0.0
        %8282 = vmatpush1.msra.mxu0 0.0
        %8283 = vmatprep.subr.mxu0 0.0
        %8284 = vmatpush1.msra.mxu0 0.0
        %8285 = vmatprep.subr.mxu0 0.0
        %8286 = vmatpush1.msra.mxu0 0.0
        %8287 = vmatprep.subr.mxu0 0.0
        %8288 = vmatpush1.msra.mxu0 0.0
        %8289 = vmatprep.subr.mxu0 0.0
        %8290 = vmatpush1.msra.mxu0 0.0
        %8291 = vmatprep.subr.mxu0 0.0
        %8292 = vmatpush1.msra.mxu0 0.0
        %8293 = vmatprep.subr.mxu0 0.0
        %8294 = vmatpush1.msra.mxu0 0.0
        %8295 = vmatprep.subr.mxu0 0.0
        %8296 = vmatpush1.msra.mxu0 0.0
        %8297 = vmatprep.subr.mxu0 0.0
        %8298 = vmatpush1.msra.mxu0 0.0
        %8299 = vmatprep.subr.mxu0 0.0
        %8300 = vmatpush1.msra.mxu0 0.0
        %8301 = vmatprep.subr.mxu0 0.0
        %8302 = vmatpush1.msra.mxu0 0.0
        %8303 = vmatprep.subr.mxu0 0.0
        %8304 = vmatpush1.msra.mxu0 0.0
        %8305 = vmatprep.subr.mxu0 0.0
        %8306 = vmatpush1.msra.mxu0 0.0
        %8307 = vmatprep.subr.mxu0 0.0
        %8308 = vmatpush1.msra.mxu0 0.0
        %8309 = vmatprep.subr.mxu0 0.0
        %8310 = vmatpush1.msra.mxu0 0.0
        %8311 = vmatprep.subr.mxu0 0.0
        %8312 = vmatpush1.msra.mxu0 0.0
        %8313 = vmatprep.subr.mxu0 0.0
        %8314 = vmatpush1.msra.mxu0 0.0
        %8315 = vmatprep.subr.mxu0 0.0
        %8316 = vmatpush1.msra.mxu0 0.0
        %8317 = vmatprep.subr.mxu0 0.0
        %8318 = vmatpush1.msra.mxu0 0.0
        %8319 = vmatprep.subr.mxu0 0.0
        %8320 = vmatpush1.msra.mxu0 0.0
        %8321 = vmatprep.subr.mxu0 0.0
        %8322 = vmatpush1.msra.mxu0 0.0
        %8323 = vmatprep.subr.mxu0 0.0
        %8324 = vmatpush1.msra.mxu0 0.0
        %8325 = vmatprep.subr.mxu0 0.0
        %8326 = vmatpush1.msra.mxu0 0.0
        %8327 = vmatprep.subr.mxu0 0.0
        %8328 = vmatpush1.msra.mxu0 0.0
        %8329 = vmatprep.subr.mxu0 0.0
        %8330 = vmatpush1.msra.mxu0 0.0
        %8331 = vmatprep.subr.mxu0 0.0
        %8332 = vmatpush1.msra.mxu0 0.0
        %8333 = vmatprep.subr.mxu0 0.0
        %8334 = vmatpush1.msra.mxu0 0.0
        %8335 = vmatprep.subr.mxu0 0.0
        %8336 = vmatpush1.msra.mxu0 0.0
        %8337 = vmatprep.subr.mxu0 0.0
        %8338 = vmatpush1.msra.mxu0 0.0
        %8339 = vmatprep.mubr.f32.mxu0 0.0
        %8340 = vmatmul.mubr.f32.gmra.mrb[0].mxu0 %v8273
        %v8341 = vpop.f32.mrb[0].mxu0
        %v8342 = vadd.f32 0.0, %v8341
        %v8343 = vpop.f32.mrb[0].mxu0
        %8344 = vdwg.mxu0
        %v8345 = vpack.c.bf16 %v8114, %v8114
        %v8346 = vpack.c.bf16 %v8190, %v8190
        %v8347 = vpack.c.bf16 %v8266, %v8266
        %v8348 = vpack.c.bf16 %v8342, %v8342
        %v8353 = vunpack.c.l.b16 %v6999
        %v8354 = vunpack.c.l.b16 %v7000
        %v8355 = vunpack.c.l.b16 %v7001
        %v8356 = vunpack.c.l.b16 %v7002
        %v8357 = vpack.c.b16 %v8354, %v8353
        %v8358 = vpack.c.b16 %v8356, %v8355
        %v8362 = vsel %vm330, %v8345, 0
        %8364 = vmatprep.subr.bf16.mxu0 0
        %8365 = vmatpush1.bf16.msra.mxu0 %v8357
        %8366 = vmatprep.subr.bf16.mxu0 0
        %8367 = vmatpush1.bf16.msra.mxu0 %v8358
        %8368 = vmatprep.subr.bf16.mxu0 0
        %8369 = vmatpush1.bf16.msra.mxu0 0
        %8370 = vmatprep.subr.bf16.mxu0 0
        %8371 = vmatpush1.bf16.msra.mxu0 0
        %8372 = vmatprep.subr.bf16.mxu0 0
        %8373 = vmatpush1.bf16.msra.mxu0 0
        %8374 = vmatprep.subr.bf16.mxu0 0
        %8375 = vmatpush1.bf16.msra.mxu0 0
        %8376 = vmatprep.subr.bf16.mxu0 0
        %8377 = vmatpush1.bf16.msra.mxu0 0
        %8378 = vmatprep.subr.bf16.mxu0 0
        %8379 = vmatpush1.bf16.msra.mxu0 0
        %8380 = vmatprep.subr.bf16.mxu0 0
        %8381 = vmatpush1.bf16.msra.mxu0 0
        %8382 = vmatprep.subr.bf16.mxu0 0
        %8383 = vmatpush1.bf16.msra.mxu0 0
        %8384 = vmatprep.subr.bf16.mxu0 0
        %8385 = vmatpush1.bf16.msra.mxu0 0
        %8386 = vmatprep.subr.bf16.mxu0 0
        %8387 = vmatpush1.bf16.msra.mxu0 0
        %8388 = vmatprep.subr.bf16.mxu0 0
        %8389 = vmatpush1.bf16.msra.mxu0 0
        %8390 = vmatprep.subr.bf16.mxu0 0
        %8391 = vmatpush1.bf16.msra.mxu0 0
        %8392 = vmatprep.subr.bf16.mxu0 0
        %8393 = vmatpush1.bf16.msra.mxu0 0
        %8394 = vmatprep.subr.bf16.mxu0 0
        %8395 = vmatpush1.bf16.msra.mxu0 0
        %8396 = vmatprep.mubr.bf16.mxu0 0
        %8397 = vmatmul.mubr.bf16.gmra.mrb[0].mxu0 %v8362
        %v8398 = vpop.f32.mrb[0].mxu0
        %v8399 = vadd.f32 0.0, %v8398
        %v8400 = vpop.f32.mrb[0].mxu0
        %v8401 = vpop.f32.mrb[0].mxu0
        %v8402 = vpop.f32.mrb[0].mxu0
        %8403 = vdwg.mxu0
        %v8405 = vsel %vm330, %v8346, 0
        %8407 = vmatprep.subr.bf16.mxu0 0
        %8408 = vmatpush1.bf16.msra.mxu0 %v8357
        %8409 = vmatprep.subr.bf16.mxu0 0
        %8410 = vmatpush1.bf16.msra.mxu0 %v8358
        %8411 = vmatprep.subr.bf16.mxu0 0
        %8412 = vmatpush1.bf16.msra.mxu0 0
        %8413 = vmatprep.subr.bf16.mxu0 0
        %8414 = vmatpush1.bf16.msra.mxu0 0
        %8415 = vmatprep.subr.bf16.mxu0 0
        %8416 = vmatpush1.bf16.msra.mxu0 0
        %8417 = vmatprep.subr.bf16.mxu0 0
        %8418 = vmatpush1.bf16.msra.mxu0 0
        %8419 = vmatprep.subr.bf16.mxu0 0
        %8420 = vmatpush1.bf16.msra.mxu0 0
        %8421 = vmatprep.subr.bf16.mxu0 0
        %8422 = vmatpush1.bf16.msra.mxu0 0
        %8423 = vmatprep.subr.bf16.mxu0 0
        %8424 = vmatpush1.bf16.msra.mxu0 0
        %8425 = vmatprep.subr.bf16.mxu0 0
        %8426 = vmatpush1.bf16.msra.mxu0 0
        %8427 = vmatprep.subr.bf16.mxu0 0
        %8428 = vmatpush1.bf16.msra.mxu0 0
        %8429 = vmatprep.subr.bf16.mxu0 0
        %8430 = vmatpush1.bf16.msra.mxu0 0
        %8431 = vmatprep.subr.bf16.mxu0 0
        %8432 = vmatpush1.bf16.msra.mxu0 0
        %8433 = vmatprep.subr.bf16.mxu0 0
        %8434 = vmatpush1.bf16.msra.mxu0 0
        %8435 = vmatprep.subr.bf16.mxu0 0
        %8436 = vmatpush1.bf16.msra.mxu0 0
        %8437 = vmatprep.subr.bf16.mxu0 0
        %8438 = vmatpush1.bf16.msra.mxu0 0
        %8439 = vmatprep.mubr.bf16.mxu0 0
        %8440 = vmatmul.mubr.bf16.gmra.mrb[0].mxu0 %v8405
        %v8441 = vpop.f32.mrb[0].mxu0
        %v8442 = vadd.f32 0.0, %v8441
        %v8443 = vpop.f32.mrb[0].mxu0
        %v8444 = vpop.f32.mrb[0].mxu0
        %v8445 = vpop.f32.mrb[0].mxu0
        %8446 = vdwg.mxu0
        %v8448 = vsel %vm330, %v8347, 0
        %8450 = vmatprep.subr.bf16.mxu0 0
        %8451 = vmatpush1.bf16.msra.mxu0 %v8357
        %8452 = vmatprep.subr.bf16.mxu0 0
        %8453 = vmatpush1.bf16.msra.mxu0 %v8358
        %8454 = vmatprep.subr.bf16.mxu0 0
        %8455 = vmatpush1.bf16.msra.mxu0 0
        %8456 = vmatprep.subr.bf16.mxu0 0
        %8457 = vmatpush1.bf16.msra.mxu0 0
        %8458 = vmatprep.subr.bf16.mxu0 0
        %8459 = vmatpush1.bf16.msra.mxu0 0
        %8460 = vmatprep.subr.bf16.mxu0 0
        %8461 = vmatpush1.bf16.msra.mxu0 0
        %8462 = vmatprep.subr.bf16.mxu0 0
        %8463 = vmatpush1.bf16.msra.mxu0 0
        %8464 = vmatprep.subr.bf16.mxu0 0
        %8465 = vmatpush1.bf16.msra.mxu0 0
        %8466 = vmatprep.subr.bf16.mxu0 0
        %8467 = vmatpush1.bf16.msra.mxu0 0
        %8468 = vmatprep.subr.bf16.mxu0 0
        %8469 = vmatpush1.bf16.msra.mxu0 0
        %8470 = vmatprep.subr.bf16.mxu0 0
        %8471 = vmatpush1.bf16.msra.mxu0 0
        %8472 = vmatprep.subr.bf16.mxu0 0
        %8473 = vmatpush1.bf16.msra.mxu0 0
        %8474 = vmatprep.subr.bf16.mxu0 0
        %8475 = vmatpush1.bf16.msra.mxu0 0
        %8476 = vmatprep.subr.bf16.mxu0 0
        %8477 = vmatpush1.bf16.msra.mxu0 0
        %8478 = vmatprep.subr.bf16.mxu0 0
        %8479 = vmatpush1.bf16.msra.mxu0 0
        %8480 = vmatprep.subr.bf16.mxu0 0
        %8481 = vmatpush1.bf16.msra.mxu0 0
        %8482 = vmatprep.mubr.bf16.mxu0 0
        %8483 = vmatmul.mubr.bf16.gmra.mrb[0].mxu0 %v8448
        %v8484 = vpop.f32.mrb[0].mxu0
        %v8485 = vadd.f32 0.0, %v8484
        %v8486 = vpop.f32.mrb[0].mxu0
        %v8487 = vpop.f32.mrb[0].mxu0
        %v8488 = vpop.f32.mrb[0].mxu0
        %8489 = vdwg.mxu0
        %v8491 = vsel %vm330, %v8348, 0
        %8493 = vmatprep.subr.bf16.mxu0 0
        %8494 = vmatpush1.bf16.msra.mxu0 %v8357
        %8495 = vmatprep.subr.bf16.mxu0 0
        %8496 = vmatpush1.bf16.msra.mxu0 %v8358
        %8497 = vmatprep.subr.bf16.mxu0 0
        %8498 = vmatpush1.bf16.msra.mxu0 0
        %8499 = vmatprep.subr.bf16.mxu0 0
        %8500 = vmatpush1.bf16.msra.mxu0 0
        %8501 = vmatprep.subr.bf16.mxu0 0
        %8502 = vmatpush1.bf16.msra.mxu0 0
        %8503 = vmatprep.subr.bf16.mxu0 0
        %8504 = vmatpush1.bf16.msra.mxu0 0
        %8505 = vmatprep.subr.bf16.mxu0 0
        %8506 = vmatpush1.bf16.msra.mxu0 0
        %8507 = vmatprep.subr.bf16.mxu0 0
        %8508 = vmatpush1.bf16.msra.mxu0 0
        %8509 = vmatprep.subr.bf16.mxu0 0
        %8510 = vmatpush1.bf16.msra.mxu0 0
        %8511 = vmatprep.subr.bf16.mxu0 0
        %8512 = vmatpush1.bf16.msra.mxu0 0
        %8513 = vmatprep.subr.bf16.mxu0 0
        %8514 = vmatpush1.bf16.msra.mxu0 0
        %8515 = vmatprep.subr.bf16.mxu0 0
        %8516 = vmatpush1.bf16.msra.mxu0 0
        %8517 = vmatprep.subr.bf16.mxu0 0
        %8518 = vmatpush1.bf16.msra.mxu0 0
        %8519 = vmatprep.subr.bf16.mxu0 0
        %8520 = vmatpush1.bf16.msra.mxu0 0
        %8521 = vmatprep.subr.bf16.mxu0 0
        %8522 = vmatpush1.bf16.msra.mxu0 0
        %8523 = vmatprep.subr.bf16.mxu0 0
        %8524 = vmatpush1.bf16.msra.mxu0 0
        %8525 = vmatprep.mubr.bf16.mxu0 0
        %8526 = vmatmul.mubr.bf16.gmra.mrb[0].mxu0 %v8491
        %v8527 = vpop.f32.mrb[0].mxu0
        %v8528 = vadd.f32 0.0, %v8527
        %v8529 = vpop.f32.mrb[0].mxu0
        %v8530 = vpop.f32.mrb[0].mxu0
        %v8531 = vpop.f32.mrb[0].mxu0
        %8532 = vdwg.mxu0
        %v8533 = vadd.f32 %v6982, %v8399
        %v8534 = vadd.f32 %v6983, %v8442
        %v8535 = vadd.f32 %v6984, %v8485
        %v8536 = vadd.f32 %v6985, %v8528
        %v8537 = vlaneseq
        %v8538 = vshrl.u32 %v8537, 7
        %v8539 = vsub.s32 1, %v8538
        %v8540 = vrot.slane %v308, %v8539
        %v8541 = vadd.f32 %v8533, %v8540
        %v8542 = vadd.f32 %v8534, %v8540
        %v8543 = vadd.f32 %v8535, %v8540
        %v8544 = vadd.f32 %v8536, %v8540
        %8545 = vset.pattern.permute.xlu0 0
        %8546 = vperm.xlu0 %8545, %v308
        %v8547 = vpop.permute.xlu0 %8546
        %v8548 = vrot.slane %v308, 2
        %v8549 = vrot.slane %v8547, 3
        %v8551 = vsel %vm330, %v8548, 0
        %v8554 = vsel %vm330, %v8541, 0
        %8556 = vmatprep.subr.mxu0 0.0
        %8557 = vmatpush1.xpose.msra.mxu0 %v8554
        %8558 = vmatprep.subr.mxu0 0.0
        %8559 = vmatpush1.xpose.msra.mxu0 0.0
        %8560 = vmatprep.subr.mxu0 0.0
        %8561 = vmatpush1.xpose.msra.mxu0 0.0
        %8562 = vmatprep.subr.mxu0 0.0
        %8563 = vmatpush1.xpose.msra.mxu0 0.0
        %8564 = vmatprep.subr.mxu0 0.0
        %8565 = vmatpush1.xpose.msra.mxu0 0.0
        %8566 = vmatprep.subr.mxu0 0.0
        %8567 = vmatpush1.xpose.msra.mxu0 0.0
        %8568 = vmatprep.subr.mxu0 0.0
        %8569 = vmatpush1.xpose.msra.mxu0 0.0
        %8570 = vmatprep.subr.mxu0 0.0
        %8571 = vmatpush1.xpose.msra.mxu0 0.0
        %8572 = vmatprep.subr.mxu0 0.0
        %8573 = vmatpush1.xpose.msra.mxu0 0.0
        %8574 = vmatprep.subr.mxu0 0.0
        %8575 = vmatpush1.xpose.msra.mxu0 0.0
        %8576 = vmatprep.subr.mxu0 0.0
        %8577 = vmatpush1.xpose.msra.mxu0 0.0
        %8578 = vmatprep.subr.mxu0 0.0
        %8579 = vmatpush1.xpose.msra.mxu0 0.0
        %8580 = vmatprep.subr.mxu0 0.0
        %8581 = vmatpush1.xpose.msra.mxu0 0.0
        %8582 = vmatprep.subr.mxu0 0.0
        %8583 = vmatpush1.xpose.msra.mxu0 0.0
        %8584 = vmatprep.subr.mxu0 0.0
        %8585 = vmatpush1.xpose.msra.mxu0 0.0
        %8586 = vmatprep.subr.mxu0 0.0
        %8587 = vmatpush1.xpose.msra.mxu0 0.0
        %8588 = vmatprep.subr.mxu0 0.0
        %8589 = vmatpush1.xpose.msra.mxu0 0.0
        %8590 = vmatprep.subr.mxu0 0.0
        %8591 = vmatpush1.xpose.msra.mxu0 0.0
        %8592 = vmatprep.subr.mxu0 0.0
        %8593 = vmatpush1.xpose.msra.mxu0 0.0
        %8594 = vmatprep.subr.mxu0 0.0
        %8595 = vmatpush1.xpose.msra.mxu0 0.0
        %8596 = vmatprep.subr.mxu0 0.0
        %8597 = vmatpush1.xpose.msra.mxu0 0.0
        %8598 = vmatprep.subr.mxu0 0.0
        %8599 = vmatpush1.xpose.msra.mxu0 0.0
        %8600 = vmatprep.subr.mxu0 0.0
        %8601 = vmatpush1.xpose.msra.mxu0 0.0
        %8602 = vmatprep.subr.mxu0 0.0
        %8603 = vmatpush1.xpose.msra.mxu0 0.0
        %8604 = vmatprep.subr.mxu0 0.0
        %8605 = vmatpush1.xpose.msra.mxu0 0.0
        %8606 = vmatprep.subr.mxu0 0.0
        %8607 = vmatpush1.xpose.msra.mxu0 0.0
        %8608 = vmatprep.subr.mxu0 0.0
        %8609 = vmatpush1.xpose.msra.mxu0 0.0
        %8610 = vmatprep.subr.mxu0 0.0
        %8611 = vmatpush1.xpose.msra.mxu0 0.0
        %8612 = vmatprep.subr.mxu0 0.0
        %8613 = vmatpush1.xpose.msra.mxu0 0.0
        %8614 = vmatprep.subr.mxu0 0.0
        %8615 = vmatpush1.xpose.msra.mxu0 0.0
        %8616 = vmatprep.subr.mxu0 0.0
        %8617 = vmatpush1.xpose.msra.mxu0 0.0
        %8618 = vmatprep.subr.mxu0 0.0
        %8619 = vmatpush1.xpose.msra.mxu0 0.0
        %8620 = vmatprep.mubr.f32.mxu0 0.0
        %8621 = vmatmul.mubr.f32.gmra.mrb[0].mxu0 %v8551
        %v8622 = vpop.f32.mrb[0].mxu0
        %v8623 = vadd.f32 %v8549, %v8622
        %v8624 = vpop.f32.mrb[0].mxu0
        %8625 = vdwg.mxu0
        %v8627 = vsel %vm330, %v8542, 0
        %8629 = vmatprep.subr.mxu0 0.0
        %8630 = vmatpush1.xpose.msra.mxu0 %v8627
        %8631 = vmatprep.subr.mxu0 0.0
        %8632 = vmatpush1.xpose.msra.mxu0 0.0
        %8633 = vmatprep.subr.mxu0 0.0
        %8634 = vmatpush1.xpose.msra.mxu0 0.0
        %8635 = vmatprep.subr.mxu0 0.0
        %8636 = vmatpush1.xpose.msra.mxu0 0.0
        %8637 = vmatprep.subr.mxu0 0.0
        %8638 = vmatpush1.xpose.msra.mxu0 0.0
        %8639 = vmatprep.subr.mxu0 0.0
        %8640 = vmatpush1.xpose.msra.mxu0 0.0
        %8641 = vmatprep.subr.mxu0 0.0
        %8642 = vmatpush1.xpose.msra.mxu0 0.0
        %8643 = vmatprep.subr.mxu0 0.0
        %8644 = vmatpush1.xpose.msra.mxu0 0.0
        %8645 = vmatprep.subr.mxu0 0.0
        %8646 = vmatpush1.xpose.msra.mxu0 0.0
        %8647 = vmatprep.subr.mxu0 0.0
        %8648 = vmatpush1.xpose.msra.mxu0 0.0
        %8649 = vmatprep.subr.mxu0 0.0
        %8650 = vmatpush1.xpose.msra.mxu0 0.0
        %8651 = vmatprep.subr.mxu0 0.0
        %8652 = vmatpush1.xpose.msra.mxu0 0.0
        %8653 = vmatprep.subr.mxu0 0.0
        %8654 = vmatpush1.xpose.msra.mxu0 0.0
        %8655 = vmatprep.subr.mxu0 0.0
        %8656 = vmatpush1.xpose.msra.mxu0 0.0
        %8657 = vmatprep.subr.mxu0 0.0
        %8658 = vmatpush1.xpose.msra.mxu0 0.0
        %8659 = vmatprep.subr.mxu0 0.0
        %8660 = vmatpush1.xpose.msra.mxu0 0.0
        %8661 = vmatprep.subr.mxu0 0.0
        %8662 = vmatpush1.xpose.msra.mxu0 0.0
        %8663 = vmatprep.subr.mxu0 0.0
        %8664 = vmatpush1.xpose.msra.mxu0 0.0
        %8665 = vmatprep.subr.mxu0 0.0
        %8666 = vmatpush1.xpose.msra.mxu0 0.0
        %8667 = vmatprep.subr.mxu0 0.0
        %8668 = vmatpush1.xpose.msra.mxu0 0.0
        %8669 = vmatprep.subr.mxu0 0.0
        %8670 = vmatpush1.xpose.msra.mxu0 0.0
        %8671 = vmatprep.subr.mxu0 0.0
        %8672 = vmatpush1.xpose.msra.mxu0 0.0
        %8673 = vmatprep.subr.mxu0 0.0
        %8674 = vmatpush1.xpose.msra.mxu0 0.0
        %8675 = vmatprep.subr.mxu0 0.0
        %8676 = vmatpush1.xpose.msra.mxu0 0.0
        %8677 = vmatprep.subr.mxu0 0.0
        %8678 = vmatpush1.xpose.msra.mxu0 0.0
        %8679 = vmatprep.subr.mxu0 0.0
        %8680 = vmatpush1.xpose.msra.mxu0 0.0
        %8681 = vmatprep.subr.mxu0 0.0
        %8682 = vmatpush1.xpose.msra.mxu0 0.0
        %8683 = vmatprep.subr.mxu0 0.0
        %8684 = vmatpush1.xpose.msra.mxu0 0.0
        %8685 = vmatprep.subr.mxu0 0.0
        %8686 = vmatpush1.xpose.msra.mxu0 0.0
        %8687 = vmatprep.subr.mxu0 0.0
        %8688 = vmatpush1.xpose.msra.mxu0 0.0
        %8689 = vmatprep.subr.mxu0 0.0
        %8690 = vmatpush1.xpose.msra.mxu0 0.0
        %8691 = vmatprep.subr.mxu0 0.0
        %8692 = vmatpush1.xpose.msra.mxu0 0.0
        %8693 = vmatprep.mubr.f32.mxu0 0.0
        %8694 = vmatmul.mubr.f32.gmra.mrb[0].mxu0 %v8551
        %v8695 = vpop.f32.mrb[0].mxu0
        %v8696 = vadd.f32 %v8549, %v8695
        %v8697 = vpop.f32.mrb[0].mxu0
        %8698 = vdwg.mxu0
        %v8700 = vsel %vm330, %v8543, 0
        %8702 = vmatprep.subr.mxu0 0.0
        %8703 = vmatpush1.xpose.msra.mxu0 %v8700
        %8704 = vmatprep.subr.mxu0 0.0
        %8705 = vmatpush1.xpose.msra.mxu0 0.0
        %8706 = vmatprep.subr.mxu0 0.0
        %8707 = vmatpush1.xpose.msra.mxu0 0.0
        %8708 = vmatprep.subr.mxu0 0.0
        %8709 = vmatpush1.xpose.msra.mxu0 0.0
        %8710 = vmatprep.subr.mxu0 0.0
        %8711 = vmatpush1.xpose.msra.mxu0 0.0
        %8712 = vmatprep.subr.mxu0 0.0
        %8713 = vmatpush1.xpose.msra.mxu0 0.0
        %8714 = vmatprep.subr.mxu0 0.0
        %8715 = vmatpush1.xpose.msra.mxu0 0.0
        %8716 = vmatprep.subr.mxu0 0.0
        %8717 = vmatpush1.xpose.msra.mxu0 0.0
        %8718 = vmatprep.subr.mxu0 0.0
        %8719 = vmatpush1.xpose.msra.mxu0 0.0
        %8720 = vmatprep.subr.mxu0 0.0
        %8721 = vmatpush1.xpose.msra.mxu0 0.0
        %8722 = vmatprep.subr.mxu0 0.0
        %8723 = vmatpush1.xpose.msra.mxu0 0.0
        %8724 = vmatprep.subr.mxu0 0.0
        %8725 = vmatpush1.xpose.msra.mxu0 0.0
        %8726 = vmatprep.subr.mxu0 0.0
        %8727 = vmatpush1.xpose.msra.mxu0 0.0
        %8728 = vmatprep.subr.mxu0 0.0
        %8729 = vmatpush1.xpose.msra.mxu0 0.0
        %8730 = vmatprep.subr.mxu0 0.0
        %8731 = vmatpush1.xpose.msra.mxu0 0.0
        %8732 = vmatprep.subr.mxu0 0.0
        %8733 = vmatpush1.xpose.msra.mxu0 0.0
        %8734 = vmatprep.subr.mxu0 0.0
        %8735 = vmatpush1.xpose.msra.mxu0 0.0
        %8736 = vmatprep.subr.mxu0 0.0
        %8737 = vmatpush1.xpose.msra.mxu0 0.0
        %8738 = vmatprep.subr.mxu0 0.0
        %8739 = vmatpush1.xpose.msra.mxu0 0.0
        %8740 = vmatprep.subr.mxu0 0.0
        %8741 = vmatpush1.xpose.msra.mxu0 0.0
        %8742 = vmatprep.subr.mxu0 0.0
        %8743 = vmatpush1.xpose.msra.mxu0 0.0
        %8744 = vmatprep.subr.mxu0 0.0
        %8745 = vmatpush1.xpose.msra.mxu0 0.0
        %8746 = vmatprep.subr.mxu0 0.0
        %8747 = vmatpush1.xpose.msra.mxu0 0.0
        %8748 = vmatprep.subr.mxu0 0.0
        %8749 = vmatpush1.xpose.msra.mxu0 0.0
        %8750 = vmatprep.subr.mxu0 0.0
        %8751 = vmatpush1.xpose.msra.mxu0 0.0
        %8752 = vmatprep.subr.mxu0 0.0
        %8753 = vmatpush1.xpose.msra.mxu0 0.0
        %8754 = vmatprep.subr.mxu0 0.0
        %8755 = vmatpush1.xpose.msra.mxu0 0.0
        %8756 = vmatprep.subr.mxu0 0.0
        %8757 = vmatpush1.xpose.msra.mxu0 0.0
        %8758 = vmatprep.subr.mxu0 0.0
        %8759 = vmatpush1.xpose.msra.mxu0 0.0
        %8760 = vmatprep.subr.mxu0 0.0
        %8761 = vmatpush1.xpose.msra.mxu0 0.0
        %8762 = vmatprep.subr.mxu0 0.0
        %8763 = vmatpush1.xpose.msra.mxu0 0.0
        %8764 = vmatprep.subr.mxu0 0.0
        %8765 = vmatpush1.xpose.msra.mxu0 0.0
        %8766 = vmatprep.mubr.f32.mxu0 0.0
        %8767 = vmatmul.mubr.f32.gmra.mrb[0].mxu0 %v8551
        %v8768 = vpop.f32.mrb[0].mxu0
        %v8769 = vadd.f32 %v8549, %v8768
        %v8770 = vpop.f32.mrb[0].mxu0
        %8771 = vdwg.mxu0
        %v8773 = vsel %vm330, %v8544, 0
        %8775 = vmatprep.subr.mxu0 0.0
        %8776 = vmatpush1.xpose.msra.mxu0 %v8773
        %8777 = vmatprep.subr.mxu0 0.0
        %8778 = vmatpush1.xpose.msra.mxu0 0.0
        %8779 = vmatprep.subr.mxu0 0.0
        %8780 = vmatpush1.xpose.msra.mxu0 0.0
        %8781 = vmatprep.subr.mxu0 0.0
        %8782 = vmatpush1.xpose.msra.mxu0 0.0
        %8783 = vmatprep.subr.mxu0 0.0
        %8784 = vmatpush1.xpose.msra.mxu0 0.0
        %8785 = vmatprep.subr.mxu0 0.0
        %8786 = vmatpush1.xpose.msra.mxu0 0.0
        %8787 = vmatprep.subr.mxu0 0.0
        %8788 = vmatpush1.xpose.msra.mxu0 0.0
        %8789 = vmatprep.subr.mxu0 0.0
        %8790 = vmatpush1.xpose.msra.mxu0 0.0
        %8791 = vmatprep.subr.mxu0 0.0
        %8792 = vmatpush1.xpose.msra.mxu0 0.0
        %8793 = vmatprep.subr.mxu0 0.0
        %8794 = vmatpush1.xpose.msra.mxu0 0.0
        %8795 = vmatprep.subr.mxu0 0.0
        %8796 = vmatpush1.xpose.msra.mxu0 0.0
        %8797 = vmatprep.subr.mxu0 0.0
        %8798 = vmatpush1.xpose.msra.mxu0 0.0
        %8799 = vmatprep.subr.mxu0 0.0
        %8800 = vmatpush1.xpose.msra.mxu0 0.0
        %8801 = vmatprep.subr.mxu0 0.0
        %8802 = vmatpush1.xpose.msra.mxu0 0.0
        %8803 = vmatprep.subr.mxu0 0.0
        %8804 = vmatpush1.xpose.msra.mxu0 0.0
        %8805 = vmatprep.subr.mxu0 0.0
        %8806 = vmatpush1.xpose.msra.mxu0 0.0
        %8807 = vmatprep.subr.mxu0 0.0
        %8808 = vmatpush1.xpose.msra.mxu0 0.0
        %8809 = vmatprep.subr.mxu0 0.0
        %8810 = vmatpush1.xpose.msra.mxu0 0.0
        %8811 = vmatprep.subr.mxu0 0.0
        %8812 = vmatpush1.xpose.msra.mxu0 0.0
        %8813 = vmatprep.subr.mxu0 0.0
        %8814 = vmatpush1.xpose.msra.mxu0 0.0
        %8815 = vmatprep.subr.mxu0 0.0
        %8816 = vmatpush1.xpose.msra.mxu0 0.0
        %8817 = vmatprep.subr.mxu0 0.0
        %8818 = vmatpush1.xpose.msra.mxu0 0.0
        %8819 = vmatprep.subr.mxu0 0.0
        %8820 = vmatpush1.xpose.msra.mxu0 0.0
        %8821 = vmatprep.subr.mxu0 0.0
        %8822 = vmatpush1.xpose.msra.mxu0 0.0
        %8823 = vmatprep.subr.mxu0 0.0
        %8824 = vmatpush1.xpose.msra.mxu0 0.0
        %8825 = vmatprep.subr.mxu0 0.0
        %8826 = vmatpush1.xpose.msra.mxu0 0.0
        %8827 = vmatprep.subr.mxu0 0.0
        %8828 = vmatpush1.xpose.msra.mxu0 0.0
        %8829 = vmatprep.subr.mxu0 0.0
        %8830 = vmatpush1.xpose.msra.mxu0 0.0
        %8831 = vmatprep.subr.mxu0 0.0
        %8832 = vmatpush1.xpose.msra.mxu0 0.0
        %8833 = vmatprep.subr.mxu0 0.0
        %8834 = vmatpush1.xpose.msra.mxu0 0.0
        %8835 = vmatprep.subr.mxu0 0.0
        %8836 = vmatpush1.xpose.msra.mxu0 0.0
        %8837 = vmatprep.subr.mxu0 0.0
        %8838 = vmatpush1.xpose.msra.mxu0 0.0
        %8839 = vmatprep.mubr.f32.mxu0 0.0
        %8840 = vmatmul.mubr.f32.gmra.mrb[0].mxu0 %v8551
        %v8841 = vpop.f32.mrb[0].mxu0
        %v8842 = vadd.f32 %v8549, %v8841
        %v8843 = vpop.f32.mrb[0].mxu0
        %8844 = vdwg.mxu0
        %vm8845 = vcmask 57344
        %8846 = vst.msk [vmem:[%s298] sm:$0x1] %vm8845, %v8623
        %8847 = vst.msk [vmem:[%s298 + $0x1] sm:$0x1] %vm8845, %v8696
        %8848 = vst.msk [vmem:[%s298 + $0x2] sm:$0x1] %vm8845, %v8769
        %8849 = vst.msk [vmem:[%s298 + $0x3] sm:$0x1] %vm8845, %v8842
        %s8850 = sand.u32 %s142, 1
        %s8851 = scalar_lea.sflag [#allocation4], %s8850
        %s8852 = sand.u32 %s142, 1
        %s8853 = smul.addr %s8852, 4
        %s8854 = scalar_lea.vmem [#allocation11], %s8853
        // Predicated region
        $region61: #{stf_informer_stack_forward.1} parent=39 // pred_check
          %p8855 = pneg %p152
        $region62: #{stf_informer_stack_forward.1} parent=39 // pred_check_branch
          %8857 = sbr.rel (%p8855) target = $region64
        $region63: #{stf_informer_stack_forward.1} parent=39 // pred_region
          %s8858 = smul.u32 4, %s24
          %s8860 = ssub.s32 64, 64
          %8861 = vsyncadd %s8851, %s8860
          %s8862 = smul.addr %s8858, 16
          %s8863 = scalar_lea.hbm %s5, %s8862
          %s8864 = sshll.u32 %s8854, 4
          %s8865 = int_to_ptr.vmem [resolvable:$true] %s8864
          %8870 = dma.vmem_to_hbm [thread:$0]  %s8865, 64, %s8863, %s8851, 16, 16, 1
        $region64: #{stf_informer_stack_forward.1} parent=39 // pred_fallthru
          _
      $region40: #{stf_informer_stack_forward.1} parent=5 // pred_fallthru
        _
      %p8871 = scmp.le.s32.totalorder 2, %s19
      // Predicated region
      $region65: #{stf_informer_stack_forward.1} parent=5 // pred_check
        %p8872 = pneg %p8871
      $region66: #{stf_informer_stack_forward.1} parent=5 // pred_check_branch
        %8874 = sbr.rel (%p8872) target = $region68
      $region67: #{stf_informer_stack_forward.1} parent=5 // pred_region
        %s8875 = ssub.s32 %s19, 2
        // Predicated region
        $region69: #{stf_informer_stack_forward.1} parent=67 // pred_check
          %p8876 = pneg %p158
        $region70: #{stf_informer_stack_forward.1} parent=67 // pred_check_branch
          %8878 = sbr.rel (%p8876) target = $region72
        $region71: #{stf_informer_stack_forward.1} parent=67 // pred_region
          %s8879 = sand.u32 %s143, 1
          %s8880 = scalar_lea.sflag [#allocation4], %s8879
          %s8881 = sand.u32 %s143, 1
          %s8882 = smul.addr %s8881, 4
          %s8883 = scalar_lea.vmem [#allocation11], %s8882
          %8884 = dma.done %s8880, 64
        $region72: #{stf_informer_stack_forward.1} parent=67 // pred_fallthru
          _
      $region68: #{stf_informer_stack_forward.1} parent=5 // pred_fallthru
        _
    $region6: #{stf_informer_stack_forward.1} parent=1 // loop_footer
      %s23 = sadd.s32 1, %s19
    $region7: #{stf_informer_stack_forward.1} parent=1 // loop_footer_branch
      %18 = sbr.rel target = $region3
    $region8: #{stf_informer_stack_forward.1} parent=1 // loop_exit
      _
    %8885 = vsyncpa [#allocation3], 1
    %s8886 = scalar_lea.sflag [#allocation3], 1
    %8887 = vsyncpa %s8886, 1
    %8888 = vsyncpa [#allocation6], 1
    %8889 = vsyncpa [#allocation9], 1
    %8890 = vsyncpa [#allocation4], 1
    %s8891 = scalar_lea.sflag [#allocation4], 1
    %8892 = vsyncpa %s8891, 1

</llo_original>
